<compile_context>
chip_gen: v5e
topology: v5e:2x2
jax: 0.10.0
libtpu: 0.0.40
codegen_flags: <defaults>
</compile_context>

<pallas_src>
import jax
import jax.numpy as jnp
from jax.experimental import pallas as pl
from jax.experimental.pallas import tpu as pltpu

EPS = 1e-5


# ---------------------------------------------------------------------------
# Pallas kernel: stride-1 VALID conv (tap-wise MXU matmuls) + bias + activation
# ---------------------------------------------------------------------------
def _make_conv_kernel(K, Ho, Wo, act):
    def kernel(x_ref, w_ref, b_ref, o_ref):
        # x_ref: (1, Hp, Wp, Cin)   padded/dilated input, one batch element
        # w_ref: (K*K, Cin, TCo)    conv taps for this Cout tile (BN folded in)
        # b_ref: (1, TCo)           fused bias (f32)
        # o_ref: (1, Ho, Wo, TCo)
        cin = x_ref.shape[-1]
        tco = w_ref.shape[-1]
        acc = jnp.zeros((Ho * Wo, tco), jnp.float32)
        for kh in range(K):
            for kw in range(K):
                xs = x_ref[0, kh:kh + Ho, kw:kw + Wo, :].reshape(Ho * Wo, cin)
                acc = acc + jnp.dot(xs, w_ref[kh * K + kw],
                                    preferred_element_type=jnp.float32)
        y = acc + b_ref[...]
        if act == "relu":
            y = jnp.maximum(y, 0.0)
        else:  # sigmoid
            y = 1.0 / (1.0 + jnp.exp(-y))
        o_ref[0] = y.reshape(Ho, Wo, tco).astype(o_ref.dtype)

    return kernel


def _conv_valid(xp, w_taps, bias, act, out_dtype):
    """xp: (B, Hp, Wp, Cin) NHWC; w_taps: (K*K, Cin, Cout); bias: (1, Cout) f32."""
    B, Hp, Wp, Cin = xp.shape
    KK, _, Cout = w_taps.shape
    K = int(round(KK ** 0.5))
    Ho, Wo = Hp - K + 1, Wp - K + 1

    # Lane-dense Cout tile that also keeps the (f32) weight block double-bufferable.
    if Cout % 256 == 0:
        tco = 256
    elif Cout % 128 == 0:
        tco = 128
    else:
        tco = Cout

    grid = (Cout // tco, B)  # batch innermost: weight tile stays VMEM-resident

    return pl.pallas_call(
        _make_conv_kernel(K, Ho, Wo, act),
        out_shape=jax.ShapeDtypeStruct((B, Ho, Wo, Cout), out_dtype),
        grid_spec=pltpu.PrefetchScalarGridSpec(
            num_scalar_prefetch=0,
            grid=grid,
            in_specs=[
                pl.BlockSpec((1, Hp, Wp, Cin), lambda j, b: (b, 0, 0, 0)),
                pl.BlockSpec((KK, Cin, tco), lambda j, b: (0, 0, j)),
                pl.BlockSpec((1, tco), lambda j, b: (0, j)),
            ],
            out_specs=pl.BlockSpec((1, Ho, Wo, tco), lambda j, b: (b, 0, 0, j)),
        ),
        compiler_params=pltpu.CompilerParams(
            dimension_semantics=("parallel", "parallel"),
            vmem_limit_bytes=48 * 1024 * 1024,
        ),
    )(xp, w_taps, bias)


def _conv_transpose_layer(x, w_eq, bias, *, stride, padding, out_pad, act, out_dtype):
    """ConvTranspose2d == stride-1 VALID conv over the zero-dilated, padded input."""
    K = w_eq.shape[0]
    lo = K - 1 - padding
    hi = K - 1 - padding + out_pad
    cfg = [(0, 0, 0), (lo, hi, stride - 1), (lo, hi, stride - 1), (0, 0, 0)]
    xp = jax.lax.pad(x, jnp.zeros((), x.dtype), cfg)
    w_taps = w_eq.reshape(K * K, w_eq.shape[2], w_eq.shape[3])
    return _conv_valid(xp, w_taps, bias, act, out_dtype)


# ---------------------------------------------------------------------------
# Weight preparation (wrapper-side constant folding)
# ---------------------------------------------------------------------------
def _flip_taps(w_pt):
    # PyTorch ConvTranspose2d weight (Cin, Cout, K, K) -> equivalent stride-1 conv taps
    # (K, K, Cin, Cout):  taps[kh, kw, ci, co] = w_pt[ci, co, K-1-kh, K-1-kw]
    return jnp.transpose(w_pt[:, :, ::-1, ::-1], (2, 3, 0, 1))


def _bn_scale_shift(bn):
    gamma, beta, mean, var = bn
    s = gamma / jnp.sqrt(var + EPS)
    return s, beta - s * mean


def resnet_decoder2_forward(x_nchw, params, compute_dtype=jnp.bfloat16):
    f32 = jnp.float32
    x = jnp.transpose(x_nchw, (0, 2, 3, 1)).astype(compute_dtype)   # NCHW -> NHWC

    def fused_post_bn(layer):
        # conv -> BN(eval) -> ReLU: fold BN scale into weight columns, shift into bias.
        w = _flip_taps(params[layer + "_w"].astype(f32))
        s, t = _bn_scale_shift(params[layer + "_bn"])
        w = (w * s[None, None, None, :]).astype(compute_dtype)
        bias = (s * params[layer + "_b"] + t).astype(f32)[None, :]
        return w, bias

    for layer, stride, out_pad in (("ct1", 2, 1), ("ct2", 2, 1), ("ct3", 2, 1), ("ct4", 1, 0)):
        w, b = fused_post_bn(layer)
        x = _conv_transpose_layer(x, w, b, stride=stride, padding=1, out_pad=out_pad,
                                  act="relu", out_dtype=compute_dtype)

    # convTrans5: Upsample(x2 nearest) -> BN -> ConvTranspose2d -> Sigmoid
    x = jnp.repeat(jnp.repeat(x, 2, axis=1), 2, axis=2)
    s5, t5 = _bn_scale_shift(params["ct5_bn"])
    x = (x.astype(f32) * s5[None, None, None, :] + t5[None, None, None, :]).astype(compute_dtype)
    w5 = _flip_taps(params["ct5_w"].astype(f32)).astype(compute_dtype)
    b5 = params["ct5_b"].astype(f32)[None, :]
    x = _conv_transpose_layer(x, w5, b5, stride=2, padding=3, out_pad=1,
                              act="sigmoid", out_dtype=f32)

    return jnp.transpose(x, (0, 3, 1, 2))   # NHWC -> NCHW, matches PyTorch output


# ---------------------------------------------------------------------------
# Pure-JAX (XLA) reference — eval-mode BN, matches the PyTorch forward
# ---------------------------------------------------------------------------
def resnet_decoder2_reference(x, params):
    def convT(h, w, b, stride, padding, out_pad):
        k = w.shape[-1]
        rhs = jnp.transpose(w[:, :, ::-1, ::-1], (1, 0, 2, 3))     # (Cout, Cin, K, K)
        pad = (k - 1 - padding, k - 1 - padding + out_pad)
        y = jax.lax.conv_general_dilated(
            h, rhs, window_strides=(1, 1), padding=[pad, pad],
            lhs_dilation=(stride, stride),
            dimension_numbers=("NCHW", "OIHW", "NCHW"),
            precision=jax.lax.Precision.HIGHEST)
        return y + b[None, :, None, None]

    def bn(h, stats):
        s, t = _bn_scale_shift(stats)
        return h * s[None, :, None, None] + t[None, :, None, None]

    h = x.astype(jnp.float32)
    h = jax.nn.relu(bn(convT(h, params["ct1_w"], params["ct1_b"], 2, 1, 1), params["ct1_bn"]))
    h = jax.nn.relu(bn(convT(h, params["ct2_w"], params["ct2_b"], 2, 1, 1), params["ct2_bn"]))
    h = jax.nn.relu(bn(convT(h, params["ct3_w"], params["ct3_b"], 2, 1, 1), params["ct3_bn"]))
    h = jax.nn.relu(bn(convT(h, params["ct4_w"], params["ct4_b"], 1, 1, 0), params["ct4_bn"]))
    h = jnp.repeat(jnp.repeat(h, 2, axis=2), 2, axis=3)
    h = bn(h, params["ct5_bn"])
    h = convT(h, params["ct5_w"], params["ct5_b"], 2, 3, 1)
    return jax.nn.sigmoid(h)


def make_params(key):
    layer_cfg = (("ct1", 1024, 1024, 3), ("ct2", 1024, 512, 3), ("ct3", 512, 256, 3),
                 ("ct4", 256, 64, 3), ("ct5", 64, 3, 7))
    params = {}
    keys = jax.random.split(key, len(layer_cfg))
    for (name, cin, cout, k), kk in zip(layer_cfg, keys):
        kw_, kb_, kg_, kbe_, km_, kv_ = jax.random.split(kk, 6)
        std = 2.0 / (cin * k * k) ** 0.5
        params[name + "_w"] = std * jax.random.normal(kw_, (cin, cout, k, k), jnp.float32)
        params[name + "_b"] = 0.2 * jax.random.normal(kb_, (cout,), jnp.float32)
        nbn = cin if name == "ct5" else cout   # ct5's BatchNorm precedes its conv (64 ch)
        params[name + "_bn"] = (
            1.0 + 0.1 * jax.random.normal(kg_, (nbn,), jnp.float32),
            0.2 * jax.random.normal(kbe_, (nbn,), jnp.float32),
            0.1 * jax.random.normal(km_, (nbn,), jnp.float32),
            1.0 + 0.2 * jnp.abs(jax.random.normal(kv_, (nbn,), jnp.float32)),
        )
    return params


if __name__ == "__main__":
    key = jax.random.PRNGKey(0)
    k_x, k_p = jax.random.split(key)

    # Channel widths are fixed by the module (1024 -> 1024 -> 512 -> 256 -> 64 -> 3);
    # keep the spatial extent small for the smoke test.
    B, H, W = 2, 2, 2
    x = jax.random.normal(k_x, (B, 1024, H, W), jnp.float32)
    params = make_params(k_p)

    ref = jax.block_until_ready(resnet_decoder2_reference(x, params))

    # float32 path: tight correctness check against the pure-JAX reference.
    out_f32 = jax.block_until_ready(resnet_decoder2_forward(x, params, jnp.float32))
    assert out_f32.shape == (B, 3, 64, 64), out_f32.shape
    err32 = float(jnp.max(jnp.abs(out_f32 - ref)))
    assert err32 < 2e-3, ("f32 mismatch", err32)

    # bfloat16 path (default, HBM-bandwidth-friendly): loose check.
    out_bf16 = jax.block_until_ready(resnet_decoder2_forward(x, params, jnp.bfloat16))
    errbf = float(jnp.max(jnp.abs(out_bf16 - ref)))
    assert errbf < 4e-2, ("bf16 mismatch", errbf)

    print("KERNEL_OK")
</pallas_src>

<mosaic_0001>
module attributes {stable_mosaic.version = 11 : i64} {
  func.func @kernel(%arg0: i32, %arg1: i32, %arg2: memref<1x6x6x1024xf32, #tpu.memory_space<vmem>>, %arg3: memref<9x1024x256xf32, #tpu.memory_space<vmem>>, %arg4: memref<1x256xf32, #tpu.memory_space<vmem>>, %arg5: memref<1x4x4x256xf32, #tpu.memory_space<vmem>>) attributes {dimension_semantics = [#tpu.dimension_semantics<parallel>, #tpu.dimension_semantics<parallel>], iteration_bounds = array<i64: 4, 2>, scalar_prefetch = 0 : i64, scratch_operands = 0 : i64, tpu.core_type = #tpu.core_type<tc>, window_params = [{transform_indices = @transform_0, window_bounds = array<i64: 1, 6, 6, 1024>}, {transform_indices = @transform_1, window_bounds = array<i64: 9, 1024, 256>}, {transform_indices = @transform_2, window_bounds = array<i64: 1, 256>}, {transform_indices = @transform_3, window_bounds = array<i64: 1, 4, 4, 256>}]} {
    %cst = arith.constant 0.000000e+00 : f32
    %0 = vector.broadcast %cst : f32 to vector<16x256xf32>
    %c0 = arith.constant 0 : index
    %c0_0 = arith.constant 0 : index
    %c0_1 = arith.constant 0 : index
    %c0_2 = arith.constant 0 : index
    %1 = vector.load %arg2[%c0, %c0_0, %c0_1, %c0_2] : memref<1x6x6x1024xf32, #tpu.memory_space<vmem>>, vector<1x4x4x1024xf32>
    %2 = vector.shape_cast %1 : vector<1x4x4x1024xf32> to vector<4x4x1024xf32>
    %3 = vector.shape_cast %2 : vector<4x4x1024xf32> to vector<16x1024xf32>
    %c0_3 = arith.constant 0 : index
    %c0_4 = arith.constant 0 : index
    %c0_5 = arith.constant 0 : index
    %4 = vector.load %arg3[%c0_3, %c0_4, %c0_5] : memref<9x1024x256xf32, #tpu.memory_space<vmem>>, vector<1x1024x256xf32>
    %5 = vector.shape_cast %4 : vector<1x1024x256xf32> to vector<1024x256xf32>
    %cst_6 = arith.constant dense<0.000000e+00> : vector<16x256xf32>
    %6 = tpu.matmul %3, %5, %cst_6 {dimension_numbers = #tpu.dot_dimension_numbers<[1], [0], [0], [1], [0, 0, 1, 1], [], []>} : vector<16x1024xf32>, vector<1024x256xf32>, vector<16x256xf32> -> vector<16x256xf32>
    %7 = arith.addf %0, %6 : vector<16x256xf32>
    %c0_7 = arith.constant 0 : index
    %c0_8 = arith.constant 0 : index
    %c1 = arith.constant 1 : index
    %c0_9 = arith.constant 0 : index
    %8 = vector.load %arg2[%c0_7, %c0_8, %c1, %c0_9] : memref<1x6x6x1024xf32, #tpu.memory_space<vmem>>, vector<1x4x4x1024xf32>
    %9 = vector.shape_cast %8 : vector<1x4x4x1024xf32> to vector<4x4x1024xf32>
    %10 = vector.shape_cast %9 : vector<4x4x1024xf32> to vector<16x1024xf32>
    %c1_10 = arith.constant 1 : index
    %c0_11 = arith.constant 0 : index
    %c0_12 = arith.constant 0 : index
    %11 = vector.load %arg3[%c1_10, %c0_11, %c0_12] : memref<9x1024x256xf32, #tpu.memory_space<vmem>>, vector<1x1024x256xf32>
    %12 = vector.shape_cast %11 : vector<1x1024x256xf32> to vector<1024x256xf32>
    %cst_13 = arith.constant dense<0.000000e+00> : vector<16x256xf32>
    %13 = tpu.matmul %10, %12, %cst_13 {dimension_numbers = #tpu.dot_dimension_numbers<[1], [0], [0], [1], [0, 0, 1, 1], [], []>} : vector<16x1024xf32>, vector<1024x256xf32>, vector<16x256xf32> -> vector<16x256xf32>
    %14 = arith.addf %7, %13 : vector<16x256xf32>
    %c0_14 = arith.constant 0 : index
    %c0_15 = arith.constant 0 : index
    %c2 = arith.constant 2 : index
    %c0_16 = arith.constant 0 : index
    %15 = vector.load %arg2[%c0_14, %c0_15, %c2, %c0_16] : memref<1x6x6x1024xf32, #tpu.memory_space<vmem>>, vector<1x4x4x1024xf32>
    %16 = vector.shape_cast %15 : vector<1x4x4x1024xf32> to vector<4x4x1024xf32>
    %17 = vector.shape_cast %16 : vector<4x4x1024xf32> to vector<16x1024xf32>
    %c2_17 = arith.constant 2 : index
    %c0_18 = arith.constant 0 : index
    %c0_19 = arith.constant 0 : index
    %18 = vector.load %arg3[%c2_17, %c0_18, %c0_19] : memref<9x1024x256xf32, #tpu.memory_space<vmem>>, vector<1x1024x256xf32>
    %19 = vector.shape_cast %18 : vector<1x1024x256xf32> to vector<1024x256xf32>
    %cst_20 = arith.constant dense<0.000000e+00> : vector<16x256xf32>
    %20 = tpu.matmul %17, %19, %cst_20 {dimension_numbers = #tpu.dot_dimension_numbers<[1], [0], [0], [1], [0, 0, 1, 1], [], []>} : vector<16x1024xf32>, vector<1024x256xf32>, vector<16x256xf32> -> vector<16x256xf32>
    %21 = arith.addf %14, %20 : vector<16x256xf32>
    %c0_21 = arith.constant 0 : index
    %c1_22 = arith.constant 1 : index
    %c0_23 = arith.constant 0 : index
    %c0_24 = arith.constant 0 : index
    %22 = vector.load %arg2[%c0_21, %c1_22, %c0_23, %c0_24] : memref<1x6x6x1024xf32, #tpu.memory_space<vmem>>, vector<1x4x4x1024xf32>
    %23 = vector.shape_cast %22 : vector<1x4x4x1024xf32> to vector<4x4x1024xf32>
    %24 = vector.shape_cast %23 : vector<4x4x1024xf32> to vector<16x1024xf32>
    %c3 = arith.constant 3 : index
    %c0_25 = arith.constant 0 : index
    %c0_26 = arith.constant 0 : index
    %25 = vector.load %arg3[%c3, %c0_25, %c0_26] : memref<9x1024x256xf32, #tpu.memory_space<vmem>>, vector<1x1024x256xf32>
    %26 = vector.shape_cast %25 : vector<1x1024x256xf32> to vector<1024x256xf32>
    %cst_27 = arith.constant dense<0.000000e+00> : vector<16x256xf32>
    %27 = tpu.matmul %24, %26, %cst_27 {dimension_numbers = #tpu.dot_dimension_numbers<[1], [0], [0], [1], [0, 0, 1, 1], [], []>} : vector<16x1024xf32>, vector<1024x256xf32>, vector<16x256xf32> -> vector<16x256xf32>
    %28 = arith.addf %21, %27 : vector<16x256xf32>
    %c0_28 = arith.constant 0 : index
    %c1_29 = arith.constant 1 : index
    %c1_30 = arith.constant 1 : index
    %c0_31 = arith.constant 0 : index
    %29 = vector.load %arg2[%c0_28, %c1_29, %c1_30, %c0_31] : memref<1x6x6x1024xf32, #tpu.memory_space<vmem>>, vector<1x4x4x1024xf32>
    %30 = vector.shape_cast %29 : vector<1x4x4x1024xf32> to vector<4x4x1024xf32>
    %31 = vector.shape_cast %30 : vector<4x4x1024xf32> to vector<16x1024xf32>
    %c4 = arith.constant 4 : index
    %c0_32 = arith.constant 0 : index
    %c0_33 = arith.constant 0 : index
    %32 = vector.load %arg3[%c4, %c0_32, %c0_33] : memref<9x1024x256xf32, #tpu.memory_space<vmem>>, vector<1x1024x256xf32>
    %33 = vector.shape_cast %32 : vector<1x1024x256xf32> to vector<1024x256xf32>
    %cst_34 = arith.constant dense<0.000000e+00> : vector<16x256xf32>
    %34 = tpu.matmul %31, %33, %cst_34 {dimension_numbers = #tpu.dot_dimension_numbers<[1], [0], [0], [1], [0, 0, 1, 1], [], []>} : vector<16x1024xf32>, vector<1024x256xf32>, vector<16x256xf32> -> vector<16x256xf32>
    %35 = arith.addf %28, %34 : vector<16x256xf32>
    %c0_35 = arith.constant 0 : index
    %c1_36 = arith.constant 1 : index
    %c2_37 = arith.constant 2 : index
    %c0_38 = arith.constant 0 : index
    %36 = vector.load %arg2[%c0_35, %c1_36, %c2_37, %c0_38] : memref<1x6x6x1024xf32, #tpu.memory_space<vmem>>, vector<1x4x4x1024xf32>
    %37 = vector.shape_cast %36 : vector<1x4x4x1024xf32> to vector<4x4x1024xf32>
    %38 = vector.shape_cast %37 : vector<4x4x1024xf32> to vector<16x1024xf32>
    %c5 = arith.constant 5 : index
    %c0_39 = arith.constant 0 : index
    %c0_40 = arith.constant 0 : index
    %39 = vector.load %arg3[%c5, %c0_39, %c0_40] : memref<9x1024x256xf32, #tpu.memory_space<vmem>>, vector<1x1024x256xf32>
    %40 = vector.shape_cast %39 : vector<1x1024x256xf32> to vector<1024x256xf32>
    %cst_41 = arith.constant dense<0.000000e+00> : vector<16x256xf32>
    %41 = tpu.matmul %38, %40, %cst_41 {dimension_numbers = #tpu.dot_dimension_numbers<[1], [0], [0], [1], [0, 0, 1, 1], [], []>} : vector<16x1024xf32>, vector<1024x256xf32>, vector<16x256xf32> -> vector<16x256xf32>
    %42 = arith.addf %35, %41 : vector<16x256xf32>
    %c0_42 = arith.constant 0 : index
    %c2_43 = arith.constant 2 : index
    %c0_44 = arith.constant 0 : index
    %c0_45 = arith.constant 0 : index
    %43 = vector.load %arg2[%c0_42, %c2_43, %c0_44, %c0_45] : memref<1x6x6x1024xf32, #tpu.memory_space<vmem>>, vector<1x4x4x1024xf32>
    %44 = vector.shape_cast %43 : vector<1x4x4x1024xf32> to vector<4x4x1024xf32>
    %45 = vector.shape_cast %44 : vector<4x4x1024xf32> to vector<16x1024xf32>
    %c6 = arith.constant 6 : index
    %c0_46 = arith.constant 0 : index
    %c0_47 = arith.constant 0 : index
    %46 = vector.load %arg3[%c6, %c0_46, %c0_47] : memref<9x1024x256xf32, #tpu.memory_space<vmem>>, vector<1x1024x256xf32>
    %47 = vector.shape_cast %46 : vector<1x1024x256xf32> to vector<1024x256xf32>
    %cst_48 = arith.constant dense<0.000000e+00> : vector<16x256xf32>
    %48 = tpu.matmul %45, %47, %cst_48 {dimension_numbers = #tpu.dot_dimension_numbers<[1], [0], [0], [1], [0, 0, 1, 1], [], []>} : vector<16x1024xf32>, vector<1024x256xf32>, vector<16x256xf32> -> vector<16x256xf32>
    %49 = arith.addf %42, %48 : vector<16x256xf32>
    %c0_49 = arith.constant 0 : index
    %c2_50 = arith.constant 2 : index
    %c1_51 = arith.constant 1 : index
    %c0_52 = arith.constant 0 : index
    %50 = vector.load %arg2[%c0_49, %c2_50, %c1_51, %c0_52] : memref<1x6x6x1024xf32, #tpu.memory_space<vmem>>, vector<1x4x4x1024xf32>
    %51 = vector.shape_cast %50 : vector<1x4x4x1024xf32> to vector<4x4x1024xf32>
    %52 = vector.shape_cast %51 : vector<4x4x1024xf32> to vector<16x1024xf32>
    %c7 = arith.constant 7 : index
    %c0_53 = arith.constant 0 : index
    %c0_54 = arith.constant 0 : index
    %53 = vector.load %arg3[%c7, %c0_53, %c0_54] : memref<9x1024x256xf32, #tpu.memory_space<vmem>>, vector<1x1024x256xf32>
    %54 = vector.shape_cast %53 : vector<1x1024x256xf32> to vector<1024x256xf32>
    %cst_55 = arith.constant dense<0.000000e+00> : vector<16x256xf32>
    %55 = tpu.matmul %52, %54, %cst_55 {dimension_numbers = #tpu.dot_dimension_numbers<[1], [0], [0], [1], [0, 0, 1, 1], [], []>} : vector<16x1024xf32>, vector<1024x256xf32>, vector<16x256xf32> -> vector<16x256xf32>
    %56 = arith.addf %49, %55 : vector<16x256xf32>
    %c0_56 = arith.constant 0 : index
    %c2_57 = arith.constant 2 : index
    %c2_58 = arith.constant 2 : index
    %c0_59 = arith.constant 0 : index
    %57 = vector.load %arg2[%c0_56, %c2_57, %c2_58, %c0_59] : memref<1x6x6x1024xf32, #tpu.memory_space<vmem>>, vector<1x4x4x1024xf32>
    %58 = vector.shape_cast %57 : vector<1x4x4x1024xf32> to vector<4x4x1024xf32>
    %59 = vector.shape_cast %58 : vector<4x4x1024xf32> to vector<16x1024xf32>
    %c8 = arith.constant 8 : index
    %c0_60 = arith.constant 0 : index
    %c0_61 = arith.constant 0 : index
    %60 = vector.load %arg3[%c8, %c0_60, %c0_61] : memref<9x1024x256xf32, #tpu.memory_space<vmem>>, vector<1x1024x256xf32>
    %61 = vector.shape_cast %60 : vector<1x1024x256xf32> to vector<1024x256xf32>
    %cst_62 = arith.constant dense<0.000000e+00> : vector<16x256xf32>
    %62 = tpu.matmul %59, %61, %cst_62 {dimension_numbers = #tpu.dot_dimension_numbers<[1], [0], [0], [1], [0, 0, 1, 1], [], []>} : vector<16x1024xf32>, vector<1024x256xf32>, vector<16x256xf32> -> vector<16x256xf32>
    %63 = arith.addf %56, %62 : vector<16x256xf32>
    %c0_63 = arith.constant 0 : index
    %c0_64 = arith.constant 0 : index
    %64 = vector.load %arg4[%c0_63, %c0_64] : memref<1x256xf32, #tpu.memory_space<vmem>>, vector<1x256xf32>
    %65 = vector.broadcast %64 : vector<1x256xf32> to vector<16x256xf32>
    %66 = arith.addf %63, %65 : vector<16x256xf32>
    %cst_65 = arith.constant 0.000000e+00 : f32
    %67 = vector.broadcast %cst_65 : f32 to vector<16x256xf32>
    %68 = arith.maximumf %66, %67 : vector<16x256xf32>
    %69 = vector.shape_cast %68 : vector<16x256xf32> to vector<4x4x256xf32>
    %c0_66 = arith.constant 0 : index
    %c0_67 = arith.constant 0 : index
    %c0_68 = arith.constant 0 : index
    %c0_69 = arith.constant 0 : index
    %70 = vector.load %arg5[%c0_66, %c0_67, %c0_68, %c0_69] : memref<1x4x4x256xf32, #tpu.memory_space<vmem>>, vector<1x4x4x256xf32>
    %71 = vector.shape_cast %70 : vector<1x4x4x256xf32> to vector<4x4x256xf32>
    %72 = vector.shape_cast %69 : vector<4x4x256xf32> to vector<1x4x4x256xf32>
    tpu.vector_store %arg5[%c0_66, %c0_67, %c0_68, %c0_69], %72 {strides = array<i32>} : memref<1x4x4x256xf32, #tpu.memory_space<vmem>>, vector<1x4x4x256xf32>,
    return
  }
  func.func @transform_0(%arg0: i32, %arg1: i32) -> (i32, i32, i32, i32) {
    %c0_i32 = arith.constant 0 : i32
    %c0_i32_0 = arith.constant 0 : i32
    %c0_i32_1 = arith.constant 0 : i32
    %c0_i32_2 = arith.constant 0 : i32
    return %arg1, %c0_i32, %c0_i32_0, %c0_i32_1 : i32, i32, i32, i32
  }
  func.func @transform_1(%arg0: i32, %arg1: i32) -> (i32, i32, i32) {
    %c0_i32 = arith.constant 0 : i32
    %c0_i32_0 = arith.constant 0 : i32
    %c0_i32_1 = arith.constant 0 : i32
    return %c0_i32, %c0_i32_0, %arg0 : i32, i32, i32
  }
  func.func @transform_2(%arg0: i32, %arg1: i32) -> (i32, i32) {
    %c0_i32 = arith.constant 0 : i32
    %c0_i32_0 = arith.constant 0 : i32
    return %c0_i32, %arg0 : i32, i32
  }
  func.func @transform_3(%arg0: i32, %arg1: i32) -> (i32, i32, i32, i32) {
    %c0_i32 = arith.constant 0 : i32
    %c0_i32_0 = arith.constant 0 : i32
    %c0_i32_1 = arith.constant 0 : i32
    return %arg1, %c0_i32, %c0_i32_0, %arg0 : i32, i32, i32, i32
  }
}

</mosaic_0001>

<llo_original>
// kernel: tpu_custom_call.1
$region0: #{tpu_custom_call.1}
  #allocation0 [shape = 'u32[]', space=smem, size = 0x4, offset = 0x4, fixed_abs, tag = 'smem constant byte address 0x4 - core index']
  #allocation1 [shape = 'u32[72,128]{1,0:T(1,128)}', space=vmem, size = 0x9000, scoped, tag = 'internal scratch']
  %s0 = inlined_call_operand.vmem [shape: f32[2,6,6,1024], index: 0, kind: input, shape index: {}]
  %s1 = inlined_call_operand.hbm [shape: f32[9,1024,1024], index: 1, kind: input, shape index: {}]
  %s2 = inlined_call_operand.hbm [shape: f32[1,1024], index: 2, kind: input, shape index: {}]
  %s3 = inlined_call_operand.hbm [shape: f32[2,4,4,1024], index: 3, kind: output, shape index: {}]
  %s4 = sld [smem:[#allocation0]]
  $region53: #{tpu_custom_call.1} parent=0
    _
  %s6 = ssub.s32 1, %s4
  %s7 = scalar_select 0, %s6, %s4
  $region1: #{tpu_custom_call.1} parent=0
    #allocation2 [shape = 'u8[18874368]{0}', space=vmem, size = 0x1200000, scoped, tag = 'input window, operand 1']
    #allocation3 [shape = 's32[2]{0}', space=sflag, size = 0x8, scoped, tag = 'scoped memory for tpu_custom_call.1']
    #allocation4 [shape = 's32[2]{0}', space=sflag, size = 0x8, scoped, tag = 'scoped memory for tpu_custom_call.1']
    #allocation5 [shape = 'u8[2048]{0}', space=vmem, size = 0x800, scoped, tag = 'input window, operand 2']
    #allocation6 [shape = 's32[2]{0}', space=sflag, size = 0x8, scoped, tag = 'scoped memory for tpu_custom_call.1']
    #allocation7 [shape = 'u8[32768]{0}', space=vmem, size = 0x8000, scoped, tag = 'output window, operand 0']
    %8 = vsyncpa [#allocation3], 0
    %s9 = scalar_lea.sflag [#allocation3], 1
    %10 = vsyncpa %s9, 0
    %11 = vsyncpa [#allocation6], 0
    %s12 = scalar_lea.sflag [#allocation6], 1
    %13 = vsyncpa %s12, 0
    %14 = vsyncpa [#allocation4], 0
    %s15 = scalar_lea.sflag [#allocation4], 1
    %16 = vsyncpa %s15, 0
    loop: start=0, step=1, limit=10
    $region2: #{tpu_custom_call.1} parent=1 // loop_pre_header
      _
    $region3: #{tpu_custom_call.1} parent=1 // loop_header
      %s18 = sphi 0, %s22
      %p19 = scmp.ge.s32.totalorder %s18, 10
      %s25 = sphi 0, %s37
      %s26 = sphi 0, %s33
      %s27 = sphi 0, %s25
      %s28 = sphi 0, %s26
      %s29 = sphi 0, %s27
      %s30 = sphi 0, %s28
      %s40 = sphi 0, %s42
      %s43 = sphi 0, %s40
      %s44 = sphi 0, %s43
      %s60 = sphi 0, %s44
      %s66 = sphi 0, %s68
      %s69 = sphi 0, %s66
      %s70 = sphi 0, %s69
      %s86 = sphi 0, %s70
      %s92 = sphi 0, %s94
      %s95 = sphi 0, %s92
      %s96 = sphi 0, %s95
      %s112 = sphi 0, %s96
      %s120 = sphi 0, %s122
      %s123 = sphi 0, %s120
      %s124 = sphi 0, %s123
      %s140 = sphi 0, %s124
    $region4: #{tpu_custom_call.1} parent=1 // loop_header_branch
      %21 = sbr.rel (%p19) target = $region8
    $region5: #{tpu_custom_call.1} parent=1 // loop_body
      %s23 = ssub.s32 %s18, 1
      %s24 = ssub.s32 %s18, 2
      %s31 = sadd.s32 1, %s26
      %p32 = scmp.ge.s32.totalorder %s31, 2
      %s33 = scalar_select %p32, 0, %s31
      %s34 = sadd.s32 1, %s25
      %s35 = scalar_select %p32, %s34, %s25
      %p36 = scmp.ge.s32.totalorder %s35, 4
      %s37 = scalar_select %p36, 0, %s35
      %s38 = ssub.s32 %s26, %s33
      %p39 = scmp.eq.s32.totalorder %s38, 0
      %s41 = sadd.s32 %s40, 1
      %s42 = scalar_select %p39, %s40, %s41
      %p45 = pneg %p39
      %p46 = scmp.eq.s32.totalorder %s18, 7
      %p47 = por %p45, %p46
      %p48 = scmp.ne.s32.totalorder %s40, %s43
      %p49 = scmp.eq.s32.totalorder %s18, 0
      %p50 = por %p48, %p49
      %p51 = scmp.ne.s32.totalorder %s40, %s43
      %p52 = scmp.eq.s32.totalorder %s23, 7
      %p53 = por %p51, %p52
      %p54 = scmp.ne.s32.totalorder %s43, %s44
      %p55 = scmp.eq.s32.totalorder %s23, 0
      %p56 = por %p54, %p55
      %p57 = scmp.ne.s32.totalorder %s43, %s44
      %p58 = scmp.eq.s32.totalorder %s24, 7
      %p59 = por %p57, %p58
      %p61 = scmp.ne.s32.totalorder %s44, %s60
      %p62 = scmp.eq.s32.totalorder %s24, 0
      %p63 = por %p61, %p62
      %s64 = ssub.s32 %s25, %s37
      %p65 = scmp.eq.s32.totalorder %s64, 0
      %s67 = sadd.s32 %s66, 1
      %s68 = scalar_select %p65, %s66, %s67
      %p71 = pneg %p65
      %p72 = scmp.eq.s32.totalorder %s18, 7
      %p73 = por %p71, %p72
      %p74 = scmp.ne.s32.totalorder %s66, %s69
      %p75 = scmp.eq.s32.totalorder %s18, 0
      %p76 = por %p74, %p75
      %p77 = scmp.ne.s32.totalorder %s66, %s69
      %p78 = scmp.eq.s32.totalorder %s23, 7
      %p79 = por %p77, %p78
      %p80 = scmp.ne.s32.totalorder %s69, %s70
      %p81 = scmp.eq.s32.totalorder %s23, 0
      %p82 = por %p80, %p81
      %p83 = scmp.ne.s32.totalorder %s69, %s70
      %p84 = scmp.eq.s32.totalorder %s24, 7
      %p85 = por %p83, %p84
      %p87 = scmp.ne.s32.totalorder %s70, %s86
      %p88 = scmp.eq.s32.totalorder %s24, 0
      %p89 = por %p87, %p88
      %s90 = ssub.s32 %s25, %s37
      %p91 = scmp.eq.s32.totalorder %s90, 0
      %s93 = sadd.s32 %s92, 1
      %s94 = scalar_select %p91, %s92, %s93
      %p97 = pneg %p91
      %p98 = scmp.eq.s32.totalorder %s18, 7
      %p99 = por %p97, %p98
      %p100 = scmp.ne.s32.totalorder %s92, %s95
      %p101 = scmp.eq.s32.totalorder %s18, 0
      %p102 = por %p100, %p101
      %p103 = scmp.ne.s32.totalorder %s92, %s95
      %p104 = scmp.eq.s32.totalorder %s23, 7
      %p105 = por %p103, %p104
      %p106 = scmp.ne.s32.totalorder %s95, %s96
      %p107 = scmp.eq.s32.totalorder %s23, 0
      %p108 = por %p106, %p107
      %p109 = scmp.ne.s32.totalorder %s95, %s96
      %p110 = scmp.eq.s32.totalorder %s24, 7
      %p111 = por %p109, %p110
      %p113 = scmp.ne.s32.totalorder %s96, %s112
      %p114 = scmp.eq.s32.totalorder %s24, 0
      %p115 = por %p113, %p114
      %s116 = ssub.s32 %s26, %s33
      %s117 = ssub.s32 %s25, %s37
      %s118 = sor.u32 %s116, %s117
      %p119 = scmp.eq.s32.totalorder %s118, 0
      %s121 = sadd.s32 %s120, 1
      %s122 = scalar_select %p119, %s120, %s121
      %p125 = pneg %p119
      %p126 = scmp.eq.s32.totalorder %s18, 7
      %p127 = por %p125, %p126
      %p128 = scmp.ne.s32.totalorder %s120, %s123
      %p129 = scmp.eq.s32.totalorder %s18, 0
      %p130 = por %p128, %p129
      %p131 = scmp.ne.s32.totalorder %s120, %s123
      %p132 = scmp.eq.s32.totalorder %s23, 7
      %p133 = por %p131, %p132
      %p134 = scmp.ne.s32.totalorder %s123, %s124
      %p135 = scmp.eq.s32.totalorder %s23, 0
      %p136 = por %p134, %p135
      %p137 = scmp.ne.s32.totalorder %s123, %s124
      %p138 = scmp.eq.s32.totalorder %s24, 7
      %p139 = por %p137, %p138
      %p141 = scmp.ne.s32.totalorder %s124, %s140
      %p142 = scmp.eq.s32.totalorder %s24, 0
      %p143 = por %p141, %p142
      %p144 = scmp.le.s32.totalorder 1, %s18
      %p145 = scmp.lt.s32.totalorder %s18, 9
      %p146 = pnand %p144, %p145
      %p147 = pneg %p146
      // Predicated region
      $region9: #{tpu_custom_call.1} parent=5 // pred_check
        _
      $region10: #{tpu_custom_call.1} parent=5 // pred_check_branch
        %149 = sbr.rel (%p146) target = $region12
      $region11: #{tpu_custom_call.1} parent=5 // pred_region
        %s150 = ssub.s32 %s18, 1
      $region12: #{tpu_custom_call.1} parent=5 // pred_fallthru
        _
      %p151 = scmp.lt.s32.totalorder %s18, 8
      // Predicated region
      $region13: #{tpu_custom_call.1} parent=5 // pred_check
        %p152 = pneg %p151
      $region14: #{tpu_custom_call.1} parent=5 // pred_check_branch
        %154 = sbr.rel (%p152) target = $region16
      $region15: #{tpu_custom_call.1} parent=5 // pred_region
        // Predicated region
        $region17: #{tpu_custom_call.1} parent=15 // pred_check
          %p155 = pneg %p50
        $region18: #{tpu_custom_call.1} parent=15 // pred_check_branch
          %157 = sbr.rel (%p155) target = $region20
        $region19: #{tpu_custom_call.1} parent=15 // pred_region
          %p158 = scmp.lt.s32.totalorder %s26, 1
          %s159 = scalar_select %p158, %s26, 1
          %s160 = smul.addr %s159, 48
          %s161 = smul.addr %s160, 8
          %s162 = scalar_lea.vmem %s0, %s161
        $region20: #{tpu_custom_call.1} parent=15 // pred_fallthru
          _
        // Predicated region
        $region21: #{tpu_custom_call.1} parent=15 // pred_check
          %p163 = pneg %p76
        $region22: #{tpu_custom_call.1} parent=15 // pred_check_branch
          %165 = sbr.rel (%p163) target = $region24
        $region23: #{tpu_custom_call.1} parent=15 // pred_region
          %s166 = sand.u32 %s66, 1
          %s167 = scalar_lea.sflag [#allocation3], %s166
          %s168 = sand.u32 %s66, 1
          %s169 = smul.addr %s168, 18432
          %s170 = scalar_lea.vmem [#allocation2], %s169
          %s171 = smul.u32 2, %s25
          %173 = vsyncadd %s167, 0
          %s174 = smul.addr %s171, 8
          %s175 = scalar_lea.hbm %s1, %s174
          %s176 = sshll.u32 %s175, 4
          %s177 = int_to_ptr.hbm [resolvable:$true] %s176
          %s178 = sshll.u32 %s170, 4
          %s179 = int_to_ptr.vmem [resolvable:$true] %s178
          %184 = dma.hbm_to_vmem [thread:$0]  %s177, 294912, %s179, %s167, 1024, 256, 16
        $region24: #{tpu_custom_call.1} parent=15 // pred_fallthru
          _
        // Predicated region
        $region25: #{tpu_custom_call.1} parent=15 // pred_check
          %p185 = pneg %p102
        $region26: #{tpu_custom_call.1} parent=15 // pred_check_branch
          %187 = sbr.rel (%p185) target = $region28
        $region27: #{tpu_custom_call.1} parent=15 // pred_region
          %s188 = sand.u32 %s92, 1
          %s189 = scalar_lea.sflag [#allocation6], %s188
          %s190 = sand.u32 %s92, 1
          %s191 = smul.addr %s190, 2
          %s192 = scalar_lea.vmem [#allocation5], %s191
          %s193 = smul.u32 2, %s25
          %195 = vsyncadd %s189, 0
          %s196 = scalar_lea.hbm %s2, %s193
          %s198 = sshll.u32 %s196, 4
          %s199 = int_to_ptr.hbm [resolvable:$true] %s198
          %s200 = sshll.u32 %s192, 4
          %s201 = int_to_ptr.vmem [resolvable:$true] %s200
          %203 = dma.hbm_to_vmem [thread:$0]  %s199, 32, %s201, %s189
        $region28: #{tpu_custom_call.1} parent=15 // pred_fallthru
          _
      $region16: #{tpu_custom_call.1} parent=5 // pred_fallthru
        _
      %p204 = scmp.le.s32.totalorder 1, %s18
      %p205 = scmp.lt.s32.totalorder %s18, 9
      %p206 = pnand %p204, %p205
      %p207 = pneg %p206
      // Predicated region
      $region29: #{tpu_custom_call.1} parent=5 // pred_check
        _
      $region30: #{tpu_custom_call.1} parent=5 // pred_check_branch
        %209 = sbr.rel (%p206) target = $region32
      $region31: #{tpu_custom_call.1} parent=5 // pred_region
        %s210 = ssub.s32 %s18, 1
        %s211 = sand.u32 %s69, 1
        %s212 = scalar_lea.sflag [#allocation3], %s211
        %s213 = sand.u32 %s69, 1
        %s214 = smul.addr %s213, 18432
        %s215 = scalar_lea.vmem [#allocation2], %s214
        // Predicated region
        $region33: #{tpu_custom_call.1} parent=31 // pred_check
          %p216 = pneg %p82
        $region34: #{tpu_custom_call.1} parent=31 // pred_check_branch
          %218 = sbr.rel (%p216) target = $region36
        $region35: #{tpu_custom_call.1} parent=31 // pred_region
          %220 = dma.done %s212, 294912
        $region36: #{tpu_custom_call.1} parent=31 // pred_fallthru
          _
        %s221 = sand.u32 %s95, 1
        %s222 = scalar_lea.sflag [#allocation6], %s221
        %s223 = sand.u32 %s95, 1
        %s224 = smul.addr %s223, 2
        %s225 = scalar_lea.vmem [#allocation5], %s224
        // Predicated region
        $region37: #{tpu_custom_call.1} parent=31 // pred_check
          %p226 = pneg %p108
        $region38: #{tpu_custom_call.1} parent=31 // pred_check_branch
          %228 = sbr.rel (%p226) target = $region40
        $region39: #{tpu_custom_call.1} parent=31 // pred_region
          %230 = dma.done %s222, 32
        $region40: #{tpu_custom_call.1} parent=31 // pred_fallthru
          _
        %p231 = scmp.lt.s32.totalorder %s28, 1
        %s232 = scalar_select %p231, %s28, 1
        %s233 = smul.addr %s232, 48
        %s234 = smul.addr %s233, 8
        %s235 = scalar_lea.vmem %s0, %s234
        %p236 = pneg %p56
        %p237 = pneg %p53
        %s238 = sand.u32 %s69, 1
        %s239 = scalar_lea.sflag [#allocation3], %s238
        %s240 = sand.u32 %s69, 1
        %s241 = smul.addr %s240, 18432
        %s242 = scalar_lea.vmem [#allocation2], %s241
        %p243 = pneg %p82
        %p244 = pneg %p79
        %s245 = sand.u32 %s95, 1
        %s246 = scalar_lea.sflag [#allocation6], %s245
        %s247 = sand.u32 %s95, 1
        %s248 = smul.addr %s247, 2
        %s249 = scalar_lea.vmem [#allocation5], %s248
        %p250 = pneg %p108
        %p251 = pneg %p105
        %p252 = pneg %p136
        %p253 = pneg %p133
        %s254 = sand.u32 %s123, 1
        %s255 = scalar_lea.sflag [#allocation4], %s254
        %s256 = sand.u32 %s123, 1
        %s257 = smul.addr %s256, 32
        %s258 = scalar_lea.vmem [#allocation7], %s257
        %p259 = scmp.lt.s32.totalorder %s28, 1
        %s260 = scalar_select %p259, %s28, 1
        %s261 = smul.addr %s260, 48
        %s262 = smul.addr %s261, 8
        %s263 = scalar_lea.vmem %s0, %s262
        %s264 = smul.u32 2, %s27
        %s265 = smul.u32 2, %s27
        %s266 = smul.u32 2, %s27
        %v267 = vld [vmem:[%s263] sm:$0xf]
        %v268 = vld [vmem:[%s263 + $0x8] sm:$0xf]
        %v269 = vld [vmem:[%s263 + $0x10] sm:$0xf]
        %v270 = vld [vmem:[%s263 + $0x18] sm:$0xf]
        %v271 = vld [vmem:[%s263 + $0x20] sm:$0xf]
        %v272 = vld [vmem:[%s263 + $0x28] sm:$0xf]
        %v273 = vld [vmem:[%s263 + $0x30] sm:$0xf]
        %v274 = vld [vmem:[%s263 + $0x38] sm:$0xf]
        %v275 = vld [vmem:[%s263 + $0x40] sm:$0xf]
        %v276 = vld [vmem:[%s263 + $0x48] sm:$0xf]
        %v277 = vld [vmem:[%s263 + $0x50] sm:$0xf]
        %v278 = vld [vmem:[%s263 + $0x58] sm:$0xf]
        %v279 = vld [vmem:[%s263 + $0x60] sm:$0xf]
        %v280 = vld [vmem:[%s263 + $0x68] sm:$0xf]
        %v281 = vld [vmem:[%s263 + $0x70] sm:$0xf]
        %v282 = vld [vmem:[%s263 + $0x78] sm:$0xf]
        %v283 = vld [vmem:[%s263 + $0x80] sm:$0xf]
        %v284 = vld [vmem:[%s263 + $0x88] sm:$0xf]
        %v285 = vld [vmem:[%s263 + $0x90] sm:$0xf]
        %v286 = vld [vmem:[%s263 + $0x98] sm:$0xf]
        %v287 = vld [vmem:[%s263 + $0xa0] sm:$0xf]
        %v288 = vld [vmem:[%s263 + $0xa8] sm:$0xf]
        %v289 = vld [vmem:[%s263 + $0xb0] sm:$0xf]
        %v290 = vld [vmem:[%s263 + $0xb8] sm:$0xf]
        %v291 = vld [vmem:[%s263 + $0xc0] sm:$0xf]
        %v292 = vld [vmem:[%s263 + $0xc8] sm:$0xf]
        %v293 = vld [vmem:[%s263 + $0xd0] sm:$0xf]
        %v294 = vld [vmem:[%s263 + $0xd8] sm:$0xf]
        %v295 = vld [vmem:[%s263 + $0xe0] sm:$0xf]
        %v296 = vld [vmem:[%s263 + $0xe8] sm:$0xf]
        %v297 = vld [vmem:[%s263 + $0xf0] sm:$0xf]
        %v298 = vld [vmem:[%s263 + $0xf8] sm:$0xf]
        %v331 = vrot.slane %v268, 4
        %v332 = vrot.slane %v270, 4
        %v333 = vrot.slane %v272, 4
        %v334 = vrot.slane %v274, 4
        %v335 = vrot.slane %v276, 4
        %v336 = vrot.slane %v278, 4
        %v337 = vrot.slane %v280, 4
        %v338 = vrot.slane %v282, 4
        %v339 = vrot.slane %v284, 4
        %v340 = vrot.slane %v286, 4
        %v341 = vrot.slane %v288, 4
        %v342 = vrot.slane %v290, 4
        %v343 = vrot.slane %v292, 4
        %v344 = vrot.slane %v294, 4
        %v345 = vrot.slane %v296, 4
        %v346 = vrot.slane %v298, 4
        %vm347 = vcmask 1043456
        %v348 = vsel %vm347, %v267, %v331
        %v349 = vsel %vm347, %v269, %v332
        %v350 = vsel %vm347, %v271, %v333
        %v351 = vsel %vm347, %v273, %v334
        %v352 = vsel %vm347, %v275, %v335
        %v353 = vsel %vm347, %v277, %v336
        %v354 = vsel %vm347, %v279, %v337
        %v355 = vsel %vm347, %v281, %v338
        %v356 = vsel %vm347, %v283, %v339
        %v357 = vsel %vm347, %v285, %v340
        %v358 = vsel %vm347, %v287, %v341
        %v359 = vsel %vm347, %v289, %v342
        %v360 = vsel %vm347, %v291, %v343
        %v361 = vsel %vm347, %v293, %v344
        %v362 = vsel %vm347, %v295, %v345
        %v363 = vsel %vm347, %v297, %v346
        %v364 = vld [vmem:[%s215] sm:$0xff]
        %v365 = vld [vmem:[%s215 + $0x8] sm:$0xff]
        %v366 = vld [vmem:[%s215 + $0x10] sm:$0xff]
        %v367 = vld [vmem:[%s215 + $0x18] sm:$0xff]
        %v368 = vld [vmem:[%s215 + $0x20] sm:$0xff]
        %v369 = vld [vmem:[%s215 + $0x28] sm:$0xff]
        %v370 = vld [vmem:[%s215 + $0x30] sm:$0xff]
        %v371 = vld [vmem:[%s215 + $0x38] sm:$0xff]
        %v372 = vld [vmem:[%s215 + $0x40] sm:$0xff]
        %v373 = vld [vmem:[%s215 + $0x48] sm:$0xff]
        %v374 = vld [vmem:[%s215 + $0x50] sm:$0xff]
        %v375 = vld [vmem:[%s215 + $0x58] sm:$0xff]
        %v376 = vld [vmem:[%s215 + $0x60] sm:$0xff]
        %v377 = vld [vmem:[%s215 + $0x68] sm:$0xff]
        %v378 = vld [vmem:[%s215 + $0x70] sm:$0xff]
        %v379 = vld [vmem:[%s215 + $0x78] sm:$0xff]
        %v380 = vld [vmem:[%s215 + $0x80] sm:$0xff]
        %v381 = vld [vmem:[%s215 + $0x88] sm:$0xff]
        %v382 = vld [vmem:[%s215 + $0x90] sm:$0xff]
        %v383 = vld [vmem:[%s215 + $0x98] sm:$0xff]
        %v384 = vld [vmem:[%s215 + $0xa0] sm:$0xff]
        %v385 = vld [vmem:[%s215 + $0xa8] sm:$0xff]
        %v386 = vld [vmem:[%s215 + $0xb0] sm:$0xff]
        %v387 = vld [vmem:[%s215 + $0xb8] sm:$0xff]
        %v388 = vld [vmem:[%s215 + $0xc0] sm:$0xff]
        %v389 = vld [vmem:[%s215 + $0xc8] sm:$0xff]
        %v390 = vld [vmem:[%s215 + $0xd0] sm:$0xff]
        %v391 = vld [vmem:[%s215 + $0xd8] sm:$0xff]
        %v392 = vld [vmem:[%s215 + $0xe0] sm:$0xff]
        %v393 = vld [vmem:[%s215 + $0xe8] sm:$0xff]
        %v394 = vld [vmem:[%s215 + $0xf0] sm:$0xff]
        %v395 = vld [vmem:[%s215 + $0xf8] sm:$0xff]
        %v396 = vld [vmem:[%s215 + $0x100] sm:$0xff]
        %v397 = vld [vmem:[%s215 + $0x108] sm:$0xff]
        %v398 = vld [vmem:[%s215 + $0x110] sm:$0xff]
        %v399 = vld [vmem:[%s215 + $0x118] sm:$0xff]
        %v400 = vld [vmem:[%s215 + $0x120] sm:$0xff]
        %v401 = vld [vmem:[%s215 + $0x128] sm:$0xff]
        %v402 = vld [vmem:[%s215 + $0x130] sm:$0xff]
        %v403 = vld [vmem:[%s215 + $0x138] sm:$0xff]
        %v404 = vld [vmem:[%s215 + $0x140] sm:$0xff]
        %v405 = vld [vmem:[%s215 + $0x148] sm:$0xff]
        %v406 = vld [vmem:[%s215 + $0x150] sm:$0xff]
        %v407 = vld [vmem:[%s215 + $0x158] sm:$0xff]
        %v408 = vld [vmem:[%s215 + $0x160] sm:$0xff]
        %v409 = vld [vmem:[%s215 + $0x168] sm:$0xff]
        %v410 = vld [vmem:[%s215 + $0x170] sm:$0xff]
        %v411 = vld [vmem:[%s215 + $0x178] sm:$0xff]
        %v412 = vld [vmem:[%s215 + $0x180] sm:$0xff]
        %v413 = vld [vmem:[%s215 + $0x188] sm:$0xff]
        %v414 = vld [vmem:[%s215 + $0x190] sm:$0xff]
        %v415 = vld [vmem:[%s215 + $0x198] sm:$0xff]
        %v416 = vld [vmem:[%s215 + $0x1a0] sm:$0xff]
        %v417 = vld [vmem:[%s215 + $0x1a8] sm:$0xff]
        %v418 = vld [vmem:[%s215 + $0x1b0] sm:$0xff]
        %v419 = vld [vmem:[%s215 + $0x1b8] sm:$0xff]
        %v420 = vld [vmem:[%s215 + $0x1c0] sm:$0xff]
        %v421 = vld [vmem:[%s215 + $0x1c8] sm:$0xff]
        %v422 = vld [vmem:[%s215 + $0x1d0] sm:$0xff]
        %v423 = vld [vmem:[%s215 + $0x1d8] sm:$0xff]
        %v424 = vld [vmem:[%s215 + $0x1e0] sm:$0xff]
        %v425 = vld [vmem:[%s215 + $0x1e8] sm:$0xff]
        %v426 = vld [vmem:[%s215 + $0x1f0] sm:$0xff]
        %v427 = vld [vmem:[%s215 + $0x1f8] sm:$0xff]
        %v428 = vld [vmem:[%s215 + $0x200] sm:$0xff]
        %v429 = vld [vmem:[%s215 + $0x208] sm:$0xff]
        %v430 = vld [vmem:[%s215 + $0x210] sm:$0xff]
        %v431 = vld [vmem:[%s215 + $0x218] sm:$0xff]
        %v432 = vld [vmem:[%s215 + $0x220] sm:$0xff]
        %v433 = vld [vmem:[%s215 + $0x228] sm:$0xff]
        %v434 = vld [vmem:[%s215 + $0x230] sm:$0xff]
        %v435 = vld [vmem:[%s215 + $0x238] sm:$0xff]
        %v436 = vld [vmem:[%s215 + $0x240] sm:$0xff]
        %v437 = vld [vmem:[%s215 + $0x248] sm:$0xff]
        %v438 = vld [vmem:[%s215 + $0x250] sm:$0xff]
        %v439 = vld [vmem:[%s215 + $0x258] sm:$0xff]
        %v440 = vld [vmem:[%s215 + $0x260] sm:$0xff]
        %v441 = vld [vmem:[%s215 + $0x268] sm:$0xff]
        %v442 = vld [vmem:[%s215 + $0x270] sm:$0xff]
        %v443 = vld [vmem:[%s215 + $0x278] sm:$0xff]
        %v444 = vld [vmem:[%s215 + $0x280] sm:$0xff]
        %v445 = vld [vmem:[%s215 + $0x288] sm:$0xff]
        %v446 = vld [vmem:[%s215 + $0x290] sm:$0xff]
        %v447 = vld [vmem:[%s215 + $0x298] sm:$0xff]
        %v448 = vld [vmem:[%s215 + $0x2a0] sm:$0xff]
        %v449 = vld [vmem:[%s215 + $0x2a8] sm:$0xff]
        %v450 = vld [vmem:[%s215 + $0x2b0] sm:$0xff]
        %v451 = vld [vmem:[%s215 + $0x2b8] sm:$0xff]
        %v452 = vld [vmem:[%s215 + $0x2c0] sm:$0xff]
        %v453 = vld [vmem:[%s215 + $0x2c8] sm:$0xff]
        %v454 = vld [vmem:[%s215 + $0x2d0] sm:$0xff]
        %v455 = vld [vmem:[%s215 + $0x2d8] sm:$0xff]
        %v456 = vld [vmem:[%s215 + $0x2e0] sm:$0xff]
        %v457 = vld [vmem:[%s215 + $0x2e8] sm:$0xff]
        %v458 = vld [vmem:[%s215 + $0x2f0] sm:$0xff]
        %v459 = vld [vmem:[%s215 + $0x2f8] sm:$0xff]
        %v460 = vld [vmem:[%s215 + $0x300] sm:$0xff]
        %v461 = vld [vmem:[%s215 + $0x308] sm:$0xff]
        %v462 = vld [vmem:[%s215 + $0x310] sm:$0xff]
        %v463 = vld [vmem:[%s215 + $0x318] sm:$0xff]
        %v464 = vld [vmem:[%s215 + $0x320] sm:$0xff]
        %v465 = vld [vmem:[%s215 + $0x328] sm:$0xff]
        %v466 = vld [vmem:[%s215 + $0x330] sm:$0xff]
        %v467 = vld [vmem:[%s215 + $0x338] sm:$0xff]
        %v468 = vld [vmem:[%s215 + $0x340] sm:$0xff]
        %v469 = vld [vmem:[%s215 + $0x348] sm:$0xff]
        %v470 = vld [vmem:[%s215 + $0x350] sm:$0xff]
        %v471 = vld [vmem:[%s215 + $0x358] sm:$0xff]
        %v472 = vld [vmem:[%s215 + $0x360] sm:$0xff]
        %v473 = vld [vmem:[%s215 + $0x368] sm:$0xff]
        %v474 = vld [vmem:[%s215 + $0x370] sm:$0xff]
        %v475 = vld [vmem:[%s215 + $0x378] sm:$0xff]
        %v476 = vld [vmem:[%s215 + $0x380] sm:$0xff]
        %v477 = vld [vmem:[%s215 + $0x388] sm:$0xff]
        %v478 = vld [vmem:[%s215 + $0x390] sm:$0xff]
        %v479 = vld [vmem:[%s215 + $0x398] sm:$0xff]
        %v480 = vld [vmem:[%s215 + $0x3a0] sm:$0xff]
        %v481 = vld [vmem:[%s215 + $0x3a8] sm:$0xff]
        %v482 = vld [vmem:[%s215 + $0x3b0] sm:$0xff]
        %v483 = vld [vmem:[%s215 + $0x3b8] sm:$0xff]
        %v484 = vld [vmem:[%s215 + $0x3c0] sm:$0xff]
        %v485 = vld [vmem:[%s215 + $0x3c8] sm:$0xff]
        %v486 = vld [vmem:[%s215 + $0x3d0] sm:$0xff]
        %v487 = vld [vmem:[%s215 + $0x3d8] sm:$0xff]
        %v488 = vld [vmem:[%s215 + $0x3e0] sm:$0xff]
        %v489 = vld [vmem:[%s215 + $0x3e8] sm:$0xff]
        %v490 = vld [vmem:[%s215 + $0x3f0] sm:$0xff]
        %v491 = vld [vmem:[%s215 + $0x3f8] sm:$0xff]
        %v492 = vld [vmem:[%s215 + $0x400] sm:$0xff]
        %v493 = vld [vmem:[%s215 + $0x408] sm:$0xff]
        %v494 = vld [vmem:[%s215 + $0x410] sm:$0xff]
        %v495 = vld [vmem:[%s215 + $0x418] sm:$0xff]
        %v496 = vld [vmem:[%s215 + $0x420] sm:$0xff]
        %v497 = vld [vmem:[%s215 + $0x428] sm:$0xff]
        %v498 = vld [vmem:[%s215 + $0x430] sm:$0xff]
        %v499 = vld [vmem:[%s215 + $0x438] sm:$0xff]
        %v500 = vld [vmem:[%s215 + $0x440] sm:$0xff]
        %v501 = vld [vmem:[%s215 + $0x448] sm:$0xff]
        %v502 = vld [vmem:[%s215 + $0x450] sm:$0xff]
        %v503 = vld [vmem:[%s215 + $0x458] sm:$0xff]
        %v504 = vld [vmem:[%s215 + $0x460] sm:$0xff]
        %v505 = vld [vmem:[%s215 + $0x468] sm:$0xff]
        %v506 = vld [vmem:[%s215 + $0x470] sm:$0xff]
        %v507 = vld [vmem:[%s215 + $0x478] sm:$0xff]
        %v508 = vld [vmem:[%s215 + $0x480] sm:$0xff]
        %v509 = vld [vmem:[%s215 + $0x488] sm:$0xff]
        %v510 = vld [vmem:[%s215 + $0x490] sm:$0xff]
        %v511 = vld [vmem:[%s215 + $0x498] sm:$0xff]
        %v512 = vld [vmem:[%s215 + $0x4a0] sm:$0xff]
        %v513 = vld [vmem:[%s215 + $0x4a8] sm:$0xff]
        %v514 = vld [vmem:[%s215 + $0x4b0] sm:$0xff]
        %v515 = vld [vmem:[%s215 + $0x4b8] sm:$0xff]
        %v516 = vld [vmem:[%s215 + $0x4c0] sm:$0xff]
        %v517 = vld [vmem:[%s215 + $0x4c8] sm:$0xff]
        %v518 = vld [vmem:[%s215 + $0x4d0] sm:$0xff]
        %v519 = vld [vmem:[%s215 + $0x4d8] sm:$0xff]
        %v520 = vld [vmem:[%s215 + $0x4e0] sm:$0xff]
        %v521 = vld [vmem:[%s215 + $0x4e8] sm:$0xff]
        %v522 = vld [vmem:[%s215 + $0x4f0] sm:$0xff]
        %v523 = vld [vmem:[%s215 + $0x4f8] sm:$0xff]
        %v524 = vld [vmem:[%s215 + $0x500] sm:$0xff]
        %v525 = vld [vmem:[%s215 + $0x508] sm:$0xff]
        %v526 = vld [vmem:[%s215 + $0x510] sm:$0xff]
        %v527 = vld [vmem:[%s215 + $0x518] sm:$0xff]
        %v528 = vld [vmem:[%s215 + $0x520] sm:$0xff]
        %v529 = vld [vmem:[%s215 + $0x528] sm:$0xff]
        %v530 = vld [vmem:[%s215 + $0x530] sm:$0xff]
        %v531 = vld [vmem:[%s215 + $0x538] sm:$0xff]
        %v532 = vld [vmem:[%s215 + $0x540] sm:$0xff]
        %v533 = vld [vmem:[%s215 + $0x548] sm:$0xff]
        %v534 = vld [vmem:[%s215 + $0x550] sm:$0xff]
        %v535 = vld [vmem:[%s215 + $0x558] sm:$0xff]
        %v536 = vld [vmem:[%s215 + $0x560] sm:$0xff]
        %v537 = vld [vmem:[%s215 + $0x568] sm:$0xff]
        %v538 = vld [vmem:[%s215 + $0x570] sm:$0xff]
        %v539 = vld [vmem:[%s215 + $0x578] sm:$0xff]
        %v540 = vld [vmem:[%s215 + $0x580] sm:$0xff]
        %v541 = vld [vmem:[%s215 + $0x588] sm:$0xff]
        %v542 = vld [vmem:[%s215 + $0x590] sm:$0xff]
        %v543 = vld [vmem:[%s215 + $0x598] sm:$0xff]
        %v544 = vld [vmem:[%s215 + $0x5a0] sm:$0xff]
        %v545 = vld [vmem:[%s215 + $0x5a8] sm:$0xff]
        %v546 = vld [vmem:[%s215 + $0x5b0] sm:$0xff]
        %v547 = vld [vmem:[%s215 + $0x5b8] sm:$0xff]
        %v548 = vld [vmem:[%s215 + $0x5c0] sm:$0xff]
        %v549 = vld [vmem:[%s215 + $0x5c8] sm:$0xff]
        %v550 = vld [vmem:[%s215 + $0x5d0] sm:$0xff]
        %v551 = vld [vmem:[%s215 + $0x5d8] sm:$0xff]
        %v552 = vld [vmem:[%s215 + $0x5e0] sm:$0xff]
        %v553 = vld [vmem:[%s215 + $0x5e8] sm:$0xff]
        %v554 = vld [vmem:[%s215 + $0x5f0] sm:$0xff]
        %v555 = vld [vmem:[%s215 + $0x5f8] sm:$0xff]
        %v556 = vld [vmem:[%s215 + $0x600] sm:$0xff]
        %v557 = vld [vmem:[%s215 + $0x608] sm:$0xff]
        %v558 = vld [vmem:[%s215 + $0x610] sm:$0xff]
        %v559 = vld [vmem:[%s215 + $0x618] sm:$0xff]
        %v560 = vld [vmem:[%s215 + $0x620] sm:$0xff]
        %v561 = vld [vmem:[%s215 + $0x628] sm:$0xff]
        %v562 = vld [vmem:[%s215 + $0x630] sm:$0xff]
        %v563 = vld [vmem:[%s215 + $0x638] sm:$0xff]
        %v564 = vld [vmem:[%s215 + $0x640] sm:$0xff]
        %v565 = vld [vmem:[%s215 + $0x648] sm:$0xff]
        %v566 = vld [vmem:[%s215 + $0x650] sm:$0xff]
        %v567 = vld [vmem:[%s215 + $0x658] sm:$0xff]
        %v568 = vld [vmem:[%s215 + $0x660] sm:$0xff]
        %v569 = vld [vmem:[%s215 + $0x668] sm:$0xff]
        %v570 = vld [vmem:[%s215 + $0x670] sm:$0xff]
        %v571 = vld [vmem:[%s215 + $0x678] sm:$0xff]
        %v572 = vld [vmem:[%s215 + $0x680] sm:$0xff]
        %v573 = vld [vmem:[%s215 + $0x688] sm:$0xff]
        %v574 = vld [vmem:[%s215 + $0x690] sm:$0xff]
        %v575 = vld [vmem:[%s215 + $0x698] sm:$0xff]
        %v576 = vld [vmem:[%s215 + $0x6a0] sm:$0xff]
        %v577 = vld [vmem:[%s215 + $0x6a8] sm:$0xff]
        %v578 = vld [vmem:[%s215 + $0x6b0] sm:$0xff]
        %v579 = vld [vmem:[%s215 + $0x6b8] sm:$0xff]
        %v580 = vld [vmem:[%s215 + $0x6c0] sm:$0xff]
        %v581 = vld [vmem:[%s215 + $0x6c8] sm:$0xff]
        %v582 = vld [vmem:[%s215 + $0x6d0] sm:$0xff]
        %v583 = vld [vmem:[%s215 + $0x6d8] sm:$0xff]
        %v584 = vld [vmem:[%s215 + $0x6e0] sm:$0xff]
        %v585 = vld [vmem:[%s215 + $0x6e8] sm:$0xff]
        %v586 = vld [vmem:[%s215 + $0x6f0] sm:$0xff]
        %v587 = vld [vmem:[%s215 + $0x6f8] sm:$0xff]
        %v588 = vld [vmem:[%s215 + $0x700] sm:$0xff]
        %v589 = vld [vmem:[%s215 + $0x708] sm:$0xff]
        %v590 = vld [vmem:[%s215 + $0x710] sm:$0xff]
        %v591 = vld [vmem:[%s215 + $0x718] sm:$0xff]
        %v592 = vld [vmem:[%s215 + $0x720] sm:$0xff]
        %v593 = vld [vmem:[%s215 + $0x728] sm:$0xff]
        %v594 = vld [vmem:[%s215 + $0x730] sm:$0xff]
        %v595 = vld [vmem:[%s215 + $0x738] sm:$0xff]
        %v596 = vld [vmem:[%s215 + $0x740] sm:$0xff]
        %v597 = vld [vmem:[%s215 + $0x748] sm:$0xff]
        %v598 = vld [vmem:[%s215 + $0x750] sm:$0xff]
        %v599 = vld [vmem:[%s215 + $0x758] sm:$0xff]
        %v600 = vld [vmem:[%s215 + $0x760] sm:$0xff]
        %v601 = vld [vmem:[%s215 + $0x768] sm:$0xff]
        %v602 = vld [vmem:[%s215 + $0x770] sm:$0xff]
        %v603 = vld [vmem:[%s215 + $0x778] sm:$0xff]
        %v604 = vld [vmem:[%s215 + $0x780] sm:$0xff]
        %v605 = vld [vmem:[%s215 + $0x788] sm:$0xff]
        %v606 = vld [vmem:[%s215 + $0x790] sm:$0xff]
        %v607 = vld [vmem:[%s215 + $0x798] sm:$0xff]
        %v608 = vld [vmem:[%s215 + $0x7a0] sm:$0xff]
        %v609 = vld [vmem:[%s215 + $0x7a8] sm:$0xff]
        %v610 = vld [vmem:[%s215 + $0x7b0] sm:$0xff]
        %v611 = vld [vmem:[%s215 + $0x7b8] sm:$0xff]
        %v612 = vld [vmem:[%s215 + $0x7c0] sm:$0xff]
        %v613 = vld [vmem:[%s215 + $0x7c8] sm:$0xff]
        %v614 = vld [vmem:[%s215 + $0x7d0] sm:$0xff]
        %v615 = vld [vmem:[%s215 + $0x7d8] sm:$0xff]
        %v616 = vld [vmem:[%s215 + $0x7e0] sm:$0xff]
        %v617 = vld [vmem:[%s215 + $0x7e8] sm:$0xff]
        %v618 = vld [vmem:[%s215 + $0x7f0] sm:$0xff]
        %v619 = vld [vmem:[%s215 + $0x7f8] sm:$0xff]
        %v620 = vld [vmem:[%s263] sm:$0x1e]
        %v621 = vld [vmem:[%s263 + $0x8] sm:$0x1e]
        %v622 = vld [vmem:[%s263 + $0x10] sm:$0x1e]
        %v623 = vld [vmem:[%s263 + $0x18] sm:$0x1e]
        %v624 = vld [vmem:[%s263 + $0x20] sm:$0x1e]
        %v625 = vld [vmem:[%s263 + $0x28] sm:$0x1e]
        %v626 = vld [vmem:[%s263 + $0x30] sm:$0x1e]
        %v627 = vld [vmem:[%s263 + $0x38] sm:$0x1e]
        %v628 = vld [vmem:[%s263 + $0x40] sm:$0x1e]
        %v629 = vld [vmem:[%s263 + $0x48] sm:$0x1e]
        %v630 = vld [vmem:[%s263 + $0x50] sm:$0x1e]
        %v631 = vld [vmem:[%s263 + $0x58] sm:$0x1e]
        %v632 = vld [vmem:[%s263 + $0x60] sm:$0x1e]
        %v633 = vld [vmem:[%s263 + $0x68] sm:$0x1e]
        %v634 = vld [vmem:[%s263 + $0x70] sm:$0x1e]
        %v635 = vld [vmem:[%s263 + $0x78] sm:$0x1e]
        %v636 = vld [vmem:[%s263 + $0x80] sm:$0x1e]
        %v637 = vld [vmem:[%s263 + $0x88] sm:$0x1e]
        %v638 = vld [vmem:[%s263 + $0x90] sm:$0x1e]
        %v639 = vld [vmem:[%s263 + $0x98] sm:$0x1e]
        %v640 = vld [vmem:[%s263 + $0xa0] sm:$0x1e]
        %v641 = vld [vmem:[%s263 + $0xa8] sm:$0x1e]
        %v642 = vld [vmem:[%s263 + $0xb0] sm:$0x1e]
        %v643 = vld [vmem:[%s263 + $0xb8] sm:$0x1e]
        %v644 = vld [vmem:[%s263 + $0xc0] sm:$0x1e]
        %v645 = vld [vmem:[%s263 + $0xc8] sm:$0x1e]
        %v646 = vld [vmem:[%s263 + $0xd0] sm:$0x1e]
        %v647 = vld [vmem:[%s263 + $0xd8] sm:$0x1e]
        %v648 = vld [vmem:[%s263 + $0xe0] sm:$0x1e]
        %v649 = vld [vmem:[%s263 + $0xe8] sm:$0x1e]
        %v650 = vld [vmem:[%s263 + $0xf0] sm:$0x1e]
        %v651 = vld [vmem:[%s263 + $0xf8] sm:$0x1e]
        %v684 = vrot.slane %v621, 4
        %v685 = vrot.slane %v623, 4
        %v686 = vrot.slane %v625, 4
        %v687 = vrot.slane %v627, 4
        %v688 = vrot.slane %v629, 4
        %v689 = vrot.slane %v631, 4
        %v690 = vrot.slane %v633, 4
        %v691 = vrot.slane %v635, 4
        %v692 = vrot.slane %v637, 4
        %v693 = vrot.slane %v639, 4
        %v694 = vrot.slane %v641, 4
        %v695 = vrot.slane %v643, 4
        %v696 = vrot.slane %v645, 4
        %v697 = vrot.slane %v647, 4
        %v698 = vrot.slane %v649, 4
        %v699 = vrot.slane %v651, 4
        %v700 = vsel %vm347, %v620, %v684
        %v701 = vsel %vm347, %v622, %v685
        %v702 = vsel %vm347, %v624, %v686
        %v703 = vsel %vm347, %v626, %v687
        %v704 = vsel %vm347, %v684, %v620
        %v705 = vrot.slane %v704, 4
        %v706 = vsel %vm347, %v685, %v622
        %v707 = vrot.slane %v706, 4
        %v708 = vsel %vm347, %v686, %v624
        %v709 = vrot.slane %v708, 4
        %v710 = vsel %vm347, %v687, %v626
        %v711 = vrot.slane %v710, 4
        %v712 = vsel %vm347, %v628, %v688
        %v713 = vsel %vm347, %v630, %v689
        %v714 = vsel %vm347, %v632, %v690
        %v715 = vsel %vm347, %v634, %v691
        %v716 = vsel %vm347, %v688, %v628
        %v717 = vrot.slane %v716, 4
        %v718 = vsel %vm347, %v689, %v630
        %v719 = vrot.slane %v718, 4
        %v720 = vsel %vm347, %v690, %v632
        %v721 = vrot.slane %v720, 4
        %v722 = vsel %vm347, %v691, %v634
        %v723 = vrot.slane %v722, 4
        %v724 = vsel %vm347, %v636, %v692
        %v725 = vsel %vm347, %v638, %v693
        %v726 = vsel %vm347, %v640, %v694
        %v727 = vsel %vm347, %v642, %v695
        %v728 = vsel %vm347, %v692, %v636
        %v729 = vrot.slane %v728, 4
        %v730 = vsel %vm347, %v693, %v638
        %v731 = vrot.slane %v730, 4
        %v732 = vsel %vm347, %v694, %v640
        %v733 = vrot.slane %v732, 4
        %v734 = vsel %vm347, %v695, %v642
        %v735 = vrot.slane %v734, 4
        %v736 = vsel %vm347, %v644, %v696
        %v737 = vsel %vm347, %v646, %v697
        %v738 = vsel %vm347, %v648, %v698
        %v739 = vsel %vm347, %v650, %v699
        %v740 = vsel %vm347, %v696, %v644
        %v741 = vrot.slane %v740, 4
        %v742 = vsel %vm347, %v697, %v646
        %v743 = vrot.slane %v742, 4
        %v744 = vsel %vm347, %v698, %v648
        %v745 = vrot.slane %v744, 4
        %v746 = vsel %vm347, %v699, %v650
        %v747 = vrot.slane %v746, 4
        %vm748 = vcmask 1042432
        %vm749 = vcmask 1046532
        %vm750 = vmor %vm748, %vm749
        %v751 = vrot.slane %v700, 5
        %v752 = vrot.slane %v751, 4
        %v753 = vrot.slane %v705, 5
        %v754 = vsel %vm750, %v752, %v753
        %v755 = vrot.slane %v701, 5
        %v756 = vrot.slane %v755, 4
        %v757 = vrot.slane %v707, 5
        %v758 = vsel %vm750, %v756, %v757
        %v759 = vrot.slane %v702, 5
        %v760 = vrot.slane %v759, 4
        %v761 = vrot.slane %v709, 5
        %v762 = vsel %vm750, %v760, %v761
        %v763 = vrot.slane %v703, 5
        %v764 = vrot.slane %v763, 4
        %v765 = vrot.slane %v711, 5
        %v766 = vsel %vm750, %v764, %v765
        %v767 = vrot.slane %v712, 5
        %v768 = vrot.slane %v767, 4
        %v769 = vrot.slane %v717, 5
        %v770 = vsel %vm750, %v768, %v769
        %v771 = vrot.slane %v713, 5
        %v772 = vrot.slane %v771, 4
        %v773 = vrot.slane %v719, 5
        %v774 = vsel %vm750, %v772, %v773
        %v775 = vrot.slane %v714, 5
        %v776 = vrot.slane %v775, 4
        %v777 = vrot.slane %v721, 5
        %v778 = vsel %vm750, %v776, %v777
        %v779 = vrot.slane %v715, 5
        %v780 = vrot.slane %v779, 4
        %v781 = vrot.slane %v723, 5
        %v782 = vsel %vm750, %v780, %v781
        %v783 = vrot.slane %v724, 5
        %v784 = vrot.slane %v783, 4
        %v785 = vrot.slane %v729, 5
        %v786 = vsel %vm750, %v784, %v785
        %v787 = vrot.slane %v725, 5
        %v788 = vrot.slane %v787, 4
        %v789 = vrot.slane %v731, 5
        %v790 = vsel %vm750, %v788, %v789
        %v791 = vrot.slane %v726, 5
        %v792 = vrot.slane %v791, 4
        %v793 = vrot.slane %v733, 5
        %v794 = vsel %vm750, %v792, %v793
        %v795 = vrot.slane %v727, 5
        %v796 = vrot.slane %v795, 4
        %v797 = vrot.slane %v735, 5
        %v798 = vsel %vm750, %v796, %v797
        %v799 = vrot.slane %v736, 5
        %v800 = vrot.slane %v799, 4
        %v801 = vrot.slane %v741, 5
        %v802 = vsel %vm750, %v800, %v801
        %v803 = vrot.slane %v737, 5
        %v804 = vrot.slane %v803, 4
        %v805 = vrot.slane %v743, 5
        %v806 = vsel %vm750, %v804, %v805
        %v807 = vrot.slane %v738, 5
        %v808 = vrot.slane %v807, 4
        %v809 = vrot.slane %v745, 5
        %v810 = vsel %vm750, %v808, %v809
        %v811 = vrot.slane %v739, 5
        %v812 = vrot.slane %v811, 4
        %v813 = vrot.slane %v747, 5
        %v814 = vsel %vm750, %v812, %v813
        %s815 = scalar_lea.vmem %s215, 2048 [#allocation2]
        %v816 = vld [vmem:[%s815] sm:$0xff]
        %v817 = vld [vmem:[%s815 + $0x8] sm:$0xff]
        %v818 = vld [vmem:[%s815 + $0x10] sm:$0xff]
        %v819 = vld [vmem:[%s815 + $0x18] sm:$0xff]
        %v820 = vld [vmem:[%s815 + $0x20] sm:$0xff]
        %v821 = vld [vmem:[%s815 + $0x28] sm:$0xff]
        %v822 = vld [vmem:[%s815 + $0x30] sm:$0xff]
        %v823 = vld [vmem:[%s815 + $0x38] sm:$0xff]
        %v824 = vld [vmem:[%s815 + $0x40] sm:$0xff]
        %v825 = vld [vmem:[%s815 + $0x48] sm:$0xff]
        %v826 = vld [vmem:[%s815 + $0x50] sm:$0xff]
        %v827 = vld [vmem:[%s815 + $0x58] sm:$0xff]
        %v828 = vld [vmem:[%s815 + $0x60] sm:$0xff]
        %v829 = vld [vmem:[%s815 + $0x68] sm:$0xff]
        %v830 = vld [vmem:[%s815 + $0x70] sm:$0xff]
        %v831 = vld [vmem:[%s815 + $0x78] sm:$0xff]
        %v832 = vld [vmem:[%s815 + $0x80] sm:$0xff]
        %v833 = vld [vmem:[%s815 + $0x88] sm:$0xff]
        %v834 = vld [vmem:[%s815 + $0x90] sm:$0xff]
        %v835 = vld [vmem:[%s815 + $0x98] sm:$0xff]
        %v836 = vld [vmem:[%s815 + $0xa0] sm:$0xff]
        %v837 = vld [vmem:[%s815 + $0xa8] sm:$0xff]
        %v838 = vld [vmem:[%s815 + $0xb0] sm:$0xff]
        %v839 = vld [vmem:[%s815 + $0xb8] sm:$0xff]
        %v840 = vld [vmem:[%s815 + $0xc0] sm:$0xff]
        %v841 = vld [vmem:[%s815 + $0xc8] sm:$0xff]
        %v842 = vld [vmem:[%s815 + $0xd0] sm:$0xff]
        %v843 = vld [vmem:[%s815 + $0xd8] sm:$0xff]
        %v844 = vld [vmem:[%s815 + $0xe0] sm:$0xff]
        %v845 = vld [vmem:[%s815 + $0xe8] sm:$0xff]
        %v846 = vld [vmem:[%s815 + $0xf0] sm:$0xff]
        %v847 = vld [vmem:[%s815 + $0xf8] sm:$0xff]
        %v848 = vld [vmem:[%s815 + $0x100] sm:$0xff]
        %v849 = vld [vmem:[%s815 + $0x108] sm:$0xff]
        %v850 = vld [vmem:[%s815 + $0x110] sm:$0xff]
        %v851 = vld [vmem:[%s815 + $0x118] sm:$0xff]
        %v852 = vld [vmem:[%s815 + $0x120] sm:$0xff]
        %v853 = vld [vmem:[%s815 + $0x128] sm:$0xff]
        %v854 = vld [vmem:[%s815 + $0x130] sm:$0xff]
        %v855 = vld [vmem:[%s815 + $0x138] sm:$0xff]
        %v856 = vld [vmem:[%s815 + $0x140] sm:$0xff]
        %v857 = vld [vmem:[%s815 + $0x148] sm:$0xff]
        %v858 = vld [vmem:[%s815 + $0x150] sm:$0xff]
        %v859 = vld [vmem:[%s815 + $0x158] sm:$0xff]
        %v860 = vld [vmem:[%s815 + $0x160] sm:$0xff]
        %v861 = vld [vmem:[%s815 + $0x168] sm:$0xff]
        %v862 = vld [vmem:[%s815 + $0x170] sm:$0xff]
        %v863 = vld [vmem:[%s815 + $0x178] sm:$0xff]
        %v864 = vld [vmem:[%s815 + $0x180] sm:$0xff]
        %v865 = vld [vmem:[%s815 + $0x188] sm:$0xff]
        %v866 = vld [vmem:[%s815 + $0x190] sm:$0xff]
        %v867 = vld [vmem:[%s815 + $0x198] sm:$0xff]
        %v868 = vld [vmem:[%s815 + $0x1a0] sm:$0xff]
        %v869 = vld [vmem:[%s815 + $0x1a8] sm:$0xff]
        %v870 = vld [vmem:[%s815 + $0x1b0] sm:$0xff]
        %v871 = vld [vmem:[%s815 + $0x1b8] sm:$0xff]
        %v872 = vld [vmem:[%s815 + $0x1c0] sm:$0xff]
        %v873 = vld [vmem:[%s815 + $0x1c8] sm:$0xff]
        %v874 = vld [vmem:[%s815 + $0x1d0] sm:$0xff]
        %v875 = vld [vmem:[%s815 + $0x1d8] sm:$0xff]
        %v876 = vld [vmem:[%s815 + $0x1e0] sm:$0xff]
        %v877 = vld [vmem:[%s815 + $0x1e8] sm:$0xff]
        %v878 = vld [vmem:[%s815 + $0x1f0] sm:$0xff]
        %v879 = vld [vmem:[%s815 + $0x1f8] sm:$0xff]
        %v880 = vld [vmem:[%s815 + $0x200] sm:$0xff]
        %v881 = vld [vmem:[%s815 + $0x208] sm:$0xff]
        %v882 = vld [vmem:[%s815 + $0x210] sm:$0xff]
        %v883 = vld [vmem:[%s815 + $0x218] sm:$0xff]
        %v884 = vld [vmem:[%s815 + $0x220] sm:$0xff]
        %v885 = vld [vmem:[%s815 + $0x228] sm:$0xff]
        %v886 = vld [vmem:[%s815 + $0x230] sm:$0xff]
        %v887 = vld [vmem:[%s815 + $0x238] sm:$0xff]
        %v888 = vld [vmem:[%s815 + $0x240] sm:$0xff]
        %v889 = vld [vmem:[%s815 + $0x248] sm:$0xff]
        %v890 = vld [vmem:[%s815 + $0x250] sm:$0xff]
        %v891 = vld [vmem:[%s815 + $0x258] sm:$0xff]
        %v892 = vld [vmem:[%s815 + $0x260] sm:$0xff]
        %v893 = vld [vmem:[%s815 + $0x268] sm:$0xff]
        %v894 = vld [vmem:[%s815 + $0x270] sm:$0xff]
        %v895 = vld [vmem:[%s815 + $0x278] sm:$0xff]
        %v896 = vld [vmem:[%s815 + $0x280] sm:$0xff]
        %v897 = vld [vmem:[%s815 + $0x288] sm:$0xff]
        %v898 = vld [vmem:[%s815 + $0x290] sm:$0xff]
        %v899 = vld [vmem:[%s815 + $0x298] sm:$0xff]
        %v900 = vld [vmem:[%s815 + $0x2a0] sm:$0xff]
        %v901 = vld [vmem:[%s815 + $0x2a8] sm:$0xff]
        %v902 = vld [vmem:[%s815 + $0x2b0] sm:$0xff]
        %v903 = vld [vmem:[%s815 + $0x2b8] sm:$0xff]
        %v904 = vld [vmem:[%s815 + $0x2c0] sm:$0xff]
        %v905 = vld [vmem:[%s815 + $0x2c8] sm:$0xff]
        %v906 = vld [vmem:[%s815 + $0x2d0] sm:$0xff]
        %v907 = vld [vmem:[%s815 + $0x2d8] sm:$0xff]
        %v908 = vld [vmem:[%s815 + $0x2e0] sm:$0xff]
        %v909 = vld [vmem:[%s815 + $0x2e8] sm:$0xff]
        %v910 = vld [vmem:[%s815 + $0x2f0] sm:$0xff]
        %v911 = vld [vmem:[%s815 + $0x2f8] sm:$0xff]
        %v912 = vld [vmem:[%s815 + $0x300] sm:$0xff]
        %v913 = vld [vmem:[%s815 + $0x308] sm:$0xff]
        %v914 = vld [vmem:[%s815 + $0x310] sm:$0xff]
        %v915 = vld [vmem:[%s815 + $0x318] sm:$0xff]
        %v916 = vld [vmem:[%s815 + $0x320] sm:$0xff]
        %v917 = vld [vmem:[%s815 + $0x328] sm:$0xff]
        %v918 = vld [vmem:[%s815 + $0x330] sm:$0xff]
        %v919 = vld [vmem:[%s815 + $0x338] sm:$0xff]
        %v920 = vld [vmem:[%s815 + $0x340] sm:$0xff]
        %v921 = vld [vmem:[%s815 + $0x348] sm:$0xff]
        %v922 = vld [vmem:[%s815 + $0x350] sm:$0xff]
        %v923 = vld [vmem:[%s815 + $0x358] sm:$0xff]
        %v924 = vld [vmem:[%s815 + $0x360] sm:$0xff]
        %v925 = vld [vmem:[%s815 + $0x368] sm:$0xff]
        %v926 = vld [vmem:[%s815 + $0x370] sm:$0xff]
        %v927 = vld [vmem:[%s815 + $0x378] sm:$0xff]
        %v928 = vld [vmem:[%s815 + $0x380] sm:$0xff]
        %v929 = vld [vmem:[%s815 + $0x388] sm:$0xff]
        %v930 = vld [vmem:[%s815 + $0x390] sm:$0xff]
        %v931 = vld [vmem:[%s815 + $0x398] sm:$0xff]
        %v932 = vld [vmem:[%s815 + $0x3a0] sm:$0xff]
        %v933 = vld [vmem:[%s815 + $0x3a8] sm:$0xff]
        %v934 = vld [vmem:[%s815 + $0x3b0] sm:$0xff]
        %v935 = vld [vmem:[%s815 + $0x3b8] sm:$0xff]
        %v936 = vld [vmem:[%s815 + $0x3c0] sm:$0xff]
        %v937 = vld [vmem:[%s815 + $0x3c8] sm:$0xff]
        %v938 = vld [vmem:[%s815 + $0x3d0] sm:$0xff]
        %v939 = vld [vmem:[%s815 + $0x3d8] sm:$0xff]
        %v940 = vld [vmem:[%s815 + $0x3e0] sm:$0xff]
        %v941 = vld [vmem:[%s815 + $0x3e8] sm:$0xff]
        %v942 = vld [vmem:[%s815 + $0x3f0] sm:$0xff]
        %v943 = vld [vmem:[%s815 + $0x3f8] sm:$0xff]
        %v944 = vld [vmem:[%s815 + $0x400] sm:$0xff]
        %v945 = vld [vmem:[%s815 + $0x408] sm:$0xff]
        %v946 = vld [vmem:[%s815 + $0x410] sm:$0xff]
        %v947 = vld [vmem:[%s815 + $0x418] sm:$0xff]
        %v948 = vld [vmem:[%s815 + $0x420] sm:$0xff]
        %v949 = vld [vmem:[%s815 + $0x428] sm:$0xff]
        %v950 = vld [vmem:[%s815 + $0x430] sm:$0xff]
        %v951 = vld [vmem:[%s815 + $0x438] sm:$0xff]
        %v952 = vld [vmem:[%s815 + $0x440] sm:$0xff]
        %v953 = vld [vmem:[%s815 + $0x448] sm:$0xff]
        %v954 = vld [vmem:[%s815 + $0x450] sm:$0xff]
        %v955 = vld [vmem:[%s815 + $0x458] sm:$0xff]
        %v956 = vld [vmem:[%s815 + $0x460] sm:$0xff]
        %v957 = vld [vmem:[%s815 + $0x468] sm:$0xff]
        %v958 = vld [vmem:[%s815 + $0x470] sm:$0xff]
        %v959 = vld [vmem:[%s815 + $0x478] sm:$0xff]
        %v960 = vld [vmem:[%s815 + $0x480] sm:$0xff]
        %v961 = vld [vmem:[%s815 + $0x488] sm:$0xff]
        %v962 = vld [vmem:[%s815 + $0x490] sm:$0xff]
        %v963 = vld [vmem:[%s815 + $0x498] sm:$0xff]
        %v964 = vld [vmem:[%s815 + $0x4a0] sm:$0xff]
        %v965 = vld [vmem:[%s815 + $0x4a8] sm:$0xff]
        %v966 = vld [vmem:[%s815 + $0x4b0] sm:$0xff]
        %v967 = vld [vmem:[%s815 + $0x4b8] sm:$0xff]
        %v968 = vld [vmem:[%s815 + $0x4c0] sm:$0xff]
        %v969 = vld [vmem:[%s815 + $0x4c8] sm:$0xff]
        %v970 = vld [vmem:[%s815 + $0x4d0] sm:$0xff]
        %v971 = vld [vmem:[%s815 + $0x4d8] sm:$0xff]
        %v972 = vld [vmem:[%s815 + $0x4e0] sm:$0xff]
        %v973 = vld [vmem:[%s815 + $0x4e8] sm:$0xff]
        %v974 = vld [vmem:[%s815 + $0x4f0] sm:$0xff]
        %v975 = vld [vmem:[%s815 + $0x4f8] sm:$0xff]
        %v976 = vld [vmem:[%s815 + $0x500] sm:$0xff]
        %v977 = vld [vmem:[%s815 + $0x508] sm:$0xff]
        %v978 = vld [vmem:[%s815 + $0x510] sm:$0xff]
        %v979 = vld [vmem:[%s815 + $0x518] sm:$0xff]
        %v980 = vld [vmem:[%s815 + $0x520] sm:$0xff]
        %v981 = vld [vmem:[%s815 + $0x528] sm:$0xff]
        %v982 = vld [vmem:[%s815 + $0x530] sm:$0xff]
        %v983 = vld [vmem:[%s815 + $0x538] sm:$0xff]
        %v984 = vld [vmem:[%s815 + $0x540] sm:$0xff]
        %v985 = vld [vmem:[%s815 + $0x548] sm:$0xff]
        %v986 = vld [vmem:[%s815 + $0x550] sm:$0xff]
        %v987 = vld [vmem:[%s815 + $0x558] sm:$0xff]
        %v988 = vld [vmem:[%s815 + $0x560] sm:$0xff]
        %v989 = vld [vmem:[%s815 + $0x568] sm:$0xff]
        %v990 = vld [vmem:[%s815 + $0x570] sm:$0xff]
        %v991 = vld [vmem:[%s815 + $0x578] sm:$0xff]
        %v992 = vld [vmem:[%s815 + $0x580] sm:$0xff]
        %v993 = vld [vmem:[%s815 + $0x588] sm:$0xff]
        %v994 = vld [vmem:[%s815 + $0x590] sm:$0xff]
        %v995 = vld [vmem:[%s815 + $0x598] sm:$0xff]
        %v996 = vld [vmem:[%s815 + $0x5a0] sm:$0xff]
        %v997 = vld [vmem:[%s815 + $0x5a8] sm:$0xff]
        %v998 = vld [vmem:[%s815 + $0x5b0] sm:$0xff]
        %v999 = vld [vmem:[%s815 + $0x5b8] sm:$0xff]
        %v1000 = vld [vmem:[%s815 + $0x5c0] sm:$0xff]
        %v1001 = vld [vmem:[%s815 + $0x5c8] sm:$0xff]
        %v1002 = vld [vmem:[%s815 + $0x5d0] sm:$0xff]
        %v1003 = vld [vmem:[%s815 + $0x5d8] sm:$0xff]
        %v1004 = vld [vmem:[%s815 + $0x5e0] sm:$0xff]
        %v1005 = vld [vmem:[%s815 + $0x5e8] sm:$0xff]
        %v1006 = vld [vmem:[%s815 + $0x5f0] sm:$0xff]
        %v1007 = vld [vmem:[%s815 + $0x5f8] sm:$0xff]
        %v1008 = vld [vmem:[%s815 + $0x600] sm:$0xff]
        %v1009 = vld [vmem:[%s815 + $0x608] sm:$0xff]
        %v1010 = vld [vmem:[%s815 + $0x610] sm:$0xff]
        %v1011 = vld [vmem:[%s815 + $0x618] sm:$0xff]
        %v1012 = vld [vmem:[%s815 + $0x620] sm:$0xff]
        %v1013 = vld [vmem:[%s815 + $0x628] sm:$0xff]
        %v1014 = vld [vmem:[%s815 + $0x630] sm:$0xff]
        %v1015 = vld [vmem:[%s815 + $0x638] sm:$0xff]
        %v1016 = vld [vmem:[%s815 + $0x640] sm:$0xff]
        %v1017 = vld [vmem:[%s815 + $0x648] sm:$0xff]
        %v1018 = vld [vmem:[%s815 + $0x650] sm:$0xff]
        %v1019 = vld [vmem:[%s815 + $0x658] sm:$0xff]
        %v1020 = vld [vmem:[%s815 + $0x660] sm:$0xff]
        %v1021 = vld [vmem:[%s815 + $0x668] sm:$0xff]
        %v1022 = vld [vmem:[%s815 + $0x670] sm:$0xff]
        %v1023 = vld [vmem:[%s815 + $0x678] sm:$0xff]
        %v1024 = vld [vmem:[%s815 + $0x680] sm:$0xff]
        %v1025 = vld [vmem:[%s815 + $0x688] sm:$0xff]
        %v1026 = vld [vmem:[%s815 + $0x690] sm:$0xff]
        %v1027 = vld [vmem:[%s815 + $0x698] sm:$0xff]
        %v1028 = vld [vmem:[%s815 + $0x6a0] sm:$0xff]
        %v1029 = vld [vmem:[%s815 + $0x6a8] sm:$0xff]
        %v1030 = vld [vmem:[%s815 + $0x6b0] sm:$0xff]
        %v1031 = vld [vmem:[%s815 + $0x6b8] sm:$0xff]
        %v1032 = vld [vmem:[%s815 + $0x6c0] sm:$0xff]
        %v1033 = vld [vmem:[%s815 + $0x6c8] sm:$0xff]
        %v1034 = vld [vmem:[%s815 + $0x6d0] sm:$0xff]
        %v1035 = vld [vmem:[%s815 + $0x6d8] sm:$0xff]
        %v1036 = vld [vmem:[%s815 + $0x6e0] sm:$0xff]
        %v1037 = vld [vmem:[%s815 + $0x6e8] sm:$0xff]
        %v1038 = vld [vmem:[%s815 + $0x6f0] sm:$0xff]
        %v1039 = vld [vmem:[%s815 + $0x6f8] sm:$0xff]
        %v1040 = vld [vmem:[%s815 + $0x700] sm:$0xff]
        %v1041 = vld [vmem:[%s815 + $0x708] sm:$0xff]
        %v1042 = vld [vmem:[%s815 + $0x710] sm:$0xff]
        %v1043 = vld [vmem:[%s815 + $0x718] sm:$0xff]
        %v1044 = vld [vmem:[%s815 + $0x720] sm:$0xff]
        %v1045 = vld [vmem:[%s815 + $0x728] sm:$0xff]
        %v1046 = vld [vmem:[%s815 + $0x730] sm:$0xff]
        %v1047 = vld [vmem:[%s815 + $0x738] sm:$0xff]
        %v1048 = vld [vmem:[%s815 + $0x740] sm:$0xff]
        %v1049 = vld [vmem:[%s815 + $0x748] sm:$0xff]
        %v1050 = vld [vmem:[%s815 + $0x750] sm:$0xff]
        %v1051 = vld [vmem:[%s815 + $0x758] sm:$0xff]
        %v1052 = vld [vmem:[%s815 + $0x760] sm:$0xff]
        %v1053 = vld [vmem:[%s815 + $0x768] sm:$0xff]
        %v1054 = vld [vmem:[%s815 + $0x770] sm:$0xff]
        %v1055 = vld [vmem:[%s815 + $0x778] sm:$0xff]
        %v1056 = vld [vmem:[%s815 + $0x780] sm:$0xff]
        %v1057 = vld [vmem:[%s815 + $0x788] sm:$0xff]
        %v1058 = vld [vmem:[%s815 + $0x790] sm:$0xff]
        %v1059 = vld [vmem:[%s815 + $0x798] sm:$0xff]
        %v1060 = vld [vmem:[%s815 + $0x7a0] sm:$0xff]
        %v1061 = vld [vmem:[%s815 + $0x7a8] sm:$0xff]
        %v1062 = vld [vmem:[%s815 + $0x7b0] sm:$0xff]
        %v1063 = vld [vmem:[%s815 + $0x7b8] sm:$0xff]
        %v1064 = vld [vmem:[%s815 + $0x7c0] sm:$0xff]
        %v1065 = vld [vmem:[%s815 + $0x7c8] sm:$0xff]
        %v1066 = vld [vmem:[%s815 + $0x7d0] sm:$0xff]
        %v1067 = vld [vmem:[%s815 + $0x7d8] sm:$0xff]
        %v1068 = vld [vmem:[%s815 + $0x7e0] sm:$0xff]
        %v1069 = vld [vmem:[%s815 + $0x7e8] sm:$0xff]
        %v1070 = vld [vmem:[%s815 + $0x7f0] sm:$0xff]
        %v1071 = vld [vmem:[%s815 + $0x7f8] sm:$0xff]
        %1072 = vst [vmem:[#allocation1] ss:$2 sm:$0xff] %v754
        %s1073 = scalar_lea.vmem [#allocation1], 1
        %1074 = vst [vmem:[%s1073] ss:$2 sm:$0xff] %v770
        %s1075 = scalar_lea.vmem [#allocation1], 16
        %1076 = vst [vmem:[%s1075] ss:$2 sm:$0xff] %v758
        %s1077 = scalar_lea.vmem [#allocation1], 17
        %1078 = vst [vmem:[%s1077] ss:$2 sm:$0xff] %v774
        %s1079 = scalar_lea.vmem [#allocation1], 32
        %1080 = vst [vmem:[%s1079] ss:$2 sm:$0xff] %v762
        %s1081 = scalar_lea.vmem [#allocation1], 33
        %1082 = vst [vmem:[%s1081] ss:$2 sm:$0xff] %v778
        %s1083 = scalar_lea.vmem [#allocation1], 48
        %1084 = vst [vmem:[%s1083] ss:$2 sm:$0xff] %v766
        %s1085 = scalar_lea.vmem [#allocation1], 49
        %1086 = vst [vmem:[%s1085] ss:$2 sm:$0xff] %v782
        %v1087 = vld.sshfl [vmem:[#allocation1] sm:$0xff pattern:$0x75316420]
        %v1088 = vld.sshfl [vmem:[#allocation1 + $0x8] sm:$0xff pattern:$0x75316420]
        %v1089 = vld.sshfl [vmem:[#allocation1 + $0x10] sm:$0xff pattern:$0x75316420]
        %v1090 = vld.sshfl [vmem:[#allocation1 + $0x18] sm:$0xff pattern:$0x75316420]
        %v1091 = vld.sshfl [vmem:[#allocation1 + $0x20] sm:$0xff pattern:$0x75316420]
        %v1092 = vld.sshfl [vmem:[#allocation1 + $0x28] sm:$0xff pattern:$0x75316420]
        %v1093 = vld.sshfl [vmem:[#allocation1 + $0x30] sm:$0xff pattern:$0x75316420]
        %v1094 = vld.sshfl [vmem:[#allocation1 + $0x38] sm:$0xff pattern:$0x75316420]
        %1095 = vst [vmem:[#allocation1] ss:$2 sm:$0xff] %v786
        %1096 = vst [vmem:[%s1073] ss:$2 sm:$0xff] %v802
        %1097 = vst [vmem:[%s1075] ss:$2 sm:$0xff] %v790
        %1098 = vst [vmem:[%s1077] ss:$2 sm:$0xff] %v806
        %1099 = vst [vmem:[%s1079] ss:$2 sm:$0xff] %v794
        %1100 = vst [vmem:[%s1081] ss:$2 sm:$0xff] %v810
        %1101 = vst [vmem:[%s1083] ss:$2 sm:$0xff] %v798
        %1102 = vst [vmem:[%s1085] ss:$2 sm:$0xff] %v814
        %v1103 = vld.sshfl [vmem:[#allocation1] sm:$0xff pattern:$0x75316420]
        %v1104 = vld.sshfl [vmem:[#allocation1 + $0x8] sm:$0xff pattern:$0x75316420]
        %v1105 = vld.sshfl [vmem:[#allocation1 + $0x10] sm:$0xff pattern:$0x75316420]
        %v1106 = vld.sshfl [vmem:[#allocation1 + $0x18] sm:$0xff pattern:$0x75316420]
        %v1107 = vld.sshfl [vmem:[#allocation1 + $0x20] sm:$0xff pattern:$0x75316420]
        %v1108 = vld.sshfl [vmem:[#allocation1 + $0x28] sm:$0xff pattern:$0x75316420]
        %v1109 = vld.sshfl [vmem:[#allocation1 + $0x30] sm:$0xff pattern:$0x75316420]
        %v1110 = vld.sshfl [vmem:[#allocation1 + $0x38] sm:$0xff pattern:$0x75316420]
        %1127 = vmatpush.msra.mxu0 %v846
        %1128 = vmatpush.msra.mxu0 %v844
        %1129 = vmatpush.msra.mxu0 %v842
        %1130 = vmatpush.msra.mxu0 %v840
        %1131 = vmatpush.msra.mxu0 %v838
        %1132 = vmatpush.msra.mxu0 %v836
        %1133 = vmatpush.msra.mxu0 %v834
        %1134 = vmatpush.msra.mxu0 %v832
        %1135 = vmatpush.msra.mxu0 %v830
        %1136 = vmatpush.msra.mxu0 %v828
        %1137 = vmatpush.msra.mxu0 %v826
        %1138 = vmatpush.msra.mxu0 %v824
        %1139 = vmatpush.msra.mxu0 %v822
        %1140 = vmatpush.msra.mxu0 %v820
        %1141 = vmatpush.msra.mxu0 %v818
        %1142 = vmatpush.msra.mxu0 %v816
        %1143 = vmatmul.f32.gmra.mxu0 %v1087
        %v1144 = vpop.f32.mrf.mxu0
        %v1145 = vadd.f32 0.0, %v1144
        %1146 = vmatmul.f32.gmra.mxu0 %v1103
        %v1147 = vpop.f32.mrf.mxu0
        %v1148 = vadd.f32 0.0, %v1147
        %1149 = vdwg.mxu0
        %1150 = vmatpush.msra.mxu0 %v878
        %1151 = vmatpush.msra.mxu0 %v876
        %1152 = vmatpush.msra.mxu0 %v874
        %1153 = vmatpush.msra.mxu0 %v872
        %1154 = vmatpush.msra.mxu0 %v870
        %1155 = vmatpush.msra.mxu0 %v868
        %1156 = vmatpush.msra.mxu0 %v866
        %1157 = vmatpush.msra.mxu0 %v864
        %1158 = vmatpush.msra.mxu0 %v862
        %1159 = vmatpush.msra.mxu0 %v860
        %1160 = vmatpush.msra.mxu0 %v858
        %1161 = vmatpush.msra.mxu0 %v856
        %1162 = vmatpush.msra.mxu0 %v854
        %1163 = vmatpush.msra.mxu0 %v852
        %1164 = vmatpush.msra.mxu0 %v850
        %1165 = vmatpush.msra.mxu0 %v848
        %1166 = vmatmul.f32.gmra.mxu0 %v1088
        %v1167 = vpop.f32.mrf.mxu0
        %v1168 = vadd.f32 %v1145, %v1167
        %1169 = vmatmul.f32.gmra.mxu0 %v1104
        %v1170 = vpop.f32.mrf.mxu0
        %v1171 = vadd.f32 %v1148, %v1170
        %1172 = vdwg.mxu0
        %1173 = vmatpush.msra.mxu0 %v910
        %1174 = vmatpush.msra.mxu0 %v908
        %1175 = vmatpush.msra.mxu0 %v906
        %1176 = vmatpush.msra.mxu0 %v904
        %1177 = vmatpush.msra.mxu0 %v902
        %1178 = vmatpush.msra.mxu0 %v900
        %1179 = vmatpush.msra.mxu0 %v898
        %1180 = vmatpush.msra.mxu0 %v896
        %1181 = vmatpush.msra.mxu0 %v894
        %1182 = vmatpush.msra.mxu0 %v892
        %1183 = vmatpush.msra.mxu0 %v890
        %1184 = vmatpush.msra.mxu0 %v888
        %1185 = vmatpush.msra.mxu0 %v886
        %1186 = vmatpush.msra.mxu0 %v884
        %1187 = vmatpush.msra.mxu0 %v882
        %1188 = vmatpush.msra.mxu0 %v880
        %1189 = vmatmul.f32.gmra.mxu0 %v1089
        %v1190 = vpop.f32.mrf.mxu0
        %v1191 = vadd.f32 %v1168, %v1190
        %1192 = vmatmul.f32.gmra.mxu0 %v1105
        %v1193 = vpop.f32.mrf.mxu0
        %v1194 = vadd.f32 %v1171, %v1193
        %1195 = vdwg.mxu0
        %1196 = vmatpush.msra.mxu0 %v942
        %1197 = vmatpush.msra.mxu0 %v940
        %1198 = vmatpush.msra.mxu0 %v938
        %1199 = vmatpush.msra.mxu0 %v936
        %1200 = vmatpush.msra.mxu0 %v934
        %1201 = vmatpush.msra.mxu0 %v932
        %1202 = vmatpush.msra.mxu0 %v930
        %1203 = vmatpush.msra.mxu0 %v928
        %1204 = vmatpush.msra.mxu0 %v926
        %1205 = vmatpush.msra.mxu0 %v924
        %1206 = vmatpush.msra.mxu0 %v922
        %1207 = vmatpush.msra.mxu0 %v920
        %1208 = vmatpush.msra.mxu0 %v918
        %1209 = vmatpush.msra.mxu0 %v916
        %1210 = vmatpush.msra.mxu0 %v914
        %1211 = vmatpush.msra.mxu0 %v912
        %1212 = vmatmul.f32.gmra.mxu0 %v1090
        %v1213 = vpop.f32.mrf.mxu0
        %v1214 = vadd.f32 %v1191, %v1213
        %1215 = vmatmul.f32.gmra.mxu0 %v1106
        %v1216 = vpop.f32.mrf.mxu0
        %v1217 = vadd.f32 %v1194, %v1216
        %1218 = vdwg.mxu0
        %1219 = vmatpush.msra.mxu0 %v974
        %1220 = vmatpush.msra.mxu0 %v972
        %1221 = vmatpush.msra.mxu0 %v970
        %1222 = vmatpush.msra.mxu0 %v968
        %1223 = vmatpush.msra.mxu0 %v966
        %1224 = vmatpush.msra.mxu0 %v964
        %1225 = vmatpush.msra.mxu0 %v962
        %1226 = vmatpush.msra.mxu0 %v960
        %1227 = vmatpush.msra.mxu0 %v958
        %1228 = vmatpush.msra.mxu0 %v956
        %1229 = vmatpush.msra.mxu0 %v954
        %1230 = vmatpush.msra.mxu0 %v952
        %1231 = vmatpush.msra.mxu0 %v950
        %1232 = vmatpush.msra.mxu0 %v948
        %1233 = vmatpush.msra.mxu0 %v946
        %1234 = vmatpush.msra.mxu0 %v944
        %1235 = vmatmul.f32.gmra.mxu0 %v1091
        %v1236 = vpop.f32.mrf.mxu0
        %v1237 = vadd.f32 %v1214, %v1236
        %1238 = vmatmul.f32.gmra.mxu0 %v1107
        %v1239 = vpop.f32.mrf.mxu0
        %v1240 = vadd.f32 %v1217, %v1239
        %1241 = vdwg.mxu0
        %1242 = vmatpush.msra.mxu0 %v1006
        %1243 = vmatpush.msra.mxu0 %v1004
        %1244 = vmatpush.msra.mxu0 %v1002
        %1245 = vmatpush.msra.mxu0 %v1000
        %1246 = vmatpush.msra.mxu0 %v998
        %1247 = vmatpush.msra.mxu0 %v996
        %1248 = vmatpush.msra.mxu0 %v994
        %1249 = vmatpush.msra.mxu0 %v992
        %1250 = vmatpush.msra.mxu0 %v990
        %1251 = vmatpush.msra.mxu0 %v988
        %1252 = vmatpush.msra.mxu0 %v986
        %1253 = vmatpush.msra.mxu0 %v984
        %1254 = vmatpush.msra.mxu0 %v982
        %1255 = vmatpush.msra.mxu0 %v980
        %1256 = vmatpush.msra.mxu0 %v978
        %1257 = vmatpush.msra.mxu0 %v976
        %1258 = vmatmul.f32.gmra.mxu0 %v1092
        %v1259 = vpop.f32.mrf.mxu0
        %v1260 = vadd.f32 %v1237, %v1259
        %1261 = vmatmul.f32.gmra.mxu0 %v1108
        %v1262 = vpop.f32.mrf.mxu0
        %v1263 = vadd.f32 %v1240, %v1262
        %1264 = vdwg.mxu0
        %1265 = vmatpush.msra.mxu0 %v1038
        %1266 = vmatpush.msra.mxu0 %v1036
        %1267 = vmatpush.msra.mxu0 %v1034
        %1268 = vmatpush.msra.mxu0 %v1032
        %1269 = vmatpush.msra.mxu0 %v1030
        %1270 = vmatpush.msra.mxu0 %v1028
        %1271 = vmatpush.msra.mxu0 %v1026
        %1272 = vmatpush.msra.mxu0 %v1024
        %1273 = vmatpush.msra.mxu0 %v1022
        %1274 = vmatpush.msra.mxu0 %v1020
        %1275 = vmatpush.msra.mxu0 %v1018
        %1276 = vmatpush.msra.mxu0 %v1016
        %1277 = vmatpush.msra.mxu0 %v1014
        %1278 = vmatpush.msra.mxu0 %v1012
        %1279 = vmatpush.msra.mxu0 %v1010
        %1280 = vmatpush.msra.mxu0 %v1008
        %1281 = vmatmul.f32.gmra.mxu0 %v1093
        %v1282 = vpop.f32.mrf.mxu0
        %v1283 = vadd.f32 %v1260, %v1282
        %1284 = vmatmul.f32.gmra.mxu0 %v1109
        %v1285 = vpop.f32.mrf.mxu0
        %v1286 = vadd.f32 %v1263, %v1285
        %1287 = vdwg.mxu0
        %1288 = vmatpush.msra.mxu0 %v1070
        %1289 = vmatpush.msra.mxu0 %v1068
        %1290 = vmatpush.msra.mxu0 %v1066
        %1291 = vmatpush.msra.mxu0 %v1064
        %1292 = vmatpush.msra.mxu0 %v1062
        %1293 = vmatpush.msra.mxu0 %v1060
        %1294 = vmatpush.msra.mxu0 %v1058
        %1295 = vmatpush.msra.mxu0 %v1056
        %1296 = vmatpush.msra.mxu0 %v1054
        %1297 = vmatpush.msra.mxu0 %v1052
        %1298 = vmatpush.msra.mxu0 %v1050
        %1299 = vmatpush.msra.mxu0 %v1048
        %1300 = vmatpush.msra.mxu0 %v1046
        %1301 = vmatpush.msra.mxu0 %v1044
        %1302 = vmatpush.msra.mxu0 %v1042
        %1303 = vmatpush.msra.mxu0 %v1040
        %1304 = vmatmul.f32.gmra.mxu0 %v1094
        %v1305 = vpop.f32.mrf.mxu0
        %v1306 = vadd.f32 %v1283, %v1305
        %1307 = vmatmul.f32.gmra.mxu0 %v1110
        %v1308 = vpop.f32.mrf.mxu0
        %v1309 = vadd.f32 %v1286, %v1308
        %1310 = vdwg.mxu0
        %1311 = vmatpush.msra.mxu0 %v847
        %1312 = vmatpush.msra.mxu0 %v845
        %1313 = vmatpush.msra.mxu0 %v843
        %1314 = vmatpush.msra.mxu0 %v841
        %1315 = vmatpush.msra.mxu0 %v839
        %1316 = vmatpush.msra.mxu0 %v837
        %1317 = vmatpush.msra.mxu0 %v835
        %1318 = vmatpush.msra.mxu0 %v833
        %1319 = vmatpush.msra.mxu0 %v831
        %1320 = vmatpush.msra.mxu0 %v829
        %1321 = vmatpush.msra.mxu0 %v827
        %1322 = vmatpush.msra.mxu0 %v825
        %1323 = vmatpush.msra.mxu0 %v823
        %1324 = vmatpush.msra.mxu0 %v821
        %1325 = vmatpush.msra.mxu0 %v819
        %1326 = vmatpush.msra.mxu0 %v817
        %1327 = vmatmul.f32.gmra.mxu0 %v1087
        %v1328 = vpop.f32.mrf.mxu0
        %v1329 = vadd.f32 0.0, %v1328
        %1330 = vmatmul.f32.gmra.mxu0 %v1103
        %v1331 = vpop.f32.mrf.mxu0
        %v1332 = vadd.f32 0.0, %v1331
        %1333 = vdwg.mxu0
        %1334 = vmatpush.msra.mxu0 %v879
        %1335 = vmatpush.msra.mxu0 %v877
        %1336 = vmatpush.msra.mxu0 %v875
        %1337 = vmatpush.msra.mxu0 %v873
        %1338 = vmatpush.msra.mxu0 %v871
        %1339 = vmatpush.msra.mxu0 %v869
        %1340 = vmatpush.msra.mxu0 %v867
        %1341 = vmatpush.msra.mxu0 %v865
        %1342 = vmatpush.msra.mxu0 %v863
        %1343 = vmatpush.msra.mxu0 %v861
        %1344 = vmatpush.msra.mxu0 %v859
        %1345 = vmatpush.msra.mxu0 %v857
        %1346 = vmatpush.msra.mxu0 %v855
        %1347 = vmatpush.msra.mxu0 %v853
        %1348 = vmatpush.msra.mxu0 %v851
        %1349 = vmatpush.msra.mxu0 %v849
        %1350 = vmatmul.f32.gmra.mxu0 %v1088
        %v1351 = vpop.f32.mrf.mxu0
        %v1352 = vadd.f32 %v1329, %v1351
        %1353 = vmatmul.f32.gmra.mxu0 %v1104
        %v1354 = vpop.f32.mrf.mxu0
        %v1355 = vadd.f32 %v1332, %v1354
        %1356 = vdwg.mxu0
        %1357 = vmatpush.msra.mxu0 %v911
        %1358 = vmatpush.msra.mxu0 %v909
        %1359 = vmatpush.msra.mxu0 %v907
        %1360 = vmatpush.msra.mxu0 %v905
        %1361 = vmatpush.msra.mxu0 %v903
        %1362 = vmatpush.msra.mxu0 %v901
        %1363 = vmatpush.msra.mxu0 %v899
        %1364 = vmatpush.msra.mxu0 %v897
        %1365 = vmatpush.msra.mxu0 %v895
        %1366 = vmatpush.msra.mxu0 %v893
        %1367 = vmatpush.msra.mxu0 %v891
        %1368 = vmatpush.msra.mxu0 %v889
        %1369 = vmatpush.msra.mxu0 %v887
        %1370 = vmatpush.msra.mxu0 %v885
        %1371 = vmatpush.msra.mxu0 %v883
        %1372 = vmatpush.msra.mxu0 %v881
        %1373 = vmatmul.f32.gmra.mxu0 %v1089
        %v1374 = vpop.f32.mrf.mxu0
        %v1375 = vadd.f32 %v1352, %v1374
        %1376 = vmatmul.f32.gmra.mxu0 %v1105
        %v1377 = vpop.f32.mrf.mxu0
        %v1378 = vadd.f32 %v1355, %v1377
        %1379 = vdwg.mxu0
        %1380 = vmatpush.msra.mxu0 %v943
        %1381 = vmatpush.msra.mxu0 %v941
        %1382 = vmatpush.msra.mxu0 %v939
        %1383 = vmatpush.msra.mxu0 %v937
        %1384 = vmatpush.msra.mxu0 %v935
        %1385 = vmatpush.msra.mxu0 %v933
        %1386 = vmatpush.msra.mxu0 %v931
        %1387 = vmatpush.msra.mxu0 %v929
        %1388 = vmatpush.msra.mxu0 %v927
        %1389 = vmatpush.msra.mxu0 %v925
        %1390 = vmatpush.msra.mxu0 %v923
        %1391 = vmatpush.msra.mxu0 %v921
        %1392 = vmatpush.msra.mxu0 %v919
        %1393 = vmatpush.msra.mxu0 %v917
        %1394 = vmatpush.msra.mxu0 %v915
        %1395 = vmatpush.msra.mxu0 %v913
        %1396 = vmatmul.f32.gmra.mxu0 %v1090
        %v1397 = vpop.f32.mrf.mxu0
        %v1398 = vadd.f32 %v1375, %v1397
        %1399 = vmatmul.f32.gmra.mxu0 %v1106
        %v1400 = vpop.f32.mrf.mxu0
        %v1401 = vadd.f32 %v1378, %v1400
        %1402 = vdwg.mxu0
        %1403 = vmatpush.msra.mxu0 %v975
        %1404 = vmatpush.msra.mxu0 %v973
        %1405 = vmatpush.msra.mxu0 %v971
        %1406 = vmatpush.msra.mxu0 %v969
        %1407 = vmatpush.msra.mxu0 %v967
        %1408 = vmatpush.msra.mxu0 %v965
        %1409 = vmatpush.msra.mxu0 %v963
        %1410 = vmatpush.msra.mxu0 %v961
        %1411 = vmatpush.msra.mxu0 %v959
        %1412 = vmatpush.msra.mxu0 %v957
        %1413 = vmatpush.msra.mxu0 %v955
        %1414 = vmatpush.msra.mxu0 %v953
        %1415 = vmatpush.msra.mxu0 %v951
        %1416 = vmatpush.msra.mxu0 %v949
        %1417 = vmatpush.msra.mxu0 %v947
        %1418 = vmatpush.msra.mxu0 %v945
        %1419 = vmatmul.f32.gmra.mxu0 %v1091
        %v1420 = vpop.f32.mrf.mxu0
        %v1421 = vadd.f32 %v1398, %v1420
        %1422 = vmatmul.f32.gmra.mxu0 %v1107
        %v1423 = vpop.f32.mrf.mxu0
        %v1424 = vadd.f32 %v1401, %v1423
        %1425 = vdwg.mxu0
        %1426 = vmatpush.msra.mxu0 %v1007
        %1427 = vmatpush.msra.mxu0 %v1005
        %1428 = vmatpush.msra.mxu0 %v1003
        %1429 = vmatpush.msra.mxu0 %v1001
        %1430 = vmatpush.msra.mxu0 %v999
        %1431 = vmatpush.msra.mxu0 %v997
        %1432 = vmatpush.msra.mxu0 %v995
        %1433 = vmatpush.msra.mxu0 %v993
        %1434 = vmatpush.msra.mxu0 %v991
        %1435 = vmatpush.msra.mxu0 %v989
        %1436 = vmatpush.msra.mxu0 %v987
        %1437 = vmatpush.msra.mxu0 %v985
        %1438 = vmatpush.msra.mxu0 %v983
        %1439 = vmatpush.msra.mxu0 %v981
        %1440 = vmatpush.msra.mxu0 %v979
        %1441 = vmatpush.msra.mxu0 %v977
        %1442 = vmatmul.f32.gmra.mxu0 %v1092
        %v1443 = vpop.f32.mrf.mxu0
        %v1444 = vadd.f32 %v1421, %v1443
        %1445 = vmatmul.f32.gmra.mxu0 %v1108
        %v1446 = vpop.f32.mrf.mxu0
        %v1447 = vadd.f32 %v1424, %v1446
        %1448 = vdwg.mxu0
        %1449 = vmatpush.msra.mxu0 %v1039
        %1450 = vmatpush.msra.mxu0 %v1037
        %1451 = vmatpush.msra.mxu0 %v1035
        %1452 = vmatpush.msra.mxu0 %v1033
        %1453 = vmatpush.msra.mxu0 %v1031
        %1454 = vmatpush.msra.mxu0 %v1029
        %1455 = vmatpush.msra.mxu0 %v1027
        %1456 = vmatpush.msra.mxu0 %v1025
        %1457 = vmatpush.msra.mxu0 %v1023
        %1458 = vmatpush.msra.mxu0 %v1021
        %1459 = vmatpush.msra.mxu0 %v1019
        %1460 = vmatpush.msra.mxu0 %v1017
        %1461 = vmatpush.msra.mxu0 %v1015
        %1462 = vmatpush.msra.mxu0 %v1013
        %1463 = vmatpush.msra.mxu0 %v1011
        %1464 = vmatpush.msra.mxu0 %v1009
        %1465 = vmatmul.f32.gmra.mxu0 %v1093
        %v1466 = vpop.f32.mrf.mxu0
        %v1467 = vadd.f32 %v1444, %v1466
        %1468 = vmatmul.f32.gmra.mxu0 %v1109
        %v1469 = vpop.f32.mrf.mxu0
        %v1470 = vadd.f32 %v1447, %v1469
        %1471 = vdwg.mxu0
        %1472 = vmatpush.msra.mxu0 %v1071
        %1473 = vmatpush.msra.mxu0 %v1069
        %1474 = vmatpush.msra.mxu0 %v1067
        %1475 = vmatpush.msra.mxu0 %v1065
        %1476 = vmatpush.msra.mxu0 %v1063
        %1477 = vmatpush.msra.mxu0 %v1061
        %1478 = vmatpush.msra.mxu0 %v1059
        %1479 = vmatpush.msra.mxu0 %v1057
        %1480 = vmatpush.msra.mxu0 %v1055
        %1481 = vmatpush.msra.mxu0 %v1053
        %1482 = vmatpush.msra.mxu0 %v1051
        %1483 = vmatpush.msra.mxu0 %v1049
        %1484 = vmatpush.msra.mxu0 %v1047
        %1485 = vmatpush.msra.mxu0 %v1045
        %1486 = vmatpush.msra.mxu0 %v1043
        %1487 = vmatpush.msra.mxu0 %v1041
        %1488 = vmatmul.f32.gmra.mxu0 %v1094
        %v1489 = vpop.f32.mrf.mxu0
        %v1490 = vadd.f32 %v1467, %v1489
        %1491 = vmatmul.f32.gmra.mxu0 %v1110
        %v1492 = vpop.f32.mrf.mxu0
        %v1493 = vadd.f32 %v1470, %v1492
        %1494 = vdwg.mxu0
        %1495 = vst [vmem:[#allocation1] ss:$2 sm:$0xff] %v348
        %s1496 = scalar_lea.vmem [#allocation1], 1
        %1497 = vst [vmem:[%s1496] ss:$2 sm:$0xff] %v352
        %s1498 = scalar_lea.vmem [#allocation1], 16
        %1499 = vst [vmem:[%s1498] ss:$2 sm:$0xff] %v349
        %s1500 = scalar_lea.vmem [#allocation1], 17
        %1501 = vst [vmem:[%s1500] ss:$2 sm:$0xff] %v353
        %s1502 = scalar_lea.vmem [#allocation1], 32
        %1503 = vst [vmem:[%s1502] ss:$2 sm:$0xff] %v350
        %s1504 = scalar_lea.vmem [#allocation1], 33
        %1505 = vst [vmem:[%s1504] ss:$2 sm:$0xff] %v354
        %s1506 = scalar_lea.vmem [#allocation1], 48
        %1507 = vst [vmem:[%s1506] ss:$2 sm:$0xff] %v351
        %s1508 = scalar_lea.vmem [#allocation1], 49
        %1509 = vst [vmem:[%s1508] ss:$2 sm:$0xff] %v355
        %v1510 = vld.sshfl [vmem:[#allocation1] sm:$0xff pattern:$0x75316420]
        %v1511 = vld.sshfl [vmem:[#allocation1 + $0x8] sm:$0xff pattern:$0x75316420]
        %v1512 = vld.sshfl [vmem:[#allocation1 + $0x10] sm:$0xff pattern:$0x75316420]
        %v1513 = vld.sshfl [vmem:[#allocation1 + $0x18] sm:$0xff pattern:$0x75316420]
        %v1514 = vld.sshfl [vmem:[#allocation1 + $0x20] sm:$0xff pattern:$0x75316420]
        %v1515 = vld.sshfl [vmem:[#allocation1 + $0x28] sm:$0xff pattern:$0x75316420]
        %v1516 = vld.sshfl [vmem:[#allocation1 + $0x30] sm:$0xff pattern:$0x75316420]
        %v1517 = vld.sshfl [vmem:[#allocation1 + $0x38] sm:$0xff pattern:$0x75316420]
        %1518 = vst [vmem:[#allocation1] ss:$2 sm:$0xff] %v356
        %1519 = vst [vmem:[%s1496] ss:$2 sm:$0xff] %v360
        %1520 = vst [vmem:[%s1498] ss:$2 sm:$0xff] %v357
        %1521 = vst [vmem:[%s1500] ss:$2 sm:$0xff] %v361
        %1522 = vst [vmem:[%s1502] ss:$2 sm:$0xff] %v358
        %1523 = vst [vmem:[%s1504] ss:$2 sm:$0xff] %v362
        %1524 = vst [vmem:[%s1506] ss:$2 sm:$0xff] %v359
        %1525 = vst [vmem:[%s1508] ss:$2 sm:$0xff] %v363
        %v1526 = vld.sshfl [vmem:[#allocation1] sm:$0xff pattern:$0x75316420]
        %v1527 = vld.sshfl [vmem:[#allocation1 + $0x8] sm:$0xff pattern:$0x75316420]
        %v1528 = vld.sshfl [vmem:[#allocation1 + $0x10] sm:$0xff pattern:$0x75316420]
        %v1529 = vld.sshfl [vmem:[#allocation1 + $0x18] sm:$0xff pattern:$0x75316420]
        %v1530 = vld.sshfl [vmem:[#allocation1 + $0x20] sm:$0xff pattern:$0x75316420]
        %v1531 = vld.sshfl [vmem:[#allocation1 + $0x28] sm:$0xff pattern:$0x75316420]
        %v1532 = vld.sshfl [vmem:[#allocation1 + $0x30] sm:$0xff pattern:$0x75316420]
        %v1533 = vld.sshfl [vmem:[#allocation1 + $0x38] sm:$0xff pattern:$0x75316420]
        %1550 = vmatpush.msra.mxu0 %v394
        %1551 = vmatpush.msra.mxu0 %v392
        %1552 = vmatpush.msra.mxu0 %v390
        %1553 = vmatpush.msra.mxu0 %v388
        %1554 = vmatpush.msra.mxu0 %v386
        %1555 = vmatpush.msra.mxu0 %v384
        %1556 = vmatpush.msra.mxu0 %v382
        %1557 = vmatpush.msra.mxu0 %v380
        %1558 = vmatpush.msra.mxu0 %v378
        %1559 = vmatpush.msra.mxu0 %v376
        %1560 = vmatpush.msra.mxu0 %v374
        %1561 = vmatpush.msra.mxu0 %v372
        %1562 = vmatpush.msra.mxu0 %v370
        %1563 = vmatpush.msra.mxu0 %v368
        %1564 = vmatpush.msra.mxu0 %v366
        %1565 = vmatpush.msra.mxu0 %v364
        %1566 = vmatmul.f32.gmra.mxu0 %v1510
        %v1567 = vpop.f32.mrf.mxu0
        %v1568 = vadd.f32 %v1306, %v1567
        %1569 = vmatmul.f32.gmra.mxu0 %v1526
        %v1570 = vpop.f32.mrf.mxu0
        %v1571 = vadd.f32 %v1309, %v1570
        %1572 = vdwg.mxu0
        %1573 = vmatpush.msra.mxu0 %v426
        %1574 = vmatpush.msra.mxu0 %v424
        %1575 = vmatpush.msra.mxu0 %v422
        %1576 = vmatpush.msra.mxu0 %v420
        %1577 = vmatpush.msra.mxu0 %v418
        %1578 = vmatpush.msra.mxu0 %v416
        %1579 = vmatpush.msra.mxu0 %v414
        %1580 = vmatpush.msra.mxu0 %v412
        %1581 = vmatpush.msra.mxu0 %v410
        %1582 = vmatpush.msra.mxu0 %v408
        %1583 = vmatpush.msra.mxu0 %v406
        %1584 = vmatpush.msra.mxu0 %v404
        %1585 = vmatpush.msra.mxu0 %v402
        %1586 = vmatpush.msra.mxu0 %v400
        %1587 = vmatpush.msra.mxu0 %v398
        %1588 = vmatpush.msra.mxu0 %v396
        %1589 = vmatmul.f32.gmra.mxu0 %v1511
        %v1590 = vpop.f32.mrf.mxu0
        %v1591 = vadd.f32 %v1568, %v1590
        %1592 = vmatmul.f32.gmra.mxu0 %v1527
        %v1593 = vpop.f32.mrf.mxu0
        %v1594 = vadd.f32 %v1571, %v1593
        %1595 = vdwg.mxu0
        %1596 = vmatpush.msra.mxu0 %v458
        %1597 = vmatpush.msra.mxu0 %v456
        %1598 = vmatpush.msra.mxu0 %v454
        %1599 = vmatpush.msra.mxu0 %v452
        %1600 = vmatpush.msra.mxu0 %v450
        %1601 = vmatpush.msra.mxu0 %v448
        %1602 = vmatpush.msra.mxu0 %v446
        %1603 = vmatpush.msra.mxu0 %v444
        %1604 = vmatpush.msra.mxu0 %v442
        %1605 = vmatpush.msra.mxu0 %v440
        %1606 = vmatpush.msra.mxu0 %v438
        %1607 = vmatpush.msra.mxu0 %v436
        %1608 = vmatpush.msra.mxu0 %v434
        %1609 = vmatpush.msra.mxu0 %v432
        %1610 = vmatpush.msra.mxu0 %v430
        %1611 = vmatpush.msra.mxu0 %v428
        %1612 = vmatmul.f32.gmra.mxu0 %v1512
        %v1613 = vpop.f32.mrf.mxu0
        %v1614 = vadd.f32 %v1591, %v1613
        %1615 = vmatmul.f32.gmra.mxu0 %v1528
        %v1616 = vpop.f32.mrf.mxu0
        %v1617 = vadd.f32 %v1594, %v1616
        %1618 = vdwg.mxu0
        %1619 = vmatpush.msra.mxu0 %v490
        %1620 = vmatpush.msra.mxu0 %v488
        %1621 = vmatpush.msra.mxu0 %v486
        %1622 = vmatpush.msra.mxu0 %v484
        %1623 = vmatpush.msra.mxu0 %v482
        %1624 = vmatpush.msra.mxu0 %v480
        %1625 = vmatpush.msra.mxu0 %v478
        %1626 = vmatpush.msra.mxu0 %v476
        %1627 = vmatpush.msra.mxu0 %v474
        %1628 = vmatpush.msra.mxu0 %v472
        %1629 = vmatpush.msra.mxu0 %v470
        %1630 = vmatpush.msra.mxu0 %v468
        %1631 = vmatpush.msra.mxu0 %v466
        %1632 = vmatpush.msra.mxu0 %v464
        %1633 = vmatpush.msra.mxu0 %v462
        %1634 = vmatpush.msra.mxu0 %v460
        %1635 = vmatmul.f32.gmra.mxu0 %v1513
        %v1636 = vpop.f32.mrf.mxu0
        %v1637 = vadd.f32 %v1614, %v1636
        %1638 = vmatmul.f32.gmra.mxu0 %v1529
        %v1639 = vpop.f32.mrf.mxu0
        %v1640 = vadd.f32 %v1617, %v1639
        %1641 = vdwg.mxu0
        %1642 = vmatpush.msra.mxu0 %v522
        %1643 = vmatpush.msra.mxu0 %v520
        %1644 = vmatpush.msra.mxu0 %v518
        %1645 = vmatpush.msra.mxu0 %v516
        %1646 = vmatpush.msra.mxu0 %v514
        %1647 = vmatpush.msra.mxu0 %v512
        %1648 = vmatpush.msra.mxu0 %v510
        %1649 = vmatpush.msra.mxu0 %v508
        %1650 = vmatpush.msra.mxu0 %v506
        %1651 = vmatpush.msra.mxu0 %v504
        %1652 = vmatpush.msra.mxu0 %v502
        %1653 = vmatpush.msra.mxu0 %v500
        %1654 = vmatpush.msra.mxu0 %v498
        %1655 = vmatpush.msra.mxu0 %v496
        %1656 = vmatpush.msra.mxu0 %v494
        %1657 = vmatpush.msra.mxu0 %v492
        %1658 = vmatmul.f32.gmra.mxu0 %v1514
        %v1659 = vpop.f32.mrf.mxu0
        %v1660 = vadd.f32 %v1637, %v1659
        %1661 = vmatmul.f32.gmra.mxu0 %v1530
        %v1662 = vpop.f32.mrf.mxu0
        %v1663 = vadd.f32 %v1640, %v1662
        %1664 = vdwg.mxu0
        %1665 = vmatpush.msra.mxu0 %v554
        %1666 = vmatpush.msra.mxu0 %v552
        %1667 = vmatpush.msra.mxu0 %v550
        %1668 = vmatpush.msra.mxu0 %v548
        %1669 = vmatpush.msra.mxu0 %v546
        %1670 = vmatpush.msra.mxu0 %v544
        %1671 = vmatpush.msra.mxu0 %v542
        %1672 = vmatpush.msra.mxu0 %v540
        %1673 = vmatpush.msra.mxu0 %v538
        %1674 = vmatpush.msra.mxu0 %v536
        %1675 = vmatpush.msra.mxu0 %v534
        %1676 = vmatpush.msra.mxu0 %v532
        %1677 = vmatpush.msra.mxu0 %v530
        %1678 = vmatpush.msra.mxu0 %v528
        %1679 = vmatpush.msra.mxu0 %v526
        %1680 = vmatpush.msra.mxu0 %v524
        %1681 = vmatmul.f32.gmra.mxu0 %v1515
        %v1682 = vpop.f32.mrf.mxu0
        %v1683 = vadd.f32 %v1660, %v1682
        %1684 = vmatmul.f32.gmra.mxu0 %v1531
        %v1685 = vpop.f32.mrf.mxu0
        %v1686 = vadd.f32 %v1663, %v1685
        %1687 = vdwg.mxu0
        %1688 = vmatpush.msra.mxu0 %v586
        %1689 = vmatpush.msra.mxu0 %v584
        %1690 = vmatpush.msra.mxu0 %v582
        %1691 = vmatpush.msra.mxu0 %v580
        %1692 = vmatpush.msra.mxu0 %v578
        %1693 = vmatpush.msra.mxu0 %v576
        %1694 = vmatpush.msra.mxu0 %v574
        %1695 = vmatpush.msra.mxu0 %v572
        %1696 = vmatpush.msra.mxu0 %v570
        %1697 = vmatpush.msra.mxu0 %v568
        %1698 = vmatpush.msra.mxu0 %v566
        %1699 = vmatpush.msra.mxu0 %v564
        %1700 = vmatpush.msra.mxu0 %v562
        %1701 = vmatpush.msra.mxu0 %v560
        %1702 = vmatpush.msra.mxu0 %v558
        %1703 = vmatpush.msra.mxu0 %v556
        %1704 = vmatmul.f32.gmra.mxu0 %v1516
        %v1705 = vpop.f32.mrf.mxu0
        %v1706 = vadd.f32 %v1683, %v1705
        %1707 = vmatmul.f32.gmra.mxu0 %v1532
        %v1708 = vpop.f32.mrf.mxu0
        %v1709 = vadd.f32 %v1686, %v1708
        %1710 = vdwg.mxu0
        %1711 = vmatpush.msra.mxu0 %v618
        %1712 = vmatpush.msra.mxu0 %v616
        %1713 = vmatpush.msra.mxu0 %v614
        %1714 = vmatpush.msra.mxu0 %v612
        %1715 = vmatpush.msra.mxu0 %v610
        %1716 = vmatpush.msra.mxu0 %v608
        %1717 = vmatpush.msra.mxu0 %v606
        %1718 = vmatpush.msra.mxu0 %v604
        %1719 = vmatpush.msra.mxu0 %v602
        %1720 = vmatpush.msra.mxu0 %v600
        %1721 = vmatpush.msra.mxu0 %v598
        %1722 = vmatpush.msra.mxu0 %v596
        %1723 = vmatpush.msra.mxu0 %v594
        %1724 = vmatpush.msra.mxu0 %v592
        %1725 = vmatpush.msra.mxu0 %v590
        %1726 = vmatpush.msra.mxu0 %v588
        %1727 = vmatmul.f32.gmra.mxu0 %v1517
        %v1728 = vpop.f32.mrf.mxu0
        %v1729 = vadd.f32 %v1706, %v1728
        %1730 = vmatmul.f32.gmra.mxu0 %v1533
        %v1731 = vpop.f32.mrf.mxu0
        %v1732 = vadd.f32 %v1709, %v1731
        %1733 = vdwg.mxu0
        %1734 = vmatpush.msra.mxu0 %v395
        %1735 = vmatpush.msra.mxu0 %v393
        %1736 = vmatpush.msra.mxu0 %v391
        %1737 = vmatpush.msra.mxu0 %v389
        %1738 = vmatpush.msra.mxu0 %v387
        %1739 = vmatpush.msra.mxu0 %v385
        %1740 = vmatpush.msra.mxu0 %v383
        %1741 = vmatpush.msra.mxu0 %v381
        %1742 = vmatpush.msra.mxu0 %v379
        %1743 = vmatpush.msra.mxu0 %v377
        %1744 = vmatpush.msra.mxu0 %v375
        %1745 = vmatpush.msra.mxu0 %v373
        %1746 = vmatpush.msra.mxu0 %v371
        %1747 = vmatpush.msra.mxu0 %v369
        %1748 = vmatpush.msra.mxu0 %v367
        %1749 = vmatpush.msra.mxu0 %v365
        %1750 = vmatmul.f32.gmra.mxu0 %v1510
        %v1751 = vpop.f32.mrf.mxu0
        %v1752 = vadd.f32 %v1490, %v1751
        %1753 = vmatmul.f32.gmra.mxu0 %v1526
        %v1754 = vpop.f32.mrf.mxu0
        %v1755 = vadd.f32 %v1493, %v1754
        %1756 = vdwg.mxu0
        %1757 = vmatpush.msra.mxu0 %v427
        %1758 = vmatpush.msra.mxu0 %v425
        %1759 = vmatpush.msra.mxu0 %v423
        %1760 = vmatpush.msra.mxu0 %v421
        %1761 = vmatpush.msra.mxu0 %v419
        %1762 = vmatpush.msra.mxu0 %v417
        %1763 = vmatpush.msra.mxu0 %v415
        %1764 = vmatpush.msra.mxu0 %v413
        %1765 = vmatpush.msra.mxu0 %v411
        %1766 = vmatpush.msra.mxu0 %v409
        %1767 = vmatpush.msra.mxu0 %v407
        %1768 = vmatpush.msra.mxu0 %v405
        %1769 = vmatpush.msra.mxu0 %v403
        %1770 = vmatpush.msra.mxu0 %v401
        %1771 = vmatpush.msra.mxu0 %v399
        %1772 = vmatpush.msra.mxu0 %v397
        %1773 = vmatmul.f32.gmra.mxu0 %v1511
        %v1774 = vpop.f32.mrf.mxu0
        %v1775 = vadd.f32 %v1752, %v1774
        %1776 = vmatmul.f32.gmra.mxu0 %v1527
        %v1777 = vpop.f32.mrf.mxu0
        %v1778 = vadd.f32 %v1755, %v1777
        %1779 = vdwg.mxu0
        %1780 = vmatpush.msra.mxu0 %v459
        %1781 = vmatpush.msra.mxu0 %v457
        %1782 = vmatpush.msra.mxu0 %v455
        %1783 = vmatpush.msra.mxu0 %v453
        %1784 = vmatpush.msra.mxu0 %v451
        %1785 = vmatpush.msra.mxu0 %v449
        %1786 = vmatpush.msra.mxu0 %v447
        %1787 = vmatpush.msra.mxu0 %v445
        %1788 = vmatpush.msra.mxu0 %v443
        %1789 = vmatpush.msra.mxu0 %v441
        %1790 = vmatpush.msra.mxu0 %v439
        %1791 = vmatpush.msra.mxu0 %v437
        %1792 = vmatpush.msra.mxu0 %v435
        %1793 = vmatpush.msra.mxu0 %v433
        %1794 = vmatpush.msra.mxu0 %v431
        %1795 = vmatpush.msra.mxu0 %v429
        %1796 = vmatmul.f32.gmra.mxu0 %v1512
        %v1797 = vpop.f32.mrf.mxu0
        %v1798 = vadd.f32 %v1775, %v1797
        %1799 = vmatmul.f32.gmra.mxu0 %v1528
        %v1800 = vpop.f32.mrf.mxu0
        %v1801 = vadd.f32 %v1778, %v1800
        %1802 = vdwg.mxu0
        %1803 = vmatpush.msra.mxu0 %v491
        %1804 = vmatpush.msra.mxu0 %v489
        %1805 = vmatpush.msra.mxu0 %v487
        %1806 = vmatpush.msra.mxu0 %v485
        %1807 = vmatpush.msra.mxu0 %v483
        %1808 = vmatpush.msra.mxu0 %v481
        %1809 = vmatpush.msra.mxu0 %v479
        %1810 = vmatpush.msra.mxu0 %v477
        %1811 = vmatpush.msra.mxu0 %v475
        %1812 = vmatpush.msra.mxu0 %v473
        %1813 = vmatpush.msra.mxu0 %v471
        %1814 = vmatpush.msra.mxu0 %v469
        %1815 = vmatpush.msra.mxu0 %v467
        %1816 = vmatpush.msra.mxu0 %v465
        %1817 = vmatpush.msra.mxu0 %v463
        %1818 = vmatpush.msra.mxu0 %v461
        %1819 = vmatmul.f32.gmra.mxu0 %v1513
        %v1820 = vpop.f32.mrf.mxu0
        %v1821 = vadd.f32 %v1798, %v1820
        %1822 = vmatmul.f32.gmra.mxu0 %v1529
        %v1823 = vpop.f32.mrf.mxu0
        %v1824 = vadd.f32 %v1801, %v1823
        %1825 = vdwg.mxu0
        %1826 = vmatpush.msra.mxu0 %v523
        %1827 = vmatpush.msra.mxu0 %v521
        %1828 = vmatpush.msra.mxu0 %v519
        %1829 = vmatpush.msra.mxu0 %v517
        %1830 = vmatpush.msra.mxu0 %v515
        %1831 = vmatpush.msra.mxu0 %v513
        %1832 = vmatpush.msra.mxu0 %v511
        %1833 = vmatpush.msra.mxu0 %v509
        %1834 = vmatpush.msra.mxu0 %v507
        %1835 = vmatpush.msra.mxu0 %v505
        %1836 = vmatpush.msra.mxu0 %v503
        %1837 = vmatpush.msra.mxu0 %v501
        %1838 = vmatpush.msra.mxu0 %v499
        %1839 = vmatpush.msra.mxu0 %v497
        %1840 = vmatpush.msra.mxu0 %v495
        %1841 = vmatpush.msra.mxu0 %v493
        %1842 = vmatmul.f32.gmra.mxu0 %v1514
        %v1843 = vpop.f32.mrf.mxu0
        %v1844 = vadd.f32 %v1821, %v1843
        %1845 = vmatmul.f32.gmra.mxu0 %v1530
        %v1846 = vpop.f32.mrf.mxu0
        %v1847 = vadd.f32 %v1824, %v1846
        %1848 = vdwg.mxu0
        %1849 = vmatpush.msra.mxu0 %v555
        %1850 = vmatpush.msra.mxu0 %v553
        %1851 = vmatpush.msra.mxu0 %v551
        %1852 = vmatpush.msra.mxu0 %v549
        %1853 = vmatpush.msra.mxu0 %v547
        %1854 = vmatpush.msra.mxu0 %v545
        %1855 = vmatpush.msra.mxu0 %v543
        %1856 = vmatpush.msra.mxu0 %v541
        %1857 = vmatpush.msra.mxu0 %v539
        %1858 = vmatpush.msra.mxu0 %v537
        %1859 = vmatpush.msra.mxu0 %v535
        %1860 = vmatpush.msra.mxu0 %v533
        %1861 = vmatpush.msra.mxu0 %v531
        %1862 = vmatpush.msra.mxu0 %v529
        %1863 = vmatpush.msra.mxu0 %v527
        %1864 = vmatpush.msra.mxu0 %v525
        %1865 = vmatmul.f32.gmra.mxu0 %v1515
        %v1866 = vpop.f32.mrf.mxu0
        %v1867 = vadd.f32 %v1844, %v1866
        %1868 = vmatmul.f32.gmra.mxu0 %v1531
        %v1869 = vpop.f32.mrf.mxu0
        %v1870 = vadd.f32 %v1847, %v1869
        %1871 = vdwg.mxu0
        %1872 = vmatpush.msra.mxu0 %v587
        %1873 = vmatpush.msra.mxu0 %v585
        %1874 = vmatpush.msra.mxu0 %v583
        %1875 = vmatpush.msra.mxu0 %v581
        %1876 = vmatpush.msra.mxu0 %v579
        %1877 = vmatpush.msra.mxu0 %v577
        %1878 = vmatpush.msra.mxu0 %v575
        %1879 = vmatpush.msra.mxu0 %v573
        %1880 = vmatpush.msra.mxu0 %v571
        %1881 = vmatpush.msra.mxu0 %v569
        %1882 = vmatpush.msra.mxu0 %v567
        %1883 = vmatpush.msra.mxu0 %v565
        %1884 = vmatpush.msra.mxu0 %v563
        %1885 = vmatpush.msra.mxu0 %v561
        %1886 = vmatpush.msra.mxu0 %v559
        %1887 = vmatpush.msra.mxu0 %v557
        %1888 = vmatmul.f32.gmra.mxu0 %v1516
        %v1889 = vpop.f32.mrf.mxu0
        %v1890 = vadd.f32 %v1867, %v1889
        %1891 = vmatmul.f32.gmra.mxu0 %v1532
        %v1892 = vpop.f32.mrf.mxu0
        %v1893 = vadd.f32 %v1870, %v1892
        %1894 = vdwg.mxu0
        %1895 = vmatpush.msra.mxu0 %v619
        %1896 = vmatpush.msra.mxu0 %v617
        %1897 = vmatpush.msra.mxu0 %v615
        %1898 = vmatpush.msra.mxu0 %v613
        %1899 = vmatpush.msra.mxu0 %v611
        %1900 = vmatpush.msra.mxu0 %v609
        %1901 = vmatpush.msra.mxu0 %v607
        %1902 = vmatpush.msra.mxu0 %v605
        %1903 = vmatpush.msra.mxu0 %v603
        %1904 = vmatpush.msra.mxu0 %v601
        %1905 = vmatpush.msra.mxu0 %v599
        %1906 = vmatpush.msra.mxu0 %v597
        %1907 = vmatpush.msra.mxu0 %v595
        %1908 = vmatpush.msra.mxu0 %v593
        %1909 = vmatpush.msra.mxu0 %v591
        %1910 = vmatpush.msra.mxu0 %v589
        %1911 = vmatmul.f32.gmra.mxu0 %v1517
        %v1912 = vpop.f32.mrf.mxu0
        %v1913 = vadd.f32 %v1890, %v1912
        %1914 = vmatmul.f32.gmra.mxu0 %v1533
        %v1915 = vpop.f32.mrf.mxu0
        %v1916 = vadd.f32 %v1893, %v1915
        %1917 = vdwg.mxu0
        %v1918 = vld [vmem:[%s263] sm:$0x3c]
        %v1919 = vld [vmem:[%s263 + $0x8] sm:$0x3c]
        %v1920 = vld [vmem:[%s263 + $0x10] sm:$0x3c]
        %v1921 = vld [vmem:[%s263 + $0x18] sm:$0x3c]
        %v1922 = vld [vmem:[%s263 + $0x20] sm:$0x3c]
        %v1923 = vld [vmem:[%s263 + $0x28] sm:$0x3c]
        %v1924 = vld [vmem:[%s263 + $0x30] sm:$0x3c]
        %v1925 = vld [vmem:[%s263 + $0x38] sm:$0x3c]
        %v1926 = vld [vmem:[%s263 + $0x40] sm:$0x3c]
        %v1927 = vld [vmem:[%s263 + $0x48] sm:$0x3c]
        %v1928 = vld [vmem:[%s263 + $0x50] sm:$0x3c]
        %v1929 = vld [vmem:[%s263 + $0x58] sm:$0x3c]
        %v1930 = vld [vmem:[%s263 + $0x60] sm:$0x3c]
        %v1931 = vld [vmem:[%s263 + $0x68] sm:$0x3c]
        %v1932 = vld [vmem:[%s263 + $0x70] sm:$0x3c]
        %v1933 = vld [vmem:[%s263 + $0x78] sm:$0x3c]
        %v1934 = vld [vmem:[%s263 + $0x80] sm:$0x3c]
        %v1935 = vld [vmem:[%s263 + $0x88] sm:$0x3c]
        %v1936 = vld [vmem:[%s263 + $0x90] sm:$0x3c]
        %v1937 = vld [vmem:[%s263 + $0x98] sm:$0x3c]
        %v1938 = vld [vmem:[%s263 + $0xa0] sm:$0x3c]
        %v1939 = vld [vmem:[%s263 + $0xa8] sm:$0x3c]
        %v1940 = vld [vmem:[%s263 + $0xb0] sm:$0x3c]
        %v1941 = vld [vmem:[%s263 + $0xb8] sm:$0x3c]
        %v1942 = vld [vmem:[%s263 + $0xc0] sm:$0x3c]
        %v1943 = vld [vmem:[%s263 + $0xc8] sm:$0x3c]
        %v1944 = vld [vmem:[%s263 + $0xd0] sm:$0x3c]
        %v1945 = vld [vmem:[%s263 + $0xd8] sm:$0x3c]
        %v1946 = vld [vmem:[%s263 + $0xe0] sm:$0x3c]
        %v1947 = vld [vmem:[%s263 + $0xe8] sm:$0x3c]
        %v1948 = vld [vmem:[%s263 + $0xf0] sm:$0x3c]
        %v1949 = vld [vmem:[%s263 + $0xf8] sm:$0x3c]
        %v1982 = vrot.slane %v1919, 4
        %v1983 = vrot.slane %v1921, 4
        %v1984 = vrot.slane %v1923, 4
        %v1985 = vrot.slane %v1925, 4
        %v1986 = vrot.slane %v1927, 4
        %v1987 = vrot.slane %v1929, 4
        %v1988 = vrot.slane %v1931, 4
        %v1989 = vrot.slane %v1933, 4
        %v1990 = vrot.slane %v1935, 4
        %v1991 = vrot.slane %v1937, 4
        %v1992 = vrot.slane %v1939, 4
        %v1993 = vrot.slane %v1941, 4
        %v1994 = vrot.slane %v1943, 4
        %v1995 = vrot.slane %v1945, 4
        %v1996 = vrot.slane %v1947, 4
        %v1997 = vrot.slane %v1949, 4
        %v1998 = vsel %vm347, %v1918, %v1982
        %v1999 = vsel %vm347, %v1920, %v1983
        %v2000 = vsel %vm347, %v1922, %v1984
        %v2001 = vsel %vm347, %v1924, %v1985
        %v2002 = vsel %vm347, %v1982, %v1918
        %v2003 = vrot.slane %v2002, 4
        %v2004 = vsel %vm347, %v1983, %v1920
        %v2005 = vrot.slane %v2004, 4
        %v2006 = vsel %vm347, %v1984, %v1922
        %v2007 = vrot.slane %v2006, 4
        %v2008 = vsel %vm347, %v1985, %v1924
        %v2009 = vrot.slane %v2008, 4
        %v2010 = vsel %vm347, %v1926, %v1986
        %v2011 = vsel %vm347, %v1928, %v1987
        %v2012 = vsel %vm347, %v1930, %v1988
        %v2013 = vsel %vm347, %v1932, %v1989
        %v2014 = vsel %vm347, %v1986, %v1926
        %v2015 = vrot.slane %v2014, 4
        %v2016 = vsel %vm347, %v1987, %v1928
        %v2017 = vrot.slane %v2016, 4
        %v2018 = vsel %vm347, %v1988, %v1930
        %v2019 = vrot.slane %v2018, 4
        %v2020 = vsel %vm347, %v1989, %v1932
        %v2021 = vrot.slane %v2020, 4
        %v2022 = vsel %vm347, %v1934, %v1990
        %v2023 = vsel %vm347, %v1936, %v1991
        %v2024 = vsel %vm347, %v1938, %v1992
        %v2025 = vsel %vm347, %v1940, %v1993
        %v2026 = vsel %vm347, %v1990, %v1934
        %v2027 = vrot.slane %v2026, 4
        %v2028 = vsel %vm347, %v1991, %v1936
        %v2029 = vrot.slane %v2028, 4
        %v2030 = vsel %vm347, %v1992, %v1938
        %v2031 = vrot.slane %v2030, 4
        %v2032 = vsel %vm347, %v1993, %v1940
        %v2033 = vrot.slane %v2032, 4
        %v2034 = vsel %vm347, %v1942, %v1994
        %v2035 = vsel %vm347, %v1944, %v1995
        %v2036 = vsel %vm347, %v1946, %v1996
        %v2037 = vsel %vm347, %v1948, %v1997
        %v2038 = vsel %vm347, %v1994, %v1942
        %v2039 = vrot.slane %v2038, 4
        %v2040 = vsel %vm347, %v1995, %v1944
        %v2041 = vrot.slane %v2040, 4
        %v2042 = vsel %vm347, %v1996, %v1946
        %v2043 = vrot.slane %v2042, 4
        %v2044 = vsel %vm347, %v1997, %v1948
        %v2045 = vrot.slane %v2044, 4
        %vm2046 = vcmask 1041408
        %vm2047 = vcmask 1045508
        %vm2048 = vmor %vm2046, %vm2047
        %v2049 = vrot.slane %v1998, 6
        %v2050 = vrot.slane %v2049, 4
        %v2051 = vrot.slane %v2003, 6
        %v2052 = vsel %vm2048, %v2050, %v2051
        %v2053 = vrot.slane %v1999, 6
        %v2054 = vrot.slane %v2053, 4
        %v2055 = vrot.slane %v2005, 6
        %v2056 = vsel %vm2048, %v2054, %v2055
        %v2057 = vrot.slane %v2000, 6
        %v2058 = vrot.slane %v2057, 4
        %v2059 = vrot.slane %v2007, 6
        %v2060 = vsel %vm2048, %v2058, %v2059
        %v2061 = vrot.slane %v2001, 6
        %v2062 = vrot.slane %v2061, 4
        %v2063 = vrot.slane %v2009, 6
        %v2064 = vsel %vm2048, %v2062, %v2063
        %v2065 = vrot.slane %v2010, 6
        %v2066 = vrot.slane %v2065, 4
        %v2067 = vrot.slane %v2015, 6
        %v2068 = vsel %vm2048, %v2066, %v2067
        %v2069 = vrot.slane %v2011, 6
        %v2070 = vrot.slane %v2069, 4
        %v2071 = vrot.slane %v2017, 6
        %v2072 = vsel %vm2048, %v2070, %v2071
        %v2073 = vrot.slane %v2012, 6
        %v2074 = vrot.slane %v2073, 4
        %v2075 = vrot.slane %v2019, 6
        %v2076 = vsel %vm2048, %v2074, %v2075
        %v2077 = vrot.slane %v2013, 6
        %v2078 = vrot.slane %v2077, 4
        %v2079 = vrot.slane %v2021, 6
        %v2080 = vsel %vm2048, %v2078, %v2079
        %v2081 = vrot.slane %v2022, 6
        %v2082 = vrot.slane %v2081, 4
        %v2083 = vrot.slane %v2027, 6
        %v2084 = vsel %vm2048, %v2082, %v2083
        %v2085 = vrot.slane %v2023, 6
        %v2086 = vrot.slane %v2085, 4
        %v2087 = vrot.slane %v2029, 6
        %v2088 = vsel %vm2048, %v2086, %v2087
        %v2089 = vrot.slane %v2024, 6
        %v2090 = vrot.slane %v2089, 4
        %v2091 = vrot.slane %v2031, 6
        %v2092 = vsel %vm2048, %v2090, %v2091
        %v2093 = vrot.slane %v2025, 6
        %v2094 = vrot.slane %v2093, 4
        %v2095 = vrot.slane %v2033, 6
        %v2096 = vsel %vm2048, %v2094, %v2095
        %v2097 = vrot.slane %v2034, 6
        %v2098 = vrot.slane %v2097, 4
        %v2099 = vrot.slane %v2039, 6
        %v2100 = vsel %vm2048, %v2098, %v2099
        %v2101 = vrot.slane %v2035, 6
        %v2102 = vrot.slane %v2101, 4
        %v2103 = vrot.slane %v2041, 6
        %v2104 = vsel %vm2048, %v2102, %v2103
        %v2105 = vrot.slane %v2036, 6
        %v2106 = vrot.slane %v2105, 4
        %v2107 = vrot.slane %v2043, 6
        %v2108 = vsel %vm2048, %v2106, %v2107
        %v2109 = vrot.slane %v2037, 6
        %v2110 = vrot.slane %v2109, 4
        %v2111 = vrot.slane %v2045, 6
        %v2112 = vsel %vm2048, %v2110, %v2111
        %s2113 = scalar_lea.vmem %s215, 4096 [#allocation2]
        %v2114 = vld [vmem:[%s2113] sm:$0xff]
        %v2115 = vld [vmem:[%s2113 + $0x8] sm:$0xff]
        %v2116 = vld [vmem:[%s2113 + $0x10] sm:$0xff]
        %v2117 = vld [vmem:[%s2113 + $0x18] sm:$0xff]
        %v2118 = vld [vmem:[%s2113 + $0x20] sm:$0xff]
        %v2119 = vld [vmem:[%s2113 + $0x28] sm:$0xff]
        %v2120 = vld [vmem:[%s2113 + $0x30] sm:$0xff]
        %v2121 = vld [vmem:[%s2113 + $0x38] sm:$0xff]
        %v2122 = vld [vmem:[%s2113 + $0x40] sm:$0xff]
        %v2123 = vld [vmem:[%s2113 + $0x48] sm:$0xff]
        %v2124 = vld [vmem:[%s2113 + $0x50] sm:$0xff]
        %v2125 = vld [vmem:[%s2113 + $0x58] sm:$0xff]
        %v2126 = vld [vmem:[%s2113 + $0x60] sm:$0xff]
        %v2127 = vld [vmem:[%s2113 + $0x68] sm:$0xff]
        %v2128 = vld [vmem:[%s2113 + $0x70] sm:$0xff]
        %v2129 = vld [vmem:[%s2113 + $0x78] sm:$0xff]
        %v2130 = vld [vmem:[%s2113 + $0x80] sm:$0xff]
        %v2131 = vld [vmem:[%s2113 + $0x88] sm:$0xff]
        %v2132 = vld [vmem:[%s2113 + $0x90] sm:$0xff]
        %v2133 = vld [vmem:[%s2113 + $0x98] sm:$0xff]
        %v2134 = vld [vmem:[%s2113 + $0xa0] sm:$0xff]
        %v2135 = vld [vmem:[%s2113 + $0xa8] sm:$0xff]
        %v2136 = vld [vmem:[%s2113 + $0xb0] sm:$0xff]
        %v2137 = vld [vmem:[%s2113 + $0xb8] sm:$0xff]
        %v2138 = vld [vmem:[%s2113 + $0xc0] sm:$0xff]
        %v2139 = vld [vmem:[%s2113 + $0xc8] sm:$0xff]
        %v2140 = vld [vmem:[%s2113 + $0xd0] sm:$0xff]
        %v2141 = vld [vmem:[%s2113 + $0xd8] sm:$0xff]
        %v2142 = vld [vmem:[%s2113 + $0xe0] sm:$0xff]
        %v2143 = vld [vmem:[%s2113 + $0xe8] sm:$0xff]
        %v2144 = vld [vmem:[%s2113 + $0xf0] sm:$0xff]
        %v2145 = vld [vmem:[%s2113 + $0xf8] sm:$0xff]
        %v2146 = vld [vmem:[%s2113 + $0x100] sm:$0xff]
        %v2147 = vld [vmem:[%s2113 + $0x108] sm:$0xff]
        %v2148 = vld [vmem:[%s2113 + $0x110] sm:$0xff]
        %v2149 = vld [vmem:[%s2113 + $0x118] sm:$0xff]
        %v2150 = vld [vmem:[%s2113 + $0x120] sm:$0xff]
        %v2151 = vld [vmem:[%s2113 + $0x128] sm:$0xff]
        %v2152 = vld [vmem:[%s2113 + $0x130] sm:$0xff]
        %v2153 = vld [vmem:[%s2113 + $0x138] sm:$0xff]
        %v2154 = vld [vmem:[%s2113 + $0x140] sm:$0xff]
        %v2155 = vld [vmem:[%s2113 + $0x148] sm:$0xff]
        %v2156 = vld [vmem:[%s2113 + $0x150] sm:$0xff]
        %v2157 = vld [vmem:[%s2113 + $0x158] sm:$0xff]
        %v2158 = vld [vmem:[%s2113 + $0x160] sm:$0xff]
        %v2159 = vld [vmem:[%s2113 + $0x168] sm:$0xff]
        %v2160 = vld [vmem:[%s2113 + $0x170] sm:$0xff]
        %v2161 = vld [vmem:[%s2113 + $0x178] sm:$0xff]
        %v2162 = vld [vmem:[%s2113 + $0x180] sm:$0xff]
        %v2163 = vld [vmem:[%s2113 + $0x188] sm:$0xff]
        %v2164 = vld [vmem:[%s2113 + $0x190] sm:$0xff]
        %v2165 = vld [vmem:[%s2113 + $0x198] sm:$0xff]
        %v2166 = vld [vmem:[%s2113 + $0x1a0] sm:$0xff]
        %v2167 = vld [vmem:[%s2113 + $0x1a8] sm:$0xff]
        %v2168 = vld [vmem:[%s2113 + $0x1b0] sm:$0xff]
        %v2169 = vld [vmem:[%s2113 + $0x1b8] sm:$0xff]
        %v2170 = vld [vmem:[%s2113 + $0x1c0] sm:$0xff]
        %v2171 = vld [vmem:[%s2113 + $0x1c8] sm:$0xff]
        %v2172 = vld [vmem:[%s2113 + $0x1d0] sm:$0xff]
        %v2173 = vld [vmem:[%s2113 + $0x1d8] sm:$0xff]
        %v2174 = vld [vmem:[%s2113 + $0x1e0] sm:$0xff]
        %v2175 = vld [vmem:[%s2113 + $0x1e8] sm:$0xff]
        %v2176 = vld [vmem:[%s2113 + $0x1f0] sm:$0xff]
        %v2177 = vld [vmem:[%s2113 + $0x1f8] sm:$0xff]
        %v2178 = vld [vmem:[%s2113 + $0x200] sm:$0xff]
        %v2179 = vld [vmem:[%s2113 + $0x208] sm:$0xff]
        %v2180 = vld [vmem:[%s2113 + $0x210] sm:$0xff]
        %v2181 = vld [vmem:[%s2113 + $0x218] sm:$0xff]
        %v2182 = vld [vmem:[%s2113 + $0x220] sm:$0xff]
        %v2183 = vld [vmem:[%s2113 + $0x228] sm:$0xff]
        %v2184 = vld [vmem:[%s2113 + $0x230] sm:$0xff]
        %v2185 = vld [vmem:[%s2113 + $0x238] sm:$0xff]
        %v2186 = vld [vmem:[%s2113 + $0x240] sm:$0xff]
        %v2187 = vld [vmem:[%s2113 + $0x248] sm:$0xff]
        %v2188 = vld [vmem:[%s2113 + $0x250] sm:$0xff]
        %v2189 = vld [vmem:[%s2113 + $0x258] sm:$0xff]
        %v2190 = vld [vmem:[%s2113 + $0x260] sm:$0xff]
        %v2191 = vld [vmem:[%s2113 + $0x268] sm:$0xff]
        %v2192 = vld [vmem:[%s2113 + $0x270] sm:$0xff]
        %v2193 = vld [vmem:[%s2113 + $0x278] sm:$0xff]
        %v2194 = vld [vmem:[%s2113 + $0x280] sm:$0xff]
        %v2195 = vld [vmem:[%s2113 + $0x288] sm:$0xff]
        %v2196 = vld [vmem:[%s2113 + $0x290] sm:$0xff]
        %v2197 = vld [vmem:[%s2113 + $0x298] sm:$0xff]
        %v2198 = vld [vmem:[%s2113 + $0x2a0] sm:$0xff]
        %v2199 = vld [vmem:[%s2113 + $0x2a8] sm:$0xff]
        %v2200 = vld [vmem:[%s2113 + $0x2b0] sm:$0xff]
        %v2201 = vld [vmem:[%s2113 + $0x2b8] sm:$0xff]
        %v2202 = vld [vmem:[%s2113 + $0x2c0] sm:$0xff]
        %v2203 = vld [vmem:[%s2113 + $0x2c8] sm:$0xff]
        %v2204 = vld [vmem:[%s2113 + $0x2d0] sm:$0xff]
        %v2205 = vld [vmem:[%s2113 + $0x2d8] sm:$0xff]
        %v2206 = vld [vmem:[%s2113 + $0x2e0] sm:$0xff]
        %v2207 = vld [vmem:[%s2113 + $0x2e8] sm:$0xff]
        %v2208 = vld [vmem:[%s2113 + $0x2f0] sm:$0xff]
        %v2209 = vld [vmem:[%s2113 + $0x2f8] sm:$0xff]
        %v2210 = vld [vmem:[%s2113 + $0x300] sm:$0xff]
        %v2211 = vld [vmem:[%s2113 + $0x308] sm:$0xff]
        %v2212 = vld [vmem:[%s2113 + $0x310] sm:$0xff]
        %v2213 = vld [vmem:[%s2113 + $0x318] sm:$0xff]
        %v2214 = vld [vmem:[%s2113 + $0x320] sm:$0xff]
        %v2215 = vld [vmem:[%s2113 + $0x328] sm:$0xff]
        %v2216 = vld [vmem:[%s2113 + $0x330] sm:$0xff]
        %v2217 = vld [vmem:[%s2113 + $0x338] sm:$0xff]
        %v2218 = vld [vmem:[%s2113 + $0x340] sm:$0xff]
        %v2219 = vld [vmem:[%s2113 + $0x348] sm:$0xff]
        %v2220 = vld [vmem:[%s2113 + $0x350] sm:$0xff]
        %v2221 = vld [vmem:[%s2113 + $0x358] sm:$0xff]
        %v2222 = vld [vmem:[%s2113 + $0x360] sm:$0xff]
        %v2223 = vld [vmem:[%s2113 + $0x368] sm:$0xff]
        %v2224 = vld [vmem:[%s2113 + $0x370] sm:$0xff]
        %v2225 = vld [vmem:[%s2113 + $0x378] sm:$0xff]
        %v2226 = vld [vmem:[%s2113 + $0x380] sm:$0xff]
        %v2227 = vld [vmem:[%s2113 + $0x388] sm:$0xff]
        %v2228 = vld [vmem:[%s2113 + $0x390] sm:$0xff]
        %v2229 = vld [vmem:[%s2113 + $0x398] sm:$0xff]
        %v2230 = vld [vmem:[%s2113 + $0x3a0] sm:$0xff]
        %v2231 = vld [vmem:[%s2113 + $0x3a8] sm:$0xff]
        %v2232 = vld [vmem:[%s2113 + $0x3b0] sm:$0xff]
        %v2233 = vld [vmem:[%s2113 + $0x3b8] sm:$0xff]
        %v2234 = vld [vmem:[%s2113 + $0x3c0] sm:$0xff]
        %v2235 = vld [vmem:[%s2113 + $0x3c8] sm:$0xff]
        %v2236 = vld [vmem:[%s2113 + $0x3d0] sm:$0xff]
        %v2237 = vld [vmem:[%s2113 + $0x3d8] sm:$0xff]
        %v2238 = vld [vmem:[%s2113 + $0x3e0] sm:$0xff]
        %v2239 = vld [vmem:[%s2113 + $0x3e8] sm:$0xff]
        %v2240 = vld [vmem:[%s2113 + $0x3f0] sm:$0xff]
        %v2241 = vld [vmem:[%s2113 + $0x3f8] sm:$0xff]
        %v2242 = vld [vmem:[%s2113 + $0x400] sm:$0xff]
        %v2243 = vld [vmem:[%s2113 + $0x408] sm:$0xff]
        %v2244 = vld [vmem:[%s2113 + $0x410] sm:$0xff]
        %v2245 = vld [vmem:[%s2113 + $0x418] sm:$0xff]
        %v2246 = vld [vmem:[%s2113 + $0x420] sm:$0xff]
        %v2247 = vld [vmem:[%s2113 + $0x428] sm:$0xff]
        %v2248 = vld [vmem:[%s2113 + $0x430] sm:$0xff]
        %v2249 = vld [vmem:[%s2113 + $0x438] sm:$0xff]
        %v2250 = vld [vmem:[%s2113 + $0x440] sm:$0xff]
        %v2251 = vld [vmem:[%s2113 + $0x448] sm:$0xff]
        %v2252 = vld [vmem:[%s2113 + $0x450] sm:$0xff]
        %v2253 = vld [vmem:[%s2113 + $0x458] sm:$0xff]
        %v2254 = vld [vmem:[%s2113 + $0x460] sm:$0xff]
        %v2255 = vld [vmem:[%s2113 + $0x468] sm:$0xff]
        %v2256 = vld [vmem:[%s2113 + $0x470] sm:$0xff]
        %v2257 = vld [vmem:[%s2113 + $0x478] sm:$0xff]
        %v2258 = vld [vmem:[%s2113 + $0x480] sm:$0xff]
        %v2259 = vld [vmem:[%s2113 + $0x488] sm:$0xff]
        %v2260 = vld [vmem:[%s2113 + $0x490] sm:$0xff]
        %v2261 = vld [vmem:[%s2113 + $0x498] sm:$0xff]
        %v2262 = vld [vmem:[%s2113 + $0x4a0] sm:$0xff]
        %v2263 = vld [vmem:[%s2113 + $0x4a8] sm:$0xff]
        %v2264 = vld [vmem:[%s2113 + $0x4b0] sm:$0xff]
        %v2265 = vld [vmem:[%s2113 + $0x4b8] sm:$0xff]
        %v2266 = vld [vmem:[%s2113 + $0x4c0] sm:$0xff]
        %v2267 = vld [vmem:[%s2113 + $0x4c8] sm:$0xff]
        %v2268 = vld [vmem:[%s2113 + $0x4d0] sm:$0xff]
        %v2269 = vld [vmem:[%s2113 + $0x4d8] sm:$0xff]
        %v2270 = vld [vmem:[%s2113 + $0x4e0] sm:$0xff]
        %v2271 = vld [vmem:[%s2113 + $0x4e8] sm:$0xff]
        %v2272 = vld [vmem:[%s2113 + $0x4f0] sm:$0xff]
        %v2273 = vld [vmem:[%s2113 + $0x4f8] sm:$0xff]
        %v2274 = vld [vmem:[%s2113 + $0x500] sm:$0xff]
        %v2275 = vld [vmem:[%s2113 + $0x508] sm:$0xff]
        %v2276 = vld [vmem:[%s2113 + $0x510] sm:$0xff]
        %v2277 = vld [vmem:[%s2113 + $0x518] sm:$0xff]
        %v2278 = vld [vmem:[%s2113 + $0x520] sm:$0xff]
        %v2279 = vld [vmem:[%s2113 + $0x528] sm:$0xff]
        %v2280 = vld [vmem:[%s2113 + $0x530] sm:$0xff]
        %v2281 = vld [vmem:[%s2113 + $0x538] sm:$0xff]
        %v2282 = vld [vmem:[%s2113 + $0x540] sm:$0xff]
        %v2283 = vld [vmem:[%s2113 + $0x548] sm:$0xff]
        %v2284 = vld [vmem:[%s2113 + $0x550] sm:$0xff]
        %v2285 = vld [vmem:[%s2113 + $0x558] sm:$0xff]
        %v2286 = vld [vmem:[%s2113 + $0x560] sm:$0xff]
        %v2287 = vld [vmem:[%s2113 + $0x568] sm:$0xff]
        %v2288 = vld [vmem:[%s2113 + $0x570] sm:$0xff]
        %v2289 = vld [vmem:[%s2113 + $0x578] sm:$0xff]
        %v2290 = vld [vmem:[%s2113 + $0x580] sm:$0xff]
        %v2291 = vld [vmem:[%s2113 + $0x588] sm:$0xff]
        %v2292 = vld [vmem:[%s2113 + $0x590] sm:$0xff]
        %v2293 = vld [vmem:[%s2113 + $0x598] sm:$0xff]
        %v2294 = vld [vmem:[%s2113 + $0x5a0] sm:$0xff]
        %v2295 = vld [vmem:[%s2113 + $0x5a8] sm:$0xff]
        %v2296 = vld [vmem:[%s2113 + $0x5b0] sm:$0xff]
        %v2297 = vld [vmem:[%s2113 + $0x5b8] sm:$0xff]
        %v2298 = vld [vmem:[%s2113 + $0x5c0] sm:$0xff]
        %v2299 = vld [vmem:[%s2113 + $0x5c8] sm:$0xff]
        %v2300 = vld [vmem:[%s2113 + $0x5d0] sm:$0xff]
        %v2301 = vld [vmem:[%s2113 + $0x5d8] sm:$0xff]
        %v2302 = vld [vmem:[%s2113 + $0x5e0] sm:$0xff]
        %v2303 = vld [vmem:[%s2113 + $0x5e8] sm:$0xff]
        %v2304 = vld [vmem:[%s2113 + $0x5f0] sm:$0xff]
        %v2305 = vld [vmem:[%s2113 + $0x5f8] sm:$0xff]
        %v2306 = vld [vmem:[%s2113 + $0x600] sm:$0xff]
        %v2307 = vld [vmem:[%s2113 + $0x608] sm:$0xff]
        %v2308 = vld [vmem:[%s2113 + $0x610] sm:$0xff]
        %v2309 = vld [vmem:[%s2113 + $0x618] sm:$0xff]
        %v2310 = vld [vmem:[%s2113 + $0x620] sm:$0xff]
        %v2311 = vld [vmem:[%s2113 + $0x628] sm:$0xff]
        %v2312 = vld [vmem:[%s2113 + $0x630] sm:$0xff]
        %v2313 = vld [vmem:[%s2113 + $0x638] sm:$0xff]
        %v2314 = vld [vmem:[%s2113 + $0x640] sm:$0xff]
        %v2315 = vld [vmem:[%s2113 + $0x648] sm:$0xff]
        %v2316 = vld [vmem:[%s2113 + $0x650] sm:$0xff]
        %v2317 = vld [vmem:[%s2113 + $0x658] sm:$0xff]
        %v2318 = vld [vmem:[%s2113 + $0x660] sm:$0xff]
        %v2319 = vld [vmem:[%s2113 + $0x668] sm:$0xff]
        %v2320 = vld [vmem:[%s2113 + $0x670] sm:$0xff]
        %v2321 = vld [vmem:[%s2113 + $0x678] sm:$0xff]
        %v2322 = vld [vmem:[%s2113 + $0x680] sm:$0xff]
        %v2323 = vld [vmem:[%s2113 + $0x688] sm:$0xff]
        %v2324 = vld [vmem:[%s2113 + $0x690] sm:$0xff]
        %v2325 = vld [vmem:[%s2113 + $0x698] sm:$0xff]
        %v2326 = vld [vmem:[%s2113 + $0x6a0] sm:$0xff]
        %v2327 = vld [vmem:[%s2113 + $0x6a8] sm:$0xff]
        %v2328 = vld [vmem:[%s2113 + $0x6b0] sm:$0xff]
        %v2329 = vld [vmem:[%s2113 + $0x6b8] sm:$0xff]
        %v2330 = vld [vmem:[%s2113 + $0x6c0] sm:$0xff]
        %v2331 = vld [vmem:[%s2113 + $0x6c8] sm:$0xff]
        %v2332 = vld [vmem:[%s2113 + $0x6d0] sm:$0xff]
        %v2333 = vld [vmem:[%s2113 + $0x6d8] sm:$0xff]
        %v2334 = vld [vmem:[%s2113 + $0x6e0] sm:$0xff]
        %v2335 = vld [vmem:[%s2113 + $0x6e8] sm:$0xff]
        %v2336 = vld [vmem:[%s2113 + $0x6f0] sm:$0xff]
        %v2337 = vld [vmem:[%s2113 + $0x6f8] sm:$0xff]
        %v2338 = vld [vmem:[%s2113 + $0x700] sm:$0xff]
        %v2339 = vld [vmem:[%s2113 + $0x708] sm:$0xff]
        %v2340 = vld [vmem:[%s2113 + $0x710] sm:$0xff]
        %v2341 = vld [vmem:[%s2113 + $0x718] sm:$0xff]
        %v2342 = vld [vmem:[%s2113 + $0x720] sm:$0xff]
        %v2343 = vld [vmem:[%s2113 + $0x728] sm:$0xff]
        %v2344 = vld [vmem:[%s2113 + $0x730] sm:$0xff]
        %v2345 = vld [vmem:[%s2113 + $0x738] sm:$0xff]
        %v2346 = vld [vmem:[%s2113 + $0x740] sm:$0xff]
        %v2347 = vld [vmem:[%s2113 + $0x748] sm:$0xff]
        %v2348 = vld [vmem:[%s2113 + $0x750] sm:$0xff]
        %v2349 = vld [vmem:[%s2113 + $0x758] sm:$0xff]
        %v2350 = vld [vmem:[%s2113 + $0x760] sm:$0xff]
        %v2351 = vld [vmem:[%s2113 + $0x768] sm:$0xff]
        %v2352 = vld [vmem:[%s2113 + $0x770] sm:$0xff]
        %v2353 = vld [vmem:[%s2113 + $0x778] sm:$0xff]
        %v2354 = vld [vmem:[%s2113 + $0x780] sm:$0xff]
        %v2355 = vld [vmem:[%s2113 + $0x788] sm:$0xff]
        %v2356 = vld [vmem:[%s2113 + $0x790] sm:$0xff]
        %v2357 = vld [vmem:[%s2113 + $0x798] sm:$0xff]
        %v2358 = vld [vmem:[%s2113 + $0x7a0] sm:$0xff]
        %v2359 = vld [vmem:[%s2113 + $0x7a8] sm:$0xff]
        %v2360 = vld [vmem:[%s2113 + $0x7b0] sm:$0xff]
        %v2361 = vld [vmem:[%s2113 + $0x7b8] sm:$0xff]
        %v2362 = vld [vmem:[%s2113 + $0x7c0] sm:$0xff]
        %v2363 = vld [vmem:[%s2113 + $0x7c8] sm:$0xff]
        %v2364 = vld [vmem:[%s2113 + $0x7d0] sm:$0xff]
        %v2365 = vld [vmem:[%s2113 + $0x7d8] sm:$0xff]
        %v2366 = vld [vmem:[%s2113 + $0x7e0] sm:$0xff]
        %v2367 = vld [vmem:[%s2113 + $0x7e8] sm:$0xff]
        %v2368 = vld [vmem:[%s2113 + $0x7f0] sm:$0xff]
        %v2369 = vld [vmem:[%s2113 + $0x7f8] sm:$0xff]
        %2370 = vst [vmem:[#allocation1] ss:$2 sm:$0xff] %v2052
        %s2371 = scalar_lea.vmem [#allocation1], 1
        %2372 = vst [vmem:[%s2371] ss:$2 sm:$0xff] %v2068
        %s2373 = scalar_lea.vmem [#allocation1], 16
        %2374 = vst [vmem:[%s2373] ss:$2 sm:$0xff] %v2056
        %s2375 = scalar_lea.vmem [#allocation1], 17
        %2376 = vst [vmem:[%s2375] ss:$2 sm:$0xff] %v2072
        %s2377 = scalar_lea.vmem [#allocation1], 32
        %2378 = vst [vmem:[%s2377] ss:$2 sm:$0xff] %v2060
        %s2379 = scalar_lea.vmem [#allocation1], 33
        %2380 = vst [vmem:[%s2379] ss:$2 sm:$0xff] %v2076
        %s2381 = scalar_lea.vmem [#allocation1], 48
        %2382 = vst [vmem:[%s2381] ss:$2 sm:$0xff] %v2064
        %s2383 = scalar_lea.vmem [#allocation1], 49
        %2384 = vst [vmem:[%s2383] ss:$2 sm:$0xff] %v2080
        %v2385 = vld.sshfl [vmem:[#allocation1] sm:$0xff pattern:$0x75316420]
        %v2386 = vld.sshfl [vmem:[#allocation1 + $0x8] sm:$0xff pattern:$0x75316420]
        %v2387 = vld.sshfl [vmem:[#allocation1 + $0x10] sm:$0xff pattern:$0x75316420]
        %v2388 = vld.sshfl [vmem:[#allocation1 + $0x18] sm:$0xff pattern:$0x75316420]
        %v2389 = vld.sshfl [vmem:[#allocation1 + $0x20] sm:$0xff pattern:$0x75316420]
        %v2390 = vld.sshfl [vmem:[#allocation1 + $0x28] sm:$0xff pattern:$0x75316420]
        %v2391 = vld.sshfl [vmem:[#allocation1 + $0x30] sm:$0xff pattern:$0x75316420]
        %v2392 = vld.sshfl [vmem:[#allocation1 + $0x38] sm:$0xff pattern:$0x75316420]
        %2393 = vst [vmem:[#allocation1] ss:$2 sm:$0xff] %v2084
        %2394 = vst [vmem:[%s2371] ss:$2 sm:$0xff] %v2100
        %2395 = vst [vmem:[%s2373] ss:$2 sm:$0xff] %v2088
        %2396 = vst [vmem:[%s2375] ss:$2 sm:$0xff] %v2104
        %2397 = vst [vmem:[%s2377] ss:$2 sm:$0xff] %v2092
        %2398 = vst [vmem:[%s2379] ss:$2 sm:$0xff] %v2108
        %2399 = vst [vmem:[%s2381] ss:$2 sm:$0xff] %v2096
        %2400 = vst [vmem:[%s2383] ss:$2 sm:$0xff] %v2112
        %v2401 = vld.sshfl [vmem:[#allocation1] sm:$0xff pattern:$0x75316420]
        %v2402 = vld.sshfl [vmem:[#allocation1 + $0x8] sm:$0xff pattern:$0x75316420]
        %v2403 = vld.sshfl [vmem:[#allocation1 + $0x10] sm:$0xff pattern:$0x75316420]
        %v2404 = vld.sshfl [vmem:[#allocation1 + $0x18] sm:$0xff pattern:$0x75316420]
        %v2405 = vld.sshfl [vmem:[#allocation1 + $0x20] sm:$0xff pattern:$0x75316420]
        %v2406 = vld.sshfl [vmem:[#allocation1 + $0x28] sm:$0xff pattern:$0x75316420]
        %v2407 = vld.sshfl [vmem:[#allocation1 + $0x30] sm:$0xff pattern:$0x75316420]
        %v2408 = vld.sshfl [vmem:[#allocation1 + $0x38] sm:$0xff pattern:$0x75316420]
        %2425 = vmatpush.msra.mxu0 %v2144
        %2426 = vmatpush.msra.mxu0 %v2142
        %2427 = vmatpush.msra.mxu0 %v2140
        %2428 = vmatpush.msra.mxu0 %v2138
        %2429 = vmatpush.msra.mxu0 %v2136
        %2430 = vmatpush.msra.mxu0 %v2134
        %2431 = vmatpush.msra.mxu0 %v2132
        %2432 = vmatpush.msra.mxu0 %v2130
        %2433 = vmatpush.msra.mxu0 %v2128
        %2434 = vmatpush.msra.mxu0 %v2126
        %2435 = vmatpush.msra.mxu0 %v2124
        %2436 = vmatpush.msra.mxu0 %v2122
        %2437 = vmatpush.msra.mxu0 %v2120
        %2438 = vmatpush.msra.mxu0 %v2118
        %2439 = vmatpush.msra.mxu0 %v2116
        %2440 = vmatpush.msra.mxu0 %v2114
        %2441 = vmatmul.f32.gmra.mxu0 %v2385
        %v2442 = vpop.f32.mrf.mxu0
        %v2443 = vadd.f32 0.0, %v2442
        %2444 = vmatmul.f32.gmra.mxu0 %v2401
        %v2445 = vpop.f32.mrf.mxu0
        %v2446 = vadd.f32 0.0, %v2445
        %2447 = vdwg.mxu0
        %2448 = vmatpush.msra.mxu0 %v2176
        %2449 = vmatpush.msra.mxu0 %v2174
        %2450 = vmatpush.msra.mxu0 %v2172
        %2451 = vmatpush.msra.mxu0 %v2170
        %2452 = vmatpush.msra.mxu0 %v2168
        %2453 = vmatpush.msra.mxu0 %v2166
        %2454 = vmatpush.msra.mxu0 %v2164
        %2455 = vmatpush.msra.mxu0 %v2162
        %2456 = vmatpush.msra.mxu0 %v2160
        %2457 = vmatpush.msra.mxu0 %v2158
        %2458 = vmatpush.msra.mxu0 %v2156
        %2459 = vmatpush.msra.mxu0 %v2154
        %2460 = vmatpush.msra.mxu0 %v2152
        %2461 = vmatpush.msra.mxu0 %v2150
        %2462 = vmatpush.msra.mxu0 %v2148
        %2463 = vmatpush.msra.mxu0 %v2146
        %2464 = vmatmul.f32.gmra.mxu0 %v2386
        %v2465 = vpop.f32.mrf.mxu0
        %v2466 = vadd.f32 %v2443, %v2465
        %2467 = vmatmul.f32.gmra.mxu0 %v2402
        %v2468 = vpop.f32.mrf.mxu0
        %v2469 = vadd.f32 %v2446, %v2468
        %2470 = vdwg.mxu0
        %2471 = vmatpush.msra.mxu0 %v2208
        %2472 = vmatpush.msra.mxu0 %v2206
        %2473 = vmatpush.msra.mxu0 %v2204
        %2474 = vmatpush.msra.mxu0 %v2202
        %2475 = vmatpush.msra.mxu0 %v2200
        %2476 = vmatpush.msra.mxu0 %v2198
        %2477 = vmatpush.msra.mxu0 %v2196
        %2478 = vmatpush.msra.mxu0 %v2194
        %2479 = vmatpush.msra.mxu0 %v2192
        %2480 = vmatpush.msra.mxu0 %v2190
        %2481 = vmatpush.msra.mxu0 %v2188
        %2482 = vmatpush.msra.mxu0 %v2186
        %2483 = vmatpush.msra.mxu0 %v2184
        %2484 = vmatpush.msra.mxu0 %v2182
        %2485 = vmatpush.msra.mxu0 %v2180
        %2486 = vmatpush.msra.mxu0 %v2178
        %2487 = vmatmul.f32.gmra.mxu0 %v2387
        %v2488 = vpop.f32.mrf.mxu0
        %v2489 = vadd.f32 %v2466, %v2488
        %2490 = vmatmul.f32.gmra.mxu0 %v2403
        %v2491 = vpop.f32.mrf.mxu0
        %v2492 = vadd.f32 %v2469, %v2491
        %2493 = vdwg.mxu0
        %2494 = vmatpush.msra.mxu0 %v2240
        %2495 = vmatpush.msra.mxu0 %v2238
        %2496 = vmatpush.msra.mxu0 %v2236
        %2497 = vmatpush.msra.mxu0 %v2234
        %2498 = vmatpush.msra.mxu0 %v2232
        %2499 = vmatpush.msra.mxu0 %v2230
        %2500 = vmatpush.msra.mxu0 %v2228
        %2501 = vmatpush.msra.mxu0 %v2226
        %2502 = vmatpush.msra.mxu0 %v2224
        %2503 = vmatpush.msra.mxu0 %v2222
        %2504 = vmatpush.msra.mxu0 %v2220
        %2505 = vmatpush.msra.mxu0 %v2218
        %2506 = vmatpush.msra.mxu0 %v2216
        %2507 = vmatpush.msra.mxu0 %v2214
        %2508 = vmatpush.msra.mxu0 %v2212
        %2509 = vmatpush.msra.mxu0 %v2210
        %2510 = vmatmul.f32.gmra.mxu0 %v2388
        %v2511 = vpop.f32.mrf.mxu0
        %v2512 = vadd.f32 %v2489, %v2511
        %2513 = vmatmul.f32.gmra.mxu0 %v2404
        %v2514 = vpop.f32.mrf.mxu0
        %v2515 = vadd.f32 %v2492, %v2514
        %2516 = vdwg.mxu0
        %2517 = vmatpush.msra.mxu0 %v2272
        %2518 = vmatpush.msra.mxu0 %v2270
        %2519 = vmatpush.msra.mxu0 %v2268
        %2520 = vmatpush.msra.mxu0 %v2266
        %2521 = vmatpush.msra.mxu0 %v2264
        %2522 = vmatpush.msra.mxu0 %v2262
        %2523 = vmatpush.msra.mxu0 %v2260
        %2524 = vmatpush.msra.mxu0 %v2258
        %2525 = vmatpush.msra.mxu0 %v2256
        %2526 = vmatpush.msra.mxu0 %v2254
        %2527 = vmatpush.msra.mxu0 %v2252
        %2528 = vmatpush.msra.mxu0 %v2250
        %2529 = vmatpush.msra.mxu0 %v2248
        %2530 = vmatpush.msra.mxu0 %v2246
        %2531 = vmatpush.msra.mxu0 %v2244
        %2532 = vmatpush.msra.mxu0 %v2242
        %2533 = vmatmul.f32.gmra.mxu0 %v2389
        %v2534 = vpop.f32.mrf.mxu0
        %v2535 = vadd.f32 %v2512, %v2534
        %2536 = vmatmul.f32.gmra.mxu0 %v2405
        %v2537 = vpop.f32.mrf.mxu0
        %v2538 = vadd.f32 %v2515, %v2537
        %2539 = vdwg.mxu0
        %2540 = vmatpush.msra.mxu0 %v2304
        %2541 = vmatpush.msra.mxu0 %v2302
        %2542 = vmatpush.msra.mxu0 %v2300
        %2543 = vmatpush.msra.mxu0 %v2298
        %2544 = vmatpush.msra.mxu0 %v2296
        %2545 = vmatpush.msra.mxu0 %v2294
        %2546 = vmatpush.msra.mxu0 %v2292
        %2547 = vmatpush.msra.mxu0 %v2290
        %2548 = vmatpush.msra.mxu0 %v2288
        %2549 = vmatpush.msra.mxu0 %v2286
        %2550 = vmatpush.msra.mxu0 %v2284
        %2551 = vmatpush.msra.mxu0 %v2282
        %2552 = vmatpush.msra.mxu0 %v2280
        %2553 = vmatpush.msra.mxu0 %v2278
        %2554 = vmatpush.msra.mxu0 %v2276
        %2555 = vmatpush.msra.mxu0 %v2274
        %2556 = vmatmul.f32.gmra.mxu0 %v2390
        %v2557 = vpop.f32.mrf.mxu0
        %v2558 = vadd.f32 %v2535, %v2557
        %2559 = vmatmul.f32.gmra.mxu0 %v2406
        %v2560 = vpop.f32.mrf.mxu0
        %v2561 = vadd.f32 %v2538, %v2560
        %2562 = vdwg.mxu0
        %2563 = vmatpush.msra.mxu0 %v2336
        %2564 = vmatpush.msra.mxu0 %v2334
        %2565 = vmatpush.msra.mxu0 %v2332
        %2566 = vmatpush.msra.mxu0 %v2330
        %2567 = vmatpush.msra.mxu0 %v2328
        %2568 = vmatpush.msra.mxu0 %v2326
        %2569 = vmatpush.msra.mxu0 %v2324
        %2570 = vmatpush.msra.mxu0 %v2322
        %2571 = vmatpush.msra.mxu0 %v2320
        %2572 = vmatpush.msra.mxu0 %v2318
        %2573 = vmatpush.msra.mxu0 %v2316
        %2574 = vmatpush.msra.mxu0 %v2314
        %2575 = vmatpush.msra.mxu0 %v2312
        %2576 = vmatpush.msra.mxu0 %v2310
        %2577 = vmatpush.msra.mxu0 %v2308
        %2578 = vmatpush.msra.mxu0 %v2306
        %2579 = vmatmul.f32.gmra.mxu0 %v2391
        %v2580 = vpop.f32.mrf.mxu0
        %v2581 = vadd.f32 %v2558, %v2580
        %2582 = vmatmul.f32.gmra.mxu0 %v2407
        %v2583 = vpop.f32.mrf.mxu0
        %v2584 = vadd.f32 %v2561, %v2583
        %2585 = vdwg.mxu0
        %2586 = vmatpush.msra.mxu0 %v2368
        %2587 = vmatpush.msra.mxu0 %v2366
        %2588 = vmatpush.msra.mxu0 %v2364
        %2589 = vmatpush.msra.mxu0 %v2362
        %2590 = vmatpush.msra.mxu0 %v2360
        %2591 = vmatpush.msra.mxu0 %v2358
        %2592 = vmatpush.msra.mxu0 %v2356
        %2593 = vmatpush.msra.mxu0 %v2354
        %2594 = vmatpush.msra.mxu0 %v2352
        %2595 = vmatpush.msra.mxu0 %v2350
        %2596 = vmatpush.msra.mxu0 %v2348
        %2597 = vmatpush.msra.mxu0 %v2346
        %2598 = vmatpush.msra.mxu0 %v2344
        %2599 = vmatpush.msra.mxu0 %v2342
        %2600 = vmatpush.msra.mxu0 %v2340
        %2601 = vmatpush.msra.mxu0 %v2338
        %2602 = vmatmul.f32.gmra.mxu0 %v2392
        %v2603 = vpop.f32.mrf.mxu0
        %v2604 = vadd.f32 %v2581, %v2603
        %2605 = vmatmul.f32.gmra.mxu0 %v2408
        %v2606 = vpop.f32.mrf.mxu0
        %v2607 = vadd.f32 %v2584, %v2606
        %2608 = vdwg.mxu0
        %2609 = vmatpush.msra.mxu0 %v2145
        %2610 = vmatpush.msra.mxu0 %v2143
        %2611 = vmatpush.msra.mxu0 %v2141
        %2612 = vmatpush.msra.mxu0 %v2139
        %2613 = vmatpush.msra.mxu0 %v2137
        %2614 = vmatpush.msra.mxu0 %v2135
        %2615 = vmatpush.msra.mxu0 %v2133
        %2616 = vmatpush.msra.mxu0 %v2131
        %2617 = vmatpush.msra.mxu0 %v2129
        %2618 = vmatpush.msra.mxu0 %v2127
        %2619 = vmatpush.msra.mxu0 %v2125
        %2620 = vmatpush.msra.mxu0 %v2123
        %2621 = vmatpush.msra.mxu0 %v2121
        %2622 = vmatpush.msra.mxu0 %v2119
        %2623 = vmatpush.msra.mxu0 %v2117
        %2624 = vmatpush.msra.mxu0 %v2115
        %2625 = vmatmul.f32.gmra.mxu0 %v2385
        %v2626 = vpop.f32.mrf.mxu0
        %v2627 = vadd.f32 0.0, %v2626
        %2628 = vmatmul.f32.gmra.mxu0 %v2401
        %v2629 = vpop.f32.mrf.mxu0
        %v2630 = vadd.f32 0.0, %v2629
        %2631 = vdwg.mxu0
        %2632 = vmatpush.msra.mxu0 %v2177
        %2633 = vmatpush.msra.mxu0 %v2175
        %2634 = vmatpush.msra.mxu0 %v2173
        %2635 = vmatpush.msra.mxu0 %v2171
        %2636 = vmatpush.msra.mxu0 %v2169
        %2637 = vmatpush.msra.mxu0 %v2167
        %2638 = vmatpush.msra.mxu0 %v2165
        %2639 = vmatpush.msra.mxu0 %v2163
        %2640 = vmatpush.msra.mxu0 %v2161
        %2641 = vmatpush.msra.mxu0 %v2159
        %2642 = vmatpush.msra.mxu0 %v2157
        %2643 = vmatpush.msra.mxu0 %v2155
        %2644 = vmatpush.msra.mxu0 %v2153
        %2645 = vmatpush.msra.mxu0 %v2151
        %2646 = vmatpush.msra.mxu0 %v2149
        %2647 = vmatpush.msra.mxu0 %v2147
        %2648 = vmatmul.f32.gmra.mxu0 %v2386
        %v2649 = vpop.f32.mrf.mxu0
        %v2650 = vadd.f32 %v2627, %v2649
        %2651 = vmatmul.f32.gmra.mxu0 %v2402
        %v2652 = vpop.f32.mrf.mxu0
        %v2653 = vadd.f32 %v2630, %v2652
        %2654 = vdwg.mxu0
        %2655 = vmatpush.msra.mxu0 %v2209
        %2656 = vmatpush.msra.mxu0 %v2207
        %2657 = vmatpush.msra.mxu0 %v2205
        %2658 = vmatpush.msra.mxu0 %v2203
        %2659 = vmatpush.msra.mxu0 %v2201
        %2660 = vmatpush.msra.mxu0 %v2199
        %2661 = vmatpush.msra.mxu0 %v2197
        %2662 = vmatpush.msra.mxu0 %v2195
        %2663 = vmatpush.msra.mxu0 %v2193
        %2664 = vmatpush.msra.mxu0 %v2191
        %2665 = vmatpush.msra.mxu0 %v2189
        %2666 = vmatpush.msra.mxu0 %v2187
        %2667 = vmatpush.msra.mxu0 %v2185
        %2668 = vmatpush.msra.mxu0 %v2183
        %2669 = vmatpush.msra.mxu0 %v2181
        %2670 = vmatpush.msra.mxu0 %v2179
        %2671 = vmatmul.f32.gmra.mxu0 %v2387
        %v2672 = vpop.f32.mrf.mxu0
        %v2673 = vadd.f32 %v2650, %v2672
        %2674 = vmatmul.f32.gmra.mxu0 %v2403
        %v2675 = vpop.f32.mrf.mxu0
        %v2676 = vadd.f32 %v2653, %v2675
        %2677 = vdwg.mxu0
        %2678 = vmatpush.msra.mxu0 %v2241
        %2679 = vmatpush.msra.mxu0 %v2239
        %2680 = vmatpush.msra.mxu0 %v2237
        %2681 = vmatpush.msra.mxu0 %v2235
        %2682 = vmatpush.msra.mxu0 %v2233
        %2683 = vmatpush.msra.mxu0 %v2231
        %2684 = vmatpush.msra.mxu0 %v2229
        %2685 = vmatpush.msra.mxu0 %v2227
        %2686 = vmatpush.msra.mxu0 %v2225
        %2687 = vmatpush.msra.mxu0 %v2223
        %2688 = vmatpush.msra.mxu0 %v2221
        %2689 = vmatpush.msra.mxu0 %v2219
        %2690 = vmatpush.msra.mxu0 %v2217
        %2691 = vmatpush.msra.mxu0 %v2215
        %2692 = vmatpush.msra.mxu0 %v2213
        %2693 = vmatpush.msra.mxu0 %v2211
        %2694 = vmatmul.f32.gmra.mxu0 %v2388
        %v2695 = vpop.f32.mrf.mxu0
        %v2696 = vadd.f32 %v2673, %v2695
        %2697 = vmatmul.f32.gmra.mxu0 %v2404
        %v2698 = vpop.f32.mrf.mxu0
        %v2699 = vadd.f32 %v2676, %v2698
        %2700 = vdwg.mxu0
        %2701 = vmatpush.msra.mxu0 %v2273
        %2702 = vmatpush.msra.mxu0 %v2271
        %2703 = vmatpush.msra.mxu0 %v2269
        %2704 = vmatpush.msra.mxu0 %v2267
        %2705 = vmatpush.msra.mxu0 %v2265
        %2706 = vmatpush.msra.mxu0 %v2263
        %2707 = vmatpush.msra.mxu0 %v2261
        %2708 = vmatpush.msra.mxu0 %v2259
        %2709 = vmatpush.msra.mxu0 %v2257
        %2710 = vmatpush.msra.mxu0 %v2255
        %2711 = vmatpush.msra.mxu0 %v2253
        %2712 = vmatpush.msra.mxu0 %v2251
        %2713 = vmatpush.msra.mxu0 %v2249
        %2714 = vmatpush.msra.mxu0 %v2247
        %2715 = vmatpush.msra.mxu0 %v2245
        %2716 = vmatpush.msra.mxu0 %v2243
        %2717 = vmatmul.f32.gmra.mxu0 %v2389
        %v2718 = vpop.f32.mrf.mxu0
        %v2719 = vadd.f32 %v2696, %v2718
        %2720 = vmatmul.f32.gmra.mxu0 %v2405
        %v2721 = vpop.f32.mrf.mxu0
        %v2722 = vadd.f32 %v2699, %v2721
        %2723 = vdwg.mxu0
        %2724 = vmatpush.msra.mxu0 %v2305
        %2725 = vmatpush.msra.mxu0 %v2303
        %2726 = vmatpush.msra.mxu0 %v2301
        %2727 = vmatpush.msra.mxu0 %v2299
        %2728 = vmatpush.msra.mxu0 %v2297
        %2729 = vmatpush.msra.mxu0 %v2295
        %2730 = vmatpush.msra.mxu0 %v2293
        %2731 = vmatpush.msra.mxu0 %v2291
        %2732 = vmatpush.msra.mxu0 %v2289
        %2733 = vmatpush.msra.mxu0 %v2287
        %2734 = vmatpush.msra.mxu0 %v2285
        %2735 = vmatpush.msra.mxu0 %v2283
        %2736 = vmatpush.msra.mxu0 %v2281
        %2737 = vmatpush.msra.mxu0 %v2279
        %2738 = vmatpush.msra.mxu0 %v2277
        %2739 = vmatpush.msra.mxu0 %v2275
        %2740 = vmatmul.f32.gmra.mxu0 %v2390
        %v2741 = vpop.f32.mrf.mxu0
        %v2742 = vadd.f32 %v2719, %v2741
        %2743 = vmatmul.f32.gmra.mxu0 %v2406
        %v2744 = vpop.f32.mrf.mxu0
        %v2745 = vadd.f32 %v2722, %v2744
        %2746 = vdwg.mxu0
        %2747 = vmatpush.msra.mxu0 %v2337
        %2748 = vmatpush.msra.mxu0 %v2335
        %2749 = vmatpush.msra.mxu0 %v2333
        %2750 = vmatpush.msra.mxu0 %v2331
        %2751 = vmatpush.msra.mxu0 %v2329
        %2752 = vmatpush.msra.mxu0 %v2327
        %2753 = vmatpush.msra.mxu0 %v2325
        %2754 = vmatpush.msra.mxu0 %v2323
        %2755 = vmatpush.msra.mxu0 %v2321
        %2756 = vmatpush.msra.mxu0 %v2319
        %2757 = vmatpush.msra.mxu0 %v2317
        %2758 = vmatpush.msra.mxu0 %v2315
        %2759 = vmatpush.msra.mxu0 %v2313
        %2760 = vmatpush.msra.mxu0 %v2311
        %2761 = vmatpush.msra.mxu0 %v2309
        %2762 = vmatpush.msra.mxu0 %v2307
        %2763 = vmatmul.f32.gmra.mxu0 %v2391
        %v2764 = vpop.f32.mrf.mxu0
        %v2765 = vadd.f32 %v2742, %v2764
        %2766 = vmatmul.f32.gmra.mxu0 %v2407
        %v2767 = vpop.f32.mrf.mxu0
        %v2768 = vadd.f32 %v2745, %v2767
        %2769 = vdwg.mxu0
        %2770 = vmatpush.msra.mxu0 %v2369
        %2771 = vmatpush.msra.mxu0 %v2367
        %2772 = vmatpush.msra.mxu0 %v2365
        %2773 = vmatpush.msra.mxu0 %v2363
        %2774 = vmatpush.msra.mxu0 %v2361
        %2775 = vmatpush.msra.mxu0 %v2359
        %2776 = vmatpush.msra.mxu0 %v2357
        %2777 = vmatpush.msra.mxu0 %v2355
        %2778 = vmatpush.msra.mxu0 %v2353
        %2779 = vmatpush.msra.mxu0 %v2351
        %2780 = vmatpush.msra.mxu0 %v2349
        %2781 = vmatpush.msra.mxu0 %v2347
        %2782 = vmatpush.msra.mxu0 %v2345
        %2783 = vmatpush.msra.mxu0 %v2343
        %2784 = vmatpush.msra.mxu0 %v2341
        %2785 = vmatpush.msra.mxu0 %v2339
        %2786 = vmatmul.f32.gmra.mxu0 %v2392
        %v2787 = vpop.f32.mrf.mxu0
        %v2788 = vadd.f32 %v2765, %v2787
        %2789 = vmatmul.f32.gmra.mxu0 %v2408
        %v2790 = vpop.f32.mrf.mxu0
        %v2791 = vadd.f32 %v2768, %v2790
        %2792 = vdwg.mxu0
        %v2793 = vadd.f32 %v1729, %v2604
        %v2794 = vadd.f32 %v1913, %v2788
        %v2795 = vadd.f32 %v1732, %v2607
        %v2796 = vadd.f32 %v1916, %v2791
        %s2797 = scalar_lea.vmem %s263, 64
        %v2798 = vld [vmem:[%s2797] sm:$0xf]
        %v2799 = vld [vmem:[%s2797 + $0x8] sm:$0xf]
        %v2800 = vld [vmem:[%s2797 + $0x10] sm:$0xf]
        %v2801 = vld [vmem:[%s2797 + $0x18] sm:$0xf]
        %v2802 = vld [vmem:[%s2797 + $0x20] sm:$0xf]
        %v2803 = vld [vmem:[%s2797 + $0x28] sm:$0xf]
        %v2804 = vld [vmem:[%s2797 + $0x30] sm:$0xf]
        %v2805 = vld [vmem:[%s2797 + $0x38] sm:$0xf]
        %v2806 = vld [vmem:[%s2797 + $0x40] sm:$0xf]
        %v2807 = vld [vmem:[%s2797 + $0x48] sm:$0xf]
        %v2808 = vld [vmem:[%s2797 + $0x50] sm:$0xf]
        %v2809 = vld [vmem:[%s2797 + $0x58] sm:$0xf]
        %v2810 = vld [vmem:[%s2797 + $0x60] sm:$0xf]
        %v2811 = vld [vmem:[%s2797 + $0x68] sm:$0xf]
        %v2812 = vld [vmem:[%s2797 + $0x70] sm:$0xf]
        %v2813 = vld [vmem:[%s2797 + $0x78] sm:$0xf]
        %v2814 = vld [vmem:[%s2797 + $0x80] sm:$0xf]
        %v2815 = vld [vmem:[%s2797 + $0x88] sm:$0xf]
        %v2816 = vld [vmem:[%s2797 + $0x90] sm:$0xf]
        %v2817 = vld [vmem:[%s2797 + $0x98] sm:$0xf]
        %v2818 = vld [vmem:[%s2797 + $0xa0] sm:$0xf]
        %v2819 = vld [vmem:[%s2797 + $0xa8] sm:$0xf]
        %v2820 = vld [vmem:[%s2797 + $0xb0] sm:$0xf]
        %v2821 = vld [vmem:[%s2797 + $0xb8] sm:$0xf]
        %v2822 = vld [vmem:[%s2797 + $0xc0] sm:$0xf]
        %v2823 = vld [vmem:[%s2797 + $0xc8] sm:$0xf]
        %v2824 = vld [vmem:[%s2797 + $0xd0] sm:$0xf]
        %v2825 = vld [vmem:[%s2797 + $0xd8] sm:$0xf]
        %v2826 = vld [vmem:[%s2797 + $0xe0] sm:$0xf]
        %v2827 = vld [vmem:[%s2797 + $0xe8] sm:$0xf]
        %v2828 = vld [vmem:[%s2797 + $0xf0] sm:$0xf]
        %v2829 = vld [vmem:[%s2797 + $0xf8] sm:$0xf]
        %v2862 = vrot.slane %v2799, 4
        %v2863 = vrot.slane %v2801, 4
        %v2864 = vrot.slane %v2803, 4
        %v2865 = vrot.slane %v2805, 4
        %v2866 = vrot.slane %v2807, 4
        %v2867 = vrot.slane %v2809, 4
        %v2868 = vrot.slane %v2811, 4
        %v2869 = vrot.slane %v2813, 4
        %v2870 = vrot.slane %v2815, 4
        %v2871 = vrot.slane %v2817, 4
        %v2872 = vrot.slane %v2819, 4
        %v2873 = vrot.slane %v2821, 4
        %v2874 = vrot.slane %v2823, 4
        %v2875 = vrot.slane %v2825, 4
        %v2876 = vrot.slane %v2827, 4
        %v2877 = vrot.slane %v2829, 4
        %v2878 = vsel %vm347, %v2798, %v2862
        %v2879 = vsel %vm347, %v2800, %v2863
        %v2880 = vsel %vm347, %v2802, %v2864
        %v2881 = vsel %vm347, %v2804, %v2865
        %v2882 = vsel %vm347, %v2806, %v2866
        %v2883 = vsel %vm347, %v2808, %v2867
        %v2884 = vsel %vm347, %v2810, %v2868
        %v2885 = vsel %vm347, %v2812, %v2869
        %v2886 = vsel %vm347, %v2814, %v2870
        %v2887 = vsel %vm347, %v2816, %v2871
        %v2888 = vsel %vm347, %v2818, %v2872
        %v2889 = vsel %vm347, %v2820, %v2873
        %v2890 = vsel %vm347, %v2822, %v2874
        %v2891 = vsel %vm347, %v2824, %v2875
        %v2892 = vsel %vm347, %v2826, %v2876
        %v2893 = vsel %vm347, %v2828, %v2877
        %s2894 = scalar_lea.vmem %s215, 6144 [#allocation2]
        %v2895 = vld [vmem:[%s2894] sm:$0xff]
        %v2896 = vld [vmem:[%s2894 + $0x8] sm:$0xff]
        %v2897 = vld [vmem:[%s2894 + $0x10] sm:$0xff]
        %v2898 = vld [vmem:[%s2894 + $0x18] sm:$0xff]
        %v2899 = vld [vmem:[%s2894 + $0x20] sm:$0xff]
        %v2900 = vld [vmem:[%s2894 + $0x28] sm:$0xff]
        %v2901 = vld [vmem:[%s2894 + $0x30] sm:$0xff]
        %v2902 = vld [vmem:[%s2894 + $0x38] sm:$0xff]
        %v2903 = vld [vmem:[%s2894 + $0x40] sm:$0xff]
        %v2904 = vld [vmem:[%s2894 + $0x48] sm:$0xff]
        %v2905 = vld [vmem:[%s2894 + $0x50] sm:$0xff]
        %v2906 = vld [vmem:[%s2894 + $0x58] sm:$0xff]
        %v2907 = vld [vmem:[%s2894 + $0x60] sm:$0xff]
        %v2908 = vld [vmem:[%s2894 + $0x68] sm:$0xff]
        %v2909 = vld [vmem:[%s2894 + $0x70] sm:$0xff]
        %v2910 = vld [vmem:[%s2894 + $0x78] sm:$0xff]
        %v2911 = vld [vmem:[%s2894 + $0x80] sm:$0xff]
        %v2912 = vld [vmem:[%s2894 + $0x88] sm:$0xff]
        %v2913 = vld [vmem:[%s2894 + $0x90] sm:$0xff]
        %v2914 = vld [vmem:[%s2894 + $0x98] sm:$0xff]
        %v2915 = vld [vmem:[%s2894 + $0xa0] sm:$0xff]
        %v2916 = vld [vmem:[%s2894 + $0xa8] sm:$0xff]
        %v2917 = vld [vmem:[%s2894 + $0xb0] sm:$0xff]
        %v2918 = vld [vmem:[%s2894 + $0xb8] sm:$0xff]
        %v2919 = vld [vmem:[%s2894 + $0xc0] sm:$0xff]
        %v2920 = vld [vmem:[%s2894 + $0xc8] sm:$0xff]
        %v2921 = vld [vmem:[%s2894 + $0xd0] sm:$0xff]
        %v2922 = vld [vmem:[%s2894 + $0xd8] sm:$0xff]
        %v2923 = vld [vmem:[%s2894 + $0xe0] sm:$0xff]
        %v2924 = vld [vmem:[%s2894 + $0xe8] sm:$0xff]
        %v2925 = vld [vmem:[%s2894 + $0xf0] sm:$0xff]
        %v2926 = vld [vmem:[%s2894 + $0xf8] sm:$0xff]
        %v2927 = vld [vmem:[%s2894 + $0x100] sm:$0xff]
        %v2928 = vld [vmem:[%s2894 + $0x108] sm:$0xff]
        %v2929 = vld [vmem:[%s2894 + $0x110] sm:$0xff]
        %v2930 = vld [vmem:[%s2894 + $0x118] sm:$0xff]
        %v2931 = vld [vmem:[%s2894 + $0x120] sm:$0xff]
        %v2932 = vld [vmem:[%s2894 + $0x128] sm:$0xff]
        %v2933 = vld [vmem:[%s2894 + $0x130] sm:$0xff]
        %v2934 = vld [vmem:[%s2894 + $0x138] sm:$0xff]
        %v2935 = vld [vmem:[%s2894 + $0x140] sm:$0xff]
        %v2936 = vld [vmem:[%s2894 + $0x148] sm:$0xff]
        %v2937 = vld [vmem:[%s2894 + $0x150] sm:$0xff]
        %v2938 = vld [vmem:[%s2894 + $0x158] sm:$0xff]
        %v2939 = vld [vmem:[%s2894 + $0x160] sm:$0xff]
        %v2940 = vld [vmem:[%s2894 + $0x168] sm:$0xff]
        %v2941 = vld [vmem:[%s2894 + $0x170] sm:$0xff]
        %v2942 = vld [vmem:[%s2894 + $0x178] sm:$0xff]
        %v2943 = vld [vmem:[%s2894 + $0x180] sm:$0xff]
        %v2944 = vld [vmem:[%s2894 + $0x188] sm:$0xff]
        %v2945 = vld [vmem:[%s2894 + $0x190] sm:$0xff]
        %v2946 = vld [vmem:[%s2894 + $0x198] sm:$0xff]
        %v2947 = vld [vmem:[%s2894 + $0x1a0] sm:$0xff]
        %v2948 = vld [vmem:[%s2894 + $0x1a8] sm:$0xff]
        %v2949 = vld [vmem:[%s2894 + $0x1b0] sm:$0xff]
        %v2950 = vld [vmem:[%s2894 + $0x1b8] sm:$0xff]
        %v2951 = vld [vmem:[%s2894 + $0x1c0] sm:$0xff]
        %v2952 = vld [vmem:[%s2894 + $0x1c8] sm:$0xff]
        %v2953 = vld [vmem:[%s2894 + $0x1d0] sm:$0xff]
        %v2954 = vld [vmem:[%s2894 + $0x1d8] sm:$0xff]
        %v2955 = vld [vmem:[%s2894 + $0x1e0] sm:$0xff]
        %v2956 = vld [vmem:[%s2894 + $0x1e8] sm:$0xff]
        %v2957 = vld [vmem:[%s2894 + $0x1f0] sm:$0xff]
        %v2958 = vld [vmem:[%s2894 + $0x1f8] sm:$0xff]
        %v2959 = vld [vmem:[%s2894 + $0x200] sm:$0xff]
        %v2960 = vld [vmem:[%s2894 + $0x208] sm:$0xff]
        %v2961 = vld [vmem:[%s2894 + $0x210] sm:$0xff]
        %v2962 = vld [vmem:[%s2894 + $0x218] sm:$0xff]
        %v2963 = vld [vmem:[%s2894 + $0x220] sm:$0xff]
        %v2964 = vld [vmem:[%s2894 + $0x228] sm:$0xff]
        %v2965 = vld [vmem:[%s2894 + $0x230] sm:$0xff]
        %v2966 = vld [vmem:[%s2894 + $0x238] sm:$0xff]
        %v2967 = vld [vmem:[%s2894 + $0x240] sm:$0xff]
        %v2968 = vld [vmem:[%s2894 + $0x248] sm:$0xff]
        %v2969 = vld [vmem:[%s2894 + $0x250] sm:$0xff]
        %v2970 = vld [vmem:[%s2894 + $0x258] sm:$0xff]
        %v2971 = vld [vmem:[%s2894 + $0x260] sm:$0xff]
        %v2972 = vld [vmem:[%s2894 + $0x268] sm:$0xff]
        %v2973 = vld [vmem:[%s2894 + $0x270] sm:$0xff]
        %v2974 = vld [vmem:[%s2894 + $0x278] sm:$0xff]
        %v2975 = vld [vmem:[%s2894 + $0x280] sm:$0xff]
        %v2976 = vld [vmem:[%s2894 + $0x288] sm:$0xff]
        %v2977 = vld [vmem:[%s2894 + $0x290] sm:$0xff]
        %v2978 = vld [vmem:[%s2894 + $0x298] sm:$0xff]
        %v2979 = vld [vmem:[%s2894 + $0x2a0] sm:$0xff]
        %v2980 = vld [vmem:[%s2894 + $0x2a8] sm:$0xff]
        %v2981 = vld [vmem:[%s2894 + $0x2b0] sm:$0xff]
        %v2982 = vld [vmem:[%s2894 + $0x2b8] sm:$0xff]
        %v2983 = vld [vmem:[%s2894 + $0x2c0] sm:$0xff]
        %v2984 = vld [vmem:[%s2894 + $0x2c8] sm:$0xff]
        %v2985 = vld [vmem:[%s2894 + $0x2d0] sm:$0xff]
        %v2986 = vld [vmem:[%s2894 + $0x2d8] sm:$0xff]
        %v2987 = vld [vmem:[%s2894 + $0x2e0] sm:$0xff]
        %v2988 = vld [vmem:[%s2894 + $0x2e8] sm:$0xff]
        %v2989 = vld [vmem:[%s2894 + $0x2f0] sm:$0xff]
        %v2990 = vld [vmem:[%s2894 + $0x2f8] sm:$0xff]
        %v2991 = vld [vmem:[%s2894 + $0x300] sm:$0xff]
        %v2992 = vld [vmem:[%s2894 + $0x308] sm:$0xff]
        %v2993 = vld [vmem:[%s2894 + $0x310] sm:$0xff]
        %v2994 = vld [vmem:[%s2894 + $0x318] sm:$0xff]
        %v2995 = vld [vmem:[%s2894 + $0x320] sm:$0xff]
        %v2996 = vld [vmem:[%s2894 + $0x328] sm:$0xff]
        %v2997 = vld [vmem:[%s2894 + $0x330] sm:$0xff]
        %v2998 = vld [vmem:[%s2894 + $0x338] sm:$0xff]
        %v2999 = vld [vmem:[%s2894 + $0x340] sm:$0xff]
        %v3000 = vld [vmem:[%s2894 + $0x348] sm:$0xff]
        %v3001 = vld [vmem:[%s2894 + $0x350] sm:$0xff]
        %v3002 = vld [vmem:[%s2894 + $0x358] sm:$0xff]
        %v3003 = vld [vmem:[%s2894 + $0x360] sm:$0xff]
        %v3004 = vld [vmem:[%s2894 + $0x368] sm:$0xff]
        %v3005 = vld [vmem:[%s2894 + $0x370] sm:$0xff]
        %v3006 = vld [vmem:[%s2894 + $0x378] sm:$0xff]
        %v3007 = vld [vmem:[%s2894 + $0x380] sm:$0xff]
        %v3008 = vld [vmem:[%s2894 + $0x388] sm:$0xff]
        %v3009 = vld [vmem:[%s2894 + $0x390] sm:$0xff]
        %v3010 = vld [vmem:[%s2894 + $0x398] sm:$0xff]
        %v3011 = vld [vmem:[%s2894 + $0x3a0] sm:$0xff]
        %v3012 = vld [vmem:[%s2894 + $0x3a8] sm:$0xff]
        %v3013 = vld [vmem:[%s2894 + $0x3b0] sm:$0xff]
        %v3014 = vld [vmem:[%s2894 + $0x3b8] sm:$0xff]
        %v3015 = vld [vmem:[%s2894 + $0x3c0] sm:$0xff]
        %v3016 = vld [vmem:[%s2894 + $0x3c8] sm:$0xff]
        %v3017 = vld [vmem:[%s2894 + $0x3d0] sm:$0xff]
        %v3018 = vld [vmem:[%s2894 + $0x3d8] sm:$0xff]
        %v3019 = vld [vmem:[%s2894 + $0x3e0] sm:$0xff]
        %v3020 = vld [vmem:[%s2894 + $0x3e8] sm:$0xff]
        %v3021 = vld [vmem:[%s2894 + $0x3f0] sm:$0xff]
        %v3022 = vld [vmem:[%s2894 + $0x3f8] sm:$0xff]
        %v3023 = vld [vmem:[%s2894 + $0x400] sm:$0xff]
        %v3024 = vld [vmem:[%s2894 + $0x408] sm:$0xff]
        %v3025 = vld [vmem:[%s2894 + $0x410] sm:$0xff]
        %v3026 = vld [vmem:[%s2894 + $0x418] sm:$0xff]
        %v3027 = vld [vmem:[%s2894 + $0x420] sm:$0xff]
        %v3028 = vld [vmem:[%s2894 + $0x428] sm:$0xff]
        %v3029 = vld [vmem:[%s2894 + $0x430] sm:$0xff]
        %v3030 = vld [vmem:[%s2894 + $0x438] sm:$0xff]
        %v3031 = vld [vmem:[%s2894 + $0x440] sm:$0xff]
        %v3032 = vld [vmem:[%s2894 + $0x448] sm:$0xff]
        %v3033 = vld [vmem:[%s2894 + $0x450] sm:$0xff]
        %v3034 = vld [vmem:[%s2894 + $0x458] sm:$0xff]
        %v3035 = vld [vmem:[%s2894 + $0x460] sm:$0xff]
        %v3036 = vld [vmem:[%s2894 + $0x468] sm:$0xff]
        %v3037 = vld [vmem:[%s2894 + $0x470] sm:$0xff]
        %v3038 = vld [vmem:[%s2894 + $0x478] sm:$0xff]
        %v3039 = vld [vmem:[%s2894 + $0x480] sm:$0xff]
        %v3040 = vld [vmem:[%s2894 + $0x488] sm:$0xff]
        %v3041 = vld [vmem:[%s2894 + $0x490] sm:$0xff]
        %v3042 = vld [vmem:[%s2894 + $0x498] sm:$0xff]
        %v3043 = vld [vmem:[%s2894 + $0x4a0] sm:$0xff]
        %v3044 = vld [vmem:[%s2894 + $0x4a8] sm:$0xff]
        %v3045 = vld [vmem:[%s2894 + $0x4b0] sm:$0xff]
        %v3046 = vld [vmem:[%s2894 + $0x4b8] sm:$0xff]
        %v3047 = vld [vmem:[%s2894 + $0x4c0] sm:$0xff]
        %v3048 = vld [vmem:[%s2894 + $0x4c8] sm:$0xff]
        %v3049 = vld [vmem:[%s2894 + $0x4d0] sm:$0xff]
        %v3050 = vld [vmem:[%s2894 + $0x4d8] sm:$0xff]
        %v3051 = vld [vmem:[%s2894 + $0x4e0] sm:$0xff]
        %v3052 = vld [vmem:[%s2894 + $0x4e8] sm:$0xff]
        %v3053 = vld [vmem:[%s2894 + $0x4f0] sm:$0xff]
        %v3054 = vld [vmem:[%s2894 + $0x4f8] sm:$0xff]
        %v3055 = vld [vmem:[%s2894 + $0x500] sm:$0xff]
        %v3056 = vld [vmem:[%s2894 + $0x508] sm:$0xff]
        %v3057 = vld [vmem:[%s2894 + $0x510] sm:$0xff]
        %v3058 = vld [vmem:[%s2894 + $0x518] sm:$0xff]
        %v3059 = vld [vmem:[%s2894 + $0x520] sm:$0xff]
        %v3060 = vld [vmem:[%s2894 + $0x528] sm:$0xff]
        %v3061 = vld [vmem:[%s2894 + $0x530] sm:$0xff]
        %v3062 = vld [vmem:[%s2894 + $0x538] sm:$0xff]
        %v3063 = vld [vmem:[%s2894 + $0x540] sm:$0xff]
        %v3064 = vld [vmem:[%s2894 + $0x548] sm:$0xff]
        %v3065 = vld [vmem:[%s2894 + $0x550] sm:$0xff]
        %v3066 = vld [vmem:[%s2894 + $0x558] sm:$0xff]
        %v3067 = vld [vmem:[%s2894 + $0x560] sm:$0xff]
        %v3068 = vld [vmem:[%s2894 + $0x568] sm:$0xff]
        %v3069 = vld [vmem:[%s2894 + $0x570] sm:$0xff]
        %v3070 = vld [vmem:[%s2894 + $0x578] sm:$0xff]
        %v3071 = vld [vmem:[%s2894 + $0x580] sm:$0xff]
        %v3072 = vld [vmem:[%s2894 + $0x588] sm:$0xff]
        %v3073 = vld [vmem:[%s2894 + $0x590] sm:$0xff]
        %v3074 = vld [vmem:[%s2894 + $0x598] sm:$0xff]
        %v3075 = vld [vmem:[%s2894 + $0x5a0] sm:$0xff]
        %v3076 = vld [vmem:[%s2894 + $0x5a8] sm:$0xff]
        %v3077 = vld [vmem:[%s2894 + $0x5b0] sm:$0xff]
        %v3078 = vld [vmem:[%s2894 + $0x5b8] sm:$0xff]
        %v3079 = vld [vmem:[%s2894 + $0x5c0] sm:$0xff]
        %v3080 = vld [vmem:[%s2894 + $0x5c8] sm:$0xff]
        %v3081 = vld [vmem:[%s2894 + $0x5d0] sm:$0xff]
        %v3082 = vld [vmem:[%s2894 + $0x5d8] sm:$0xff]
        %v3083 = vld [vmem:[%s2894 + $0x5e0] sm:$0xff]
        %v3084 = vld [vmem:[%s2894 + $0x5e8] sm:$0xff]
        %v3085 = vld [vmem:[%s2894 + $0x5f0] sm:$0xff]
        %v3086 = vld [vmem:[%s2894 + $0x5f8] sm:$0xff]
        %v3087 = vld [vmem:[%s2894 + $0x600] sm:$0xff]
        %v3088 = vld [vmem:[%s2894 + $0x608] sm:$0xff]
        %v3089 = vld [vmem:[%s2894 + $0x610] sm:$0xff]
        %v3090 = vld [vmem:[%s2894 + $0x618] sm:$0xff]
        %v3091 = vld [vmem:[%s2894 + $0x620] sm:$0xff]
        %v3092 = vld [vmem:[%s2894 + $0x628] sm:$0xff]
        %v3093 = vld [vmem:[%s2894 + $0x630] sm:$0xff]
        %v3094 = vld [vmem:[%s2894 + $0x638] sm:$0xff]
        %v3095 = vld [vmem:[%s2894 + $0x640] sm:$0xff]
        %v3096 = vld [vmem:[%s2894 + $0x648] sm:$0xff]
        %v3097 = vld [vmem:[%s2894 + $0x650] sm:$0xff]
        %v3098 = vld [vmem:[%s2894 + $0x658] sm:$0xff]
        %v3099 = vld [vmem:[%s2894 + $0x660] sm:$0xff]
        %v3100 = vld [vmem:[%s2894 + $0x668] sm:$0xff]
        %v3101 = vld [vmem:[%s2894 + $0x670] sm:$0xff]
        %v3102 = vld [vmem:[%s2894 + $0x678] sm:$0xff]
        %v3103 = vld [vmem:[%s2894 + $0x680] sm:$0xff]
        %v3104 = vld [vmem:[%s2894 + $0x688] sm:$0xff]
        %v3105 = vld [vmem:[%s2894 + $0x690] sm:$0xff]
        %v3106 = vld [vmem:[%s2894 + $0x698] sm:$0xff]
        %v3107 = vld [vmem:[%s2894 + $0x6a0] sm:$0xff]
        %v3108 = vld [vmem:[%s2894 + $0x6a8] sm:$0xff]
        %v3109 = vld [vmem:[%s2894 + $0x6b0] sm:$0xff]
        %v3110 = vld [vmem:[%s2894 + $0x6b8] sm:$0xff]
        %v3111 = vld [vmem:[%s2894 + $0x6c0] sm:$0xff]
        %v3112 = vld [vmem:[%s2894 + $0x6c8] sm:$0xff]
        %v3113 = vld [vmem:[%s2894 + $0x6d0] sm:$0xff]
        %v3114 = vld [vmem:[%s2894 + $0x6d8] sm:$0xff]
        %v3115 = vld [vmem:[%s2894 + $0x6e0] sm:$0xff]
        %v3116 = vld [vmem:[%s2894 + $0x6e8] sm:$0xff]
        %v3117 = vld [vmem:[%s2894 + $0x6f0] sm:$0xff]
        %v3118 = vld [vmem:[%s2894 + $0x6f8] sm:$0xff]
        %v3119 = vld [vmem:[%s2894 + $0x700] sm:$0xff]
        %v3120 = vld [vmem:[%s2894 + $0x708] sm:$0xff]
        %v3121 = vld [vmem:[%s2894 + $0x710] sm:$0xff]
        %v3122 = vld [vmem:[%s2894 + $0x718] sm:$0xff]
        %v3123 = vld [vmem:[%s2894 + $0x720] sm:$0xff]
        %v3124 = vld [vmem:[%s2894 + $0x728] sm:$0xff]
        %v3125 = vld [vmem:[%s2894 + $0x730] sm:$0xff]
        %v3126 = vld [vmem:[%s2894 + $0x738] sm:$0xff]
        %v3127 = vld [vmem:[%s2894 + $0x740] sm:$0xff]
        %v3128 = vld [vmem:[%s2894 + $0x748] sm:$0xff]
        %v3129 = vld [vmem:[%s2894 + $0x750] sm:$0xff]
        %v3130 = vld [vmem:[%s2894 + $0x758] sm:$0xff]
        %v3131 = vld [vmem:[%s2894 + $0x760] sm:$0xff]
        %v3132 = vld [vmem:[%s2894 + $0x768] sm:$0xff]
        %v3133 = vld [vmem:[%s2894 + $0x770] sm:$0xff]
        %v3134 = vld [vmem:[%s2894 + $0x778] sm:$0xff]
        %v3135 = vld [vmem:[%s2894 + $0x780] sm:$0xff]
        %v3136 = vld [vmem:[%s2894 + $0x788] sm:$0xff]
        %v3137 = vld [vmem:[%s2894 + $0x790] sm:$0xff]
        %v3138 = vld [vmem:[%s2894 + $0x798] sm:$0xff]
        %v3139 = vld [vmem:[%s2894 + $0x7a0] sm:$0xff]
        %v3140 = vld [vmem:[%s2894 + $0x7a8] sm:$0xff]
        %v3141 = vld [vmem:[%s2894 + $0x7b0] sm:$0xff]
        %v3142 = vld [vmem:[%s2894 + $0x7b8] sm:$0xff]
        %v3143 = vld [vmem:[%s2894 + $0x7c0] sm:$0xff]
        %v3144 = vld [vmem:[%s2894 + $0x7c8] sm:$0xff]
        %v3145 = vld [vmem:[%s2894 + $0x7d0] sm:$0xff]
        %v3146 = vld [vmem:[%s2894 + $0x7d8] sm:$0xff]
        %v3147 = vld [vmem:[%s2894 + $0x7e0] sm:$0xff]
        %v3148 = vld [vmem:[%s2894 + $0x7e8] sm:$0xff]
        %v3149 = vld [vmem:[%s2894 + $0x7f0] sm:$0xff]
        %v3150 = vld [vmem:[%s2894 + $0x7f8] sm:$0xff]
        %3151 = vst [vmem:[#allocation1] ss:$2 sm:$0xff] %v2878
        %s3152 = scalar_lea.vmem [#allocation1], 1
        %3153 = vst [vmem:[%s3152] ss:$2 sm:$0xff] %v2882
        %s3154 = scalar_lea.vmem [#allocation1], 16
        %3155 = vst [vmem:[%s3154] ss:$2 sm:$0xff] %v2879
        %s3156 = scalar_lea.vmem [#allocation1], 17
        %3157 = vst [vmem:[%s3156] ss:$2 sm:$0xff] %v2883
        %s3158 = scalar_lea.vmem [#allocation1], 32
        %3159 = vst [vmem:[%s3158] ss:$2 sm:$0xff] %v2880
        %s3160 = scalar_lea.vmem [#allocation1], 33
        %3161 = vst [vmem:[%s3160] ss:$2 sm:$0xff] %v2884
        %s3162 = scalar_lea.vmem [#allocation1], 48
        %3163 = vst [vmem:[%s3162] ss:$2 sm:$0xff] %v2881
        %s3164 = scalar_lea.vmem [#allocation1], 49
        %3165 = vst [vmem:[%s3164] ss:$2 sm:$0xff] %v2885
        %v3166 = vld.sshfl [vmem:[#allocation1] sm:$0xff pattern:$0x75316420]
        %v3167 = vld.sshfl [vmem:[#allocation1 + $0x8] sm:$0xff pattern:$0x75316420]
        %v3168 = vld.sshfl [vmem:[#allocation1 + $0x10] sm:$0xff pattern:$0x75316420]
        %v3169 = vld.sshfl [vmem:[#allocation1 + $0x18] sm:$0xff pattern:$0x75316420]
        %v3170 = vld.sshfl [vmem:[#allocation1 + $0x20] sm:$0xff pattern:$0x75316420]
        %v3171 = vld.sshfl [vmem:[#allocation1 + $0x28] sm:$0xff pattern:$0x75316420]
        %v3172 = vld.sshfl [vmem:[#allocation1 + $0x30] sm:$0xff pattern:$0x75316420]
        %v3173 = vld.sshfl [vmem:[#allocation1 + $0x38] sm:$0xff pattern:$0x75316420]
        %3174 = vst [vmem:[#allocation1] ss:$2 sm:$0xff] %v2886
        %3175 = vst [vmem:[%s3152] ss:$2 sm:$0xff] %v2890
        %3176 = vst [vmem:[%s3154] ss:$2 sm:$0xff] %v2887
        %3177 = vst [vmem:[%s3156] ss:$2 sm:$0xff] %v2891
        %3178 = vst [vmem:[%s3158] ss:$2 sm:$0xff] %v2888
        %3179 = vst [vmem:[%s3160] ss:$2 sm:$0xff] %v2892
        %3180 = vst [vmem:[%s3162] ss:$2 sm:$0xff] %v2889
        %3181 = vst [vmem:[%s3164] ss:$2 sm:$0xff] %v2893
        %v3182 = vld.sshfl [vmem:[#allocation1] sm:$0xff pattern:$0x75316420]
        %v3183 = vld.sshfl [vmem:[#allocation1 + $0x8] sm:$0xff pattern:$0x75316420]
        %v3184 = vld.sshfl [vmem:[#allocation1 + $0x10] sm:$0xff pattern:$0x75316420]
        %v3185 = vld.sshfl [vmem:[#allocation1 + $0x18] sm:$0xff pattern:$0x75316420]
        %v3186 = vld.sshfl [vmem:[#allocation1 + $0x20] sm:$0xff pattern:$0x75316420]
        %v3187 = vld.sshfl [vmem:[#allocation1 + $0x28] sm:$0xff pattern:$0x75316420]
        %v3188 = vld.sshfl [vmem:[#allocation1 + $0x30] sm:$0xff pattern:$0x75316420]
        %v3189 = vld.sshfl [vmem:[#allocation1 + $0x38] sm:$0xff pattern:$0x75316420]
        %3206 = vmatpush.msra.mxu0 %v2925
        %3207 = vmatpush.msra.mxu0 %v2923
        %3208 = vmatpush.msra.mxu0 %v2921
        %3209 = vmatpush.msra.mxu0 %v2919
        %3210 = vmatpush.msra.mxu0 %v2917
        %3211 = vmatpush.msra.mxu0 %v2915
        %3212 = vmatpush.msra.mxu0 %v2913
        %3213 = vmatpush.msra.mxu0 %v2911
        %3214 = vmatpush.msra.mxu0 %v2909
        %3215 = vmatpush.msra.mxu0 %v2907
        %3216 = vmatpush.msra.mxu0 %v2905
        %3217 = vmatpush.msra.mxu0 %v2903
        %3218 = vmatpush.msra.mxu0 %v2901
        %3219 = vmatpush.msra.mxu0 %v2899
        %3220 = vmatpush.msra.mxu0 %v2897
        %3221 = vmatpush.msra.mxu0 %v2895
        %3222 = vmatmul.f32.gmra.mxu0 %v3166
        %v3223 = vpop.f32.mrf.mxu0
        %v3224 = vadd.f32 0.0, %v3223
        %3225 = vmatmul.f32.gmra.mxu0 %v3182
        %v3226 = vpop.f32.mrf.mxu0
        %v3227 = vadd.f32 0.0, %v3226
        %3228 = vdwg.mxu0
        %3229 = vmatpush.msra.mxu0 %v2957
        %3230 = vmatpush.msra.mxu0 %v2955
        %3231 = vmatpush.msra.mxu0 %v2953
        %3232 = vmatpush.msra.mxu0 %v2951
        %3233 = vmatpush.msra.mxu0 %v2949
        %3234 = vmatpush.msra.mxu0 %v2947
        %3235 = vmatpush.msra.mxu0 %v2945
        %3236 = vmatpush.msra.mxu0 %v2943
        %3237 = vmatpush.msra.mxu0 %v2941
        %3238 = vmatpush.msra.mxu0 %v2939
        %3239 = vmatpush.msra.mxu0 %v2937
        %3240 = vmatpush.msra.mxu0 %v2935
        %3241 = vmatpush.msra.mxu0 %v2933
        %3242 = vmatpush.msra.mxu0 %v2931
        %3243 = vmatpush.msra.mxu0 %v2929
        %3244 = vmatpush.msra.mxu0 %v2927
        %3245 = vmatmul.f32.gmra.mxu0 %v3167
        %v3246 = vpop.f32.mrf.mxu0
        %v3247 = vadd.f32 %v3224, %v3246
        %3248 = vmatmul.f32.gmra.mxu0 %v3183
        %v3249 = vpop.f32.mrf.mxu0
        %v3250 = vadd.f32 %v3227, %v3249
        %3251 = vdwg.mxu0
        %3252 = vmatpush.msra.mxu0 %v2989
        %3253 = vmatpush.msra.mxu0 %v2987
        %3254 = vmatpush.msra.mxu0 %v2985
        %3255 = vmatpush.msra.mxu0 %v2983
        %3256 = vmatpush.msra.mxu0 %v2981
        %3257 = vmatpush.msra.mxu0 %v2979
        %3258 = vmatpush.msra.mxu0 %v2977
        %3259 = vmatpush.msra.mxu0 %v2975
        %3260 = vmatpush.msra.mxu0 %v2973
        %3261 = vmatpush.msra.mxu0 %v2971
        %3262 = vmatpush.msra.mxu0 %v2969
        %3263 = vmatpush.msra.mxu0 %v2967
        %3264 = vmatpush.msra.mxu0 %v2965
        %3265 = vmatpush.msra.mxu0 %v2963
        %3266 = vmatpush.msra.mxu0 %v2961
        %3267 = vmatpush.msra.mxu0 %v2959
        %3268 = vmatmul.f32.gmra.mxu0 %v3168
        %v3269 = vpop.f32.mrf.mxu0
        %v3270 = vadd.f32 %v3247, %v3269
        %3271 = vmatmul.f32.gmra.mxu0 %v3184
        %v3272 = vpop.f32.mrf.mxu0
        %v3273 = vadd.f32 %v3250, %v3272
        %3274 = vdwg.mxu0
        %3275 = vmatpush.msra.mxu0 %v3021
        %3276 = vmatpush.msra.mxu0 %v3019
        %3277 = vmatpush.msra.mxu0 %v3017
        %3278 = vmatpush.msra.mxu0 %v3015
        %3279 = vmatpush.msra.mxu0 %v3013
        %3280 = vmatpush.msra.mxu0 %v3011
        %3281 = vmatpush.msra.mxu0 %v3009
        %3282 = vmatpush.msra.mxu0 %v3007
        %3283 = vmatpush.msra.mxu0 %v3005
        %3284 = vmatpush.msra.mxu0 %v3003
        %3285 = vmatpush.msra.mxu0 %v3001
        %3286 = vmatpush.msra.mxu0 %v2999
        %3287 = vmatpush.msra.mxu0 %v2997
        %3288 = vmatpush.msra.mxu0 %v2995
        %3289 = vmatpush.msra.mxu0 %v2993
        %3290 = vmatpush.msra.mxu0 %v2991
        %3291 = vmatmul.f32.gmra.mxu0 %v3169
        %v3292 = vpop.f32.mrf.mxu0
        %v3293 = vadd.f32 %v3270, %v3292
        %3294 = vmatmul.f32.gmra.mxu0 %v3185
        %v3295 = vpop.f32.mrf.mxu0
        %v3296 = vadd.f32 %v3273, %v3295
        %3297 = vdwg.mxu0
        %3298 = vmatpush.msra.mxu0 %v3053
        %3299 = vmatpush.msra.mxu0 %v3051
        %3300 = vmatpush.msra.mxu0 %v3049
        %3301 = vmatpush.msra.mxu0 %v3047
        %3302 = vmatpush.msra.mxu0 %v3045
        %3303 = vmatpush.msra.mxu0 %v3043
        %3304 = vmatpush.msra.mxu0 %v3041
        %3305 = vmatpush.msra.mxu0 %v3039
        %3306 = vmatpush.msra.mxu0 %v3037
        %3307 = vmatpush.msra.mxu0 %v3035
        %3308 = vmatpush.msra.mxu0 %v3033
        %3309 = vmatpush.msra.mxu0 %v3031
        %3310 = vmatpush.msra.mxu0 %v3029
        %3311 = vmatpush.msra.mxu0 %v3027
        %3312 = vmatpush.msra.mxu0 %v3025
        %3313 = vmatpush.msra.mxu0 %v3023
        %3314 = vmatmul.f32.gmra.mxu0 %v3170
        %v3315 = vpop.f32.mrf.mxu0
        %v3316 = vadd.f32 %v3293, %v3315
        %3317 = vmatmul.f32.gmra.mxu0 %v3186
        %v3318 = vpop.f32.mrf.mxu0
        %v3319 = vadd.f32 %v3296, %v3318
        %3320 = vdwg.mxu0
        %3321 = vmatpush.msra.mxu0 %v3085
        %3322 = vmatpush.msra.mxu0 %v3083
        %3323 = vmatpush.msra.mxu0 %v3081
        %3324 = vmatpush.msra.mxu0 %v3079
        %3325 = vmatpush.msra.mxu0 %v3077
        %3326 = vmatpush.msra.mxu0 %v3075
        %3327 = vmatpush.msra.mxu0 %v3073
        %3328 = vmatpush.msra.mxu0 %v3071
        %3329 = vmatpush.msra.mxu0 %v3069
        %3330 = vmatpush.msra.mxu0 %v3067
        %3331 = vmatpush.msra.mxu0 %v3065
        %3332 = vmatpush.msra.mxu0 %v3063
        %3333 = vmatpush.msra.mxu0 %v3061
        %3334 = vmatpush.msra.mxu0 %v3059
        %3335 = vmatpush.msra.mxu0 %v3057
        %3336 = vmatpush.msra.mxu0 %v3055
        %3337 = vmatmul.f32.gmra.mxu0 %v3171
        %v3338 = vpop.f32.mrf.mxu0
        %v3339 = vadd.f32 %v3316, %v3338
        %3340 = vmatmul.f32.gmra.mxu0 %v3187
        %v3341 = vpop.f32.mrf.mxu0
        %v3342 = vadd.f32 %v3319, %v3341
        %3343 = vdwg.mxu0
        %3344 = vmatpush.msra.mxu0 %v3117
        %3345 = vmatpush.msra.mxu0 %v3115
        %3346 = vmatpush.msra.mxu0 %v3113
        %3347 = vmatpush.msra.mxu0 %v3111
        %3348 = vmatpush.msra.mxu0 %v3109
        %3349 = vmatpush.msra.mxu0 %v3107
        %3350 = vmatpush.msra.mxu0 %v3105
        %3351 = vmatpush.msra.mxu0 %v3103
        %3352 = vmatpush.msra.mxu0 %v3101
        %3353 = vmatpush.msra.mxu0 %v3099
        %3354 = vmatpush.msra.mxu0 %v3097
        %3355 = vmatpush.msra.mxu0 %v3095
        %3356 = vmatpush.msra.mxu0 %v3093
        %3357 = vmatpush.msra.mxu0 %v3091
        %3358 = vmatpush.msra.mxu0 %v3089
        %3359 = vmatpush.msra.mxu0 %v3087
        %3360 = vmatmul.f32.gmra.mxu0 %v3172
        %v3361 = vpop.f32.mrf.mxu0
        %v3362 = vadd.f32 %v3339, %v3361
        %3363 = vmatmul.f32.gmra.mxu0 %v3188
        %v3364 = vpop.f32.mrf.mxu0
        %v3365 = vadd.f32 %v3342, %v3364
        %3366 = vdwg.mxu0
        %3367 = vmatpush.msra.mxu0 %v3149
        %3368 = vmatpush.msra.mxu0 %v3147
        %3369 = vmatpush.msra.mxu0 %v3145
        %3370 = vmatpush.msra.mxu0 %v3143
        %3371 = vmatpush.msra.mxu0 %v3141
        %3372 = vmatpush.msra.mxu0 %v3139
        %3373 = vmatpush.msra.mxu0 %v3137
        %3374 = vmatpush.msra.mxu0 %v3135
        %3375 = vmatpush.msra.mxu0 %v3133
        %3376 = vmatpush.msra.mxu0 %v3131
        %3377 = vmatpush.msra.mxu0 %v3129
        %3378 = vmatpush.msra.mxu0 %v3127
        %3379 = vmatpush.msra.mxu0 %v3125
        %3380 = vmatpush.msra.mxu0 %v3123
        %3381 = vmatpush.msra.mxu0 %v3121
        %3382 = vmatpush.msra.mxu0 %v3119
        %3383 = vmatmul.f32.gmra.mxu0 %v3173
        %v3384 = vpop.f32.mrf.mxu0
        %v3385 = vadd.f32 %v3362, %v3384
        %3386 = vmatmul.f32.gmra.mxu0 %v3189
        %v3387 = vpop.f32.mrf.mxu0
        %v3388 = vadd.f32 %v3365, %v3387
        %3389 = vdwg.mxu0
        %3390 = vmatpush.msra.mxu0 %v2926
        %3391 = vmatpush.msra.mxu0 %v2924
        %3392 = vmatpush.msra.mxu0 %v2922
        %3393 = vmatpush.msra.mxu0 %v2920
        %3394 = vmatpush.msra.mxu0 %v2918
        %3395 = vmatpush.msra.mxu0 %v2916
        %3396 = vmatpush.msra.mxu0 %v2914
        %3397 = vmatpush.msra.mxu0 %v2912
        %3398 = vmatpush.msra.mxu0 %v2910
        %3399 = vmatpush.msra.mxu0 %v2908
        %3400 = vmatpush.msra.mxu0 %v2906
        %3401 = vmatpush.msra.mxu0 %v2904
        %3402 = vmatpush.msra.mxu0 %v2902
        %3403 = vmatpush.msra.mxu0 %v2900
        %3404 = vmatpush.msra.mxu0 %v2898
        %3405 = vmatpush.msra.mxu0 %v2896
        %3406 = vmatmul.f32.gmra.mxu0 %v3166
        %v3407 = vpop.f32.mrf.mxu0
        %v3408 = vadd.f32 0.0, %v3407
        %3409 = vmatmul.f32.gmra.mxu0 %v3182
        %v3410 = vpop.f32.mrf.mxu0
        %v3411 = vadd.f32 0.0, %v3410
        %3412 = vdwg.mxu0
        %3413 = vmatpush.msra.mxu0 %v2958
        %3414 = vmatpush.msra.mxu0 %v2956
        %3415 = vmatpush.msra.mxu0 %v2954
        %3416 = vmatpush.msra.mxu0 %v2952
        %3417 = vmatpush.msra.mxu0 %v2950
        %3418 = vmatpush.msra.mxu0 %v2948
        %3419 = vmatpush.msra.mxu0 %v2946
        %3420 = vmatpush.msra.mxu0 %v2944
        %3421 = vmatpush.msra.mxu0 %v2942
        %3422 = vmatpush.msra.mxu0 %v2940
        %3423 = vmatpush.msra.mxu0 %v2938
        %3424 = vmatpush.msra.mxu0 %v2936
        %3425 = vmatpush.msra.mxu0 %v2934
        %3426 = vmatpush.msra.mxu0 %v2932
        %3427 = vmatpush.msra.mxu0 %v2930
        %3428 = vmatpush.msra.mxu0 %v2928
        %3429 = vmatmul.f32.gmra.mxu0 %v3167
        %v3430 = vpop.f32.mrf.mxu0
        %v3431 = vadd.f32 %v3408, %v3430
        %3432 = vmatmul.f32.gmra.mxu0 %v3183
        %v3433 = vpop.f32.mrf.mxu0
        %v3434 = vadd.f32 %v3411, %v3433
        %3435 = vdwg.mxu0
        %3436 = vmatpush.msra.mxu0 %v2990
        %3437 = vmatpush.msra.mxu0 %v2988
        %3438 = vmatpush.msra.mxu0 %v2986
        %3439 = vmatpush.msra.mxu0 %v2984
        %3440 = vmatpush.msra.mxu0 %v2982
        %3441 = vmatpush.msra.mxu0 %v2980
        %3442 = vmatpush.msra.mxu0 %v2978
        %3443 = vmatpush.msra.mxu0 %v2976
        %3444 = vmatpush.msra.mxu0 %v2974
        %3445 = vmatpush.msra.mxu0 %v2972
        %3446 = vmatpush.msra.mxu0 %v2970
        %3447 = vmatpush.msra.mxu0 %v2968
        %3448 = vmatpush.msra.mxu0 %v2966
        %3449 = vmatpush.msra.mxu0 %v2964
        %3450 = vmatpush.msra.mxu0 %v2962
        %3451 = vmatpush.msra.mxu0 %v2960
        %3452 = vmatmul.f32.gmra.mxu0 %v3168
        %v3453 = vpop.f32.mrf.mxu0
        %v3454 = vadd.f32 %v3431, %v3453
        %3455 = vmatmul.f32.gmra.mxu0 %v3184
        %v3456 = vpop.f32.mrf.mxu0
        %v3457 = vadd.f32 %v3434, %v3456
        %3458 = vdwg.mxu0
        %3459 = vmatpush.msra.mxu0 %v3022
        %3460 = vmatpush.msra.mxu0 %v3020
        %3461 = vmatpush.msra.mxu0 %v3018
        %3462 = vmatpush.msra.mxu0 %v3016
        %3463 = vmatpush.msra.mxu0 %v3014
        %3464 = vmatpush.msra.mxu0 %v3012
        %3465 = vmatpush.msra.mxu0 %v3010
        %3466 = vmatpush.msra.mxu0 %v3008
        %3467 = vmatpush.msra.mxu0 %v3006
        %3468 = vmatpush.msra.mxu0 %v3004
        %3469 = vmatpush.msra.mxu0 %v3002
        %3470 = vmatpush.msra.mxu0 %v3000
        %3471 = vmatpush.msra.mxu0 %v2998
        %3472 = vmatpush.msra.mxu0 %v2996
        %3473 = vmatpush.msra.mxu0 %v2994
        %3474 = vmatpush.msra.mxu0 %v2992
        %3475 = vmatmul.f32.gmra.mxu0 %v3169
        %v3476 = vpop.f32.mrf.mxu0
        %v3477 = vadd.f32 %v3454, %v3476
        %3478 = vmatmul.f32.gmra.mxu0 %v3185
        %v3479 = vpop.f32.mrf.mxu0
        %v3480 = vadd.f32 %v3457, %v3479
        %3481 = vdwg.mxu0
        %3482 = vmatpush.msra.mxu0 %v3054
        %3483 = vmatpush.msra.mxu0 %v3052
        %3484 = vmatpush.msra.mxu0 %v3050
        %3485 = vmatpush.msra.mxu0 %v3048
        %3486 = vmatpush.msra.mxu0 %v3046
        %3487 = vmatpush.msra.mxu0 %v3044
        %3488 = vmatpush.msra.mxu0 %v3042
        %3489 = vmatpush.msra.mxu0 %v3040
        %3490 = vmatpush.msra.mxu0 %v3038
        %3491 = vmatpush.msra.mxu0 %v3036
        %3492 = vmatpush.msra.mxu0 %v3034
        %3493 = vmatpush.msra.mxu0 %v3032
        %3494 = vmatpush.msra.mxu0 %v3030
        %3495 = vmatpush.msra.mxu0 %v3028
        %3496 = vmatpush.msra.mxu0 %v3026
        %3497 = vmatpush.msra.mxu0 %v3024
        %3498 = vmatmul.f32.gmra.mxu0 %v3170
        %v3499 = vpop.f32.mrf.mxu0
        %v3500 = vadd.f32 %v3477, %v3499
        %3501 = vmatmul.f32.gmra.mxu0 %v3186
        %v3502 = vpop.f32.mrf.mxu0
        %v3503 = vadd.f32 %v3480, %v3502
        %3504 = vdwg.mxu0
        %3505 = vmatpush.msra.mxu0 %v3086
        %3506 = vmatpush.msra.mxu0 %v3084
        %3507 = vmatpush.msra.mxu0 %v3082
        %3508 = vmatpush.msra.mxu0 %v3080
        %3509 = vmatpush.msra.mxu0 %v3078
        %3510 = vmatpush.msra.mxu0 %v3076
        %3511 = vmatpush.msra.mxu0 %v3074
        %3512 = vmatpush.msra.mxu0 %v3072
        %3513 = vmatpush.msra.mxu0 %v3070
        %3514 = vmatpush.msra.mxu0 %v3068
        %3515 = vmatpush.msra.mxu0 %v3066
        %3516 = vmatpush.msra.mxu0 %v3064
        %3517 = vmatpush.msra.mxu0 %v3062
        %3518 = vmatpush.msra.mxu0 %v3060
        %3519 = vmatpush.msra.mxu0 %v3058
        %3520 = vmatpush.msra.mxu0 %v3056
        %3521 = vmatmul.f32.gmra.mxu0 %v3171
        %v3522 = vpop.f32.mrf.mxu0
        %v3523 = vadd.f32 %v3500, %v3522
        %3524 = vmatmul.f32.gmra.mxu0 %v3187
        %v3525 = vpop.f32.mrf.mxu0
        %v3526 = vadd.f32 %v3503, %v3525
        %3527 = vdwg.mxu0
        %3528 = vmatpush.msra.mxu0 %v3118
        %3529 = vmatpush.msra.mxu0 %v3116
        %3530 = vmatpush.msra.mxu0 %v3114
        %3531 = vmatpush.msra.mxu0 %v3112
        %3532 = vmatpush.msra.mxu0 %v3110
        %3533 = vmatpush.msra.mxu0 %v3108
        %3534 = vmatpush.msra.mxu0 %v3106
        %3535 = vmatpush.msra.mxu0 %v3104
        %3536 = vmatpush.msra.mxu0 %v3102
        %3537 = vmatpush.msra.mxu0 %v3100
        %3538 = vmatpush.msra.mxu0 %v3098
        %3539 = vmatpush.msra.mxu0 %v3096
        %3540 = vmatpush.msra.mxu0 %v3094
        %3541 = vmatpush.msra.mxu0 %v3092
        %3542 = vmatpush.msra.mxu0 %v3090
        %3543 = vmatpush.msra.mxu0 %v3088
        %3544 = vmatmul.f32.gmra.mxu0 %v3172
        %v3545 = vpop.f32.mrf.mxu0
        %v3546 = vadd.f32 %v3523, %v3545
        %3547 = vmatmul.f32.gmra.mxu0 %v3188
        %v3548 = vpop.f32.mrf.mxu0
        %v3549 = vadd.f32 %v3526, %v3548
        %3550 = vdwg.mxu0
        %3551 = vmatpush.msra.mxu0 %v3150
        %3552 = vmatpush.msra.mxu0 %v3148
        %3553 = vmatpush.msra.mxu0 %v3146
        %3554 = vmatpush.msra.mxu0 %v3144
        %3555 = vmatpush.msra.mxu0 %v3142
        %3556 = vmatpush.msra.mxu0 %v3140
        %3557 = vmatpush.msra.mxu0 %v3138
        %3558 = vmatpush.msra.mxu0 %v3136
        %3559 = vmatpush.msra.mxu0 %v3134
        %3560 = vmatpush.msra.mxu0 %v3132
        %3561 = vmatpush.msra.mxu0 %v3130
        %3562 = vmatpush.msra.mxu0 %v3128
        %3563 = vmatpush.msra.mxu0 %v3126
        %3564 = vmatpush.msra.mxu0 %v3124
        %3565 = vmatpush.msra.mxu0 %v3122
        %3566 = vmatpush.msra.mxu0 %v3120
        %3567 = vmatmul.f32.gmra.mxu0 %v3173
        %v3568 = vpop.f32.mrf.mxu0
        %v3569 = vadd.f32 %v3546, %v3568
        %3570 = vmatmul.f32.gmra.mxu0 %v3189
        %v3571 = vpop.f32.mrf.mxu0
        %v3572 = vadd.f32 %v3549, %v3571
        %3573 = vdwg.mxu0
        %v3574 = vadd.f32 %v2793, %v3385
        %v3575 = vadd.f32 %v2794, %v3569
        %v3576 = vadd.f32 %v2795, %v3388
        %v3577 = vadd.f32 %v2796, %v3572
        %v3578 = vld [vmem:[%s2797] sm:$0x1e]
        %v3579 = vld [vmem:[%s2797 + $0x8] sm:$0x1e]
        %v3580 = vld [vmem:[%s2797 + $0x10] sm:$0x1e]
        %v3581 = vld [vmem:[%s2797 + $0x18] sm:$0x1e]
        %v3582 = vld [vmem:[%s2797 + $0x20] sm:$0x1e]
        %v3583 = vld [vmem:[%s2797 + $0x28] sm:$0x1e]
        %v3584 = vld [vmem:[%s2797 + $0x30] sm:$0x1e]
        %v3585 = vld [vmem:[%s2797 + $0x38] sm:$0x1e]
        %v3586 = vld [vmem:[%s2797 + $0x40] sm:$0x1e]
        %v3587 = vld [vmem:[%s2797 + $0x48] sm:$0x1e]
        %v3588 = vld [vmem:[%s2797 + $0x50] sm:$0x1e]
        %v3589 = vld [vmem:[%s2797 + $0x58] sm:$0x1e]
        %v3590 = vld [vmem:[%s2797 + $0x60] sm:$0x1e]
        %v3591 = vld [vmem:[%s2797 + $0x68] sm:$0x1e]
        %v3592 = vld [vmem:[%s2797 + $0x70] sm:$0x1e]
        %v3593 = vld [vmem:[%s2797 + $0x78] sm:$0x1e]
        %v3594 = vld [vmem:[%s2797 + $0x80] sm:$0x1e]
        %v3595 = vld [vmem:[%s2797 + $0x88] sm:$0x1e]
        %v3596 = vld [vmem:[%s2797 + $0x90] sm:$0x1e]
        %v3597 = vld [vmem:[%s2797 + $0x98] sm:$0x1e]
        %v3598 = vld [vmem:[%s2797 + $0xa0] sm:$0x1e]
        %v3599 = vld [vmem:[%s2797 + $0xa8] sm:$0x1e]
        %v3600 = vld [vmem:[%s2797 + $0xb0] sm:$0x1e]
        %v3601 = vld [vmem:[%s2797 + $0xb8] sm:$0x1e]
        %v3602 = vld [vmem:[%s2797 + $0xc0] sm:$0x1e]
        %v3603 = vld [vmem:[%s2797 + $0xc8] sm:$0x1e]
        %v3604 = vld [vmem:[%s2797 + $0xd0] sm:$0x1e]
        %v3605 = vld [vmem:[%s2797 + $0xd8] sm:$0x1e]
        %v3606 = vld [vmem:[%s2797 + $0xe0] sm:$0x1e]
        %v3607 = vld [vmem:[%s2797 + $0xe8] sm:$0x1e]
        %v3608 = vld [vmem:[%s2797 + $0xf0] sm:$0x1e]
        %v3609 = vld [vmem:[%s2797 + $0xf8] sm:$0x1e]
        %v3642 = vrot.slane %v3579, 4
        %v3643 = vrot.slane %v3581, 4
        %v3644 = vrot.slane %v3583, 4
        %v3645 = vrot.slane %v3585, 4
        %v3646 = vrot.slane %v3587, 4
        %v3647 = vrot.slane %v3589, 4
        %v3648 = vrot.slane %v3591, 4
        %v3649 = vrot.slane %v3593, 4
        %v3650 = vrot.slane %v3595, 4
        %v3651 = vrot.slane %v3597, 4
        %v3652 = vrot.slane %v3599, 4
        %v3653 = vrot.slane %v3601, 4
        %v3654 = vrot.slane %v3603, 4
        %v3655 = vrot.slane %v3605, 4
        %v3656 = vrot.slane %v3607, 4
        %v3657 = vrot.slane %v3609, 4
        %v3658 = vsel %vm347, %v3578, %v3642
        %v3659 = vsel %vm347, %v3580, %v3643
        %v3660 = vsel %vm347, %v3582, %v3644
        %v3661 = vsel %vm347, %v3584, %v3645
        %v3662 = vsel %vm347, %v3642, %v3578
        %v3663 = vrot.slane %v3662, 4
        %v3664 = vsel %vm347, %v3643, %v3580
        %v3665 = vrot.slane %v3664, 4
        %v3666 = vsel %vm347, %v3644, %v3582
        %v3667 = vrot.slane %v3666, 4
        %v3668 = vsel %vm347, %v3645, %v3584
        %v3669 = vrot.slane %v3668, 4
        %v3670 = vsel %vm347, %v3586, %v3646
        %v3671 = vsel %vm347, %v3588, %v3647
        %v3672 = vsel %vm347, %v3590, %v3648
        %v3673 = vsel %vm347, %v3592, %v3649
        %v3674 = vsel %vm347, %v3646, %v3586
        %v3675 = vrot.slane %v3674, 4
        %v3676 = vsel %vm347, %v3647, %v3588
        %v3677 = vrot.slane %v3676, 4
        %v3678 = vsel %vm347, %v3648, %v3590
        %v3679 = vrot.slane %v3678, 4
        %v3680 = vsel %vm347, %v3649, %v3592
        %v3681 = vrot.slane %v3680, 4
        %v3682 = vsel %vm347, %v3594, %v3650
        %v3683 = vsel %vm347, %v3596, %v3651
        %v3684 = vsel %vm347, %v3598, %v3652
        %v3685 = vsel %vm347, %v3600, %v3653
        %v3686 = vsel %vm347, %v3650, %v3594
        %v3687 = vrot.slane %v3686, 4
        %v3688 = vsel %vm347, %v3651, %v3596
        %v3689 = vrot.slane %v3688, 4
        %v3690 = vsel %vm347, %v3652, %v3598
        %v3691 = vrot.slane %v3690, 4
        %v3692 = vsel %vm347, %v3653, %v3600
        %v3693 = vrot.slane %v3692, 4
        %v3694 = vsel %vm347, %v3602, %v3654
        %v3695 = vsel %vm347, %v3604, %v3655
        %v3696 = vsel %vm347, %v3606, %v3656
        %v3697 = vsel %vm347, %v3608, %v3657
        %v3698 = vsel %vm347, %v3654, %v3602
        %v3699 = vrot.slane %v3698, 4
        %v3700 = vsel %vm347, %v3655, %v3604
        %v3701 = vrot.slane %v3700, 4
        %v3702 = vsel %vm347, %v3656, %v3606
        %v3703 = vrot.slane %v3702, 4
        %v3704 = vsel %vm347, %v3657, %v3608
        %v3705 = vrot.slane %v3704, 4
        %v3706 = vrot.slane %v3658, 5
        %v3707 = vrot.slane %v3706, 4
        %v3708 = vrot.slane %v3663, 5
        %v3709 = vsel %vm750, %v3707, %v3708
        %v3710 = vrot.slane %v3659, 5
        %v3711 = vrot.slane %v3710, 4
        %v3712 = vrot.slane %v3665, 5
        %v3713 = vsel %vm750, %v3711, %v3712
        %v3714 = vrot.slane %v3660, 5
        %v3715 = vrot.slane %v3714, 4
        %v3716 = vrot.slane %v3667, 5
        %v3717 = vsel %vm750, %v3715, %v3716
        %v3718 = vrot.slane %v3661, 5
        %v3719 = vrot.slane %v3718, 4
        %v3720 = vrot.slane %v3669, 5
        %v3721 = vsel %vm750, %v3719, %v3720
        %v3722 = vrot.slane %v3670, 5
        %v3723 = vrot.slane %v3722, 4
        %v3724 = vrot.slane %v3675, 5
        %v3725 = vsel %vm750, %v3723, %v3724
        %v3726 = vrot.slane %v3671, 5
        %v3727 = vrot.slane %v3726, 4
        %v3728 = vrot.slane %v3677, 5
        %v3729 = vsel %vm750, %v3727, %v3728
        %v3730 = vrot.slane %v3672, 5
        %v3731 = vrot.slane %v3730, 4
        %v3732 = vrot.slane %v3679, 5
        %v3733 = vsel %vm750, %v3731, %v3732
        %v3734 = vrot.slane %v3673, 5
        %v3735 = vrot.slane %v3734, 4
        %v3736 = vrot.slane %v3681, 5
        %v3737 = vsel %vm750, %v3735, %v3736
        %v3738 = vrot.slane %v3682, 5
        %v3739 = vrot.slane %v3738, 4
        %v3740 = vrot.slane %v3687, 5
        %v3741 = vsel %vm750, %v3739, %v3740
        %v3742 = vrot.slane %v3683, 5
        %v3743 = vrot.slane %v3742, 4
        %v3744 = vrot.slane %v3689, 5
        %v3745 = vsel %vm750, %v3743, %v3744
        %v3746 = vrot.slane %v3684, 5
        %v3747 = vrot.slane %v3746, 4
        %v3748 = vrot.slane %v3691, 5
        %v3749 = vsel %vm750, %v3747, %v3748
        %v3750 = vrot.slane %v3685, 5
        %v3751 = vrot.slane %v3750, 4
        %v3752 = vrot.slane %v3693, 5
        %v3753 = vsel %vm750, %v3751, %v3752
        %v3754 = vrot.slane %v3694, 5
        %v3755 = vrot.slane %v3754, 4
        %v3756 = vrot.slane %v3699, 5
        %v3757 = vsel %vm750, %v3755, %v3756
        %v3758 = vrot.slane %v3695, 5
        %v3759 = vrot.slane %v3758, 4
        %v3760 = vrot.slane %v3701, 5
        %v3761 = vsel %vm750, %v3759, %v3760
        %v3762 = vrot.slane %v3696, 5
        %v3763 = vrot.slane %v3762, 4
        %v3764 = vrot.slane %v3703, 5
        %v3765 = vsel %vm750, %v3763, %v3764
        %v3766 = vrot.slane %v3697, 5
        %v3767 = vrot.slane %v3766, 4
        %v3768 = vrot.slane %v3705, 5
        %v3769 = vsel %vm750, %v3767, %v3768
        %s3770 = scalar_lea.vmem %s215, 8192 [#allocation2]
        %v3771 = vld [vmem:[%s3770] sm:$0xff]
        %v3772 = vld [vmem:[%s3770 + $0x8] sm:$0xff]
        %v3773 = vld [vmem:[%s3770 + $0x10] sm:$0xff]
        %v3774 = vld [vmem:[%s3770 + $0x18] sm:$0xff]
        %v3775 = vld [vmem:[%s3770 + $0x20] sm:$0xff]
        %v3776 = vld [vmem:[%s3770 + $0x28] sm:$0xff]
        %v3777 = vld [vmem:[%s3770 + $0x30] sm:$0xff]
        %v3778 = vld [vmem:[%s3770 + $0x38] sm:$0xff]
        %v3779 = vld [vmem:[%s3770 + $0x40] sm:$0xff]
        %v3780 = vld [vmem:[%s3770 + $0x48] sm:$0xff]
        %v3781 = vld [vmem:[%s3770 + $0x50] sm:$0xff]
        %v3782 = vld [vmem:[%s3770 + $0x58] sm:$0xff]
        %v3783 = vld [vmem:[%s3770 + $0x60] sm:$0xff]
        %v3784 = vld [vmem:[%s3770 + $0x68] sm:$0xff]
        %v3785 = vld [vmem:[%s3770 + $0x70] sm:$0xff]
        %v3786 = vld [vmem:[%s3770 + $0x78] sm:$0xff]
        %v3787 = vld [vmem:[%s3770 + $0x80] sm:$0xff]
        %v3788 = vld [vmem:[%s3770 + $0x88] sm:$0xff]
        %v3789 = vld [vmem:[%s3770 + $0x90] sm:$0xff]
        %v3790 = vld [vmem:[%s3770 + $0x98] sm:$0xff]
        %v3791 = vld [vmem:[%s3770 + $0xa0] sm:$0xff]
        %v3792 = vld [vmem:[%s3770 + $0xa8] sm:$0xff]
        %v3793 = vld [vmem:[%s3770 + $0xb0] sm:$0xff]
        %v3794 = vld [vmem:[%s3770 + $0xb8] sm:$0xff]
        %v3795 = vld [vmem:[%s3770 + $0xc0] sm:$0xff]
        %v3796 = vld [vmem:[%s3770 + $0xc8] sm:$0xff]
        %v3797 = vld [vmem:[%s3770 + $0xd0] sm:$0xff]
        %v3798 = vld [vmem:[%s3770 + $0xd8] sm:$0xff]
        %v3799 = vld [vmem:[%s3770 + $0xe0] sm:$0xff]
        %v3800 = vld [vmem:[%s3770 + $0xe8] sm:$0xff]
        %v3801 = vld [vmem:[%s3770 + $0xf0] sm:$0xff]
        %v3802 = vld [vmem:[%s3770 + $0xf8] sm:$0xff]
        %v3803 = vld [vmem:[%s3770 + $0x100] sm:$0xff]
        %v3804 = vld [vmem:[%s3770 + $0x108] sm:$0xff]
        %v3805 = vld [vmem:[%s3770 + $0x110] sm:$0xff]
        %v3806 = vld [vmem:[%s3770 + $0x118] sm:$0xff]
        %v3807 = vld [vmem:[%s3770 + $0x120] sm:$0xff]
        %v3808 = vld [vmem:[%s3770 + $0x128] sm:$0xff]
        %v3809 = vld [vmem:[%s3770 + $0x130] sm:$0xff]
        %v3810 = vld [vmem:[%s3770 + $0x138] sm:$0xff]
        %v3811 = vld [vmem:[%s3770 + $0x140] sm:$0xff]
        %v3812 = vld [vmem:[%s3770 + $0x148] sm:$0xff]
        %v3813 = vld [vmem:[%s3770 + $0x150] sm:$0xff]
        %v3814 = vld [vmem:[%s3770 + $0x158] sm:$0xff]
        %v3815 = vld [vmem:[%s3770 + $0x160] sm:$0xff]
        %v3816 = vld [vmem:[%s3770 + $0x168] sm:$0xff]
        %v3817 = vld [vmem:[%s3770 + $0x170] sm:$0xff]
        %v3818 = vld [vmem:[%s3770 + $0x178] sm:$0xff]
        %v3819 = vld [vmem:[%s3770 + $0x180] sm:$0xff]
        %v3820 = vld [vmem:[%s3770 + $0x188] sm:$0xff]
        %v3821 = vld [vmem:[%s3770 + $0x190] sm:$0xff]
        %v3822 = vld [vmem:[%s3770 + $0x198] sm:$0xff]
        %v3823 = vld [vmem:[%s3770 + $0x1a0] sm:$0xff]
        %v3824 = vld [vmem:[%s3770 + $0x1a8] sm:$0xff]
        %v3825 = vld [vmem:[%s3770 + $0x1b0] sm:$0xff]
        %v3826 = vld [vmem:[%s3770 + $0x1b8] sm:$0xff]
        %v3827 = vld [vmem:[%s3770 + $0x1c0] sm:$0xff]
        %v3828 = vld [vmem:[%s3770 + $0x1c8] sm:$0xff]
        %v3829 = vld [vmem:[%s3770 + $0x1d0] sm:$0xff]
        %v3830 = vld [vmem:[%s3770 + $0x1d8] sm:$0xff]
        %v3831 = vld [vmem:[%s3770 + $0x1e0] sm:$0xff]
        %v3832 = vld [vmem:[%s3770 + $0x1e8] sm:$0xff]
        %v3833 = vld [vmem:[%s3770 + $0x1f0] sm:$0xff]
        %v3834 = vld [vmem:[%s3770 + $0x1f8] sm:$0xff]
        %v3835 = vld [vmem:[%s3770 + $0x200] sm:$0xff]
        %v3836 = vld [vmem:[%s3770 + $0x208] sm:$0xff]
        %v3837 = vld [vmem:[%s3770 + $0x210] sm:$0xff]
        %v3838 = vld [vmem:[%s3770 + $0x218] sm:$0xff]
        %v3839 = vld [vmem:[%s3770 + $0x220] sm:$0xff]
        %v3840 = vld [vmem:[%s3770 + $0x228] sm:$0xff]
        %v3841 = vld [vmem:[%s3770 + $0x230] sm:$0xff]
        %v3842 = vld [vmem:[%s3770 + $0x238] sm:$0xff]
        %v3843 = vld [vmem:[%s3770 + $0x240] sm:$0xff]
        %v3844 = vld [vmem:[%s3770 + $0x248] sm:$0xff]
        %v3845 = vld [vmem:[%s3770 + $0x250] sm:$0xff]
        %v3846 = vld [vmem:[%s3770 + $0x258] sm:$0xff]
        %v3847 = vld [vmem:[%s3770 + $0x260] sm:$0xff]
        %v3848 = vld [vmem:[%s3770 + $0x268] sm:$0xff]
        %v3849 = vld [vmem:[%s3770 + $0x270] sm:$0xff]
        %v3850 = vld [vmem:[%s3770 + $0x278] sm:$0xff]
        %v3851 = vld [vmem:[%s3770 + $0x280] sm:$0xff]
        %v3852 = vld [vmem:[%s3770 + $0x288] sm:$0xff]
        %v3853 = vld [vmem:[%s3770 + $0x290] sm:$0xff]
        %v3854 = vld [vmem:[%s3770 + $0x298] sm:$0xff]
        %v3855 = vld [vmem:[%s3770 + $0x2a0] sm:$0xff]
        %v3856 = vld [vmem:[%s3770 + $0x2a8] sm:$0xff]
        %v3857 = vld [vmem:[%s3770 + $0x2b0] sm:$0xff]
        %v3858 = vld [vmem:[%s3770 + $0x2b8] sm:$0xff]
        %v3859 = vld [vmem:[%s3770 + $0x2c0] sm:$0xff]
        %v3860 = vld [vmem:[%s3770 + $0x2c8] sm:$0xff]
        %v3861 = vld [vmem:[%s3770 + $0x2d0] sm:$0xff]
        %v3862 = vld [vmem:[%s3770 + $0x2d8] sm:$0xff]
        %v3863 = vld [vmem:[%s3770 + $0x2e0] sm:$0xff]
        %v3864 = vld [vmem:[%s3770 + $0x2e8] sm:$0xff]
        %v3865 = vld [vmem:[%s3770 + $0x2f0] sm:$0xff]
        %v3866 = vld [vmem:[%s3770 + $0x2f8] sm:$0xff]
        %v3867 = vld [vmem:[%s3770 + $0x300] sm:$0xff]
        %v3868 = vld [vmem:[%s3770 + $0x308] sm:$0xff]
        %v3869 = vld [vmem:[%s3770 + $0x310] sm:$0xff]
        %v3870 = vld [vmem:[%s3770 + $0x318] sm:$0xff]
        %v3871 = vld [vmem:[%s3770 + $0x320] sm:$0xff]
        %v3872 = vld [vmem:[%s3770 + $0x328] sm:$0xff]
        %v3873 = vld [vmem:[%s3770 + $0x330] sm:$0xff]
        %v3874 = vld [vmem:[%s3770 + $0x338] sm:$0xff]
        %v3875 = vld [vmem:[%s3770 + $0x340] sm:$0xff]
        %v3876 = vld [vmem:[%s3770 + $0x348] sm:$0xff]
        %v3877 = vld [vmem:[%s3770 + $0x350] sm:$0xff]
        %v3878 = vld [vmem:[%s3770 + $0x358] sm:$0xff]
        %v3879 = vld [vmem:[%s3770 + $0x360] sm:$0xff]
        %v3880 = vld [vmem:[%s3770 + $0x368] sm:$0xff]
        %v3881 = vld [vmem:[%s3770 + $0x370] sm:$0xff]
        %v3882 = vld [vmem:[%s3770 + $0x378] sm:$0xff]
        %v3883 = vld [vmem:[%s3770 + $0x380] sm:$0xff]
        %v3884 = vld [vmem:[%s3770 + $0x388] sm:$0xff]
        %v3885 = vld [vmem:[%s3770 + $0x390] sm:$0xff]
        %v3886 = vld [vmem:[%s3770 + $0x398] sm:$0xff]
        %v3887 = vld [vmem:[%s3770 + $0x3a0] sm:$0xff]
        %v3888 = vld [vmem:[%s3770 + $0x3a8] sm:$0xff]
        %v3889 = vld [vmem:[%s3770 + $0x3b0] sm:$0xff]
        %v3890 = vld [vmem:[%s3770 + $0x3b8] sm:$0xff]
        %v3891 = vld [vmem:[%s3770 + $0x3c0] sm:$0xff]
        %v3892 = vld [vmem:[%s3770 + $0x3c8] sm:$0xff]
        %v3893 = vld [vmem:[%s3770 + $0x3d0] sm:$0xff]
        %v3894 = vld [vmem:[%s3770 + $0x3d8] sm:$0xff]
        %v3895 = vld [vmem:[%s3770 + $0x3e0] sm:$0xff]
        %v3896 = vld [vmem:[%s3770 + $0x3e8] sm:$0xff]
        %v3897 = vld [vmem:[%s3770 + $0x3f0] sm:$0xff]
        %v3898 = vld [vmem:[%s3770 + $0x3f8] sm:$0xff]
        %v3899 = vld [vmem:[%s3770 + $0x400] sm:$0xff]
        %v3900 = vld [vmem:[%s3770 + $0x408] sm:$0xff]
        %v3901 = vld [vmem:[%s3770 + $0x410] sm:$0xff]
        %v3902 = vld [vmem:[%s3770 + $0x418] sm:$0xff]
        %v3903 = vld [vmem:[%s3770 + $0x420] sm:$0xff]
        %v3904 = vld [vmem:[%s3770 + $0x428] sm:$0xff]
        %v3905 = vld [vmem:[%s3770 + $0x430] sm:$0xff]
        %v3906 = vld [vmem:[%s3770 + $0x438] sm:$0xff]
        %v3907 = vld [vmem:[%s3770 + $0x440] sm:$0xff]
        %v3908 = vld [vmem:[%s3770 + $0x448] sm:$0xff]
        %v3909 = vld [vmem:[%s3770 + $0x450] sm:$0xff]
        %v3910 = vld [vmem:[%s3770 + $0x458] sm:$0xff]
        %v3911 = vld [vmem:[%s3770 + $0x460] sm:$0xff]
        %v3912 = vld [vmem:[%s3770 + $0x468] sm:$0xff]
        %v3913 = vld [vmem:[%s3770 + $0x470] sm:$0xff]
        %v3914 = vld [vmem:[%s3770 + $0x478] sm:$0xff]
        %v3915 = vld [vmem:[%s3770 + $0x480] sm:$0xff]
        %v3916 = vld [vmem:[%s3770 + $0x488] sm:$0xff]
        %v3917 = vld [vmem:[%s3770 + $0x490] sm:$0xff]
        %v3918 = vld [vmem:[%s3770 + $0x498] sm:$0xff]
        %v3919 = vld [vmem:[%s3770 + $0x4a0] sm:$0xff]
        %v3920 = vld [vmem:[%s3770 + $0x4a8] sm:$0xff]
        %v3921 = vld [vmem:[%s3770 + $0x4b0] sm:$0xff]
        %v3922 = vld [vmem:[%s3770 + $0x4b8] sm:$0xff]
        %v3923 = vld [vmem:[%s3770 + $0x4c0] sm:$0xff]
        %v3924 = vld [vmem:[%s3770 + $0x4c8] sm:$0xff]
        %v3925 = vld [vmem:[%s3770 + $0x4d0] sm:$0xff]
        %v3926 = vld [vmem:[%s3770 + $0x4d8] sm:$0xff]
        %v3927 = vld [vmem:[%s3770 + $0x4e0] sm:$0xff]
        %v3928 = vld [vmem:[%s3770 + $0x4e8] sm:$0xff]
        %v3929 = vld [vmem:[%s3770 + $0x4f0] sm:$0xff]
        %v3930 = vld [vmem:[%s3770 + $0x4f8] sm:$0xff]
        %v3931 = vld [vmem:[%s3770 + $0x500] sm:$0xff]
        %v3932 = vld [vmem:[%s3770 + $0x508] sm:$0xff]
        %v3933 = vld [vmem:[%s3770 + $0x510] sm:$0xff]
        %v3934 = vld [vmem:[%s3770 + $0x518] sm:$0xff]
        %v3935 = vld [vmem:[%s3770 + $0x520] sm:$0xff]
        %v3936 = vld [vmem:[%s3770 + $0x528] sm:$0xff]
        %v3937 = vld [vmem:[%s3770 + $0x530] sm:$0xff]
        %v3938 = vld [vmem:[%s3770 + $0x538] sm:$0xff]
        %v3939 = vld [vmem:[%s3770 + $0x540] sm:$0xff]
        %v3940 = vld [vmem:[%s3770 + $0x548] sm:$0xff]
        %v3941 = vld [vmem:[%s3770 + $0x550] sm:$0xff]
        %v3942 = vld [vmem:[%s3770 + $0x558] sm:$0xff]
        %v3943 = vld [vmem:[%s3770 + $0x560] sm:$0xff]
        %v3944 = vld [vmem:[%s3770 + $0x568] sm:$0xff]
        %v3945 = vld [vmem:[%s3770 + $0x570] sm:$0xff]
        %v3946 = vld [vmem:[%s3770 + $0x578] sm:$0xff]
        %v3947 = vld [vmem:[%s3770 + $0x580] sm:$0xff]
        %v3948 = vld [vmem:[%s3770 + $0x588] sm:$0xff]
        %v3949 = vld [vmem:[%s3770 + $0x590] sm:$0xff]
        %v3950 = vld [vmem:[%s3770 + $0x598] sm:$0xff]
        %v3951 = vld [vmem:[%s3770 + $0x5a0] sm:$0xff]
        %v3952 = vld [vmem:[%s3770 + $0x5a8] sm:$0xff]
        %v3953 = vld [vmem:[%s3770 + $0x5b0] sm:$0xff]
        %v3954 = vld [vmem:[%s3770 + $0x5b8] sm:$0xff]
        %v3955 = vld [vmem:[%s3770 + $0x5c0] sm:$0xff]
        %v3956 = vld [vmem:[%s3770 + $0x5c8] sm:$0xff]
        %v3957 = vld [vmem:[%s3770 + $0x5d0] sm:$0xff]
        %v3958 = vld [vmem:[%s3770 + $0x5d8] sm:$0xff]
        %v3959 = vld [vmem:[%s3770 + $0x5e0] sm:$0xff]
        %v3960 = vld [vmem:[%s3770 + $0x5e8] sm:$0xff]
        %v3961 = vld [vmem:[%s3770 + $0x5f0] sm:$0xff]
        %v3962 = vld [vmem:[%s3770 + $0x5f8] sm:$0xff]
        %v3963 = vld [vmem:[%s3770 + $0x600] sm:$0xff]
        %v3964 = vld [vmem:[%s3770 + $0x608] sm:$0xff]
        %v3965 = vld [vmem:[%s3770 + $0x610] sm:$0xff]
        %v3966 = vld [vmem:[%s3770 + $0x618] sm:$0xff]
        %v3967 = vld [vmem:[%s3770 + $0x620] sm:$0xff]
        %v3968 = vld [vmem:[%s3770 + $0x628] sm:$0xff]
        %v3969 = vld [vmem:[%s3770 + $0x630] sm:$0xff]
        %v3970 = vld [vmem:[%s3770 + $0x638] sm:$0xff]
        %v3971 = vld [vmem:[%s3770 + $0x640] sm:$0xff]
        %v3972 = vld [vmem:[%s3770 + $0x648] sm:$0xff]
        %v3973 = vld [vmem:[%s3770 + $0x650] sm:$0xff]
        %v3974 = vld [vmem:[%s3770 + $0x658] sm:$0xff]
        %v3975 = vld [vmem:[%s3770 + $0x660] sm:$0xff]
        %v3976 = vld [vmem:[%s3770 + $0x668] sm:$0xff]
        %v3977 = vld [vmem:[%s3770 + $0x670] sm:$0xff]
        %v3978 = vld [vmem:[%s3770 + $0x678] sm:$0xff]
        %v3979 = vld [vmem:[%s3770 + $0x680] sm:$0xff]
        %v3980 = vld [vmem:[%s3770 + $0x688] sm:$0xff]
        %v3981 = vld [vmem:[%s3770 + $0x690] sm:$0xff]
        %v3982 = vld [vmem:[%s3770 + $0x698] sm:$0xff]
        %v3983 = vld [vmem:[%s3770 + $0x6a0] sm:$0xff]
        %v3984 = vld [vmem:[%s3770 + $0x6a8] sm:$0xff]
        %v3985 = vld [vmem:[%s3770 + $0x6b0] sm:$0xff]
        %v3986 = vld [vmem:[%s3770 + $0x6b8] sm:$0xff]
        %v3987 = vld [vmem:[%s3770 + $0x6c0] sm:$0xff]
        %v3988 = vld [vmem:[%s3770 + $0x6c8] sm:$0xff]
        %v3989 = vld [vmem:[%s3770 + $0x6d0] sm:$0xff]
        %v3990 = vld [vmem:[%s3770 + $0x6d8] sm:$0xff]
        %v3991 = vld [vmem:[%s3770 + $0x6e0] sm:$0xff]
        %v3992 = vld [vmem:[%s3770 + $0x6e8] sm:$0xff]
        %v3993 = vld [vmem:[%s3770 + $0x6f0] sm:$0xff]
        %v3994 = vld [vmem:[%s3770 + $0x6f8] sm:$0xff]
        %v3995 = vld [vmem:[%s3770 + $0x700] sm:$0xff]
        %v3996 = vld [vmem:[%s3770 + $0x708] sm:$0xff]
        %v3997 = vld [vmem:[%s3770 + $0x710] sm:$0xff]
        %v3998 = vld [vmem:[%s3770 + $0x718] sm:$0xff]
        %v3999 = vld [vmem:[%s3770 + $0x720] sm:$0xff]
        %v4000 = vld [vmem:[%s3770 + $0x728] sm:$0xff]
        %v4001 = vld [vmem:[%s3770 + $0x730] sm:$0xff]
        %v4002 = vld [vmem:[%s3770 + $0x738] sm:$0xff]
        %v4003 = vld [vmem:[%s3770 + $0x740] sm:$0xff]
        %v4004 = vld [vmem:[%s3770 + $0x748] sm:$0xff]
        %v4005 = vld [vmem:[%s3770 + $0x750] sm:$0xff]
        %v4006 = vld [vmem:[%s3770 + $0x758] sm:$0xff]
        %v4007 = vld [vmem:[%s3770 + $0x760] sm:$0xff]
        %v4008 = vld [vmem:[%s3770 + $0x768] sm:$0xff]
        %v4009 = vld [vmem:[%s3770 + $0x770] sm:$0xff]
        %v4010 = vld [vmem:[%s3770 + $0x778] sm:$0xff]
        %v4011 = vld [vmem:[%s3770 + $0x780] sm:$0xff]
        %v4012 = vld [vmem:[%s3770 + $0x788] sm:$0xff]
        %v4013 = vld [vmem:[%s3770 + $0x790] sm:$0xff]
        %v4014 = vld [vmem:[%s3770 + $0x798] sm:$0xff]
        %v4015 = vld [vmem:[%s3770 + $0x7a0] sm:$0xff]
        %v4016 = vld [vmem:[%s3770 + $0x7a8] sm:$0xff]
        %v4017 = vld [vmem:[%s3770 + $0x7b0] sm:$0xff]
        %v4018 = vld [vmem:[%s3770 + $0x7b8] sm:$0xff]
        %v4019 = vld [vmem:[%s3770 + $0x7c0] sm:$0xff]
        %v4020 = vld [vmem:[%s3770 + $0x7c8] sm:$0xff]
        %v4021 = vld [vmem:[%s3770 + $0x7d0] sm:$0xff]
        %v4022 = vld [vmem:[%s3770 + $0x7d8] sm:$0xff]
        %v4023 = vld [vmem:[%s3770 + $0x7e0] sm:$0xff]
        %v4024 = vld [vmem:[%s3770 + $0x7e8] sm:$0xff]
        %v4025 = vld [vmem:[%s3770 + $0x7f0] sm:$0xff]
        %v4026 = vld [vmem:[%s3770 + $0x7f8] sm:$0xff]
        %4027 = vst [vmem:[#allocation1] ss:$2 sm:$0xff] %v3709
        %s4028 = scalar_lea.vmem [#allocation1], 1
        %4029 = vst [vmem:[%s4028] ss:$2 sm:$0xff] %v3725
        %s4030 = scalar_lea.vmem [#allocation1], 16
        %4031 = vst [vmem:[%s4030] ss:$2 sm:$0xff] %v3713
        %s4032 = scalar_lea.vmem [#allocation1], 17
        %4033 = vst [vmem:[%s4032] ss:$2 sm:$0xff] %v3729
        %s4034 = scalar_lea.vmem [#allocation1], 32
        %4035 = vst [vmem:[%s4034] ss:$2 sm:$0xff] %v3717
        %s4036 = scalar_lea.vmem [#allocation1], 33
        %4037 = vst [vmem:[%s4036] ss:$2 sm:$0xff] %v3733
        %s4038 = scalar_lea.vmem [#allocation1], 48
        %4039 = vst [vmem:[%s4038] ss:$2 sm:$0xff] %v3721
        %s4040 = scalar_lea.vmem [#allocation1], 49
        %4041 = vst [vmem:[%s4040] ss:$2 sm:$0xff] %v3737
        %v4042 = vld.sshfl [vmem:[#allocation1] sm:$0xff pattern:$0x75316420]
        %v4043 = vld.sshfl [vmem:[#allocation1 + $0x8] sm:$0xff pattern:$0x75316420]
        %v4044 = vld.sshfl [vmem:[#allocation1 + $0x10] sm:$0xff pattern:$0x75316420]
        %v4045 = vld.sshfl [vmem:[#allocation1 + $0x18] sm:$0xff pattern:$0x75316420]
        %v4046 = vld.sshfl [vmem:[#allocation1 + $0x20] sm:$0xff pattern:$0x75316420]
        %v4047 = vld.sshfl [vmem:[#allocation1 + $0x28] sm:$0xff pattern:$0x75316420]
        %v4048 = vld.sshfl [vmem:[#allocation1 + $0x30] sm:$0xff pattern:$0x75316420]
        %v4049 = vld.sshfl [vmem:[#allocation1 + $0x38] sm:$0xff pattern:$0x75316420]
        %4050 = vst [vmem:[#allocation1] ss:$2 sm:$0xff] %v3741
        %4051 = vst [vmem:[%s4028] ss:$2 sm:$0xff] %v3757
        %4052 = vst [vmem:[%s4030] ss:$2 sm:$0xff] %v3745
        %4053 = vst [vmem:[%s4032] ss:$2 sm:$0xff] %v3761
        %4054 = vst [vmem:[%s4034] ss:$2 sm:$0xff] %v3749
        %4055 = vst [vmem:[%s4036] ss:$2 sm:$0xff] %v3765
        %4056 = vst [vmem:[%s4038] ss:$2 sm:$0xff] %v3753
        %4057 = vst [vmem:[%s4040] ss:$2 sm:$0xff] %v3769
        %v4058 = vld.sshfl [vmem:[#allocation1] sm:$0xff pattern:$0x75316420]
        %v4059 = vld.sshfl [vmem:[#allocation1 + $0x8] sm:$0xff pattern:$0x75316420]
        %v4060 = vld.sshfl [vmem:[#allocation1 + $0x10] sm:$0xff pattern:$0x75316420]
        %v4061 = vld.sshfl [vmem:[#allocation1 + $0x18] sm:$0xff pattern:$0x75316420]
        %v4062 = vld.sshfl [vmem:[#allocation1 + $0x20] sm:$0xff pattern:$0x75316420]
        %v4063 = vld.sshfl [vmem:[#allocation1 + $0x28] sm:$0xff pattern:$0x75316420]
        %v4064 = vld.sshfl [vmem:[#allocation1 + $0x30] sm:$0xff pattern:$0x75316420]
        %v4065 = vld.sshfl [vmem:[#allocation1 + $0x38] sm:$0xff pattern:$0x75316420]
        %4082 = vmatpush.msra.mxu0 %v3801
        %4083 = vmatpush.msra.mxu0 %v3799
        %4084 = vmatpush.msra.mxu0 %v3797
        %4085 = vmatpush.msra.mxu0 %v3795
        %4086 = vmatpush.msra.mxu0 %v3793
        %4087 = vmatpush.msra.mxu0 %v3791
        %4088 = vmatpush.msra.mxu0 %v3789
        %4089 = vmatpush.msra.mxu0 %v3787
        %4090 = vmatpush.msra.mxu0 %v3785
        %4091 = vmatpush.msra.mxu0 %v3783
        %4092 = vmatpush.msra.mxu0 %v3781
        %4093 = vmatpush.msra.mxu0 %v3779
        %4094 = vmatpush.msra.mxu0 %v3777
        %4095 = vmatpush.msra.mxu0 %v3775
        %4096 = vmatpush.msra.mxu0 %v3773
        %4097 = vmatpush.msra.mxu0 %v3771
        %4098 = vmatmul.f32.gmra.mxu0 %v4042
        %v4099 = vpop.f32.mrf.mxu0
        %v4100 = vadd.f32 0.0, %v4099
        %4101 = vmatmul.f32.gmra.mxu0 %v4058
        %v4102 = vpop.f32.mrf.mxu0
        %v4103 = vadd.f32 0.0, %v4102
        %4104 = vdwg.mxu0
        %4105 = vmatpush.msra.mxu0 %v3833
        %4106 = vmatpush.msra.mxu0 %v3831
        %4107 = vmatpush.msra.mxu0 %v3829
        %4108 = vmatpush.msra.mxu0 %v3827
        %4109 = vmatpush.msra.mxu0 %v3825
        %4110 = vmatpush.msra.mxu0 %v3823
        %4111 = vmatpush.msra.mxu0 %v3821
        %4112 = vmatpush.msra.mxu0 %v3819
        %4113 = vmatpush.msra.mxu0 %v3817
        %4114 = vmatpush.msra.mxu0 %v3815
        %4115 = vmatpush.msra.mxu0 %v3813
        %4116 = vmatpush.msra.mxu0 %v3811
        %4117 = vmatpush.msra.mxu0 %v3809
        %4118 = vmatpush.msra.mxu0 %v3807
        %4119 = vmatpush.msra.mxu0 %v3805
        %4120 = vmatpush.msra.mxu0 %v3803
        %4121 = vmatmul.f32.gmra.mxu0 %v4043
        %v4122 = vpop.f32.mrf.mxu0
        %v4123 = vadd.f32 %v4100, %v4122
        %4124 = vmatmul.f32.gmra.mxu0 %v4059
        %v4125 = vpop.f32.mrf.mxu0
        %v4126 = vadd.f32 %v4103, %v4125
        %4127 = vdwg.mxu0
        %4128 = vmatpush.msra.mxu0 %v3865
        %4129 = vmatpush.msra.mxu0 %v3863
        %4130 = vmatpush.msra.mxu0 %v3861
        %4131 = vmatpush.msra.mxu0 %v3859
        %4132 = vmatpush.msra.mxu0 %v3857
        %4133 = vmatpush.msra.mxu0 %v3855
        %4134 = vmatpush.msra.mxu0 %v3853
        %4135 = vmatpush.msra.mxu0 %v3851
        %4136 = vmatpush.msra.mxu0 %v3849
        %4137 = vmatpush.msra.mxu0 %v3847
        %4138 = vmatpush.msra.mxu0 %v3845
        %4139 = vmatpush.msra.mxu0 %v3843
        %4140 = vmatpush.msra.mxu0 %v3841
        %4141 = vmatpush.msra.mxu0 %v3839
        %4142 = vmatpush.msra.mxu0 %v3837
        %4143 = vmatpush.msra.mxu0 %v3835
        %4144 = vmatmul.f32.gmra.mxu0 %v4044
        %v4145 = vpop.f32.mrf.mxu0
        %v4146 = vadd.f32 %v4123, %v4145
        %4147 = vmatmul.f32.gmra.mxu0 %v4060
        %v4148 = vpop.f32.mrf.mxu0
        %v4149 = vadd.f32 %v4126, %v4148
        %4150 = vdwg.mxu0
        %4151 = vmatpush.msra.mxu0 %v3897
        %4152 = vmatpush.msra.mxu0 %v3895
        %4153 = vmatpush.msra.mxu0 %v3893
        %4154 = vmatpush.msra.mxu0 %v3891
        %4155 = vmatpush.msra.mxu0 %v3889
        %4156 = vmatpush.msra.mxu0 %v3887
        %4157 = vmatpush.msra.mxu0 %v3885
        %4158 = vmatpush.msra.mxu0 %v3883
        %4159 = vmatpush.msra.mxu0 %v3881
        %4160 = vmatpush.msra.mxu0 %v3879
        %4161 = vmatpush.msra.mxu0 %v3877
        %4162 = vmatpush.msra.mxu0 %v3875
        %4163 = vmatpush.msra.mxu0 %v3873
        %4164 = vmatpush.msra.mxu0 %v3871
        %4165 = vmatpush.msra.mxu0 %v3869
        %4166 = vmatpush.msra.mxu0 %v3867
        %4167 = vmatmul.f32.gmra.mxu0 %v4045
        %v4168 = vpop.f32.mrf.mxu0
        %v4169 = vadd.f32 %v4146, %v4168
        %4170 = vmatmul.f32.gmra.mxu0 %v4061
        %v4171 = vpop.f32.mrf.mxu0
        %v4172 = vadd.f32 %v4149, %v4171
        %4173 = vdwg.mxu0
        %4174 = vmatpush.msra.mxu0 %v3929
        %4175 = vmatpush.msra.mxu0 %v3927
        %4176 = vmatpush.msra.mxu0 %v3925
        %4177 = vmatpush.msra.mxu0 %v3923
        %4178 = vmatpush.msra.mxu0 %v3921
        %4179 = vmatpush.msra.mxu0 %v3919
        %4180 = vmatpush.msra.mxu0 %v3917
        %4181 = vmatpush.msra.mxu0 %v3915
        %4182 = vmatpush.msra.mxu0 %v3913
        %4183 = vmatpush.msra.mxu0 %v3911
        %4184 = vmatpush.msra.mxu0 %v3909
        %4185 = vmatpush.msra.mxu0 %v3907
        %4186 = vmatpush.msra.mxu0 %v3905
        %4187 = vmatpush.msra.mxu0 %v3903
        %4188 = vmatpush.msra.mxu0 %v3901
        %4189 = vmatpush.msra.mxu0 %v3899
        %4190 = vmatmul.f32.gmra.mxu0 %v4046
        %v4191 = vpop.f32.mrf.mxu0
        %v4192 = vadd.f32 %v4169, %v4191
        %4193 = vmatmul.f32.gmra.mxu0 %v4062
        %v4194 = vpop.f32.mrf.mxu0
        %v4195 = vadd.f32 %v4172, %v4194
        %4196 = vdwg.mxu0
        %4197 = vmatpush.msra.mxu0 %v3961
        %4198 = vmatpush.msra.mxu0 %v3959
        %4199 = vmatpush.msra.mxu0 %v3957
        %4200 = vmatpush.msra.mxu0 %v3955
        %4201 = vmatpush.msra.mxu0 %v3953
        %4202 = vmatpush.msra.mxu0 %v3951
        %4203 = vmatpush.msra.mxu0 %v3949
        %4204 = vmatpush.msra.mxu0 %v3947
        %4205 = vmatpush.msra.mxu0 %v3945
        %4206 = vmatpush.msra.mxu0 %v3943
        %4207 = vmatpush.msra.mxu0 %v3941
        %4208 = vmatpush.msra.mxu0 %v3939
        %4209 = vmatpush.msra.mxu0 %v3937
        %4210 = vmatpush.msra.mxu0 %v3935
        %4211 = vmatpush.msra.mxu0 %v3933
        %4212 = vmatpush.msra.mxu0 %v3931
        %4213 = vmatmul.f32.gmra.mxu0 %v4047
        %v4214 = vpop.f32.mrf.mxu0
        %v4215 = vadd.f32 %v4192, %v4214
        %4216 = vmatmul.f32.gmra.mxu0 %v4063
        %v4217 = vpop.f32.mrf.mxu0
        %v4218 = vadd.f32 %v4195, %v4217
        %4219 = vdwg.mxu0
        %4220 = vmatpush.msra.mxu0 %v3993
        %4221 = vmatpush.msra.mxu0 %v3991
        %4222 = vmatpush.msra.mxu0 %v3989
        %4223 = vmatpush.msra.mxu0 %v3987
        %4224 = vmatpush.msra.mxu0 %v3985
        %4225 = vmatpush.msra.mxu0 %v3983
        %4226 = vmatpush.msra.mxu0 %v3981
        %4227 = vmatpush.msra.mxu0 %v3979
        %4228 = vmatpush.msra.mxu0 %v3977
        %4229 = vmatpush.msra.mxu0 %v3975
        %4230 = vmatpush.msra.mxu0 %v3973
        %4231 = vmatpush.msra.mxu0 %v3971
        %4232 = vmatpush.msra.mxu0 %v3969
        %4233 = vmatpush.msra.mxu0 %v3967
        %4234 = vmatpush.msra.mxu0 %v3965
        %4235 = vmatpush.msra.mxu0 %v3963
        %4236 = vmatmul.f32.gmra.mxu0 %v4048
        %v4237 = vpop.f32.mrf.mxu0
        %v4238 = vadd.f32 %v4215, %v4237
        %4239 = vmatmul.f32.gmra.mxu0 %v4064
        %v4240 = vpop.f32.mrf.mxu0
        %v4241 = vadd.f32 %v4218, %v4240
        %4242 = vdwg.mxu0
        %4243 = vmatpush.msra.mxu0 %v4025
        %4244 = vmatpush.msra.mxu0 %v4023
        %4245 = vmatpush.msra.mxu0 %v4021
        %4246 = vmatpush.msra.mxu0 %v4019
        %4247 = vmatpush.msra.mxu0 %v4017
        %4248 = vmatpush.msra.mxu0 %v4015
        %4249 = vmatpush.msra.mxu0 %v4013
        %4250 = vmatpush.msra.mxu0 %v4011
        %4251 = vmatpush.msra.mxu0 %v4009
        %4252 = vmatpush.msra.mxu0 %v4007
        %4253 = vmatpush.msra.mxu0 %v4005
        %4254 = vmatpush.msra.mxu0 %v4003
        %4255 = vmatpush.msra.mxu0 %v4001
        %4256 = vmatpush.msra.mxu0 %v3999
        %4257 = vmatpush.msra.mxu0 %v3997
        %4258 = vmatpush.msra.mxu0 %v3995
        %4259 = vmatmul.f32.gmra.mxu0 %v4049
        %v4260 = vpop.f32.mrf.mxu0
        %v4261 = vadd.f32 %v4238, %v4260
        %4262 = vmatmul.f32.gmra.mxu0 %v4065
        %v4263 = vpop.f32.mrf.mxu0
        %v4264 = vadd.f32 %v4241, %v4263
        %4265 = vdwg.mxu0
        %4266 = vmatpush.msra.mxu0 %v3802
        %4267 = vmatpush.msra.mxu0 %v3800
        %4268 = vmatpush.msra.mxu0 %v3798
        %4269 = vmatpush.msra.mxu0 %v3796
        %4270 = vmatpush.msra.mxu0 %v3794
        %4271 = vmatpush.msra.mxu0 %v3792
        %4272 = vmatpush.msra.mxu0 %v3790
        %4273 = vmatpush.msra.mxu0 %v3788
        %4274 = vmatpush.msra.mxu0 %v3786
        %4275 = vmatpush.msra.mxu0 %v3784
        %4276 = vmatpush.msra.mxu0 %v3782
        %4277 = vmatpush.msra.mxu0 %v3780
        %4278 = vmatpush.msra.mxu0 %v3778
        %4279 = vmatpush.msra.mxu0 %v3776
        %4280 = vmatpush.msra.mxu0 %v3774
        %4281 = vmatpush.msra.mxu0 %v3772
        %4282 = vmatmul.f32.gmra.mxu0 %v4042
        %v4283 = vpop.f32.mrf.mxu0
        %v4284 = vadd.f32 0.0, %v4283
        %4285 = vmatmul.f32.gmra.mxu0 %v4058
        %v4286 = vpop.f32.mrf.mxu0
        %v4287 = vadd.f32 0.0, %v4286
        %4288 = vdwg.mxu0
        %4289 = vmatpush.msra.mxu0 %v3834
        %4290 = vmatpush.msra.mxu0 %v3832
        %4291 = vmatpush.msra.mxu0 %v3830
        %4292 = vmatpush.msra.mxu0 %v3828
        %4293 = vmatpush.msra.mxu0 %v3826
        %4294 = vmatpush.msra.mxu0 %v3824
        %4295 = vmatpush.msra.mxu0 %v3822
        %4296 = vmatpush.msra.mxu0 %v3820
        %4297 = vmatpush.msra.mxu0 %v3818
        %4298 = vmatpush.msra.mxu0 %v3816
        %4299 = vmatpush.msra.mxu0 %v3814
        %4300 = vmatpush.msra.mxu0 %v3812
        %4301 = vmatpush.msra.mxu0 %v3810
        %4302 = vmatpush.msra.mxu0 %v3808
        %4303 = vmatpush.msra.mxu0 %v3806
        %4304 = vmatpush.msra.mxu0 %v3804
        %4305 = vmatmul.f32.gmra.mxu0 %v4043
        %v4306 = vpop.f32.mrf.mxu0
        %v4307 = vadd.f32 %v4284, %v4306
        %4308 = vmatmul.f32.gmra.mxu0 %v4059
        %v4309 = vpop.f32.mrf.mxu0
        %v4310 = vadd.f32 %v4287, %v4309
        %4311 = vdwg.mxu0
        %4312 = vmatpush.msra.mxu0 %v3866
        %4313 = vmatpush.msra.mxu0 %v3864
        %4314 = vmatpush.msra.mxu0 %v3862
        %4315 = vmatpush.msra.mxu0 %v3860
        %4316 = vmatpush.msra.mxu0 %v3858
        %4317 = vmatpush.msra.mxu0 %v3856
        %4318 = vmatpush.msra.mxu0 %v3854
        %4319 = vmatpush.msra.mxu0 %v3852
        %4320 = vmatpush.msra.mxu0 %v3850
        %4321 = vmatpush.msra.mxu0 %v3848
        %4322 = vmatpush.msra.mxu0 %v3846
        %4323 = vmatpush.msra.mxu0 %v3844
        %4324 = vmatpush.msra.mxu0 %v3842
        %4325 = vmatpush.msra.mxu0 %v3840
        %4326 = vmatpush.msra.mxu0 %v3838
        %4327 = vmatpush.msra.mxu0 %v3836
        %4328 = vmatmul.f32.gmra.mxu0 %v4044
        %v4329 = vpop.f32.mrf.mxu0
        %v4330 = vadd.f32 %v4307, %v4329
        %4331 = vmatmul.f32.gmra.mxu0 %v4060
        %v4332 = vpop.f32.mrf.mxu0
        %v4333 = vadd.f32 %v4310, %v4332
        %4334 = vdwg.mxu0
        %4335 = vmatpush.msra.mxu0 %v3898
        %4336 = vmatpush.msra.mxu0 %v3896
        %4337 = vmatpush.msra.mxu0 %v3894
        %4338 = vmatpush.msra.mxu0 %v3892
        %4339 = vmatpush.msra.mxu0 %v3890
        %4340 = vmatpush.msra.mxu0 %v3888
        %4341 = vmatpush.msra.mxu0 %v3886
        %4342 = vmatpush.msra.mxu0 %v3884
        %4343 = vmatpush.msra.mxu0 %v3882
        %4344 = vmatpush.msra.mxu0 %v3880
        %4345 = vmatpush.msra.mxu0 %v3878
        %4346 = vmatpush.msra.mxu0 %v3876
        %4347 = vmatpush.msra.mxu0 %v3874
        %4348 = vmatpush.msra.mxu0 %v3872
        %4349 = vmatpush.msra.mxu0 %v3870
        %4350 = vmatpush.msra.mxu0 %v3868
        %4351 = vmatmul.f32.gmra.mxu0 %v4045
        %v4352 = vpop.f32.mrf.mxu0
        %v4353 = vadd.f32 %v4330, %v4352
        %4354 = vmatmul.f32.gmra.mxu0 %v4061
        %v4355 = vpop.f32.mrf.mxu0
        %v4356 = vadd.f32 %v4333, %v4355
        %4357 = vdwg.mxu0
        %4358 = vmatpush.msra.mxu0 %v3930
        %4359 = vmatpush.msra.mxu0 %v3928
        %4360 = vmatpush.msra.mxu0 %v3926
        %4361 = vmatpush.msra.mxu0 %v3924
        %4362 = vmatpush.msra.mxu0 %v3922
        %4363 = vmatpush.msra.mxu0 %v3920
        %4364 = vmatpush.msra.mxu0 %v3918
        %4365 = vmatpush.msra.mxu0 %v3916
        %4366 = vmatpush.msra.mxu0 %v3914
        %4367 = vmatpush.msra.mxu0 %v3912
        %4368 = vmatpush.msra.mxu0 %v3910
        %4369 = vmatpush.msra.mxu0 %v3908
        %4370 = vmatpush.msra.mxu0 %v3906
        %4371 = vmatpush.msra.mxu0 %v3904
        %4372 = vmatpush.msra.mxu0 %v3902
        %4373 = vmatpush.msra.mxu0 %v3900
        %4374 = vmatmul.f32.gmra.mxu0 %v4046
        %v4375 = vpop.f32.mrf.mxu0
        %v4376 = vadd.f32 %v4353, %v4375
        %4377 = vmatmul.f32.gmra.mxu0 %v4062
        %v4378 = vpop.f32.mrf.mxu0
        %v4379 = vadd.f32 %v4356, %v4378
        %4380 = vdwg.mxu0
        %4381 = vmatpush.msra.mxu0 %v3962
        %4382 = vmatpush.msra.mxu0 %v3960
        %4383 = vmatpush.msra.mxu0 %v3958
        %4384 = vmatpush.msra.mxu0 %v3956
        %4385 = vmatpush.msra.mxu0 %v3954
        %4386 = vmatpush.msra.mxu0 %v3952
        %4387 = vmatpush.msra.mxu0 %v3950
        %4388 = vmatpush.msra.mxu0 %v3948
        %4389 = vmatpush.msra.mxu0 %v3946
        %4390 = vmatpush.msra.mxu0 %v3944
        %4391 = vmatpush.msra.mxu0 %v3942
        %4392 = vmatpush.msra.mxu0 %v3940
        %4393 = vmatpush.msra.mxu0 %v3938
        %4394 = vmatpush.msra.mxu0 %v3936
        %4395 = vmatpush.msra.mxu0 %v3934
        %4396 = vmatpush.msra.mxu0 %v3932
        %4397 = vmatmul.f32.gmra.mxu0 %v4047
        %v4398 = vpop.f32.mrf.mxu0
        %v4399 = vadd.f32 %v4376, %v4398
        %4400 = vmatmul.f32.gmra.mxu0 %v4063
        %v4401 = vpop.f32.mrf.mxu0
        %v4402 = vadd.f32 %v4379, %v4401
        %4403 = vdwg.mxu0
        %4404 = vmatpush.msra.mxu0 %v3994
        %4405 = vmatpush.msra.mxu0 %v3992
        %4406 = vmatpush.msra.mxu0 %v3990
        %4407 = vmatpush.msra.mxu0 %v3988
        %4408 = vmatpush.msra.mxu0 %v3986
        %4409 = vmatpush.msra.mxu0 %v3984
        %4410 = vmatpush.msra.mxu0 %v3982
        %4411 = vmatpush.msra.mxu0 %v3980
        %4412 = vmatpush.msra.mxu0 %v3978
        %4413 = vmatpush.msra.mxu0 %v3976
        %4414 = vmatpush.msra.mxu0 %v3974
        %4415 = vmatpush.msra.mxu0 %v3972
        %4416 = vmatpush.msra.mxu0 %v3970
        %4417 = vmatpush.msra.mxu0 %v3968
        %4418 = vmatpush.msra.mxu0 %v3966
        %4419 = vmatpush.msra.mxu0 %v3964
        %4420 = vmatmul.f32.gmra.mxu0 %v4048
        %v4421 = vpop.f32.mrf.mxu0
        %v4422 = vadd.f32 %v4399, %v4421
        %4423 = vmatmul.f32.gmra.mxu0 %v4064
        %v4424 = vpop.f32.mrf.mxu0
        %v4425 = vadd.f32 %v4402, %v4424
        %4426 = vdwg.mxu0
        %4427 = vmatpush.msra.mxu0 %v4026
        %4428 = vmatpush.msra.mxu0 %v4024
        %4429 = vmatpush.msra.mxu0 %v4022
        %4430 = vmatpush.msra.mxu0 %v4020
        %4431 = vmatpush.msra.mxu0 %v4018
        %4432 = vmatpush.msra.mxu0 %v4016
        %4433 = vmatpush.msra.mxu0 %v4014
        %4434 = vmatpush.msra.mxu0 %v4012
        %4435 = vmatpush.msra.mxu0 %v4010
        %4436 = vmatpush.msra.mxu0 %v4008
        %4437 = vmatpush.msra.mxu0 %v4006
        %4438 = vmatpush.msra.mxu0 %v4004
        %4439 = vmatpush.msra.mxu0 %v4002
        %4440 = vmatpush.msra.mxu0 %v4000
        %4441 = vmatpush.msra.mxu0 %v3998
        %4442 = vmatpush.msra.mxu0 %v3996
        %4443 = vmatmul.f32.gmra.mxu0 %v4049
        %v4444 = vpop.f32.mrf.mxu0
        %v4445 = vadd.f32 %v4422, %v4444
        %4446 = vmatmul.f32.gmra.mxu0 %v4065
        %v4447 = vpop.f32.mrf.mxu0
        %v4448 = vadd.f32 %v4425, %v4447
        %4449 = vdwg.mxu0
        %v4450 = vadd.f32 %v3574, %v4261
        %v4451 = vadd.f32 %v3575, %v4445
        %v4452 = vadd.f32 %v3576, %v4264
        %v4453 = vadd.f32 %v3577, %v4448
        %v4454 = vld [vmem:[%s2797] sm:$0x3c]
        %v4455 = vld [vmem:[%s2797 + $0x8] sm:$0x3c]
        %v4456 = vld [vmem:[%s2797 + $0x10] sm:$0x3c]
        %v4457 = vld [vmem:[%s2797 + $0x18] sm:$0x3c]
        %v4458 = vld [vmem:[%s2797 + $0x20] sm:$0x3c]
        %v4459 = vld [vmem:[%s2797 + $0x28] sm:$0x3c]
        %v4460 = vld [vmem:[%s2797 + $0x30] sm:$0x3c]
        %v4461 = vld [vmem:[%s2797 + $0x38] sm:$0x3c]
        %v4462 = vld [vmem:[%s2797 + $0x40] sm:$0x3c]
        %v4463 = vld [vmem:[%s2797 + $0x48] sm:$0x3c]
        %v4464 = vld [vmem:[%s2797 + $0x50] sm:$0x3c]
        %v4465 = vld [vmem:[%s2797 + $0x58] sm:$0x3c]
        %v4466 = vld [vmem:[%s2797 + $0x60] sm:$0x3c]
        %v4467 = vld [vmem:[%s2797 + $0x68] sm:$0x3c]
        %v4468 = vld [vmem:[%s2797 + $0x70] sm:$0x3c]
        %v4469 = vld [vmem:[%s2797 + $0x78] sm:$0x3c]
        %v4470 = vld [vmem:[%s2797 + $0x80] sm:$0x3c]
        %v4471 = vld [vmem:[%s2797 + $0x88] sm:$0x3c]
        %v4472 = vld [vmem:[%s2797 + $0x90] sm:$0x3c]
        %v4473 = vld [vmem:[%s2797 + $0x98] sm:$0x3c]
        %v4474 = vld [vmem:[%s2797 + $0xa0] sm:$0x3c]
        %v4475 = vld [vmem:[%s2797 + $0xa8] sm:$0x3c]
        %v4476 = vld [vmem:[%s2797 + $0xb0] sm:$0x3c]
        %v4477 = vld [vmem:[%s2797 + $0xb8] sm:$0x3c]
        %v4478 = vld [vmem:[%s2797 + $0xc0] sm:$0x3c]
        %v4479 = vld [vmem:[%s2797 + $0xc8] sm:$0x3c]
        %v4480 = vld [vmem:[%s2797 + $0xd0] sm:$0x3c]
        %v4481 = vld [vmem:[%s2797 + $0xd8] sm:$0x3c]
        %v4482 = vld [vmem:[%s2797 + $0xe0] sm:$0x3c]
        %v4483 = vld [vmem:[%s2797 + $0xe8] sm:$0x3c]
        %v4484 = vld [vmem:[%s2797 + $0xf0] sm:$0x3c]
        %v4485 = vld [vmem:[%s2797 + $0xf8] sm:$0x3c]
        %v4518 = vrot.slane %v4455, 4
        %v4519 = vrot.slane %v4457, 4
        %v4520 = vrot.slane %v4459, 4
        %v4521 = vrot.slane %v4461, 4
        %v4522 = vrot.slane %v4463, 4
        %v4523 = vrot.slane %v4465, 4
        %v4524 = vrot.slane %v4467, 4
        %v4525 = vrot.slane %v4469, 4
        %v4526 = vrot.slane %v4471, 4
        %v4527 = vrot.slane %v4473, 4
        %v4528 = vrot.slane %v4475, 4
        %v4529 = vrot.slane %v4477, 4
        %v4530 = vrot.slane %v4479, 4
        %v4531 = vrot.slane %v4481, 4
        %v4532 = vrot.slane %v4483, 4
        %v4533 = vrot.slane %v4485, 4
        %v4534 = vsel %vm347, %v4454, %v4518
        %v4535 = vsel %vm347, %v4456, %v4519
        %v4536 = vsel %vm347, %v4458, %v4520
        %v4537 = vsel %vm347, %v4460, %v4521
        %v4538 = vsel %vm347, %v4518, %v4454
        %v4539 = vrot.slane %v4538, 4
        %v4540 = vsel %vm347, %v4519, %v4456
        %v4541 = vrot.slane %v4540, 4
        %v4542 = vsel %vm347, %v4520, %v4458
        %v4543 = vrot.slane %v4542, 4
        %v4544 = vsel %vm347, %v4521, %v4460
        %v4545 = vrot.slane %v4544, 4
        %v4546 = vsel %vm347, %v4462, %v4522
        %v4547 = vsel %vm347, %v4464, %v4523
        %v4548 = vsel %vm347, %v4466, %v4524
        %v4549 = vsel %vm347, %v4468, %v4525
        %v4550 = vsel %vm347, %v4522, %v4462
        %v4551 = vrot.slane %v4550, 4
        %v4552 = vsel %vm347, %v4523, %v4464
        %v4553 = vrot.slane %v4552, 4
        %v4554 = vsel %vm347, %v4524, %v4466
        %v4555 = vrot.slane %v4554, 4
        %v4556 = vsel %vm347, %v4525, %v4468
        %v4557 = vrot.slane %v4556, 4
        %v4558 = vsel %vm347, %v4470, %v4526
        %v4559 = vsel %vm347, %v4472, %v4527
        %v4560 = vsel %vm347, %v4474, %v4528
        %v4561 = vsel %vm347, %v4476, %v4529
        %v4562 = vsel %vm347, %v4526, %v4470
        %v4563 = vrot.slane %v4562, 4
        %v4564 = vsel %vm347, %v4527, %v4472
        %v4565 = vrot.slane %v4564, 4
        %v4566 = vsel %vm347, %v4528, %v4474
        %v4567 = vrot.slane %v4566, 4
        %v4568 = vsel %vm347, %v4529, %v4476
        %v4569 = vrot.slane %v4568, 4
        %v4570 = vsel %vm347, %v4478, %v4530
        %v4571 = vsel %vm347, %v4480, %v4531
        %v4572 = vsel %vm347, %v4482, %v4532
        %v4573 = vsel %vm347, %v4484, %v4533
        %v4574 = vsel %vm347, %v4530, %v4478
        %v4575 = vrot.slane %v4574, 4
        %v4576 = vsel %vm347, %v4531, %v4480
        %v4577 = vrot.slane %v4576, 4
        %v4578 = vsel %vm347, %v4532, %v4482
        %v4579 = vrot.slane %v4578, 4
        %v4580 = vsel %vm347, %v4533, %v4484
        %v4581 = vrot.slane %v4580, 4
        %v4582 = vrot.slane %v4534, 6
        %v4583 = vrot.slane %v4582, 4
        %v4584 = vrot.slane %v4539, 6
        %v4585 = vsel %vm2048, %v4583, %v4584
        %v4586 = vrot.slane %v4535, 6
        %v4587 = vrot.slane %v4586, 4
        %v4588 = vrot.slane %v4541, 6
        %v4589 = vsel %vm2048, %v4587, %v4588
        %v4590 = vrot.slane %v4536, 6
        %v4591 = vrot.slane %v4590, 4
        %v4592 = vrot.slane %v4543, 6
        %v4593 = vsel %vm2048, %v4591, %v4592
        %v4594 = vrot.slane %v4537, 6
        %v4595 = vrot.slane %v4594, 4
        %v4596 = vrot.slane %v4545, 6
        %v4597 = vsel %vm2048, %v4595, %v4596
        %v4598 = vrot.slane %v4546, 6
        %v4599 = vrot.slane %v4598, 4
        %v4600 = vrot.slane %v4551, 6
        %v4601 = vsel %vm2048, %v4599, %v4600
        %v4602 = vrot.slane %v4547, 6
        %v4603 = vrot.slane %v4602, 4
        %v4604 = vrot.slane %v4553, 6
        %v4605 = vsel %vm2048, %v4603, %v4604
        %v4606 = vrot.slane %v4548, 6
        %v4607 = vrot.slane %v4606, 4
        %v4608 = vrot.slane %v4555, 6
        %v4609 = vsel %vm2048, %v4607, %v4608
        %v4610 = vrot.slane %v4549, 6
        %v4611 = vrot.slane %v4610, 4
        %v4612 = vrot.slane %v4557, 6
        %v4613 = vsel %vm2048, %v4611, %v4612
        %v4614 = vrot.slane %v4558, 6
        %v4615 = vrot.slane %v4614, 4
        %v4616 = vrot.slane %v4563, 6
        %v4617 = vsel %vm2048, %v4615, %v4616
        %v4618 = vrot.slane %v4559, 6
        %v4619 = vrot.slane %v4618, 4
        %v4620 = vrot.slane %v4565, 6
        %v4621 = vsel %vm2048, %v4619, %v4620
        %v4622 = vrot.slane %v4560, 6
        %v4623 = vrot.slane %v4622, 4
        %v4624 = vrot.slane %v4567, 6
        %v4625 = vsel %vm2048, %v4623, %v4624
        %v4626 = vrot.slane %v4561, 6
        %v4627 = vrot.slane %v4626, 4
        %v4628 = vrot.slane %v4569, 6
        %v4629 = vsel %vm2048, %v4627, %v4628
        %v4630 = vrot.slane %v4570, 6
        %v4631 = vrot.slane %v4630, 4
        %v4632 = vrot.slane %v4575, 6
        %v4633 = vsel %vm2048, %v4631, %v4632
        %v4634 = vrot.slane %v4571, 6
        %v4635 = vrot.slane %v4634, 4
        %v4636 = vrot.slane %v4577, 6
        %v4637 = vsel %vm2048, %v4635, %v4636
        %v4638 = vrot.slane %v4572, 6
        %v4639 = vrot.slane %v4638, 4
        %v4640 = vrot.slane %v4579, 6
        %v4641 = vsel %vm2048, %v4639, %v4640
        %v4642 = vrot.slane %v4573, 6
        %v4643 = vrot.slane %v4642, 4
        %v4644 = vrot.slane %v4581, 6
        %v4645 = vsel %vm2048, %v4643, %v4644
        %s4646 = scalar_lea.vmem %s215, 10240 [#allocation2]
        %v4647 = vld [vmem:[%s4646] sm:$0xff]
        %v4648 = vld [vmem:[%s4646 + $0x8] sm:$0xff]
        %v4649 = vld [vmem:[%s4646 + $0x10] sm:$0xff]
        %v4650 = vld [vmem:[%s4646 + $0x18] sm:$0xff]
        %v4651 = vld [vmem:[%s4646 + $0x20] sm:$0xff]
        %v4652 = vld [vmem:[%s4646 + $0x28] sm:$0xff]
        %v4653 = vld [vmem:[%s4646 + $0x30] sm:$0xff]
        %v4654 = vld [vmem:[%s4646 + $0x38] sm:$0xff]
        %v4655 = vld [vmem:[%s4646 + $0x40] sm:$0xff]
        %v4656 = vld [vmem:[%s4646 + $0x48] sm:$0xff]
        %v4657 = vld [vmem:[%s4646 + $0x50] sm:$0xff]
        %v4658 = vld [vmem:[%s4646 + $0x58] sm:$0xff]
        %v4659 = vld [vmem:[%s4646 + $0x60] sm:$0xff]
        %v4660 = vld [vmem:[%s4646 + $0x68] sm:$0xff]
        %v4661 = vld [vmem:[%s4646 + $0x70] sm:$0xff]
        %v4662 = vld [vmem:[%s4646 + $0x78] sm:$0xff]
        %v4663 = vld [vmem:[%s4646 + $0x80] sm:$0xff]
        %v4664 = vld [vmem:[%s4646 + $0x88] sm:$0xff]
        %v4665 = vld [vmem:[%s4646 + $0x90] sm:$0xff]
        %v4666 = vld [vmem:[%s4646 + $0x98] sm:$0xff]
        %v4667 = vld [vmem:[%s4646 + $0xa0] sm:$0xff]
        %v4668 = vld [vmem:[%s4646 + $0xa8] sm:$0xff]
        %v4669 = vld [vmem:[%s4646 + $0xb0] sm:$0xff]
        %v4670 = vld [vmem:[%s4646 + $0xb8] sm:$0xff]
        %v4671 = vld [vmem:[%s4646 + $0xc0] sm:$0xff]
        %v4672 = vld [vmem:[%s4646 + $0xc8] sm:$0xff]
        %v4673 = vld [vmem:[%s4646 + $0xd0] sm:$0xff]
        %v4674 = vld [vmem:[%s4646 + $0xd8] sm:$0xff]
        %v4675 = vld [vmem:[%s4646 + $0xe0] sm:$0xff]
        %v4676 = vld [vmem:[%s4646 + $0xe8] sm:$0xff]
        %v4677 = vld [vmem:[%s4646 + $0xf0] sm:$0xff]
        %v4678 = vld [vmem:[%s4646 + $0xf8] sm:$0xff]
        %v4679 = vld [vmem:[%s4646 + $0x100] sm:$0xff]
        %v4680 = vld [vmem:[%s4646 + $0x108] sm:$0xff]
        %v4681 = vld [vmem:[%s4646 + $0x110] sm:$0xff]
        %v4682 = vld [vmem:[%s4646 + $0x118] sm:$0xff]
        %v4683 = vld [vmem:[%s4646 + $0x120] sm:$0xff]
        %v4684 = vld [vmem:[%s4646 + $0x128] sm:$0xff]
        %v4685 = vld [vmem:[%s4646 + $0x130] sm:$0xff]
        %v4686 = vld [vmem:[%s4646 + $0x138] sm:$0xff]
        %v4687 = vld [vmem:[%s4646 + $0x140] sm:$0xff]
        %v4688 = vld [vmem:[%s4646 + $0x148] sm:$0xff]
        %v4689 = vld [vmem:[%s4646 + $0x150] sm:$0xff]
        %v4690 = vld [vmem:[%s4646 + $0x158] sm:$0xff]
        %v4691 = vld [vmem:[%s4646 + $0x160] sm:$0xff]
        %v4692 = vld [vmem:[%s4646 + $0x168] sm:$0xff]
        %v4693 = vld [vmem:[%s4646 + $0x170] sm:$0xff]
        %v4694 = vld [vmem:[%s4646 + $0x178] sm:$0xff]
        %v4695 = vld [vmem:[%s4646 + $0x180] sm:$0xff]
        %v4696 = vld [vmem:[%s4646 + $0x188] sm:$0xff]
        %v4697 = vld [vmem:[%s4646 + $0x190] sm:$0xff]
        %v4698 = vld [vmem:[%s4646 + $0x198] sm:$0xff]
        %v4699 = vld [vmem:[%s4646 + $0x1a0] sm:$0xff]
        %v4700 = vld [vmem:[%s4646 + $0x1a8] sm:$0xff]
        %v4701 = vld [vmem:[%s4646 + $0x1b0] sm:$0xff]
        %v4702 = vld [vmem:[%s4646 + $0x1b8] sm:$0xff]
        %v4703 = vld [vmem:[%s4646 + $0x1c0] sm:$0xff]
        %v4704 = vld [vmem:[%s4646 + $0x1c8] sm:$0xff]
        %v4705 = vld [vmem:[%s4646 + $0x1d0] sm:$0xff]
        %v4706 = vld [vmem:[%s4646 + $0x1d8] sm:$0xff]
        %v4707 = vld [vmem:[%s4646 + $0x1e0] sm:$0xff]
        %v4708 = vld [vmem:[%s4646 + $0x1e8] sm:$0xff]
        %v4709 = vld [vmem:[%s4646 + $0x1f0] sm:$0xff]
        %v4710 = vld [vmem:[%s4646 + $0x1f8] sm:$0xff]
        %v4711 = vld [vmem:[%s4646 + $0x200] sm:$0xff]
        %v4712 = vld [vmem:[%s4646 + $0x208] sm:$0xff]
        %v4713 = vld [vmem:[%s4646 + $0x210] sm:$0xff]
        %v4714 = vld [vmem:[%s4646 + $0x218] sm:$0xff]
        %v4715 = vld [vmem:[%s4646 + $0x220] sm:$0xff]
        %v4716 = vld [vmem:[%s4646 + $0x228] sm:$0xff]
        %v4717 = vld [vmem:[%s4646 + $0x230] sm:$0xff]
        %v4718 = vld [vmem:[%s4646 + $0x238] sm:$0xff]
        %v4719 = vld [vmem:[%s4646 + $0x240] sm:$0xff]
        %v4720 = vld [vmem:[%s4646 + $0x248] sm:$0xff]
        %v4721 = vld [vmem:[%s4646 + $0x250] sm:$0xff]
        %v4722 = vld [vmem:[%s4646 + $0x258] sm:$0xff]
        %v4723 = vld [vmem:[%s4646 + $0x260] sm:$0xff]
        %v4724 = vld [vmem:[%s4646 + $0x268] sm:$0xff]
        %v4725 = vld [vmem:[%s4646 + $0x270] sm:$0xff]
        %v4726 = vld [vmem:[%s4646 + $0x278] sm:$0xff]
        %v4727 = vld [vmem:[%s4646 + $0x280] sm:$0xff]
        %v4728 = vld [vmem:[%s4646 + $0x288] sm:$0xff]
        %v4729 = vld [vmem:[%s4646 + $0x290] sm:$0xff]
        %v4730 = vld [vmem:[%s4646 + $0x298] sm:$0xff]
        %v4731 = vld [vmem:[%s4646 + $0x2a0] sm:$0xff]
        %v4732 = vld [vmem:[%s4646 + $0x2a8] sm:$0xff]
        %v4733 = vld [vmem:[%s4646 + $0x2b0] sm:$0xff]
        %v4734 = vld [vmem:[%s4646 + $0x2b8] sm:$0xff]
        %v4735 = vld [vmem:[%s4646 + $0x2c0] sm:$0xff]
        %v4736 = vld [vmem:[%s4646 + $0x2c8] sm:$0xff]
        %v4737 = vld [vmem:[%s4646 + $0x2d0] sm:$0xff]
        %v4738 = vld [vmem:[%s4646 + $0x2d8] sm:$0xff]
        %v4739 = vld [vmem:[%s4646 + $0x2e0] sm:$0xff]
        %v4740 = vld [vmem:[%s4646 + $0x2e8] sm:$0xff]
        %v4741 = vld [vmem:[%s4646 + $0x2f0] sm:$0xff]
        %v4742 = vld [vmem:[%s4646 + $0x2f8] sm:$0xff]
        %v4743 = vld [vmem:[%s4646 + $0x300] sm:$0xff]
        %v4744 = vld [vmem:[%s4646 + $0x308] sm:$0xff]
        %v4745 = vld [vmem:[%s4646 + $0x310] sm:$0xff]
        %v4746 = vld [vmem:[%s4646 + $0x318] sm:$0xff]
        %v4747 = vld [vmem:[%s4646 + $0x320] sm:$0xff]
        %v4748 = vld [vmem:[%s4646 + $0x328] sm:$0xff]
        %v4749 = vld [vmem:[%s4646 + $0x330] sm:$0xff]
        %v4750 = vld [vmem:[%s4646 + $0x338] sm:$0xff]
        %v4751 = vld [vmem:[%s4646 + $0x340] sm:$0xff]
        %v4752 = vld [vmem:[%s4646 + $0x348] sm:$0xff]
        %v4753 = vld [vmem:[%s4646 + $0x350] sm:$0xff]
        %v4754 = vld [vmem:[%s4646 + $0x358] sm:$0xff]
        %v4755 = vld [vmem:[%s4646 + $0x360] sm:$0xff]
        %v4756 = vld [vmem:[%s4646 + $0x368] sm:$0xff]
        %v4757 = vld [vmem:[%s4646 + $0x370] sm:$0xff]
        %v4758 = vld [vmem:[%s4646 + $0x378] sm:$0xff]
        %v4759 = vld [vmem:[%s4646 + $0x380] sm:$0xff]
        %v4760 = vld [vmem:[%s4646 + $0x388] sm:$0xff]
        %v4761 = vld [vmem:[%s4646 + $0x390] sm:$0xff]
        %v4762 = vld [vmem:[%s4646 + $0x398] sm:$0xff]
        %v4763 = vld [vmem:[%s4646 + $0x3a0] sm:$0xff]
        %v4764 = vld [vmem:[%s4646 + $0x3a8] sm:$0xff]
        %v4765 = vld [vmem:[%s4646 + $0x3b0] sm:$0xff]
        %v4766 = vld [vmem:[%s4646 + $0x3b8] sm:$0xff]
        %v4767 = vld [vmem:[%s4646 + $0x3c0] sm:$0xff]
        %v4768 = vld [vmem:[%s4646 + $0x3c8] sm:$0xff]
        %v4769 = vld [vmem:[%s4646 + $0x3d0] sm:$0xff]
        %v4770 = vld [vmem:[%s4646 + $0x3d8] sm:$0xff]
        %v4771 = vld [vmem:[%s4646 + $0x3e0] sm:$0xff]
        %v4772 = vld [vmem:[%s4646 + $0x3e8] sm:$0xff]
        %v4773 = vld [vmem:[%s4646 + $0x3f0] sm:$0xff]
        %v4774 = vld [vmem:[%s4646 + $0x3f8] sm:$0xff]
        %v4775 = vld [vmem:[%s4646 + $0x400] sm:$0xff]
        %v4776 = vld [vmem:[%s4646 + $0x408] sm:$0xff]
        %v4777 = vld [vmem:[%s4646 + $0x410] sm:$0xff]
        %v4778 = vld [vmem:[%s4646 + $0x418] sm:$0xff]
        %v4779 = vld [vmem:[%s4646 + $0x420] sm:$0xff]
        %v4780 = vld [vmem:[%s4646 + $0x428] sm:$0xff]
        %v4781 = vld [vmem:[%s4646 + $0x430] sm:$0xff]
        %v4782 = vld [vmem:[%s4646 + $0x438] sm:$0xff]
        %v4783 = vld [vmem:[%s4646 + $0x440] sm:$0xff]
        %v4784 = vld [vmem:[%s4646 + $0x448] sm:$0xff]
        %v4785 = vld [vmem:[%s4646 + $0x450] sm:$0xff]
        %v4786 = vld [vmem:[%s4646 + $0x458] sm:$0xff]
        %v4787 = vld [vmem:[%s4646 + $0x460] sm:$0xff]
        %v4788 = vld [vmem:[%s4646 + $0x468] sm:$0xff]
        %v4789 = vld [vmem:[%s4646 + $0x470] sm:$0xff]
        %v4790 = vld [vmem:[%s4646 + $0x478] sm:$0xff]
        %v4791 = vld [vmem:[%s4646 + $0x480] sm:$0xff]
        %v4792 = vld [vmem:[%s4646 + $0x488] sm:$0xff]
        %v4793 = vld [vmem:[%s4646 + $0x490] sm:$0xff]
        %v4794 = vld [vmem:[%s4646 + $0x498] sm:$0xff]
        %v4795 = vld [vmem:[%s4646 + $0x4a0] sm:$0xff]
        %v4796 = vld [vmem:[%s4646 + $0x4a8] sm:$0xff]
        %v4797 = vld [vmem:[%s4646 + $0x4b0] sm:$0xff]
        %v4798 = vld [vmem:[%s4646 + $0x4b8] sm:$0xff]
        %v4799 = vld [vmem:[%s4646 + $0x4c0] sm:$0xff]
        %v4800 = vld [vmem:[%s4646 + $0x4c8] sm:$0xff]
        %v4801 = vld [vmem:[%s4646 + $0x4d0] sm:$0xff]
        %v4802 = vld [vmem:[%s4646 + $0x4d8] sm:$0xff]
        %v4803 = vld [vmem:[%s4646 + $0x4e0] sm:$0xff]
        %v4804 = vld [vmem:[%s4646 + $0x4e8] sm:$0xff]
        %v4805 = vld [vmem:[%s4646 + $0x4f0] sm:$0xff]
        %v4806 = vld [vmem:[%s4646 + $0x4f8] sm:$0xff]
        %v4807 = vld [vmem:[%s4646 + $0x500] sm:$0xff]
        %v4808 = vld [vmem:[%s4646 + $0x508] sm:$0xff]
        %v4809 = vld [vmem:[%s4646 + $0x510] sm:$0xff]
        %v4810 = vld [vmem:[%s4646 + $0x518] sm:$0xff]
        %v4811 = vld [vmem:[%s4646 + $0x520] sm:$0xff]
        %v4812 = vld [vmem:[%s4646 + $0x528] sm:$0xff]
        %v4813 = vld [vmem:[%s4646 + $0x530] sm:$0xff]
        %v4814 = vld [vmem:[%s4646 + $0x538] sm:$0xff]
        %v4815 = vld [vmem:[%s4646 + $0x540] sm:$0xff]
        %v4816 = vld [vmem:[%s4646 + $0x548] sm:$0xff]
        %v4817 = vld [vmem:[%s4646 + $0x550] sm:$0xff]
        %v4818 = vld [vmem:[%s4646 + $0x558] sm:$0xff]
        %v4819 = vld [vmem:[%s4646 + $0x560] sm:$0xff]
        %v4820 = vld [vmem:[%s4646 + $0x568] sm:$0xff]
        %v4821 = vld [vmem:[%s4646 + $0x570] sm:$0xff]
        %v4822 = vld [vmem:[%s4646 + $0x578] sm:$0xff]
        %v4823 = vld [vmem:[%s4646 + $0x580] sm:$0xff]
        %v4824 = vld [vmem:[%s4646 + $0x588] sm:$0xff]
        %v4825 = vld [vmem:[%s4646 + $0x590] sm:$0xff]
        %v4826 = vld [vmem:[%s4646 + $0x598] sm:$0xff]
        %v4827 = vld [vmem:[%s4646 + $0x5a0] sm:$0xff]
        %v4828 = vld [vmem:[%s4646 + $0x5a8] sm:$0xff]
        %v4829 = vld [vmem:[%s4646 + $0x5b0] sm:$0xff]
        %v4830 = vld [vmem:[%s4646 + $0x5b8] sm:$0xff]
        %v4831 = vld [vmem:[%s4646 + $0x5c0] sm:$0xff]
        %v4832 = vld [vmem:[%s4646 + $0x5c8] sm:$0xff]
        %v4833 = vld [vmem:[%s4646 + $0x5d0] sm:$0xff]
        %v4834 = vld [vmem:[%s4646 + $0x5d8] sm:$0xff]
        %v4835 = vld [vmem:[%s4646 + $0x5e0] sm:$0xff]
        %v4836 = vld [vmem:[%s4646 + $0x5e8] sm:$0xff]
        %v4837 = vld [vmem:[%s4646 + $0x5f0] sm:$0xff]
        %v4838 = vld [vmem:[%s4646 + $0x5f8] sm:$0xff]
        %v4839 = vld [vmem:[%s4646 + $0x600] sm:$0xff]
        %v4840 = vld [vmem:[%s4646 + $0x608] sm:$0xff]
        %v4841 = vld [vmem:[%s4646 + $0x610] sm:$0xff]
        %v4842 = vld [vmem:[%s4646 + $0x618] sm:$0xff]
        %v4843 = vld [vmem:[%s4646 + $0x620] sm:$0xff]
        %v4844 = vld [vmem:[%s4646 + $0x628] sm:$0xff]
        %v4845 = vld [vmem:[%s4646 + $0x630] sm:$0xff]
        %v4846 = vld [vmem:[%s4646 + $0x638] sm:$0xff]
        %v4847 = vld [vmem:[%s4646 + $0x640] sm:$0xff]
        %v4848 = vld [vmem:[%s4646 + $0x648] sm:$0xff]
        %v4849 = vld [vmem:[%s4646 + $0x650] sm:$0xff]
        %v4850 = vld [vmem:[%s4646 + $0x658] sm:$0xff]
        %v4851 = vld [vmem:[%s4646 + $0x660] sm:$0xff]
        %v4852 = vld [vmem:[%s4646 + $0x668] sm:$0xff]
        %v4853 = vld [vmem:[%s4646 + $0x670] sm:$0xff]
        %v4854 = vld [vmem:[%s4646 + $0x678] sm:$0xff]
        %v4855 = vld [vmem:[%s4646 + $0x680] sm:$0xff]
        %v4856 = vld [vmem:[%s4646 + $0x688] sm:$0xff]
        %v4857 = vld [vmem:[%s4646 + $0x690] sm:$0xff]
        %v4858 = vld [vmem:[%s4646 + $0x698] sm:$0xff]
        %v4859 = vld [vmem:[%s4646 + $0x6a0] sm:$0xff]
        %v4860 = vld [vmem:[%s4646 + $0x6a8] sm:$0xff]
        %v4861 = vld [vmem:[%s4646 + $0x6b0] sm:$0xff]
        %v4862 = vld [vmem:[%s4646 + $0x6b8] sm:$0xff]
        %v4863 = vld [vmem:[%s4646 + $0x6c0] sm:$0xff]
        %v4864 = vld [vmem:[%s4646 + $0x6c8] sm:$0xff]
        %v4865 = vld [vmem:[%s4646 + $0x6d0] sm:$0xff]
        %v4866 = vld [vmem:[%s4646 + $0x6d8] sm:$0xff]
        %v4867 = vld [vmem:[%s4646 + $0x6e0] sm:$0xff]
        %v4868 = vld [vmem:[%s4646 + $0x6e8] sm:$0xff]
        %v4869 = vld [vmem:[%s4646 + $0x6f0] sm:$0xff]
        %v4870 = vld [vmem:[%s4646 + $0x6f8] sm:$0xff]
        %v4871 = vld [vmem:[%s4646 + $0x700] sm:$0xff]
        %v4872 = vld [vmem:[%s4646 + $0x708] sm:$0xff]
        %v4873 = vld [vmem:[%s4646 + $0x710] sm:$0xff]
        %v4874 = vld [vmem:[%s4646 + $0x718] sm:$0xff]
        %v4875 = vld [vmem:[%s4646 + $0x720] sm:$0xff]
        %v4876 = vld [vmem:[%s4646 + $0x728] sm:$0xff]
        %v4877 = vld [vmem:[%s4646 + $0x730] sm:$0xff]
        %v4878 = vld [vmem:[%s4646 + $0x738] sm:$0xff]
        %v4879 = vld [vmem:[%s4646 + $0x740] sm:$0xff]
        %v4880 = vld [vmem:[%s4646 + $0x748] sm:$0xff]
        %v4881 = vld [vmem:[%s4646 + $0x750] sm:$0xff]
        %v4882 = vld [vmem:[%s4646 + $0x758] sm:$0xff]
        %v4883 = vld [vmem:[%s4646 + $0x760] sm:$0xff]
        %v4884 = vld [vmem:[%s4646 + $0x768] sm:$0xff]
        %v4885 = vld [vmem:[%s4646 + $0x770] sm:$0xff]
        %v4886 = vld [vmem:[%s4646 + $0x778] sm:$0xff]
        %v4887 = vld [vmem:[%s4646 + $0x780] sm:$0xff]
        %v4888 = vld [vmem:[%s4646 + $0x788] sm:$0xff]
        %v4889 = vld [vmem:[%s4646 + $0x790] sm:$0xff]
        %v4890 = vld [vmem:[%s4646 + $0x798] sm:$0xff]
        %v4891 = vld [vmem:[%s4646 + $0x7a0] sm:$0xff]
        %v4892 = vld [vmem:[%s4646 + $0x7a8] sm:$0xff]
        %v4893 = vld [vmem:[%s4646 + $0x7b0] sm:$0xff]
        %v4894 = vld [vmem:[%s4646 + $0x7b8] sm:$0xff]
        %v4895 = vld [vmem:[%s4646 + $0x7c0] sm:$0xff]
        %v4896 = vld [vmem:[%s4646 + $0x7c8] sm:$0xff]
        %v4897 = vld [vmem:[%s4646 + $0x7d0] sm:$0xff]
        %v4898 = vld [vmem:[%s4646 + $0x7d8] sm:$0xff]
        %v4899 = vld [vmem:[%s4646 + $0x7e0] sm:$0xff]
        %v4900 = vld [vmem:[%s4646 + $0x7e8] sm:$0xff]
        %v4901 = vld [vmem:[%s4646 + $0x7f0] sm:$0xff]
        %v4902 = vld [vmem:[%s4646 + $0x7f8] sm:$0xff]
        %4903 = vst [vmem:[#allocation1] ss:$2 sm:$0xff] %v4585
        %s4904 = scalar_lea.vmem [#allocation1], 1
        %4905 = vst [vmem:[%s4904] ss:$2 sm:$0xff] %v4601
        %s4906 = scalar_lea.vmem [#allocation1], 16
        %4907 = vst [vmem:[%s4906] ss:$2 sm:$0xff] %v4589
        %s4908 = scalar_lea.vmem [#allocation1], 17
        %4909 = vst [vmem:[%s4908] ss:$2 sm:$0xff] %v4605
        %s4910 = scalar_lea.vmem [#allocation1], 32
        %4911 = vst [vmem:[%s4910] ss:$2 sm:$0xff] %v4593
        %s4912 = scalar_lea.vmem [#allocation1], 33
        %4913 = vst [vmem:[%s4912] ss:$2 sm:$0xff] %v4609
        %s4914 = scalar_lea.vmem [#allocation1], 48
        %4915 = vst [vmem:[%s4914] ss:$2 sm:$0xff] %v4597
        %s4916 = scalar_lea.vmem [#allocation1], 49
        %4917 = vst [vmem:[%s4916] ss:$2 sm:$0xff] %v4613
        %v4918 = vld.sshfl [vmem:[#allocation1] sm:$0xff pattern:$0x75316420]
        %v4919 = vld.sshfl [vmem:[#allocation1 + $0x8] sm:$0xff pattern:$0x75316420]
        %v4920 = vld.sshfl [vmem:[#allocation1 + $0x10] sm:$0xff pattern:$0x75316420]
        %v4921 = vld.sshfl [vmem:[#allocation1 + $0x18] sm:$0xff pattern:$0x75316420]
        %v4922 = vld.sshfl [vmem:[#allocation1 + $0x20] sm:$0xff pattern:$0x75316420]
        %v4923 = vld.sshfl [vmem:[#allocation1 + $0x28] sm:$0xff pattern:$0x75316420]
        %v4924 = vld.sshfl [vmem:[#allocation1 + $0x30] sm:$0xff pattern:$0x75316420]
        %v4925 = vld.sshfl [vmem:[#allocation1 + $0x38] sm:$0xff pattern:$0x75316420]
        %4926 = vst [vmem:[#allocation1] ss:$2 sm:$0xff] %v4617
        %4927 = vst [vmem:[%s4904] ss:$2 sm:$0xff] %v4633
        %4928 = vst [vmem:[%s4906] ss:$2 sm:$0xff] %v4621
        %4929 = vst [vmem:[%s4908] ss:$2 sm:$0xff] %v4637
        %4930 = vst [vmem:[%s4910] ss:$2 sm:$0xff] %v4625
        %4931 = vst [vmem:[%s4912] ss:$2 sm:$0xff] %v4641
        %4932 = vst [vmem:[%s4914] ss:$2 sm:$0xff] %v4629
        %4933 = vst [vmem:[%s4916] ss:$2 sm:$0xff] %v4645
        %v4934 = vld.sshfl [vmem:[#allocation1] sm:$0xff pattern:$0x75316420]
        %v4935 = vld.sshfl [vmem:[#allocation1 + $0x8] sm:$0xff pattern:$0x75316420]
        %v4936 = vld.sshfl [vmem:[#allocation1 + $0x10] sm:$0xff pattern:$0x75316420]
        %v4937 = vld.sshfl [vmem:[#allocation1 + $0x18] sm:$0xff pattern:$0x75316420]
        %v4938 = vld.sshfl [vmem:[#allocation1 + $0x20] sm:$0xff pattern:$0x75316420]
        %v4939 = vld.sshfl [vmem:[#allocation1 + $0x28] sm:$0xff pattern:$0x75316420]
        %v4940 = vld.sshfl [vmem:[#allocation1 + $0x30] sm:$0xff pattern:$0x75316420]
        %v4941 = vld.sshfl [vmem:[#allocation1 + $0x38] sm:$0xff pattern:$0x75316420]
        %4958 = vmatpush.msra.mxu0 %v4677
        %4959 = vmatpush.msra.mxu0 %v4675
        %4960 = vmatpush.msra.mxu0 %v4673
        %4961 = vmatpush.msra.mxu0 %v4671
        %4962 = vmatpush.msra.mxu0 %v4669
        %4963 = vmatpush.msra.mxu0 %v4667
        %4964 = vmatpush.msra.mxu0 %v4665
        %4965 = vmatpush.msra.mxu0 %v4663
        %4966 = vmatpush.msra.mxu0 %v4661
        %4967 = vmatpush.msra.mxu0 %v4659
        %4968 = vmatpush.msra.mxu0 %v4657
        %4969 = vmatpush.msra.mxu0 %v4655
        %4970 = vmatpush.msra.mxu0 %v4653
        %4971 = vmatpush.msra.mxu0 %v4651
        %4972 = vmatpush.msra.mxu0 %v4649
        %4973 = vmatpush.msra.mxu0 %v4647
        %4974 = vmatmul.f32.gmra.mxu0 %v4918
        %v4975 = vpop.f32.mrf.mxu0
        %v4976 = vadd.f32 0.0, %v4975
        %4977 = vmatmul.f32.gmra.mxu0 %v4934
        %v4978 = vpop.f32.mrf.mxu0
        %v4979 = vadd.f32 0.0, %v4978
        %4980 = vdwg.mxu0
        %4981 = vmatpush.msra.mxu0 %v4709
        %4982 = vmatpush.msra.mxu0 %v4707
        %4983 = vmatpush.msra.mxu0 %v4705
        %4984 = vmatpush.msra.mxu0 %v4703
        %4985 = vmatpush.msra.mxu0 %v4701
        %4986 = vmatpush.msra.mxu0 %v4699
        %4987 = vmatpush.msra.mxu0 %v4697
        %4988 = vmatpush.msra.mxu0 %v4695
        %4989 = vmatpush.msra.mxu0 %v4693
        %4990 = vmatpush.msra.mxu0 %v4691
        %4991 = vmatpush.msra.mxu0 %v4689
        %4992 = vmatpush.msra.mxu0 %v4687
        %4993 = vmatpush.msra.mxu0 %v4685
        %4994 = vmatpush.msra.mxu0 %v4683
        %4995 = vmatpush.msra.mxu0 %v4681
        %4996 = vmatpush.msra.mxu0 %v4679
        %4997 = vmatmul.f32.gmra.mxu0 %v4919
        %v4998 = vpop.f32.mrf.mxu0
        %v4999 = vadd.f32 %v4976, %v4998
        %5000 = vmatmul.f32.gmra.mxu0 %v4935
        %v5001 = vpop.f32.mrf.mxu0
        %v5002 = vadd.f32 %v4979, %v5001
        %5003 = vdwg.mxu0
        %5004 = vmatpush.msra.mxu0 %v4741
        %5005 = vmatpush.msra.mxu0 %v4739
        %5006 = vmatpush.msra.mxu0 %v4737
        %5007 = vmatpush.msra.mxu0 %v4735
        %5008 = vmatpush.msra.mxu0 %v4733
        %5009 = vmatpush.msra.mxu0 %v4731
        %5010 = vmatpush.msra.mxu0 %v4729
        %5011 = vmatpush.msra.mxu0 %v4727
        %5012 = vmatpush.msra.mxu0 %v4725
        %5013 = vmatpush.msra.mxu0 %v4723
        %5014 = vmatpush.msra.mxu0 %v4721
        %5015 = vmatpush.msra.mxu0 %v4719
        %5016 = vmatpush.msra.mxu0 %v4717
        %5017 = vmatpush.msra.mxu0 %v4715
        %5018 = vmatpush.msra.mxu0 %v4713
        %5019 = vmatpush.msra.mxu0 %v4711
        %5020 = vmatmul.f32.gmra.mxu0 %v4920
        %v5021 = vpop.f32.mrf.mxu0
        %v5022 = vadd.f32 %v4999, %v5021
        %5023 = vmatmul.f32.gmra.mxu0 %v4936
        %v5024 = vpop.f32.mrf.mxu0
        %v5025 = vadd.f32 %v5002, %v5024
        %5026 = vdwg.mxu0
        %5027 = vmatpush.msra.mxu0 %v4773
        %5028 = vmatpush.msra.mxu0 %v4771
        %5029 = vmatpush.msra.mxu0 %v4769
        %5030 = vmatpush.msra.mxu0 %v4767
        %5031 = vmatpush.msra.mxu0 %v4765
        %5032 = vmatpush.msra.mxu0 %v4763
        %5033 = vmatpush.msra.mxu0 %v4761
        %5034 = vmatpush.msra.mxu0 %v4759
        %5035 = vmatpush.msra.mxu0 %v4757
        %5036 = vmatpush.msra.mxu0 %v4755
        %5037 = vmatpush.msra.mxu0 %v4753
        %5038 = vmatpush.msra.mxu0 %v4751
        %5039 = vmatpush.msra.mxu0 %v4749
        %5040 = vmatpush.msra.mxu0 %v4747
        %5041 = vmatpush.msra.mxu0 %v4745
        %5042 = vmatpush.msra.mxu0 %v4743
        %5043 = vmatmul.f32.gmra.mxu0 %v4921
        %v5044 = vpop.f32.mrf.mxu0
        %v5045 = vadd.f32 %v5022, %v5044
        %5046 = vmatmul.f32.gmra.mxu0 %v4937
        %v5047 = vpop.f32.mrf.mxu0
        %v5048 = vadd.f32 %v5025, %v5047
        %5049 = vdwg.mxu0
        %5050 = vmatpush.msra.mxu0 %v4805
        %5051 = vmatpush.msra.mxu0 %v4803
        %5052 = vmatpush.msra.mxu0 %v4801
        %5053 = vmatpush.msra.mxu0 %v4799
        %5054 = vmatpush.msra.mxu0 %v4797
        %5055 = vmatpush.msra.mxu0 %v4795
        %5056 = vmatpush.msra.mxu0 %v4793
        %5057 = vmatpush.msra.mxu0 %v4791
        %5058 = vmatpush.msra.mxu0 %v4789
        %5059 = vmatpush.msra.mxu0 %v4787
        %5060 = vmatpush.msra.mxu0 %v4785
        %5061 = vmatpush.msra.mxu0 %v4783
        %5062 = vmatpush.msra.mxu0 %v4781
        %5063 = vmatpush.msra.mxu0 %v4779
        %5064 = vmatpush.msra.mxu0 %v4777
        %5065 = vmatpush.msra.mxu0 %v4775
        %5066 = vmatmul.f32.gmra.mxu0 %v4922
        %v5067 = vpop.f32.mrf.mxu0
        %v5068 = vadd.f32 %v5045, %v5067
        %5069 = vmatmul.f32.gmra.mxu0 %v4938
        %v5070 = vpop.f32.mrf.mxu0
        %v5071 = vadd.f32 %v5048, %v5070
        %5072 = vdwg.mxu0
        %5073 = vmatpush.msra.mxu0 %v4837
        %5074 = vmatpush.msra.mxu0 %v4835
        %5075 = vmatpush.msra.mxu0 %v4833
        %5076 = vmatpush.msra.mxu0 %v4831
        %5077 = vmatpush.msra.mxu0 %v4829
        %5078 = vmatpush.msra.mxu0 %v4827
        %5079 = vmatpush.msra.mxu0 %v4825
        %5080 = vmatpush.msra.mxu0 %v4823
        %5081 = vmatpush.msra.mxu0 %v4821
        %5082 = vmatpush.msra.mxu0 %v4819
        %5083 = vmatpush.msra.mxu0 %v4817
        %5084 = vmatpush.msra.mxu0 %v4815
        %5085 = vmatpush.msra.mxu0 %v4813
        %5086 = vmatpush.msra.mxu0 %v4811
        %5087 = vmatpush.msra.mxu0 %v4809
        %5088 = vmatpush.msra.mxu0 %v4807
        %5089 = vmatmul.f32.gmra.mxu0 %v4923
        %v5090 = vpop.f32.mrf.mxu0
        %v5091 = vadd.f32 %v5068, %v5090
        %5092 = vmatmul.f32.gmra.mxu0 %v4939
        %v5093 = vpop.f32.mrf.mxu0
        %v5094 = vadd.f32 %v5071, %v5093
        %5095 = vdwg.mxu0
        %5096 = vmatpush.msra.mxu0 %v4869
        %5097 = vmatpush.msra.mxu0 %v4867
        %5098 = vmatpush.msra.mxu0 %v4865
        %5099 = vmatpush.msra.mxu0 %v4863
        %5100 = vmatpush.msra.mxu0 %v4861
        %5101 = vmatpush.msra.mxu0 %v4859
        %5102 = vmatpush.msra.mxu0 %v4857
        %5103 = vmatpush.msra.mxu0 %v4855
        %5104 = vmatpush.msra.mxu0 %v4853
        %5105 = vmatpush.msra.mxu0 %v4851
        %5106 = vmatpush.msra.mxu0 %v4849
        %5107 = vmatpush.msra.mxu0 %v4847
        %5108 = vmatpush.msra.mxu0 %v4845
        %5109 = vmatpush.msra.mxu0 %v4843
        %5110 = vmatpush.msra.mxu0 %v4841
        %5111 = vmatpush.msra.mxu0 %v4839
        %5112 = vmatmul.f32.gmra.mxu0 %v4924
        %v5113 = vpop.f32.mrf.mxu0
        %v5114 = vadd.f32 %v5091, %v5113
        %5115 = vmatmul.f32.gmra.mxu0 %v4940
        %v5116 = vpop.f32.mrf.mxu0
        %v5117 = vadd.f32 %v5094, %v5116
        %5118 = vdwg.mxu0
        %5119 = vmatpush.msra.mxu0 %v4901
        %5120 = vmatpush.msra.mxu0 %v4899
        %5121 = vmatpush.msra.mxu0 %v4897
        %5122 = vmatpush.msra.mxu0 %v4895
        %5123 = vmatpush.msra.mxu0 %v4893
        %5124 = vmatpush.msra.mxu0 %v4891
        %5125 = vmatpush.msra.mxu0 %v4889
        %5126 = vmatpush.msra.mxu0 %v4887
        %5127 = vmatpush.msra.mxu0 %v4885
        %5128 = vmatpush.msra.mxu0 %v4883
        %5129 = vmatpush.msra.mxu0 %v4881
        %5130 = vmatpush.msra.mxu0 %v4879
        %5131 = vmatpush.msra.mxu0 %v4877
        %5132 = vmatpush.msra.mxu0 %v4875
        %5133 = vmatpush.msra.mxu0 %v4873
        %5134 = vmatpush.msra.mxu0 %v4871
        %5135 = vmatmul.f32.gmra.mxu0 %v4925
        %v5136 = vpop.f32.mrf.mxu0
        %v5137 = vadd.f32 %v5114, %v5136
        %5138 = vmatmul.f32.gmra.mxu0 %v4941
        %v5139 = vpop.f32.mrf.mxu0
        %v5140 = vadd.f32 %v5117, %v5139
        %5141 = vdwg.mxu0
        %5142 = vmatpush.msra.mxu0 %v4678
        %5143 = vmatpush.msra.mxu0 %v4676
        %5144 = vmatpush.msra.mxu0 %v4674
        %5145 = vmatpush.msra.mxu0 %v4672
        %5146 = vmatpush.msra.mxu0 %v4670
        %5147 = vmatpush.msra.mxu0 %v4668
        %5148 = vmatpush.msra.mxu0 %v4666
        %5149 = vmatpush.msra.mxu0 %v4664
        %5150 = vmatpush.msra.mxu0 %v4662
        %5151 = vmatpush.msra.mxu0 %v4660
        %5152 = vmatpush.msra.mxu0 %v4658
        %5153 = vmatpush.msra.mxu0 %v4656
        %5154 = vmatpush.msra.mxu0 %v4654
        %5155 = vmatpush.msra.mxu0 %v4652
        %5156 = vmatpush.msra.mxu0 %v4650
        %5157 = vmatpush.msra.mxu0 %v4648
        %5158 = vmatmul.f32.gmra.mxu0 %v4918
        %v5159 = vpop.f32.mrf.mxu0
        %v5160 = vadd.f32 0.0, %v5159
        %5161 = vmatmul.f32.gmra.mxu0 %v4934
        %v5162 = vpop.f32.mrf.mxu0
        %v5163 = vadd.f32 0.0, %v5162
        %5164 = vdwg.mxu0
        %5165 = vmatpush.msra.mxu0 %v4710
        %5166 = vmatpush.msra.mxu0 %v4708
        %5167 = vmatpush.msra.mxu0 %v4706
        %5168 = vmatpush.msra.mxu0 %v4704
        %5169 = vmatpush.msra.mxu0 %v4702
        %5170 = vmatpush.msra.mxu0 %v4700
        %5171 = vmatpush.msra.mxu0 %v4698
        %5172 = vmatpush.msra.mxu0 %v4696
        %5173 = vmatpush.msra.mxu0 %v4694
        %5174 = vmatpush.msra.mxu0 %v4692
        %5175 = vmatpush.msra.mxu0 %v4690
        %5176 = vmatpush.msra.mxu0 %v4688
        %5177 = vmatpush.msra.mxu0 %v4686
        %5178 = vmatpush.msra.mxu0 %v4684
        %5179 = vmatpush.msra.mxu0 %v4682
        %5180 = vmatpush.msra.mxu0 %v4680
        %5181 = vmatmul.f32.gmra.mxu0 %v4919
        %v5182 = vpop.f32.mrf.mxu0
        %v5183 = vadd.f32 %v5160, %v5182
        %5184 = vmatmul.f32.gmra.mxu0 %v4935
        %v5185 = vpop.f32.mrf.mxu0
        %v5186 = vadd.f32 %v5163, %v5185
        %5187 = vdwg.mxu0
        %5188 = vmatpush.msra.mxu0 %v4742
        %5189 = vmatpush.msra.mxu0 %v4740
        %5190 = vmatpush.msra.mxu0 %v4738
        %5191 = vmatpush.msra.mxu0 %v4736
        %5192 = vmatpush.msra.mxu0 %v4734
        %5193 = vmatpush.msra.mxu0 %v4732
        %5194 = vmatpush.msra.mxu0 %v4730
        %5195 = vmatpush.msra.mxu0 %v4728
        %5196 = vmatpush.msra.mxu0 %v4726
        %5197 = vmatpush.msra.mxu0 %v4724
        %5198 = vmatpush.msra.mxu0 %v4722
        %5199 = vmatpush.msra.mxu0 %v4720
        %5200 = vmatpush.msra.mxu0 %v4718
        %5201 = vmatpush.msra.mxu0 %v4716
        %5202 = vmatpush.msra.mxu0 %v4714
        %5203 = vmatpush.msra.mxu0 %v4712
        %5204 = vmatmul.f32.gmra.mxu0 %v4920
        %v5205 = vpop.f32.mrf.mxu0
        %v5206 = vadd.f32 %v5183, %v5205
        %5207 = vmatmul.f32.gmra.mxu0 %v4936
        %v5208 = vpop.f32.mrf.mxu0
        %v5209 = vadd.f32 %v5186, %v5208
        %5210 = vdwg.mxu0
        %5211 = vmatpush.msra.mxu0 %v4774
        %5212 = vmatpush.msra.mxu0 %v4772
        %5213 = vmatpush.msra.mxu0 %v4770
        %5214 = vmatpush.msra.mxu0 %v4768
        %5215 = vmatpush.msra.mxu0 %v4766
        %5216 = vmatpush.msra.mxu0 %v4764
        %5217 = vmatpush.msra.mxu0 %v4762
        %5218 = vmatpush.msra.mxu0 %v4760
        %5219 = vmatpush.msra.mxu0 %v4758
        %5220 = vmatpush.msra.mxu0 %v4756
        %5221 = vmatpush.msra.mxu0 %v4754
        %5222 = vmatpush.msra.mxu0 %v4752
        %5223 = vmatpush.msra.mxu0 %v4750
        %5224 = vmatpush.msra.mxu0 %v4748
        %5225 = vmatpush.msra.mxu0 %v4746
        %5226 = vmatpush.msra.mxu0 %v4744
        %5227 = vmatmul.f32.gmra.mxu0 %v4921
        %v5228 = vpop.f32.mrf.mxu0
        %v5229 = vadd.f32 %v5206, %v5228
        %5230 = vmatmul.f32.gmra.mxu0 %v4937
        %v5231 = vpop.f32.mrf.mxu0
        %v5232 = vadd.f32 %v5209, %v5231
        %5233 = vdwg.mxu0
        %5234 = vmatpush.msra.mxu0 %v4806
        %5235 = vmatpush.msra.mxu0 %v4804
        %5236 = vmatpush.msra.mxu0 %v4802
        %5237 = vmatpush.msra.mxu0 %v4800
        %5238 = vmatpush.msra.mxu0 %v4798
        %5239 = vmatpush.msra.mxu0 %v4796
        %5240 = vmatpush.msra.mxu0 %v4794
        %5241 = vmatpush.msra.mxu0 %v4792
        %5242 = vmatpush.msra.mxu0 %v4790
        %5243 = vmatpush.msra.mxu0 %v4788
        %5244 = vmatpush.msra.mxu0 %v4786
        %5245 = vmatpush.msra.mxu0 %v4784
        %5246 = vmatpush.msra.mxu0 %v4782
        %5247 = vmatpush.msra.mxu0 %v4780
        %5248 = vmatpush.msra.mxu0 %v4778
        %5249 = vmatpush.msra.mxu0 %v4776
        %5250 = vmatmul.f32.gmra.mxu0 %v4922
        %v5251 = vpop.f32.mrf.mxu0
        %v5252 = vadd.f32 %v5229, %v5251
        %5253 = vmatmul.f32.gmra.mxu0 %v4938
        %v5254 = vpop.f32.mrf.mxu0
        %v5255 = vadd.f32 %v5232, %v5254
        %5256 = vdwg.mxu0
        %5257 = vmatpush.msra.mxu0 %v4838
        %5258 = vmatpush.msra.mxu0 %v4836
        %5259 = vmatpush.msra.mxu0 %v4834
        %5260 = vmatpush.msra.mxu0 %v4832
        %5261 = vmatpush.msra.mxu0 %v4830
        %5262 = vmatpush.msra.mxu0 %v4828
        %5263 = vmatpush.msra.mxu0 %v4826
        %5264 = vmatpush.msra.mxu0 %v4824
        %5265 = vmatpush.msra.mxu0 %v4822
        %5266 = vmatpush.msra.mxu0 %v4820
        %5267 = vmatpush.msra.mxu0 %v4818
        %5268 = vmatpush.msra.mxu0 %v4816
        %5269 = vmatpush.msra.mxu0 %v4814
        %5270 = vmatpush.msra.mxu0 %v4812
        %5271 = vmatpush.msra.mxu0 %v4810
        %5272 = vmatpush.msra.mxu0 %v4808
        %5273 = vmatmul.f32.gmra.mxu0 %v4923
        %v5274 = vpop.f32.mrf.mxu0
        %v5275 = vadd.f32 %v5252, %v5274
        %5276 = vmatmul.f32.gmra.mxu0 %v4939
        %v5277 = vpop.f32.mrf.mxu0
        %v5278 = vadd.f32 %v5255, %v5277
        %5279 = vdwg.mxu0
        %5280 = vmatpush.msra.mxu0 %v4870
        %5281 = vmatpush.msra.mxu0 %v4868
        %5282 = vmatpush.msra.mxu0 %v4866
        %5283 = vmatpush.msra.mxu0 %v4864
        %5284 = vmatpush.msra.mxu0 %v4862
        %5285 = vmatpush.msra.mxu0 %v4860
        %5286 = vmatpush.msra.mxu0 %v4858
        %5287 = vmatpush.msra.mxu0 %v4856
        %5288 = vmatpush.msra.mxu0 %v4854
        %5289 = vmatpush.msra.mxu0 %v4852
        %5290 = vmatpush.msra.mxu0 %v4850
        %5291 = vmatpush.msra.mxu0 %v4848
        %5292 = vmatpush.msra.mxu0 %v4846
        %5293 = vmatpush.msra.mxu0 %v4844
        %5294 = vmatpush.msra.mxu0 %v4842
        %5295 = vmatpush.msra.mxu0 %v4840
        %5296 = vmatmul.f32.gmra.mxu0 %v4924
        %v5297 = vpop.f32.mrf.mxu0
        %v5298 = vadd.f32 %v5275, %v5297
        %5299 = vmatmul.f32.gmra.mxu0 %v4940
        %v5300 = vpop.f32.mrf.mxu0
        %v5301 = vadd.f32 %v5278, %v5300
        %5302 = vdwg.mxu0
        %5303 = vmatpush.msra.mxu0 %v4902
        %5304 = vmatpush.msra.mxu0 %v4900
        %5305 = vmatpush.msra.mxu0 %v4898
        %5306 = vmatpush.msra.mxu0 %v4896
        %5307 = vmatpush.msra.mxu0 %v4894
        %5308 = vmatpush.msra.mxu0 %v4892
        %5309 = vmatpush.msra.mxu0 %v4890
        %5310 = vmatpush.msra.mxu0 %v4888
        %5311 = vmatpush.msra.mxu0 %v4886
        %5312 = vmatpush.msra.mxu0 %v4884
        %5313 = vmatpush.msra.mxu0 %v4882
        %5314 = vmatpush.msra.mxu0 %v4880
        %5315 = vmatpush.msra.mxu0 %v4878
        %5316 = vmatpush.msra.mxu0 %v4876
        %5317 = vmatpush.msra.mxu0 %v4874
        %5318 = vmatpush.msra.mxu0 %v4872
        %5319 = vmatmul.f32.gmra.mxu0 %v4925
        %v5320 = vpop.f32.mrf.mxu0
        %v5321 = vadd.f32 %v5298, %v5320
        %5322 = vmatmul.f32.gmra.mxu0 %v4941
        %v5323 = vpop.f32.mrf.mxu0
        %v5324 = vadd.f32 %v5301, %v5323
        %5325 = vdwg.mxu0
        %v5326 = vadd.f32 %v4450, %v5137
        %v5327 = vadd.f32 %v4451, %v5321
        %v5328 = vadd.f32 %v4452, %v5140
        %v5329 = vadd.f32 %v4453, %v5324
        %s5330 = scalar_lea.vmem %s263, 128
        %v5331 = vld [vmem:[%s5330] sm:$0xf]
        %v5332 = vld [vmem:[%s5330 + $0x8] sm:$0xf]
        %v5333 = vld [vmem:[%s5330 + $0x10] sm:$0xf]
        %v5334 = vld [vmem:[%s5330 + $0x18] sm:$0xf]
        %v5335 = vld [vmem:[%s5330 + $0x20] sm:$0xf]
        %v5336 = vld [vmem:[%s5330 + $0x28] sm:$0xf]
        %v5337 = vld [vmem:[%s5330 + $0x30] sm:$0xf]
        %v5338 = vld [vmem:[%s5330 + $0x38] sm:$0xf]
        %v5339 = vld [vmem:[%s5330 + $0x40] sm:$0xf]
        %v5340 = vld [vmem:[%s5330 + $0x48] sm:$0xf]
        %v5341 = vld [vmem:[%s5330 + $0x50] sm:$0xf]
        %v5342 = vld [vmem:[%s5330 + $0x58] sm:$0xf]
        %v5343 = vld [vmem:[%s5330 + $0x60] sm:$0xf]
        %v5344 = vld [vmem:[%s5330 + $0x68] sm:$0xf]
        %v5345 = vld [vmem:[%s5330 + $0x70] sm:$0xf]
        %v5346 = vld [vmem:[%s5330 + $0x78] sm:$0xf]
        %v5347 = vld [vmem:[%s5330 + $0x80] sm:$0xf]
        %v5348 = vld [vmem:[%s5330 + $0x88] sm:$0xf]
        %v5349 = vld [vmem:[%s5330 + $0x90] sm:$0xf]
        %v5350 = vld [vmem:[%s5330 + $0x98] sm:$0xf]
        %v5351 = vld [vmem:[%s5330 + $0xa0] sm:$0xf]
        %v5352 = vld [vmem:[%s5330 + $0xa8] sm:$0xf]
        %v5353 = vld [vmem:[%s5330 + $0xb0] sm:$0xf]
        %v5354 = vld [vmem:[%s5330 + $0xb8] sm:$0xf]
        %v5355 = vld [vmem:[%s5330 + $0xc0] sm:$0xf]
        %v5356 = vld [vmem:[%s5330 + $0xc8] sm:$0xf]
        %v5357 = vld [vmem:[%s5330 + $0xd0] sm:$0xf]
        %v5358 = vld [vmem:[%s5330 + $0xd8] sm:$0xf]
        %v5359 = vld [vmem:[%s5330 + $0xe0] sm:$0xf]
        %v5360 = vld [vmem:[%s5330 + $0xe8] sm:$0xf]
        %v5361 = vld [vmem:[%s5330 + $0xf0] sm:$0xf]
        %v5362 = vld [vmem:[%s5330 + $0xf8] sm:$0xf]
        %v5395 = vrot.slane %v5332, 4
        %v5396 = vrot.slane %v5334, 4
        %v5397 = vrot.slane %v5336, 4
        %v5398 = vrot.slane %v5338, 4
        %v5399 = vrot.slane %v5340, 4
        %v5400 = vrot.slane %v5342, 4
        %v5401 = vrot.slane %v5344, 4
        %v5402 = vrot.slane %v5346, 4
        %v5403 = vrot.slane %v5348, 4
        %v5404 = vrot.slane %v5350, 4
        %v5405 = vrot.slane %v5352, 4
        %v5406 = vrot.slane %v5354, 4
        %v5407 = vrot.slane %v5356, 4
        %v5408 = vrot.slane %v5358, 4
        %v5409 = vrot.slane %v5360, 4
        %v5410 = vrot.slane %v5362, 4
        %v5411 = vsel %vm347, %v5331, %v5395
        %v5412 = vsel %vm347, %v5333, %v5396
        %v5413 = vsel %vm347, %v5335, %v5397
        %v5414 = vsel %vm347, %v5337, %v5398
        %v5415 = vsel %vm347, %v5339, %v5399
        %v5416 = vsel %vm347, %v5341, %v5400
        %v5417 = vsel %vm347, %v5343, %v5401
        %v5418 = vsel %vm347, %v5345, %v5402
        %v5419 = vsel %vm347, %v5347, %v5403
        %v5420 = vsel %vm347, %v5349, %v5404
        %v5421 = vsel %vm347, %v5351, %v5405
        %v5422 = vsel %vm347, %v5353, %v5406
        %v5423 = vsel %vm347, %v5355, %v5407
        %v5424 = vsel %vm347, %v5357, %v5408
        %v5425 = vsel %vm347, %v5359, %v5409
        %v5426 = vsel %vm347, %v5361, %v5410
        %s5427 = scalar_lea.vmem %s215, 12288 [#allocation2]
        %v5428 = vld [vmem:[%s5427] sm:$0xff]
        %v5429 = vld [vmem:[%s5427 + $0x8] sm:$0xff]
        %v5430 = vld [vmem:[%s5427 + $0x10] sm:$0xff]
        %v5431 = vld [vmem:[%s5427 + $0x18] sm:$0xff]
        %v5432 = vld [vmem:[%s5427 + $0x20] sm:$0xff]
        %v5433 = vld [vmem:[%s5427 + $0x28] sm:$0xff]
        %v5434 = vld [vmem:[%s5427 + $0x30] sm:$0xff]
        %v5435 = vld [vmem:[%s5427 + $0x38] sm:$0xff]
        %v5436 = vld [vmem:[%s5427 + $0x40] sm:$0xff]
        %v5437 = vld [vmem:[%s5427 + $0x48] sm:$0xff]
        %v5438 = vld [vmem:[%s5427 + $0x50] sm:$0xff]
        %v5439 = vld [vmem:[%s5427 + $0x58] sm:$0xff]
        %v5440 = vld [vmem:[%s5427 + $0x60] sm:$0xff]
        %v5441 = vld [vmem:[%s5427 + $0x68] sm:$0xff]
        %v5442 = vld [vmem:[%s5427 + $0x70] sm:$0xff]
        %v5443 = vld [vmem:[%s5427 + $0x78] sm:$0xff]
        %v5444 = vld [vmem:[%s5427 + $0x80] sm:$0xff]
        %v5445 = vld [vmem:[%s5427 + $0x88] sm:$0xff]
        %v5446 = vld [vmem:[%s5427 + $0x90] sm:$0xff]
        %v5447 = vld [vmem:[%s5427 + $0x98] sm:$0xff]
        %v5448 = vld [vmem:[%s5427 + $0xa0] sm:$0xff]
        %v5449 = vld [vmem:[%s5427 + $0xa8] sm:$0xff]
        %v5450 = vld [vmem:[%s5427 + $0xb0] sm:$0xff]
        %v5451 = vld [vmem:[%s5427 + $0xb8] sm:$0xff]
        %v5452 = vld [vmem:[%s5427 + $0xc0] sm:$0xff]
        %v5453 = vld [vmem:[%s5427 + $0xc8] sm:$0xff]
        %v5454 = vld [vmem:[%s5427 + $0xd0] sm:$0xff]
        %v5455 = vld [vmem:[%s5427 + $0xd8] sm:$0xff]
        %v5456 = vld [vmem:[%s5427 + $0xe0] sm:$0xff]
        %v5457 = vld [vmem:[%s5427 + $0xe8] sm:$0xff]
        %v5458 = vld [vmem:[%s5427 + $0xf0] sm:$0xff]
        %v5459 = vld [vmem:[%s5427 + $0xf8] sm:$0xff]
        %v5460 = vld [vmem:[%s5427 + $0x100] sm:$0xff]
        %v5461 = vld [vmem:[%s5427 + $0x108] sm:$0xff]
        %v5462 = vld [vmem:[%s5427 + $0x110] sm:$0xff]
        %v5463 = vld [vmem:[%s5427 + $0x118] sm:$0xff]
        %v5464 = vld [vmem:[%s5427 + $0x120] sm:$0xff]
        %v5465 = vld [vmem:[%s5427 + $0x128] sm:$0xff]
        %v5466 = vld [vmem:[%s5427 + $0x130] sm:$0xff]
        %v5467 = vld [vmem:[%s5427 + $0x138] sm:$0xff]
        %v5468 = vld [vmem:[%s5427 + $0x140] sm:$0xff]
        %v5469 = vld [vmem:[%s5427 + $0x148] sm:$0xff]
        %v5470 = vld [vmem:[%s5427 + $0x150] sm:$0xff]
        %v5471 = vld [vmem:[%s5427 + $0x158] sm:$0xff]
        %v5472 = vld [vmem:[%s5427 + $0x160] sm:$0xff]
        %v5473 = vld [vmem:[%s5427 + $0x168] sm:$0xff]
        %v5474 = vld [vmem:[%s5427 + $0x170] sm:$0xff]
        %v5475 = vld [vmem:[%s5427 + $0x178] sm:$0xff]
        %v5476 = vld [vmem:[%s5427 + $0x180] sm:$0xff]
        %v5477 = vld [vmem:[%s5427 + $0x188] sm:$0xff]
        %v5478 = vld [vmem:[%s5427 + $0x190] sm:$0xff]
        %v5479 = vld [vmem:[%s5427 + $0x198] sm:$0xff]
        %v5480 = vld [vmem:[%s5427 + $0x1a0] sm:$0xff]
        %v5481 = vld [vmem:[%s5427 + $0x1a8] sm:$0xff]
        %v5482 = vld [vmem:[%s5427 + $0x1b0] sm:$0xff]
        %v5483 = vld [vmem:[%s5427 + $0x1b8] sm:$0xff]
        %v5484 = vld [vmem:[%s5427 + $0x1c0] sm:$0xff]
        %v5485 = vld [vmem:[%s5427 + $0x1c8] sm:$0xff]
        %v5486 = vld [vmem:[%s5427 + $0x1d0] sm:$0xff]
        %v5487 = vld [vmem:[%s5427 + $0x1d8] sm:$0xff]
        %v5488 = vld [vmem:[%s5427 + $0x1e0] sm:$0xff]
        %v5489 = vld [vmem:[%s5427 + $0x1e8] sm:$0xff]
        %v5490 = vld [vmem:[%s5427 + $0x1f0] sm:$0xff]
        %v5491 = vld [vmem:[%s5427 + $0x1f8] sm:$0xff]
        %v5492 = vld [vmem:[%s5427 + $0x200] sm:$0xff]
        %v5493 = vld [vmem:[%s5427 + $0x208] sm:$0xff]
        %v5494 = vld [vmem:[%s5427 + $0x210] sm:$0xff]
        %v5495 = vld [vmem:[%s5427 + $0x218] sm:$0xff]
        %v5496 = vld [vmem:[%s5427 + $0x220] sm:$0xff]
        %v5497 = vld [vmem:[%s5427 + $0x228] sm:$0xff]
        %v5498 = vld [vmem:[%s5427 + $0x230] sm:$0xff]
        %v5499 = vld [vmem:[%s5427 + $0x238] sm:$0xff]
        %v5500 = vld [vmem:[%s5427 + $0x240] sm:$0xff]
        %v5501 = vld [vmem:[%s5427 + $0x248] sm:$0xff]
        %v5502 = vld [vmem:[%s5427 + $0x250] sm:$0xff]
        %v5503 = vld [vmem:[%s5427 + $0x258] sm:$0xff]
        %v5504 = vld [vmem:[%s5427 + $0x260] sm:$0xff]
        %v5505 = vld [vmem:[%s5427 + $0x268] sm:$0xff]
        %v5506 = vld [vmem:[%s5427 + $0x270] sm:$0xff]
        %v5507 = vld [vmem:[%s5427 + $0x278] sm:$0xff]
        %v5508 = vld [vmem:[%s5427 + $0x280] sm:$0xff]
        %v5509 = vld [vmem:[%s5427 + $0x288] sm:$0xff]
        %v5510 = vld [vmem:[%s5427 + $0x290] sm:$0xff]
        %v5511 = vld [vmem:[%s5427 + $0x298] sm:$0xff]
        %v5512 = vld [vmem:[%s5427 + $0x2a0] sm:$0xff]
        %v5513 = vld [vmem:[%s5427 + $0x2a8] sm:$0xff]
        %v5514 = vld [vmem:[%s5427 + $0x2b0] sm:$0xff]
        %v5515 = vld [vmem:[%s5427 + $0x2b8] sm:$0xff]
        %v5516 = vld [vmem:[%s5427 + $0x2c0] sm:$0xff]
        %v5517 = vld [vmem:[%s5427 + $0x2c8] sm:$0xff]
        %v5518 = vld [vmem:[%s5427 + $0x2d0] sm:$0xff]
        %v5519 = vld [vmem:[%s5427 + $0x2d8] sm:$0xff]
        %v5520 = vld [vmem:[%s5427 + $0x2e0] sm:$0xff]
        %v5521 = vld [vmem:[%s5427 + $0x2e8] sm:$0xff]
        %v5522 = vld [vmem:[%s5427 + $0x2f0] sm:$0xff]
        %v5523 = vld [vmem:[%s5427 + $0x2f8] sm:$0xff]
        %v5524 = vld [vmem:[%s5427 + $0x300] sm:$0xff]
        %v5525 = vld [vmem:[%s5427 + $0x308] sm:$0xff]
        %v5526 = vld [vmem:[%s5427 + $0x310] sm:$0xff]
        %v5527 = vld [vmem:[%s5427 + $0x318] sm:$0xff]
        %v5528 = vld [vmem:[%s5427 + $0x320] sm:$0xff]
        %v5529 = vld [vmem:[%s5427 + $0x328] sm:$0xff]
        %v5530 = vld [vmem:[%s5427 + $0x330] sm:$0xff]
        %v5531 = vld [vmem:[%s5427 + $0x338] sm:$0xff]
        %v5532 = vld [vmem:[%s5427 + $0x340] sm:$0xff]
        %v5533 = vld [vmem:[%s5427 + $0x348] sm:$0xff]
        %v5534 = vld [vmem:[%s5427 + $0x350] sm:$0xff]
        %v5535 = vld [vmem:[%s5427 + $0x358] sm:$0xff]
        %v5536 = vld [vmem:[%s5427 + $0x360] sm:$0xff]
        %v5537 = vld [vmem:[%s5427 + $0x368] sm:$0xff]
        %v5538 = vld [vmem:[%s5427 + $0x370] sm:$0xff]
        %v5539 = vld [vmem:[%s5427 + $0x378] sm:$0xff]
        %v5540 = vld [vmem:[%s5427 + $0x380] sm:$0xff]
        %v5541 = vld [vmem:[%s5427 + $0x388] sm:$0xff]
        %v5542 = vld [vmem:[%s5427 + $0x390] sm:$0xff]
        %v5543 = vld [vmem:[%s5427 + $0x398] sm:$0xff]
        %v5544 = vld [vmem:[%s5427 + $0x3a0] sm:$0xff]
        %v5545 = vld [vmem:[%s5427 + $0x3a8] sm:$0xff]
        %v5546 = vld [vmem:[%s5427 + $0x3b0] sm:$0xff]
        %v5547 = vld [vmem:[%s5427 + $0x3b8] sm:$0xff]
        %v5548 = vld [vmem:[%s5427 + $0x3c0] sm:$0xff]
        %v5549 = vld [vmem:[%s5427 + $0x3c8] sm:$0xff]
        %v5550 = vld [vmem:[%s5427 + $0x3d0] sm:$0xff]
        %v5551 = vld [vmem:[%s5427 + $0x3d8] sm:$0xff]
        %v5552 = vld [vmem:[%s5427 + $0x3e0] sm:$0xff]
        %v5553 = vld [vmem:[%s5427 + $0x3e8] sm:$0xff]
        %v5554 = vld [vmem:[%s5427 + $0x3f0] sm:$0xff]
        %v5555 = vld [vmem:[%s5427 + $0x3f8] sm:$0xff]
        %v5556 = vld [vmem:[%s5427 + $0x400] sm:$0xff]
        %v5557 = vld [vmem:[%s5427 + $0x408] sm:$0xff]
        %v5558 = vld [vmem:[%s5427 + $0x410] sm:$0xff]
        %v5559 = vld [vmem:[%s5427 + $0x418] sm:$0xff]
        %v5560 = vld [vmem:[%s5427 + $0x420] sm:$0xff]
        %v5561 = vld [vmem:[%s5427 + $0x428] sm:$0xff]
        %v5562 = vld [vmem:[%s5427 + $0x430] sm:$0xff]
        %v5563 = vld [vmem:[%s5427 + $0x438] sm:$0xff]
        %v5564 = vld [vmem:[%s5427 + $0x440] sm:$0xff]
        %v5565 = vld [vmem:[%s5427 + $0x448] sm:$0xff]
        %v5566 = vld [vmem:[%s5427 + $0x450] sm:$0xff]
        %v5567 = vld [vmem:[%s5427 + $0x458] sm:$0xff]
        %v5568 = vld [vmem:[%s5427 + $0x460] sm:$0xff]
        %v5569 = vld [vmem:[%s5427 + $0x468] sm:$0xff]
        %v5570 = vld [vmem:[%s5427 + $0x470] sm:$0xff]
        %v5571 = vld [vmem:[%s5427 + $0x478] sm:$0xff]
        %v5572 = vld [vmem:[%s5427 + $0x480] sm:$0xff]
        %v5573 = vld [vmem:[%s5427 + $0x488] sm:$0xff]
        %v5574 = vld [vmem:[%s5427 + $0x490] sm:$0xff]
        %v5575 = vld [vmem:[%s5427 + $0x498] sm:$0xff]
        %v5576 = vld [vmem:[%s5427 + $0x4a0] sm:$0xff]
        %v5577 = vld [vmem:[%s5427 + $0x4a8] sm:$0xff]
        %v5578 = vld [vmem:[%s5427 + $0x4b0] sm:$0xff]
        %v5579 = vld [vmem:[%s5427 + $0x4b8] sm:$0xff]
        %v5580 = vld [vmem:[%s5427 + $0x4c0] sm:$0xff]
        %v5581 = vld [vmem:[%s5427 + $0x4c8] sm:$0xff]
        %v5582 = vld [vmem:[%s5427 + $0x4d0] sm:$0xff]
        %v5583 = vld [vmem:[%s5427 + $0x4d8] sm:$0xff]
        %v5584 = vld [vmem:[%s5427 + $0x4e0] sm:$0xff]
        %v5585 = vld [vmem:[%s5427 + $0x4e8] sm:$0xff]
        %v5586 = vld [vmem:[%s5427 + $0x4f0] sm:$0xff]
        %v5587 = vld [vmem:[%s5427 + $0x4f8] sm:$0xff]
        %v5588 = vld [vmem:[%s5427 + $0x500] sm:$0xff]
        %v5589 = vld [vmem:[%s5427 + $0x508] sm:$0xff]
        %v5590 = vld [vmem:[%s5427 + $0x510] sm:$0xff]
        %v5591 = vld [vmem:[%s5427 + $0x518] sm:$0xff]
        %v5592 = vld [vmem:[%s5427 + $0x520] sm:$0xff]
        %v5593 = vld [vmem:[%s5427 + $0x528] sm:$0xff]
        %v5594 = vld [vmem:[%s5427 + $0x530] sm:$0xff]
        %v5595 = vld [vmem:[%s5427 + $0x538] sm:$0xff]
        %v5596 = vld [vmem:[%s5427 + $0x540] sm:$0xff]
        %v5597 = vld [vmem:[%s5427 + $0x548] sm:$0xff]
        %v5598 = vld [vmem:[%s5427 + $0x550] sm:$0xff]
        %v5599 = vld [vmem:[%s5427 + $0x558] sm:$0xff]
        %v5600 = vld [vmem:[%s5427 + $0x560] sm:$0xff]
        %v5601 = vld [vmem:[%s5427 + $0x568] sm:$0xff]
        %v5602 = vld [vmem:[%s5427 + $0x570] sm:$0xff]
        %v5603 = vld [vmem:[%s5427 + $0x578] sm:$0xff]
        %v5604 = vld [vmem:[%s5427 + $0x580] sm:$0xff]
        %v5605 = vld [vmem:[%s5427 + $0x588] sm:$0xff]
        %v5606 = vld [vmem:[%s5427 + $0x590] sm:$0xff]
        %v5607 = vld [vmem:[%s5427 + $0x598] sm:$0xff]
        %v5608 = vld [vmem:[%s5427 + $0x5a0] sm:$0xff]
        %v5609 = vld [vmem:[%s5427 + $0x5a8] sm:$0xff]
        %v5610 = vld [vmem:[%s5427 + $0x5b0] sm:$0xff]
        %v5611 = vld [vmem:[%s5427 + $0x5b8] sm:$0xff]
        %v5612 = vld [vmem:[%s5427 + $0x5c0] sm:$0xff]
        %v5613 = vld [vmem:[%s5427 + $0x5c8] sm:$0xff]
        %v5614 = vld [vmem:[%s5427 + $0x5d0] sm:$0xff]
        %v5615 = vld [vmem:[%s5427 + $0x5d8] sm:$0xff]
        %v5616 = vld [vmem:[%s5427 + $0x5e0] sm:$0xff]
        %v5617 = vld [vmem:[%s5427 + $0x5e8] sm:$0xff]
        %v5618 = vld [vmem:[%s5427 + $0x5f0] sm:$0xff]
        %v5619 = vld [vmem:[%s5427 + $0x5f8] sm:$0xff]
        %v5620 = vld [vmem:[%s5427 + $0x600] sm:$0xff]
        %v5621 = vld [vmem:[%s5427 + $0x608] sm:$0xff]
        %v5622 = vld [vmem:[%s5427 + $0x610] sm:$0xff]
        %v5623 = vld [vmem:[%s5427 + $0x618] sm:$0xff]
        %v5624 = vld [vmem:[%s5427 + $0x620] sm:$0xff]
        %v5625 = vld [vmem:[%s5427 + $0x628] sm:$0xff]
        %v5626 = vld [vmem:[%s5427 + $0x630] sm:$0xff]
        %v5627 = vld [vmem:[%s5427 + $0x638] sm:$0xff]
        %v5628 = vld [vmem:[%s5427 + $0x640] sm:$0xff]
        %v5629 = vld [vmem:[%s5427 + $0x648] sm:$0xff]
        %v5630 = vld [vmem:[%s5427 + $0x650] sm:$0xff]
        %v5631 = vld [vmem:[%s5427 + $0x658] sm:$0xff]
        %v5632 = vld [vmem:[%s5427 + $0x660] sm:$0xff]
        %v5633 = vld [vmem:[%s5427 + $0x668] sm:$0xff]
        %v5634 = vld [vmem:[%s5427 + $0x670] sm:$0xff]
        %v5635 = vld [vmem:[%s5427 + $0x678] sm:$0xff]
        %v5636 = vld [vmem:[%s5427 + $0x680] sm:$0xff]
        %v5637 = vld [vmem:[%s5427 + $0x688] sm:$0xff]
        %v5638 = vld [vmem:[%s5427 + $0x690] sm:$0xff]
        %v5639 = vld [vmem:[%s5427 + $0x698] sm:$0xff]
        %v5640 = vld [vmem:[%s5427 + $0x6a0] sm:$0xff]
        %v5641 = vld [vmem:[%s5427 + $0x6a8] sm:$0xff]
        %v5642 = vld [vmem:[%s5427 + $0x6b0] sm:$0xff]
        %v5643 = vld [vmem:[%s5427 + $0x6b8] sm:$0xff]
        %v5644 = vld [vmem:[%s5427 + $0x6c0] sm:$0xff]
        %v5645 = vld [vmem:[%s5427 + $0x6c8] sm:$0xff]
        %v5646 = vld [vmem:[%s5427 + $0x6d0] sm:$0xff]
        %v5647 = vld [vmem:[%s5427 + $0x6d8] sm:$0xff]
        %v5648 = vld [vmem:[%s5427 + $0x6e0] sm:$0xff]
        %v5649 = vld [vmem:[%s5427 + $0x6e8] sm:$0xff]
        %v5650 = vld [vmem:[%s5427 + $0x6f0] sm:$0xff]
        %v5651 = vld [vmem:[%s5427 + $0x6f8] sm:$0xff]
        %v5652 = vld [vmem:[%s5427 + $0x700] sm:$0xff]
        %v5653 = vld [vmem:[%s5427 + $0x708] sm:$0xff]
        %v5654 = vld [vmem:[%s5427 + $0x710] sm:$0xff]
        %v5655 = vld [vmem:[%s5427 + $0x718] sm:$0xff]
        %v5656 = vld [vmem:[%s5427 + $0x720] sm:$0xff]
        %v5657 = vld [vmem:[%s5427 + $0x728] sm:$0xff]
        %v5658 = vld [vmem:[%s5427 + $0x730] sm:$0xff]
        %v5659 = vld [vmem:[%s5427 + $0x738] sm:$0xff]
        %v5660 = vld [vmem:[%s5427 + $0x740] sm:$0xff]
        %v5661 = vld [vmem:[%s5427 + $0x748] sm:$0xff]
        %v5662 = vld [vmem:[%s5427 + $0x750] sm:$0xff]
        %v5663 = vld [vmem:[%s5427 + $0x758] sm:$0xff]
        %v5664 = vld [vmem:[%s5427 + $0x760] sm:$0xff]
        %v5665 = vld [vmem:[%s5427 + $0x768] sm:$0xff]
        %v5666 = vld [vmem:[%s5427 + $0x770] sm:$0xff]
        %v5667 = vld [vmem:[%s5427 + $0x778] sm:$0xff]
        %v5668 = vld [vmem:[%s5427 + $0x780] sm:$0xff]
        %v5669 = vld [vmem:[%s5427 + $0x788] sm:$0xff]
        %v5670 = vld [vmem:[%s5427 + $0x790] sm:$0xff]
        %v5671 = vld [vmem:[%s5427 + $0x798] sm:$0xff]
        %v5672 = vld [vmem:[%s5427 + $0x7a0] sm:$0xff]
        %v5673 = vld [vmem:[%s5427 + $0x7a8] sm:$0xff]
        %v5674 = vld [vmem:[%s5427 + $0x7b0] sm:$0xff]
        %v5675 = vld [vmem:[%s5427 + $0x7b8] sm:$0xff]
        %v5676 = vld [vmem:[%s5427 + $0x7c0] sm:$0xff]
        %v5677 = vld [vmem:[%s5427 + $0x7c8] sm:$0xff]
        %v5678 = vld [vmem:[%s5427 + $0x7d0] sm:$0xff]
        %v5679 = vld [vmem:[%s5427 + $0x7d8] sm:$0xff]
        %v5680 = vld [vmem:[%s5427 + $0x7e0] sm:$0xff]
        %v5681 = vld [vmem:[%s5427 + $0x7e8] sm:$0xff]
        %v5682 = vld [vmem:[%s5427 + $0x7f0] sm:$0xff]
        %v5683 = vld [vmem:[%s5427 + $0x7f8] sm:$0xff]
        %5684 = vst [vmem:[#allocation1] ss:$2 sm:$0xff] %v5411
        %s5685 = scalar_lea.vmem [#allocation1], 1
        %5686 = vst [vmem:[%s5685] ss:$2 sm:$0xff] %v5415
        %s5687 = scalar_lea.vmem [#allocation1], 16
        %5688 = vst [vmem:[%s5687] ss:$2 sm:$0xff] %v5412
        %s5689 = scalar_lea.vmem [#allocation1], 17
        %5690 = vst [vmem:[%s5689] ss:$2 sm:$0xff] %v5416
        %s5691 = scalar_lea.vmem [#allocation1], 32
        %5692 = vst [vmem:[%s5691] ss:$2 sm:$0xff] %v5413
        %s5693 = scalar_lea.vmem [#allocation1], 33
        %5694 = vst [vmem:[%s5693] ss:$2 sm:$0xff] %v5417
        %s5695 = scalar_lea.vmem [#allocation1], 48
        %5696 = vst [vmem:[%s5695] ss:$2 sm:$0xff] %v5414
        %s5697 = scalar_lea.vmem [#allocation1], 49
        %5698 = vst [vmem:[%s5697] ss:$2 sm:$0xff] %v5418
        %v5699 = vld.sshfl [vmem:[#allocation1] sm:$0xff pattern:$0x75316420]
        %v5700 = vld.sshfl [vmem:[#allocation1 + $0x8] sm:$0xff pattern:$0x75316420]
        %v5701 = vld.sshfl [vmem:[#allocation1 + $0x10] sm:$0xff pattern:$0x75316420]
        %v5702 = vld.sshfl [vmem:[#allocation1 + $0x18] sm:$0xff pattern:$0x75316420]
        %v5703 = vld.sshfl [vmem:[#allocation1 + $0x20] sm:$0xff pattern:$0x75316420]
        %v5704 = vld.sshfl [vmem:[#allocation1 + $0x28] sm:$0xff pattern:$0x75316420]
        %v5705 = vld.sshfl [vmem:[#allocation1 + $0x30] sm:$0xff pattern:$0x75316420]
        %v5706 = vld.sshfl [vmem:[#allocation1 + $0x38] sm:$0xff pattern:$0x75316420]
        %5707 = vst [vmem:[#allocation1] ss:$2 sm:$0xff] %v5419
        %5708 = vst [vmem:[%s5685] ss:$2 sm:$0xff] %v5423
        %5709 = vst [vmem:[%s5687] ss:$2 sm:$0xff] %v5420
        %5710 = vst [vmem:[%s5689] ss:$2 sm:$0xff] %v5424
        %5711 = vst [vmem:[%s5691] ss:$2 sm:$0xff] %v5421
        %5712 = vst [vmem:[%s5693] ss:$2 sm:$0xff] %v5425
        %5713 = vst [vmem:[%s5695] ss:$2 sm:$0xff] %v5422
        %5714 = vst [vmem:[%s5697] ss:$2 sm:$0xff] %v5426
        %v5715 = vld.sshfl [vmem:[#allocation1] sm:$0xff pattern:$0x75316420]
        %v5716 = vld.sshfl [vmem:[#allocation1 + $0x8] sm:$0xff pattern:$0x75316420]
        %v5717 = vld.sshfl [vmem:[#allocation1 + $0x10] sm:$0xff pattern:$0x75316420]
        %v5718 = vld.sshfl [vmem:[#allocation1 + $0x18] sm:$0xff pattern:$0x75316420]
        %v5719 = vld.sshfl [vmem:[#allocation1 + $0x20] sm:$0xff pattern:$0x75316420]
        %v5720 = vld.sshfl [vmem:[#allocation1 + $0x28] sm:$0xff pattern:$0x75316420]
        %v5721 = vld.sshfl [vmem:[#allocation1 + $0x30] sm:$0xff pattern:$0x75316420]
        %v5722 = vld.sshfl [vmem:[#allocation1 + $0x38] sm:$0xff pattern:$0x75316420]
        %5739 = vmatpush.msra.mxu0 %v5458
        %5740 = vmatpush.msra.mxu0 %v5456
        %5741 = vmatpush.msra.mxu0 %v5454
        %5742 = vmatpush.msra.mxu0 %v5452
        %5743 = vmatpush.msra.mxu0 %v5450
        %5744 = vmatpush.msra.mxu0 %v5448
        %5745 = vmatpush.msra.mxu0 %v5446
        %5746 = vmatpush.msra.mxu0 %v5444
        %5747 = vmatpush.msra.mxu0 %v5442
        %5748 = vmatpush.msra.mxu0 %v5440
        %5749 = vmatpush.msra.mxu0 %v5438
        %5750 = vmatpush.msra.mxu0 %v5436
        %5751 = vmatpush.msra.mxu0 %v5434
        %5752 = vmatpush.msra.mxu0 %v5432
        %5753 = vmatpush.msra.mxu0 %v5430
        %5754 = vmatpush.msra.mxu0 %v5428
        %5755 = vmatmul.f32.gmra.mxu0 %v5699
        %v5756 = vpop.f32.mrf.mxu0
        %v5757 = vadd.f32 0.0, %v5756
        %5758 = vmatmul.f32.gmra.mxu0 %v5715
        %v5759 = vpop.f32.mrf.mxu0
        %v5760 = vadd.f32 0.0, %v5759
        %5761 = vdwg.mxu0
        %5762 = vmatpush.msra.mxu0 %v5490
        %5763 = vmatpush.msra.mxu0 %v5488
        %5764 = vmatpush.msra.mxu0 %v5486
        %5765 = vmatpush.msra.mxu0 %v5484
        %5766 = vmatpush.msra.mxu0 %v5482
        %5767 = vmatpush.msra.mxu0 %v5480
        %5768 = vmatpush.msra.mxu0 %v5478
        %5769 = vmatpush.msra.mxu0 %v5476
        %5770 = vmatpush.msra.mxu0 %v5474
        %5771 = vmatpush.msra.mxu0 %v5472
        %5772 = vmatpush.msra.mxu0 %v5470
        %5773 = vmatpush.msra.mxu0 %v5468
        %5774 = vmatpush.msra.mxu0 %v5466
        %5775 = vmatpush.msra.mxu0 %v5464
        %5776 = vmatpush.msra.mxu0 %v5462
        %5777 = vmatpush.msra.mxu0 %v5460
        %5778 = vmatmul.f32.gmra.mxu0 %v5700
        %v5779 = vpop.f32.mrf.mxu0
        %v5780 = vadd.f32 %v5757, %v5779
        %5781 = vmatmul.f32.gmra.mxu0 %v5716
        %v5782 = vpop.f32.mrf.mxu0
        %v5783 = vadd.f32 %v5760, %v5782
        %5784 = vdwg.mxu0
        %5785 = vmatpush.msra.mxu0 %v5522
        %5786 = vmatpush.msra.mxu0 %v5520
        %5787 = vmatpush.msra.mxu0 %v5518
        %5788 = vmatpush.msra.mxu0 %v5516
        %5789 = vmatpush.msra.mxu0 %v5514
        %5790 = vmatpush.msra.mxu0 %v5512
        %5791 = vmatpush.msra.mxu0 %v5510
        %5792 = vmatpush.msra.mxu0 %v5508
        %5793 = vmatpush.msra.mxu0 %v5506
        %5794 = vmatpush.msra.mxu0 %v5504
        %5795 = vmatpush.msra.mxu0 %v5502
        %5796 = vmatpush.msra.mxu0 %v5500
        %5797 = vmatpush.msra.mxu0 %v5498
        %5798 = vmatpush.msra.mxu0 %v5496
        %5799 = vmatpush.msra.mxu0 %v5494
        %5800 = vmatpush.msra.mxu0 %v5492
        %5801 = vmatmul.f32.gmra.mxu0 %v5701
        %v5802 = vpop.f32.mrf.mxu0
        %v5803 = vadd.f32 %v5780, %v5802
        %5804 = vmatmul.f32.gmra.mxu0 %v5717
        %v5805 = vpop.f32.mrf.mxu0
        %v5806 = vadd.f32 %v5783, %v5805
        %5807 = vdwg.mxu0
        %5808 = vmatpush.msra.mxu0 %v5554
        %5809 = vmatpush.msra.mxu0 %v5552
        %5810 = vmatpush.msra.mxu0 %v5550
        %5811 = vmatpush.msra.mxu0 %v5548
        %5812 = vmatpush.msra.mxu0 %v5546
        %5813 = vmatpush.msra.mxu0 %v5544
        %5814 = vmatpush.msra.mxu0 %v5542
        %5815 = vmatpush.msra.mxu0 %v5540
        %5816 = vmatpush.msra.mxu0 %v5538
        %5817 = vmatpush.msra.mxu0 %v5536
        %5818 = vmatpush.msra.mxu0 %v5534
        %5819 = vmatpush.msra.mxu0 %v5532
        %5820 = vmatpush.msra.mxu0 %v5530
        %5821 = vmatpush.msra.mxu0 %v5528
        %5822 = vmatpush.msra.mxu0 %v5526
        %5823 = vmatpush.msra.mxu0 %v5524
        %5824 = vmatmul.f32.gmra.mxu0 %v5702
        %v5825 = vpop.f32.mrf.mxu0
        %v5826 = vadd.f32 %v5803, %v5825
        %5827 = vmatmul.f32.gmra.mxu0 %v5718
        %v5828 = vpop.f32.mrf.mxu0
        %v5829 = vadd.f32 %v5806, %v5828
        %5830 = vdwg.mxu0
        %5831 = vmatpush.msra.mxu0 %v5586
        %5832 = vmatpush.msra.mxu0 %v5584
        %5833 = vmatpush.msra.mxu0 %v5582
        %5834 = vmatpush.msra.mxu0 %v5580
        %5835 = vmatpush.msra.mxu0 %v5578
        %5836 = vmatpush.msra.mxu0 %v5576
        %5837 = vmatpush.msra.mxu0 %v5574
        %5838 = vmatpush.msra.mxu0 %v5572
        %5839 = vmatpush.msra.mxu0 %v5570
        %5840 = vmatpush.msra.mxu0 %v5568
        %5841 = vmatpush.msra.mxu0 %v5566
        %5842 = vmatpush.msra.mxu0 %v5564
        %5843 = vmatpush.msra.mxu0 %v5562
        %5844 = vmatpush.msra.mxu0 %v5560
        %5845 = vmatpush.msra.mxu0 %v5558
        %5846 = vmatpush.msra.mxu0 %v5556
        %5847 = vmatmul.f32.gmra.mxu0 %v5703
        %v5848 = vpop.f32.mrf.mxu0
        %v5849 = vadd.f32 %v5826, %v5848
        %5850 = vmatmul.f32.gmra.mxu0 %v5719
        %v5851 = vpop.f32.mrf.mxu0
        %v5852 = vadd.f32 %v5829, %v5851
        %5853 = vdwg.mxu0
        %5854 = vmatpush.msra.mxu0 %v5618
        %5855 = vmatpush.msra.mxu0 %v5616
        %5856 = vmatpush.msra.mxu0 %v5614
        %5857 = vmatpush.msra.mxu0 %v5612
        %5858 = vmatpush.msra.mxu0 %v5610
        %5859 = vmatpush.msra.mxu0 %v5608
        %5860 = vmatpush.msra.mxu0 %v5606
        %5861 = vmatpush.msra.mxu0 %v5604
        %5862 = vmatpush.msra.mxu0 %v5602
        %5863 = vmatpush.msra.mxu0 %v5600
        %5864 = vmatpush.msra.mxu0 %v5598
        %5865 = vmatpush.msra.mxu0 %v5596
        %5866 = vmatpush.msra.mxu0 %v5594
        %5867 = vmatpush.msra.mxu0 %v5592
        %5868 = vmatpush.msra.mxu0 %v5590
        %5869 = vmatpush.msra.mxu0 %v5588
        %5870 = vmatmul.f32.gmra.mxu0 %v5704
        %v5871 = vpop.f32.mrf.mxu0
        %v5872 = vadd.f32 %v5849, %v5871
        %5873 = vmatmul.f32.gmra.mxu0 %v5720
        %v5874 = vpop.f32.mrf.mxu0
        %v5875 = vadd.f32 %v5852, %v5874
        %5876 = vdwg.mxu0
        %5877 = vmatpush.msra.mxu0 %v5650
        %5878 = vmatpush.msra.mxu0 %v5648
        %5879 = vmatpush.msra.mxu0 %v5646
        %5880 = vmatpush.msra.mxu0 %v5644
        %5881 = vmatpush.msra.mxu0 %v5642
        %5882 = vmatpush.msra.mxu0 %v5640
        %5883 = vmatpush.msra.mxu0 %v5638
        %5884 = vmatpush.msra.mxu0 %v5636
        %5885 = vmatpush.msra.mxu0 %v5634
        %5886 = vmatpush.msra.mxu0 %v5632
        %5887 = vmatpush.msra.mxu0 %v5630
        %5888 = vmatpush.msra.mxu0 %v5628
        %5889 = vmatpush.msra.mxu0 %v5626
        %5890 = vmatpush.msra.mxu0 %v5624
        %5891 = vmatpush.msra.mxu0 %v5622
        %5892 = vmatpush.msra.mxu0 %v5620
        %5893 = vmatmul.f32.gmra.mxu0 %v5705
        %v5894 = vpop.f32.mrf.mxu0
        %v5895 = vadd.f32 %v5872, %v5894
        %5896 = vmatmul.f32.gmra.mxu0 %v5721
        %v5897 = vpop.f32.mrf.mxu0
        %v5898 = vadd.f32 %v5875, %v5897
        %5899 = vdwg.mxu0
        %5900 = vmatpush.msra.mxu0 %v5682
        %5901 = vmatpush.msra.mxu0 %v5680
        %5902 = vmatpush.msra.mxu0 %v5678
        %5903 = vmatpush.msra.mxu0 %v5676
        %5904 = vmatpush.msra.mxu0 %v5674
        %5905 = vmatpush.msra.mxu0 %v5672
        %5906 = vmatpush.msra.mxu0 %v5670
        %5907 = vmatpush.msra.mxu0 %v5668
        %5908 = vmatpush.msra.mxu0 %v5666
        %5909 = vmatpush.msra.mxu0 %v5664
        %5910 = vmatpush.msra.mxu0 %v5662
        %5911 = vmatpush.msra.mxu0 %v5660
        %5912 = vmatpush.msra.mxu0 %v5658
        %5913 = vmatpush.msra.mxu0 %v5656
        %5914 = vmatpush.msra.mxu0 %v5654
        %5915 = vmatpush.msra.mxu0 %v5652
        %5916 = vmatmul.f32.gmra.mxu0 %v5706
        %v5917 = vpop.f32.mrf.mxu0
        %v5918 = vadd.f32 %v5895, %v5917
        %5919 = vmatmul.f32.gmra.mxu0 %v5722
        %v5920 = vpop.f32.mrf.mxu0
        %v5921 = vadd.f32 %v5898, %v5920
        %5922 = vdwg.mxu0
        %5923 = vmatpush.msra.mxu0 %v5459
        %5924 = vmatpush.msra.mxu0 %v5457
        %5925 = vmatpush.msra.mxu0 %v5455
        %5926 = vmatpush.msra.mxu0 %v5453
        %5927 = vmatpush.msra.mxu0 %v5451
        %5928 = vmatpush.msra.mxu0 %v5449
        %5929 = vmatpush.msra.mxu0 %v5447
        %5930 = vmatpush.msra.mxu0 %v5445
        %5931 = vmatpush.msra.mxu0 %v5443
        %5932 = vmatpush.msra.mxu0 %v5441
        %5933 = vmatpush.msra.mxu0 %v5439
        %5934 = vmatpush.msra.mxu0 %v5437
        %5935 = vmatpush.msra.mxu0 %v5435
        %5936 = vmatpush.msra.mxu0 %v5433
        %5937 = vmatpush.msra.mxu0 %v5431
        %5938 = vmatpush.msra.mxu0 %v5429
        %5939 = vmatmul.f32.gmra.mxu0 %v5699
        %v5940 = vpop.f32.mrf.mxu0
        %v5941 = vadd.f32 0.0, %v5940
        %5942 = vmatmul.f32.gmra.mxu0 %v5715
        %v5943 = vpop.f32.mrf.mxu0
        %v5944 = vadd.f32 0.0, %v5943
        %5945 = vdwg.mxu0
        %5946 = vmatpush.msra.mxu0 %v5491
        %5947 = vmatpush.msra.mxu0 %v5489
        %5948 = vmatpush.msra.mxu0 %v5487
        %5949 = vmatpush.msra.mxu0 %v5485
        %5950 = vmatpush.msra.mxu0 %v5483
        %5951 = vmatpush.msra.mxu0 %v5481
        %5952 = vmatpush.msra.mxu0 %v5479
        %5953 = vmatpush.msra.mxu0 %v5477
        %5954 = vmatpush.msra.mxu0 %v5475
        %5955 = vmatpush.msra.mxu0 %v5473
        %5956 = vmatpush.msra.mxu0 %v5471
        %5957 = vmatpush.msra.mxu0 %v5469
        %5958 = vmatpush.msra.mxu0 %v5467
        %5959 = vmatpush.msra.mxu0 %v5465
        %5960 = vmatpush.msra.mxu0 %v5463
        %5961 = vmatpush.msra.mxu0 %v5461
        %5962 = vmatmul.f32.gmra.mxu0 %v5700
        %v5963 = vpop.f32.mrf.mxu0
        %v5964 = vadd.f32 %v5941, %v5963
        %5965 = vmatmul.f32.gmra.mxu0 %v5716
        %v5966 = vpop.f32.mrf.mxu0
        %v5967 = vadd.f32 %v5944, %v5966
        %5968 = vdwg.mxu0
        %5969 = vmatpush.msra.mxu0 %v5523
        %5970 = vmatpush.msra.mxu0 %v5521
        %5971 = vmatpush.msra.mxu0 %v5519
        %5972 = vmatpush.msra.mxu0 %v5517
        %5973 = vmatpush.msra.mxu0 %v5515
        %5974 = vmatpush.msra.mxu0 %v5513
        %5975 = vmatpush.msra.mxu0 %v5511
        %5976 = vmatpush.msra.mxu0 %v5509
        %5977 = vmatpush.msra.mxu0 %v5507
        %5978 = vmatpush.msra.mxu0 %v5505
        %5979 = vmatpush.msra.mxu0 %v5503
        %5980 = vmatpush.msra.mxu0 %v5501
        %5981 = vmatpush.msra.mxu0 %v5499
        %5982 = vmatpush.msra.mxu0 %v5497
        %5983 = vmatpush.msra.mxu0 %v5495
        %5984 = vmatpush.msra.mxu0 %v5493
        %5985 = vmatmul.f32.gmra.mxu0 %v5701
        %v5986 = vpop.f32.mrf.mxu0
        %v5987 = vadd.f32 %v5964, %v5986
        %5988 = vmatmul.f32.gmra.mxu0 %v5717
        %v5989 = vpop.f32.mrf.mxu0
        %v5990 = vadd.f32 %v5967, %v5989
        %5991 = vdwg.mxu0
        %5992 = vmatpush.msra.mxu0 %v5555
        %5993 = vmatpush.msra.mxu0 %v5553
        %5994 = vmatpush.msra.mxu0 %v5551
        %5995 = vmatpush.msra.mxu0 %v5549
        %5996 = vmatpush.msra.mxu0 %v5547
        %5997 = vmatpush.msra.mxu0 %v5545
        %5998 = vmatpush.msra.mxu0 %v5543
        %5999 = vmatpush.msra.mxu0 %v5541
        %6000 = vmatpush.msra.mxu0 %v5539
        %6001 = vmatpush.msra.mxu0 %v5537
        %6002 = vmatpush.msra.mxu0 %v5535
        %6003 = vmatpush.msra.mxu0 %v5533
        %6004 = vmatpush.msra.mxu0 %v5531
        %6005 = vmatpush.msra.mxu0 %v5529
        %6006 = vmatpush.msra.mxu0 %v5527
        %6007 = vmatpush.msra.mxu0 %v5525
        %6008 = vmatmul.f32.gmra.mxu0 %v5702
        %v6009 = vpop.f32.mrf.mxu0
        %v6010 = vadd.f32 %v5987, %v6009
        %6011 = vmatmul.f32.gmra.mxu0 %v5718
        %v6012 = vpop.f32.mrf.mxu0
        %v6013 = vadd.f32 %v5990, %v6012
        %6014 = vdwg.mxu0
        %6015 = vmatpush.msra.mxu0 %v5587
        %6016 = vmatpush.msra.mxu0 %v5585
        %6017 = vmatpush.msra.mxu0 %v5583
        %6018 = vmatpush.msra.mxu0 %v5581
        %6019 = vmatpush.msra.mxu0 %v5579
        %6020 = vmatpush.msra.mxu0 %v5577
        %6021 = vmatpush.msra.mxu0 %v5575
        %6022 = vmatpush.msra.mxu0 %v5573
        %6023 = vmatpush.msra.mxu0 %v5571
        %6024 = vmatpush.msra.mxu0 %v5569
        %6025 = vmatpush.msra.mxu0 %v5567
        %6026 = vmatpush.msra.mxu0 %v5565
        %6027 = vmatpush.msra.mxu0 %v5563
        %6028 = vmatpush.msra.mxu0 %v5561
        %6029 = vmatpush.msra.mxu0 %v5559
        %6030 = vmatpush.msra.mxu0 %v5557
        %6031 = vmatmul.f32.gmra.mxu0 %v5703
        %v6032 = vpop.f32.mrf.mxu0
        %v6033 = vadd.f32 %v6010, %v6032
        %6034 = vmatmul.f32.gmra.mxu0 %v5719
        %v6035 = vpop.f32.mrf.mxu0
        %v6036 = vadd.f32 %v6013, %v6035
        %6037 = vdwg.mxu0
        %6038 = vmatpush.msra.mxu0 %v5619
        %6039 = vmatpush.msra.mxu0 %v5617
        %6040 = vmatpush.msra.mxu0 %v5615
        %6041 = vmatpush.msra.mxu0 %v5613
        %6042 = vmatpush.msra.mxu0 %v5611
        %6043 = vmatpush.msra.mxu0 %v5609
        %6044 = vmatpush.msra.mxu0 %v5607
        %6045 = vmatpush.msra.mxu0 %v5605
        %6046 = vmatpush.msra.mxu0 %v5603
        %6047 = vmatpush.msra.mxu0 %v5601
        %6048 = vmatpush.msra.mxu0 %v5599
        %6049 = vmatpush.msra.mxu0 %v5597
        %6050 = vmatpush.msra.mxu0 %v5595
        %6051 = vmatpush.msra.mxu0 %v5593
        %6052 = vmatpush.msra.mxu0 %v5591
        %6053 = vmatpush.msra.mxu0 %v5589
        %6054 = vmatmul.f32.gmra.mxu0 %v5704
        %v6055 = vpop.f32.mrf.mxu0
        %v6056 = vadd.f32 %v6033, %v6055
        %6057 = vmatmul.f32.gmra.mxu0 %v5720
        %v6058 = vpop.f32.mrf.mxu0
        %v6059 = vadd.f32 %v6036, %v6058
        %6060 = vdwg.mxu0
        %6061 = vmatpush.msra.mxu0 %v5651
        %6062 = vmatpush.msra.mxu0 %v5649
        %6063 = vmatpush.msra.mxu0 %v5647
        %6064 = vmatpush.msra.mxu0 %v5645
        %6065 = vmatpush.msra.mxu0 %v5643
        %6066 = vmatpush.msra.mxu0 %v5641
        %6067 = vmatpush.msra.mxu0 %v5639
        %6068 = vmatpush.msra.mxu0 %v5637
        %6069 = vmatpush.msra.mxu0 %v5635
        %6070 = vmatpush.msra.mxu0 %v5633
        %6071 = vmatpush.msra.mxu0 %v5631
        %6072 = vmatpush.msra.mxu0 %v5629
        %6073 = vmatpush.msra.mxu0 %v5627
        %6074 = vmatpush.msra.mxu0 %v5625
        %6075 = vmatpush.msra.mxu0 %v5623
        %6076 = vmatpush.msra.mxu0 %v5621
        %6077 = vmatmul.f32.gmra.mxu0 %v5705
        %v6078 = vpop.f32.mrf.mxu0
        %v6079 = vadd.f32 %v6056, %v6078
        %6080 = vmatmul.f32.gmra.mxu0 %v5721
        %v6081 = vpop.f32.mrf.mxu0
        %v6082 = vadd.f32 %v6059, %v6081
        %6083 = vdwg.mxu0
        %6084 = vmatpush.msra.mxu0 %v5683
        %6085 = vmatpush.msra.mxu0 %v5681
        %6086 = vmatpush.msra.mxu0 %v5679
        %6087 = vmatpush.msra.mxu0 %v5677
        %6088 = vmatpush.msra.mxu0 %v5675
        %6089 = vmatpush.msra.mxu0 %v5673
        %6090 = vmatpush.msra.mxu0 %v5671
        %6091 = vmatpush.msra.mxu0 %v5669
        %6092 = vmatpush.msra.mxu0 %v5667
        %6093 = vmatpush.msra.mxu0 %v5665
        %6094 = vmatpush.msra.mxu0 %v5663
        %6095 = vmatpush.msra.mxu0 %v5661
        %6096 = vmatpush.msra.mxu0 %v5659
        %6097 = vmatpush.msra.mxu0 %v5657
        %6098 = vmatpush.msra.mxu0 %v5655
        %6099 = vmatpush.msra.mxu0 %v5653
        %6100 = vmatmul.f32.gmra.mxu0 %v5706
        %v6101 = vpop.f32.mrf.mxu0
        %v6102 = vadd.f32 %v6079, %v6101
        %6103 = vmatmul.f32.gmra.mxu0 %v5722
        %v6104 = vpop.f32.mrf.mxu0
        %v6105 = vadd.f32 %v6082, %v6104
        %6106 = vdwg.mxu0
        %v6107 = vadd.f32 %v5326, %v5918
        %v6108 = vadd.f32 %v5327, %v6102
        %v6109 = vadd.f32 %v5328, %v5921
        %v6110 = vadd.f32 %v5329, %v6105
        %v6111 = vld [vmem:[%s5330] sm:$0x1e]
        %v6112 = vld [vmem:[%s5330 + $0x8] sm:$0x1e]
        %v6113 = vld [vmem:[%s5330 + $0x10] sm:$0x1e]
        %v6114 = vld [vmem:[%s5330 + $0x18] sm:$0x1e]
        %v6115 = vld [vmem:[%s5330 + $0x20] sm:$0x1e]
        %v6116 = vld [vmem:[%s5330 + $0x28] sm:$0x1e]
        %v6117 = vld [vmem:[%s5330 + $0x30] sm:$0x1e]
        %v6118 = vld [vmem:[%s5330 + $0x38] sm:$0x1e]
        %v6119 = vld [vmem:[%s5330 + $0x40] sm:$0x1e]
        %v6120 = vld [vmem:[%s5330 + $0x48] sm:$0x1e]
        %v6121 = vld [vmem:[%s5330 + $0x50] sm:$0x1e]
        %v6122 = vld [vmem:[%s5330 + $0x58] sm:$0x1e]
        %v6123 = vld [vmem:[%s5330 + $0x60] sm:$0x1e]
        %v6124 = vld [vmem:[%s5330 + $0x68] sm:$0x1e]
        %v6125 = vld [vmem:[%s5330 + $0x70] sm:$0x1e]
        %v6126 = vld [vmem:[%s5330 + $0x78] sm:$0x1e]
        %v6127 = vld [vmem:[%s5330 + $0x80] sm:$0x1e]
        %v6128 = vld [vmem:[%s5330 + $0x88] sm:$0x1e]
        %v6129 = vld [vmem:[%s5330 + $0x90] sm:$0x1e]
        %v6130 = vld [vmem:[%s5330 + $0x98] sm:$0x1e]
        %v6131 = vld [vmem:[%s5330 + $0xa0] sm:$0x1e]
        %v6132 = vld [vmem:[%s5330 + $0xa8] sm:$0x1e]
        %v6133 = vld [vmem:[%s5330 + $0xb0] sm:$0x1e]
        %v6134 = vld [vmem:[%s5330 + $0xb8] sm:$0x1e]
        %v6135 = vld [vmem:[%s5330 + $0xc0] sm:$0x1e]
        %v6136 = vld [vmem:[%s5330 + $0xc8] sm:$0x1e]
        %v6137 = vld [vmem:[%s5330 + $0xd0] sm:$0x1e]
        %v6138 = vld [vmem:[%s5330 + $0xd8] sm:$0x1e]
        %v6139 = vld [vmem:[%s5330 + $0xe0] sm:$0x1e]
        %v6140 = vld [vmem:[%s5330 + $0xe8] sm:$0x1e]
        %v6141 = vld [vmem:[%s5330 + $0xf0] sm:$0x1e]
        %v6142 = vld [vmem:[%s5330 + $0xf8] sm:$0x1e]
        %v6175 = vrot.slane %v6112, 4
        %v6176 = vrot.slane %v6114, 4
        %v6177 = vrot.slane %v6116, 4
        %v6178 = vrot.slane %v6118, 4
        %v6179 = vrot.slane %v6120, 4
        %v6180 = vrot.slane %v6122, 4
        %v6181 = vrot.slane %v6124, 4
        %v6182 = vrot.slane %v6126, 4
        %v6183 = vrot.slane %v6128, 4
        %v6184 = vrot.slane %v6130, 4
        %v6185 = vrot.slane %v6132, 4
        %v6186 = vrot.slane %v6134, 4
        %v6187 = vrot.slane %v6136, 4
        %v6188 = vrot.slane %v6138, 4
        %v6189 = vrot.slane %v6140, 4
        %v6190 = vrot.slane %v6142, 4
        %v6191 = vsel %vm347, %v6111, %v6175
        %v6192 = vsel %vm347, %v6113, %v6176
        %v6193 = vsel %vm347, %v6115, %v6177
        %v6194 = vsel %vm347, %v6117, %v6178
        %v6195 = vsel %vm347, %v6175, %v6111
        %v6196 = vrot.slane %v6195, 4
        %v6197 = vsel %vm347, %v6176, %v6113
        %v6198 = vrot.slane %v6197, 4
        %v6199 = vsel %vm347, %v6177, %v6115
        %v6200 = vrot.slane %v6199, 4
        %v6201 = vsel %vm347, %v6178, %v6117
        %v6202 = vrot.slane %v6201, 4
        %v6203 = vsel %vm347, %v6119, %v6179
        %v6204 = vsel %vm347, %v6121, %v6180
        %v6205 = vsel %vm347, %v6123, %v6181
        %v6206 = vsel %vm347, %v6125, %v6182
        %v6207 = vsel %vm347, %v6179, %v6119
        %v6208 = vrot.slane %v6207, 4
        %v6209 = vsel %vm347, %v6180, %v6121
        %v6210 = vrot.slane %v6209, 4
        %v6211 = vsel %vm347, %v6181, %v6123
        %v6212 = vrot.slane %v6211, 4
        %v6213 = vsel %vm347, %v6182, %v6125
        %v6214 = vrot.slane %v6213, 4
        %v6215 = vsel %vm347, %v6127, %v6183
        %v6216 = vsel %vm347, %v6129, %v6184
        %v6217 = vsel %vm347, %v6131, %v6185
        %v6218 = vsel %vm347, %v6133, %v6186
        %v6219 = vsel %vm347, %v6183, %v6127
        %v6220 = vrot.slane %v6219, 4
        %v6221 = vsel %vm347, %v6184, %v6129
        %v6222 = vrot.slane %v6221, 4
        %v6223 = vsel %vm347, %v6185, %v6131
        %v6224 = vrot.slane %v6223, 4
        %v6225 = vsel %vm347, %v6186, %v6133
        %v6226 = vrot.slane %v6225, 4
        %v6227 = vsel %vm347, %v6135, %v6187
        %v6228 = vsel %vm347, %v6137, %v6188
        %v6229 = vsel %vm347, %v6139, %v6189
        %v6230 = vsel %vm347, %v6141, %v6190
        %v6231 = vsel %vm347, %v6187, %v6135
        %v6232 = vrot.slane %v6231, 4
        %v6233 = vsel %vm347, %v6188, %v6137
        %v6234 = vrot.slane %v6233, 4
        %v6235 = vsel %vm347, %v6189, %v6139
        %v6236 = vrot.slane %v6235, 4
        %v6237 = vsel %vm347, %v6190, %v6141
        %v6238 = vrot.slane %v6237, 4
        %v6239 = vrot.slane %v6191, 5
        %v6240 = vrot.slane %v6239, 4
        %v6241 = vrot.slane %v6196, 5
        %v6242 = vsel %vm750, %v6240, %v6241
        %v6243 = vrot.slane %v6192, 5
        %v6244 = vrot.slane %v6243, 4
        %v6245 = vrot.slane %v6198, 5
        %v6246 = vsel %vm750, %v6244, %v6245
        %v6247 = vrot.slane %v6193, 5
        %v6248 = vrot.slane %v6247, 4
        %v6249 = vrot.slane %v6200, 5
        %v6250 = vsel %vm750, %v6248, %v6249
        %v6251 = vrot.slane %v6194, 5
        %v6252 = vrot.slane %v6251, 4
        %v6253 = vrot.slane %v6202, 5
        %v6254 = vsel %vm750, %v6252, %v6253
        %v6255 = vrot.slane %v6203, 5
        %v6256 = vrot.slane %v6255, 4
        %v6257 = vrot.slane %v6208, 5
        %v6258 = vsel %vm750, %v6256, %v6257
        %v6259 = vrot.slane %v6204, 5
        %v6260 = vrot.slane %v6259, 4
        %v6261 = vrot.slane %v6210, 5
        %v6262 = vsel %vm750, %v6260, %v6261
        %v6263 = vrot.slane %v6205, 5
        %v6264 = vrot.slane %v6263, 4
        %v6265 = vrot.slane %v6212, 5
        %v6266 = vsel %vm750, %v6264, %v6265
        %v6267 = vrot.slane %v6206, 5
        %v6268 = vrot.slane %v6267, 4
        %v6269 = vrot.slane %v6214, 5
        %v6270 = vsel %vm750, %v6268, %v6269
        %v6271 = vrot.slane %v6215, 5
        %v6272 = vrot.slane %v6271, 4
        %v6273 = vrot.slane %v6220, 5
        %v6274 = vsel %vm750, %v6272, %v6273
        %v6275 = vrot.slane %v6216, 5
        %v6276 = vrot.slane %v6275, 4
        %v6277 = vrot.slane %v6222, 5
        %v6278 = vsel %vm750, %v6276, %v6277
        %v6279 = vrot.slane %v6217, 5
        %v6280 = vrot.slane %v6279, 4
        %v6281 = vrot.slane %v6224, 5
        %v6282 = vsel %vm750, %v6280, %v6281
        %v6283 = vrot.slane %v6218, 5
        %v6284 = vrot.slane %v6283, 4
        %v6285 = vrot.slane %v6226, 5
        %v6286 = vsel %vm750, %v6284, %v6285
        %v6287 = vrot.slane %v6227, 5
        %v6288 = vrot.slane %v6287, 4
        %v6289 = vrot.slane %v6232, 5
        %v6290 = vsel %vm750, %v6288, %v6289
        %v6291 = vrot.slane %v6228, 5
        %v6292 = vrot.slane %v6291, 4
        %v6293 = vrot.slane %v6234, 5
        %v6294 = vsel %vm750, %v6292, %v6293
        %v6295 = vrot.slane %v6229, 5
        %v6296 = vrot.slane %v6295, 4
        %v6297 = vrot.slane %v6236, 5
        %v6298 = vsel %vm750, %v6296, %v6297
        %v6299 = vrot.slane %v6230, 5
        %v6300 = vrot.slane %v6299, 4
        %v6301 = vrot.slane %v6238, 5
        %v6302 = vsel %vm750, %v6300, %v6301
        %s6303 = scalar_lea.vmem %s215, 14336 [#allocation2]
        %v6304 = vld [vmem:[%s6303] sm:$0xff]
        %v6305 = vld [vmem:[%s6303 + $0x8] sm:$0xff]
        %v6306 = vld [vmem:[%s6303 + $0x10] sm:$0xff]
        %v6307 = vld [vmem:[%s6303 + $0x18] sm:$0xff]
        %v6308 = vld [vmem:[%s6303 + $0x20] sm:$0xff]
        %v6309 = vld [vmem:[%s6303 + $0x28] sm:$0xff]
        %v6310 = vld [vmem:[%s6303 + $0x30] sm:$0xff]
        %v6311 = vld [vmem:[%s6303 + $0x38] sm:$0xff]
        %v6312 = vld [vmem:[%s6303 + $0x40] sm:$0xff]
        %v6313 = vld [vmem:[%s6303 + $0x48] sm:$0xff]
        %v6314 = vld [vmem:[%s6303 + $0x50] sm:$0xff]
        %v6315 = vld [vmem:[%s6303 + $0x58] sm:$0xff]
        %v6316 = vld [vmem:[%s6303 + $0x60] sm:$0xff]
        %v6317 = vld [vmem:[%s6303 + $0x68] sm:$0xff]
        %v6318 = vld [vmem:[%s6303 + $0x70] sm:$0xff]
        %v6319 = vld [vmem:[%s6303 + $0x78] sm:$0xff]
        %v6320 = vld [vmem:[%s6303 + $0x80] sm:$0xff]
        %v6321 = vld [vmem:[%s6303 + $0x88] sm:$0xff]
        %v6322 = vld [vmem:[%s6303 + $0x90] sm:$0xff]
        %v6323 = vld [vmem:[%s6303 + $0x98] sm:$0xff]
        %v6324 = vld [vmem:[%s6303 + $0xa0] sm:$0xff]
        %v6325 = vld [vmem:[%s6303 + $0xa8] sm:$0xff]
        %v6326 = vld [vmem:[%s6303 + $0xb0] sm:$0xff]
        %v6327 = vld [vmem:[%s6303 + $0xb8] sm:$0xff]
        %v6328 = vld [vmem:[%s6303 + $0xc0] sm:$0xff]
        %v6329 = vld [vmem:[%s6303 + $0xc8] sm:$0xff]
        %v6330 = vld [vmem:[%s6303 + $0xd0] sm:$0xff]
        %v6331 = vld [vmem:[%s6303 + $0xd8] sm:$0xff]
        %v6332 = vld [vmem:[%s6303 + $0xe0] sm:$0xff]
        %v6333 = vld [vmem:[%s6303 + $0xe8] sm:$0xff]
        %v6334 = vld [vmem:[%s6303 + $0xf0] sm:$0xff]
        %v6335 = vld [vmem:[%s6303 + $0xf8] sm:$0xff]
        %v6336 = vld [vmem:[%s6303 + $0x100] sm:$0xff]
        %v6337 = vld [vmem:[%s6303 + $0x108] sm:$0xff]
        %v6338 = vld [vmem:[%s6303 + $0x110] sm:$0xff]
        %v6339 = vld [vmem:[%s6303 + $0x118] sm:$0xff]
        %v6340 = vld [vmem:[%s6303 + $0x120] sm:$0xff]
        %v6341 = vld [vmem:[%s6303 + $0x128] sm:$0xff]
        %v6342 = vld [vmem:[%s6303 + $0x130] sm:$0xff]
        %v6343 = vld [vmem:[%s6303 + $0x138] sm:$0xff]
        %v6344 = vld [vmem:[%s6303 + $0x140] sm:$0xff]
        %v6345 = vld [vmem:[%s6303 + $0x148] sm:$0xff]
        %v6346 = vld [vmem:[%s6303 + $0x150] sm:$0xff]
        %v6347 = vld [vmem:[%s6303 + $0x158] sm:$0xff]
        %v6348 = vld [vmem:[%s6303 + $0x160] sm:$0xff]
        %v6349 = vld [vmem:[%s6303 + $0x168] sm:$0xff]
        %v6350 = vld [vmem:[%s6303 + $0x170] sm:$0xff]
        %v6351 = vld [vmem:[%s6303 + $0x178] sm:$0xff]
        %v6352 = vld [vmem:[%s6303 + $0x180] sm:$0xff]
        %v6353 = vld [vmem:[%s6303 + $0x188] sm:$0xff]
        %v6354 = vld [vmem:[%s6303 + $0x190] sm:$0xff]
        %v6355 = vld [vmem:[%s6303 + $0x198] sm:$0xff]
        %v6356 = vld [vmem:[%s6303 + $0x1a0] sm:$0xff]
        %v6357 = vld [vmem:[%s6303 + $0x1a8] sm:$0xff]
        %v6358 = vld [vmem:[%s6303 + $0x1b0] sm:$0xff]
        %v6359 = vld [vmem:[%s6303 + $0x1b8] sm:$0xff]
        %v6360 = vld [vmem:[%s6303 + $0x1c0] sm:$0xff]
        %v6361 = vld [vmem:[%s6303 + $0x1c8] sm:$0xff]
        %v6362 = vld [vmem:[%s6303 + $0x1d0] sm:$0xff]
        %v6363 = vld [vmem:[%s6303 + $0x1d8] sm:$0xff]
        %v6364 = vld [vmem:[%s6303 + $0x1e0] sm:$0xff]
        %v6365 = vld [vmem:[%s6303 + $0x1e8] sm:$0xff]
        %v6366 = vld [vmem:[%s6303 + $0x1f0] sm:$0xff]
        %v6367 = vld [vmem:[%s6303 + $0x1f8] sm:$0xff]
        %v6368 = vld [vmem:[%s6303 + $0x200] sm:$0xff]
        %v6369 = vld [vmem:[%s6303 + $0x208] sm:$0xff]
        %v6370 = vld [vmem:[%s6303 + $0x210] sm:$0xff]
        %v6371 = vld [vmem:[%s6303 + $0x218] sm:$0xff]
        %v6372 = vld [vmem:[%s6303 + $0x220] sm:$0xff]
        %v6373 = vld [vmem:[%s6303 + $0x228] sm:$0xff]
        %v6374 = vld [vmem:[%s6303 + $0x230] sm:$0xff]
        %v6375 = vld [vmem:[%s6303 + $0x238] sm:$0xff]
        %v6376 = vld [vmem:[%s6303 + $0x240] sm:$0xff]
        %v6377 = vld [vmem:[%s6303 + $0x248] sm:$0xff]
        %v6378 = vld [vmem:[%s6303 + $0x250] sm:$0xff]
        %v6379 = vld [vmem:[%s6303 + $0x258] sm:$0xff]
        %v6380 = vld [vmem:[%s6303 + $0x260] sm:$0xff]
        %v6381 = vld [vmem:[%s6303 + $0x268] sm:$0xff]
        %v6382 = vld [vmem:[%s6303 + $0x270] sm:$0xff]
        %v6383 = vld [vmem:[%s6303 + $0x278] sm:$0xff]
        %v6384 = vld [vmem:[%s6303 + $0x280] sm:$0xff]
        %v6385 = vld [vmem:[%s6303 + $0x288] sm:$0xff]
        %v6386 = vld [vmem:[%s6303 + $0x290] sm:$0xff]
        %v6387 = vld [vmem:[%s6303 + $0x298] sm:$0xff]
        %v6388 = vld [vmem:[%s6303 + $0x2a0] sm:$0xff]
        %v6389 = vld [vmem:[%s6303 + $0x2a8] sm:$0xff]
        %v6390 = vld [vmem:[%s6303 + $0x2b0] sm:$0xff]
        %v6391 = vld [vmem:[%s6303 + $0x2b8] sm:$0xff]
        %v6392 = vld [vmem:[%s6303 + $0x2c0] sm:$0xff]
        %v6393 = vld [vmem:[%s6303 + $0x2c8] sm:$0xff]
        %v6394 = vld [vmem:[%s6303 + $0x2d0] sm:$0xff]
        %v6395 = vld [vmem:[%s6303 + $0x2d8] sm:$0xff]
        %v6396 = vld [vmem:[%s6303 + $0x2e0] sm:$0xff]
        %v6397 = vld [vmem:[%s6303 + $0x2e8] sm:$0xff]
        %v6398 = vld [vmem:[%s6303 + $0x2f0] sm:$0xff]
        %v6399 = vld [vmem:[%s6303 + $0x2f8] sm:$0xff]
        %v6400 = vld [vmem:[%s6303 + $0x300] sm:$0xff]
        %v6401 = vld [vmem:[%s6303 + $0x308] sm:$0xff]
        %v6402 = vld [vmem:[%s6303 + $0x310] sm:$0xff]
        %v6403 = vld [vmem:[%s6303 + $0x318] sm:$0xff]
        %v6404 = vld [vmem:[%s6303 + $0x320] sm:$0xff]
        %v6405 = vld [vmem:[%s6303 + $0x328] sm:$0xff]
        %v6406 = vld [vmem:[%s6303 + $0x330] sm:$0xff]
        %v6407 = vld [vmem:[%s6303 + $0x338] sm:$0xff]
        %v6408 = vld [vmem:[%s6303 + $0x340] sm:$0xff]
        %v6409 = vld [vmem:[%s6303 + $0x348] sm:$0xff]
        %v6410 = vld [vmem:[%s6303 + $0x350] sm:$0xff]
        %v6411 = vld [vmem:[%s6303 + $0x358] sm:$0xff]
        %v6412 = vld [vmem:[%s6303 + $0x360] sm:$0xff]
        %v6413 = vld [vmem:[%s6303 + $0x368] sm:$0xff]
        %v6414 = vld [vmem:[%s6303 + $0x370] sm:$0xff]
        %v6415 = vld [vmem:[%s6303 + $0x378] sm:$0xff]
        %v6416 = vld [vmem:[%s6303 + $0x380] sm:$0xff]
        %v6417 = vld [vmem:[%s6303 + $0x388] sm:$0xff]
        %v6418 = vld [vmem:[%s6303 + $0x390] sm:$0xff]
        %v6419 = vld [vmem:[%s6303 + $0x398] sm:$0xff]
        %v6420 = vld [vmem:[%s6303 + $0x3a0] sm:$0xff]
        %v6421 = vld [vmem:[%s6303 + $0x3a8] sm:$0xff]
        %v6422 = vld [vmem:[%s6303 + $0x3b0] sm:$0xff]
        %v6423 = vld [vmem:[%s6303 + $0x3b8] sm:$0xff]
        %v6424 = vld [vmem:[%s6303 + $0x3c0] sm:$0xff]
        %v6425 = vld [vmem:[%s6303 + $0x3c8] sm:$0xff]
        %v6426 = vld [vmem:[%s6303 + $0x3d0] sm:$0xff]
        %v6427 = vld [vmem:[%s6303 + $0x3d8] sm:$0xff]
        %v6428 = vld [vmem:[%s6303 + $0x3e0] sm:$0xff]
        %v6429 = vld [vmem:[%s6303 + $0x3e8] sm:$0xff]
        %v6430 = vld [vmem:[%s6303 + $0x3f0] sm:$0xff]
        %v6431 = vld [vmem:[%s6303 + $0x3f8] sm:$0xff]
        %v6432 = vld [vmem:[%s6303 + $0x400] sm:$0xff]
        %v6433 = vld [vmem:[%s6303 + $0x408] sm:$0xff]
        %v6434 = vld [vmem:[%s6303 + $0x410] sm:$0xff]
        %v6435 = vld [vmem:[%s6303 + $0x418] sm:$0xff]
        %v6436 = vld [vmem:[%s6303 + $0x420] sm:$0xff]
        %v6437 = vld [vmem:[%s6303 + $0x428] sm:$0xff]
        %v6438 = vld [vmem:[%s6303 + $0x430] sm:$0xff]
        %v6439 = vld [vmem:[%s6303 + $0x438] sm:$0xff]
        %v6440 = vld [vmem:[%s6303 + $0x440] sm:$0xff]
        %v6441 = vld [vmem:[%s6303 + $0x448] sm:$0xff]
        %v6442 = vld [vmem:[%s6303 + $0x450] sm:$0xff]
        %v6443 = vld [vmem:[%s6303 + $0x458] sm:$0xff]
        %v6444 = vld [vmem:[%s6303 + $0x460] sm:$0xff]
        %v6445 = vld [vmem:[%s6303 + $0x468] sm:$0xff]
        %v6446 = vld [vmem:[%s6303 + $0x470] sm:$0xff]
        %v6447 = vld [vmem:[%s6303 + $0x478] sm:$0xff]
        %v6448 = vld [vmem:[%s6303 + $0x480] sm:$0xff]
        %v6449 = vld [vmem:[%s6303 + $0x488] sm:$0xff]
        %v6450 = vld [vmem:[%s6303 + $0x490] sm:$0xff]
        %v6451 = vld [vmem:[%s6303 + $0x498] sm:$0xff]
        %v6452 = vld [vmem:[%s6303 + $0x4a0] sm:$0xff]
        %v6453 = vld [vmem:[%s6303 + $0x4a8] sm:$0xff]
        %v6454 = vld [vmem:[%s6303 + $0x4b0] sm:$0xff]
        %v6455 = vld [vmem:[%s6303 + $0x4b8] sm:$0xff]
        %v6456 = vld [vmem:[%s6303 + $0x4c0] sm:$0xff]
        %v6457 = vld [vmem:[%s6303 + $0x4c8] sm:$0xff]
        %v6458 = vld [vmem:[%s6303 + $0x4d0] sm:$0xff]
        %v6459 = vld [vmem:[%s6303 + $0x4d8] sm:$0xff]
        %v6460 = vld [vmem:[%s6303 + $0x4e0] sm:$0xff]
        %v6461 = vld [vmem:[%s6303 + $0x4e8] sm:$0xff]
        %v6462 = vld [vmem:[%s6303 + $0x4f0] sm:$0xff]
        %v6463 = vld [vmem:[%s6303 + $0x4f8] sm:$0xff]
        %v6464 = vld [vmem:[%s6303 + $0x500] sm:$0xff]
        %v6465 = vld [vmem:[%s6303 + $0x508] sm:$0xff]
        %v6466 = vld [vmem:[%s6303 + $0x510] sm:$0xff]
        %v6467 = vld [vmem:[%s6303 + $0x518] sm:$0xff]
        %v6468 = vld [vmem:[%s6303 + $0x520] sm:$0xff]
        %v6469 = vld [vmem:[%s6303 + $0x528] sm:$0xff]
        %v6470 = vld [vmem:[%s6303 + $0x530] sm:$0xff]
        %v6471 = vld [vmem:[%s6303 + $0x538] sm:$0xff]
        %v6472 = vld [vmem:[%s6303 + $0x540] sm:$0xff]
        %v6473 = vld [vmem:[%s6303 + $0x548] sm:$0xff]
        %v6474 = vld [vmem:[%s6303 + $0x550] sm:$0xff]
        %v6475 = vld [vmem:[%s6303 + $0x558] sm:$0xff]
        %v6476 = vld [vmem:[%s6303 + $0x560] sm:$0xff]
        %v6477 = vld [vmem:[%s6303 + $0x568] sm:$0xff]
        %v6478 = vld [vmem:[%s6303 + $0x570] sm:$0xff]
        %v6479 = vld [vmem:[%s6303 + $0x578] sm:$0xff]
        %v6480 = vld [vmem:[%s6303 + $0x580] sm:$0xff]
        %v6481 = vld [vmem:[%s6303 + $0x588] sm:$0xff]
        %v6482 = vld [vmem:[%s6303 + $0x590] sm:$0xff]
        %v6483 = vld [vmem:[%s6303 + $0x598] sm:$0xff]
        %v6484 = vld [vmem:[%s6303 + $0x5a0] sm:$0xff]
        %v6485 = vld [vmem:[%s6303 + $0x5a8] sm:$0xff]
        %v6486 = vld [vmem:[%s6303 + $0x5b0] sm:$0xff]
        %v6487 = vld [vmem:[%s6303 + $0x5b8] sm:$0xff]
        %v6488 = vld [vmem:[%s6303 + $0x5c0] sm:$0xff]
        %v6489 = vld [vmem:[%s6303 + $0x5c8] sm:$0xff]
        %v6490 = vld [vmem:[%s6303 + $0x5d0] sm:$0xff]
        %v6491 = vld [vmem:[%s6303 + $0x5d8] sm:$0xff]
        %v6492 = vld [vmem:[%s6303 + $0x5e0] sm:$0xff]
        %v6493 = vld [vmem:[%s6303 + $0x5e8] sm:$0xff]
        %v6494 = vld [vmem:[%s6303 + $0x5f0] sm:$0xff]
        %v6495 = vld [vmem:[%s6303 + $0x5f8] sm:$0xff]
        %v6496 = vld [vmem:[%s6303 + $0x600] sm:$0xff]
        %v6497 = vld [vmem:[%s6303 + $0x608] sm:$0xff]
        %v6498 = vld [vmem:[%s6303 + $0x610] sm:$0xff]
        %v6499 = vld [vmem:[%s6303 + $0x618] sm:$0xff]
        %v6500 = vld [vmem:[%s6303 + $0x620] sm:$0xff]
        %v6501 = vld [vmem:[%s6303 + $0x628] sm:$0xff]
        %v6502 = vld [vmem:[%s6303 + $0x630] sm:$0xff]
        %v6503 = vld [vmem:[%s6303 + $0x638] sm:$0xff]
        %v6504 = vld [vmem:[%s6303 + $0x640] sm:$0xff]
        %v6505 = vld [vmem:[%s6303 + $0x648] sm:$0xff]
        %v6506 = vld [vmem:[%s6303 + $0x650] sm:$0xff]
        %v6507 = vld [vmem:[%s6303 + $0x658] sm:$0xff]
        %v6508 = vld [vmem:[%s6303 + $0x660] sm:$0xff]
        %v6509 = vld [vmem:[%s6303 + $0x668] sm:$0xff]
        %v6510 = vld [vmem:[%s6303 + $0x670] sm:$0xff]
        %v6511 = vld [vmem:[%s6303 + $0x678] sm:$0xff]
        %v6512 = vld [vmem:[%s6303 + $0x680] sm:$0xff]
        %v6513 = vld [vmem:[%s6303 + $0x688] sm:$0xff]
        %v6514 = vld [vmem:[%s6303 + $0x690] sm:$0xff]
        %v6515 = vld [vmem:[%s6303 + $0x698] sm:$0xff]
        %v6516 = vld [vmem:[%s6303 + $0x6a0] sm:$0xff]
        %v6517 = vld [vmem:[%s6303 + $0x6a8] sm:$0xff]
        %v6518 = vld [vmem:[%s6303 + $0x6b0] sm:$0xff]
        %v6519 = vld [vmem:[%s6303 + $0x6b8] sm:$0xff]
        %v6520 = vld [vmem:[%s6303 + $0x6c0] sm:$0xff]
        %v6521 = vld [vmem:[%s6303 + $0x6c8] sm:$0xff]
        %v6522 = vld [vmem:[%s6303 + $0x6d0] sm:$0xff]
        %v6523 = vld [vmem:[%s6303 + $0x6d8] sm:$0xff]
        %v6524 = vld [vmem:[%s6303 + $0x6e0] sm:$0xff]
        %v6525 = vld [vmem:[%s6303 + $0x6e8] sm:$0xff]
        %v6526 = vld [vmem:[%s6303 + $0x6f0] sm:$0xff]
        %v6527 = vld [vmem:[%s6303 + $0x6f8] sm:$0xff]
        %v6528 = vld [vmem:[%s6303 + $0x700] sm:$0xff]
        %v6529 = vld [vmem:[%s6303 + $0x708] sm:$0xff]
        %v6530 = vld [vmem:[%s6303 + $0x710] sm:$0xff]
        %v6531 = vld [vmem:[%s6303 + $0x718] sm:$0xff]
        %v6532 = vld [vmem:[%s6303 + $0x720] sm:$0xff]
        %v6533 = vld [vmem:[%s6303 + $0x728] sm:$0xff]
        %v6534 = vld [vmem:[%s6303 + $0x730] sm:$0xff]
        %v6535 = vld [vmem:[%s6303 + $0x738] sm:$0xff]
        %v6536 = vld [vmem:[%s6303 + $0x740] sm:$0xff]
        %v6537 = vld [vmem:[%s6303 + $0x748] sm:$0xff]
        %v6538 = vld [vmem:[%s6303 + $0x750] sm:$0xff]
        %v6539 = vld [vmem:[%s6303 + $0x758] sm:$0xff]
        %v6540 = vld [vmem:[%s6303 + $0x760] sm:$0xff]
        %v6541 = vld [vmem:[%s6303 + $0x768] sm:$0xff]
        %v6542 = vld [vmem:[%s6303 + $0x770] sm:$0xff]
        %v6543 = vld [vmem:[%s6303 + $0x778] sm:$0xff]
        %v6544 = vld [vmem:[%s6303 + $0x780] sm:$0xff]
        %v6545 = vld [vmem:[%s6303 + $0x788] sm:$0xff]
        %v6546 = vld [vmem:[%s6303 + $0x790] sm:$0xff]
        %v6547 = vld [vmem:[%s6303 + $0x798] sm:$0xff]
        %v6548 = vld [vmem:[%s6303 + $0x7a0] sm:$0xff]
        %v6549 = vld [vmem:[%s6303 + $0x7a8] sm:$0xff]
        %v6550 = vld [vmem:[%s6303 + $0x7b0] sm:$0xff]
        %v6551 = vld [vmem:[%s6303 + $0x7b8] sm:$0xff]
        %v6552 = vld [vmem:[%s6303 + $0x7c0] sm:$0xff]
        %v6553 = vld [vmem:[%s6303 + $0x7c8] sm:$0xff]
        %v6554 = vld [vmem:[%s6303 + $0x7d0] sm:$0xff]
        %v6555 = vld [vmem:[%s6303 + $0x7d8] sm:$0xff]
        %v6556 = vld [vmem:[%s6303 + $0x7e0] sm:$0xff]
        %v6557 = vld [vmem:[%s6303 + $0x7e8] sm:$0xff]
        %v6558 = vld [vmem:[%s6303 + $0x7f0] sm:$0xff]
        %v6559 = vld [vmem:[%s6303 + $0x7f8] sm:$0xff]
        %6560 = vst [vmem:[#allocation1] ss:$2 sm:$0xff] %v6242
        %s6561 = scalar_lea.vmem [#allocation1], 1
        %6562 = vst [vmem:[%s6561] ss:$2 sm:$0xff] %v6258
        %s6563 = scalar_lea.vmem [#allocation1], 16
        %6564 = vst [vmem:[%s6563] ss:$2 sm:$0xff] %v6246
        %s6565 = scalar_lea.vmem [#allocation1], 17
        %6566 = vst [vmem:[%s6565] ss:$2 sm:$0xff] %v6262
        %s6567 = scalar_lea.vmem [#allocation1], 32
        %6568 = vst [vmem:[%s6567] ss:$2 sm:$0xff] %v6250
        %s6569 = scalar_lea.vmem [#allocation1], 33
        %6570 = vst [vmem:[%s6569] ss:$2 sm:$0xff] %v6266
        %s6571 = scalar_lea.vmem [#allocation1], 48
        %6572 = vst [vmem:[%s6571] ss:$2 sm:$0xff] %v6254
        %s6573 = scalar_lea.vmem [#allocation1], 49
        %6574 = vst [vmem:[%s6573] ss:$2 sm:$0xff] %v6270
        %v6575 = vld.sshfl [vmem:[#allocation1] sm:$0xff pattern:$0x75316420]
        %v6576 = vld.sshfl [vmem:[#allocation1 + $0x8] sm:$0xff pattern:$0x75316420]
        %v6577 = vld.sshfl [vmem:[#allocation1 + $0x10] sm:$0xff pattern:$0x75316420]
        %v6578 = vld.sshfl [vmem:[#allocation1 + $0x18] sm:$0xff pattern:$0x75316420]
        %v6579 = vld.sshfl [vmem:[#allocation1 + $0x20] sm:$0xff pattern:$0x75316420]
        %v6580 = vld.sshfl [vmem:[#allocation1 + $0x28] sm:$0xff pattern:$0x75316420]
        %v6581 = vld.sshfl [vmem:[#allocation1 + $0x30] sm:$0xff pattern:$0x75316420]
        %v6582 = vld.sshfl [vmem:[#allocation1 + $0x38] sm:$0xff pattern:$0x75316420]
        %6583 = vst [vmem:[#allocation1] ss:$2 sm:$0xff] %v6274
        %6584 = vst [vmem:[%s6561] ss:$2 sm:$0xff] %v6290
        %6585 = vst [vmem:[%s6563] ss:$2 sm:$0xff] %v6278
        %6586 = vst [vmem:[%s6565] ss:$2 sm:$0xff] %v6294
        %6587 = vst [vmem:[%s6567] ss:$2 sm:$0xff] %v6282
        %6588 = vst [vmem:[%s6569] ss:$2 sm:$0xff] %v6298
        %6589 = vst [vmem:[%s6571] ss:$2 sm:$0xff] %v6286
        %6590 = vst [vmem:[%s6573] ss:$2 sm:$0xff] %v6302
        %v6591 = vld.sshfl [vmem:[#allocation1] sm:$0xff pattern:$0x75316420]
        %v6592 = vld.sshfl [vmem:[#allocation1 + $0x8] sm:$0xff pattern:$0x75316420]
        %v6593 = vld.sshfl [vmem:[#allocation1 + $0x10] sm:$0xff pattern:$0x75316420]
        %v6594 = vld.sshfl [vmem:[#allocation1 + $0x18] sm:$0xff pattern:$0x75316420]
        %v6595 = vld.sshfl [vmem:[#allocation1 + $0x20] sm:$0xff pattern:$0x75316420]
        %v6596 = vld.sshfl [vmem:[#allocation1 + $0x28] sm:$0xff pattern:$0x75316420]
        %v6597 = vld.sshfl [vmem:[#allocation1 + $0x30] sm:$0xff pattern:$0x75316420]
        %v6598 = vld.sshfl [vmem:[#allocation1 + $0x38] sm:$0xff pattern:$0x75316420]
        %6615 = vmatpush.msra.mxu0 %v6334
        %6616 = vmatpush.msra.mxu0 %v6332
        %6617 = vmatpush.msra.mxu0 %v6330
        %6618 = vmatpush.msra.mxu0 %v6328
        %6619 = vmatpush.msra.mxu0 %v6326
        %6620 = vmatpush.msra.mxu0 %v6324
        %6621 = vmatpush.msra.mxu0 %v6322
        %6622 = vmatpush.msra.mxu0 %v6320
        %6623 = vmatpush.msra.mxu0 %v6318
        %6624 = vmatpush.msra.mxu0 %v6316
        %6625 = vmatpush.msra.mxu0 %v6314
        %6626 = vmatpush.msra.mxu0 %v6312
        %6627 = vmatpush.msra.mxu0 %v6310
        %6628 = vmatpush.msra.mxu0 %v6308
        %6629 = vmatpush.msra.mxu0 %v6306
        %6630 = vmatpush.msra.mxu0 %v6304
        %6631 = vmatmul.f32.gmra.mxu0 %v6575
        %v6632 = vpop.f32.mrf.mxu0
        %v6633 = vadd.f32 0.0, %v6632
        %6634 = vmatmul.f32.gmra.mxu0 %v6591
        %v6635 = vpop.f32.mrf.mxu0
        %v6636 = vadd.f32 0.0, %v6635
        %6637 = vdwg.mxu0
        %6638 = vmatpush.msra.mxu0 %v6366
        %6639 = vmatpush.msra.mxu0 %v6364
        %6640 = vmatpush.msra.mxu0 %v6362
        %6641 = vmatpush.msra.mxu0 %v6360
        %6642 = vmatpush.msra.mxu0 %v6358
        %6643 = vmatpush.msra.mxu0 %v6356
        %6644 = vmatpush.msra.mxu0 %v6354
        %6645 = vmatpush.msra.mxu0 %v6352
        %6646 = vmatpush.msra.mxu0 %v6350
        %6647 = vmatpush.msra.mxu0 %v6348
        %6648 = vmatpush.msra.mxu0 %v6346
        %6649 = vmatpush.msra.mxu0 %v6344
        %6650 = vmatpush.msra.mxu0 %v6342
        %6651 = vmatpush.msra.mxu0 %v6340
        %6652 = vmatpush.msra.mxu0 %v6338
        %6653 = vmatpush.msra.mxu0 %v6336
        %6654 = vmatmul.f32.gmra.mxu0 %v6576
        %v6655 = vpop.f32.mrf.mxu0
        %v6656 = vadd.f32 %v6633, %v6655
        %6657 = vmatmul.f32.gmra.mxu0 %v6592
        %v6658 = vpop.f32.mrf.mxu0
        %v6659 = vadd.f32 %v6636, %v6658
        %6660 = vdwg.mxu0
        %6661 = vmatpush.msra.mxu0 %v6398
        %6662 = vmatpush.msra.mxu0 %v6396
        %6663 = vmatpush.msra.mxu0 %v6394
        %6664 = vmatpush.msra.mxu0 %v6392
        %6665 = vmatpush.msra.mxu0 %v6390
        %6666 = vmatpush.msra.mxu0 %v6388
        %6667 = vmatpush.msra.mxu0 %v6386
        %6668 = vmatpush.msra.mxu0 %v6384
        %6669 = vmatpush.msra.mxu0 %v6382
        %6670 = vmatpush.msra.mxu0 %v6380
        %6671 = vmatpush.msra.mxu0 %v6378
        %6672 = vmatpush.msra.mxu0 %v6376
        %6673 = vmatpush.msra.mxu0 %v6374
        %6674 = vmatpush.msra.mxu0 %v6372
        %6675 = vmatpush.msra.mxu0 %v6370
        %6676 = vmatpush.msra.mxu0 %v6368
        %6677 = vmatmul.f32.gmra.mxu0 %v6577
        %v6678 = vpop.f32.mrf.mxu0
        %v6679 = vadd.f32 %v6656, %v6678
        %6680 = vmatmul.f32.gmra.mxu0 %v6593
        %v6681 = vpop.f32.mrf.mxu0
        %v6682 = vadd.f32 %v6659, %v6681
        %6683 = vdwg.mxu0
        %6684 = vmatpush.msra.mxu0 %v6430
        %6685 = vmatpush.msra.mxu0 %v6428
        %6686 = vmatpush.msra.mxu0 %v6426
        %6687 = vmatpush.msra.mxu0 %v6424
        %6688 = vmatpush.msra.mxu0 %v6422
        %6689 = vmatpush.msra.mxu0 %v6420
        %6690 = vmatpush.msra.mxu0 %v6418
        %6691 = vmatpush.msra.mxu0 %v6416
        %6692 = vmatpush.msra.mxu0 %v6414
        %6693 = vmatpush.msra.mxu0 %v6412
        %6694 = vmatpush.msra.mxu0 %v6410
        %6695 = vmatpush.msra.mxu0 %v6408
        %6696 = vmatpush.msra.mxu0 %v6406
        %6697 = vmatpush.msra.mxu0 %v6404
        %6698 = vmatpush.msra.mxu0 %v6402
        %6699 = vmatpush.msra.mxu0 %v6400
        %6700 = vmatmul.f32.gmra.mxu0 %v6578
        %v6701 = vpop.f32.mrf.mxu0
        %v6702 = vadd.f32 %v6679, %v6701
        %6703 = vmatmul.f32.gmra.mxu0 %v6594
        %v6704 = vpop.f32.mrf.mxu0
        %v6705 = vadd.f32 %v6682, %v6704
        %6706 = vdwg.mxu0
        %6707 = vmatpush.msra.mxu0 %v6462
        %6708 = vmatpush.msra.mxu0 %v6460
        %6709 = vmatpush.msra.mxu0 %v6458
        %6710 = vmatpush.msra.mxu0 %v6456
        %6711 = vmatpush.msra.mxu0 %v6454
        %6712 = vmatpush.msra.mxu0 %v6452
        %6713 = vmatpush.msra.mxu0 %v6450
        %6714 = vmatpush.msra.mxu0 %v6448
        %6715 = vmatpush.msra.mxu0 %v6446
        %6716 = vmatpush.msra.mxu0 %v6444
        %6717 = vmatpush.msra.mxu0 %v6442
        %6718 = vmatpush.msra.mxu0 %v6440
        %6719 = vmatpush.msra.mxu0 %v6438
        %6720 = vmatpush.msra.mxu0 %v6436
        %6721 = vmatpush.msra.mxu0 %v6434
        %6722 = vmatpush.msra.mxu0 %v6432
        %6723 = vmatmul.f32.gmra.mxu0 %v6579
        %v6724 = vpop.f32.mrf.mxu0
        %v6725 = vadd.f32 %v6702, %v6724
        %6726 = vmatmul.f32.gmra.mxu0 %v6595
        %v6727 = vpop.f32.mrf.mxu0
        %v6728 = vadd.f32 %v6705, %v6727
        %6729 = vdwg.mxu0
        %6730 = vmatpush.msra.mxu0 %v6494
        %6731 = vmatpush.msra.mxu0 %v6492
        %6732 = vmatpush.msra.mxu0 %v6490
        %6733 = vmatpush.msra.mxu0 %v6488
        %6734 = vmatpush.msra.mxu0 %v6486
        %6735 = vmatpush.msra.mxu0 %v6484
        %6736 = vmatpush.msra.mxu0 %v6482
        %6737 = vmatpush.msra.mxu0 %v6480
        %6738 = vmatpush.msra.mxu0 %v6478
        %6739 = vmatpush.msra.mxu0 %v6476
        %6740 = vmatpush.msra.mxu0 %v6474
        %6741 = vmatpush.msra.mxu0 %v6472
        %6742 = vmatpush.msra.mxu0 %v6470
        %6743 = vmatpush.msra.mxu0 %v6468
        %6744 = vmatpush.msra.mxu0 %v6466
        %6745 = vmatpush.msra.mxu0 %v6464
        %6746 = vmatmul.f32.gmra.mxu0 %v6580
        %v6747 = vpop.f32.mrf.mxu0
        %v6748 = vadd.f32 %v6725, %v6747
        %6749 = vmatmul.f32.gmra.mxu0 %v6596
        %v6750 = vpop.f32.mrf.mxu0
        %v6751 = vadd.f32 %v6728, %v6750
        %6752 = vdwg.mxu0
        %6753 = vmatpush.msra.mxu0 %v6526
        %6754 = vmatpush.msra.mxu0 %v6524
        %6755 = vmatpush.msra.mxu0 %v6522
        %6756 = vmatpush.msra.mxu0 %v6520
        %6757 = vmatpush.msra.mxu0 %v6518
        %6758 = vmatpush.msra.mxu0 %v6516
        %6759 = vmatpush.msra.mxu0 %v6514
        %6760 = vmatpush.msra.mxu0 %v6512
        %6761 = vmatpush.msra.mxu0 %v6510
        %6762 = vmatpush.msra.mxu0 %v6508
        %6763 = vmatpush.msra.mxu0 %v6506
        %6764 = vmatpush.msra.mxu0 %v6504
        %6765 = vmatpush.msra.mxu0 %v6502
        %6766 = vmatpush.msra.mxu0 %v6500
        %6767 = vmatpush.msra.mxu0 %v6498
        %6768 = vmatpush.msra.mxu0 %v6496
        %6769 = vmatmul.f32.gmra.mxu0 %v6581
        %v6770 = vpop.f32.mrf.mxu0
        %v6771 = vadd.f32 %v6748, %v6770
        %6772 = vmatmul.f32.gmra.mxu0 %v6597
        %v6773 = vpop.f32.mrf.mxu0
        %v6774 = vadd.f32 %v6751, %v6773
        %6775 = vdwg.mxu0
        %6776 = vmatpush.msra.mxu0 %v6558
        %6777 = vmatpush.msra.mxu0 %v6556
        %6778 = vmatpush.msra.mxu0 %v6554
        %6779 = vmatpush.msra.mxu0 %v6552
        %6780 = vmatpush.msra.mxu0 %v6550
        %6781 = vmatpush.msra.mxu0 %v6548
        %6782 = vmatpush.msra.mxu0 %v6546
        %6783 = vmatpush.msra.mxu0 %v6544
        %6784 = vmatpush.msra.mxu0 %v6542
        %6785 = vmatpush.msra.mxu0 %v6540
        %6786 = vmatpush.msra.mxu0 %v6538
        %6787 = vmatpush.msra.mxu0 %v6536
        %6788 = vmatpush.msra.mxu0 %v6534
        %6789 = vmatpush.msra.mxu0 %v6532
        %6790 = vmatpush.msra.mxu0 %v6530
        %6791 = vmatpush.msra.mxu0 %v6528
        %6792 = vmatmul.f32.gmra.mxu0 %v6582
        %v6793 = vpop.f32.mrf.mxu0
        %v6794 = vadd.f32 %v6771, %v6793
        %6795 = vmatmul.f32.gmra.mxu0 %v6598
        %v6796 = vpop.f32.mrf.mxu0
        %v6797 = vadd.f32 %v6774, %v6796
        %6798 = vdwg.mxu0
        %6799 = vmatpush.msra.mxu0 %v6335
        %6800 = vmatpush.msra.mxu0 %v6333
        %6801 = vmatpush.msra.mxu0 %v6331
        %6802 = vmatpush.msra.mxu0 %v6329
        %6803 = vmatpush.msra.mxu0 %v6327
        %6804 = vmatpush.msra.mxu0 %v6325
        %6805 = vmatpush.msra.mxu0 %v6323
        %6806 = vmatpush.msra.mxu0 %v6321
        %6807 = vmatpush.msra.mxu0 %v6319
        %6808 = vmatpush.msra.mxu0 %v6317
        %6809 = vmatpush.msra.mxu0 %v6315
        %6810 = vmatpush.msra.mxu0 %v6313
        %6811 = vmatpush.msra.mxu0 %v6311
        %6812 = vmatpush.msra.mxu0 %v6309
        %6813 = vmatpush.msra.mxu0 %v6307
        %6814 = vmatpush.msra.mxu0 %v6305
        %6815 = vmatmul.f32.gmra.mxu0 %v6575
        %v6816 = vpop.f32.mrf.mxu0
        %v6817 = vadd.f32 0.0, %v6816
        %6818 = vmatmul.f32.gmra.mxu0 %v6591
        %v6819 = vpop.f32.mrf.mxu0
        %v6820 = vadd.f32 0.0, %v6819
        %6821 = vdwg.mxu0
        %6822 = vmatpush.msra.mxu0 %v6367
        %6823 = vmatpush.msra.mxu0 %v6365
        %6824 = vmatpush.msra.mxu0 %v6363
        %6825 = vmatpush.msra.mxu0 %v6361
        %6826 = vmatpush.msra.mxu0 %v6359
        %6827 = vmatpush.msra.mxu0 %v6357
        %6828 = vmatpush.msra.mxu0 %v6355
        %6829 = vmatpush.msra.mxu0 %v6353
        %6830 = vmatpush.msra.mxu0 %v6351
        %6831 = vmatpush.msra.mxu0 %v6349
        %6832 = vmatpush.msra.mxu0 %v6347
        %6833 = vmatpush.msra.mxu0 %v6345
        %6834 = vmatpush.msra.mxu0 %v6343
        %6835 = vmatpush.msra.mxu0 %v6341
        %6836 = vmatpush.msra.mxu0 %v6339
        %6837 = vmatpush.msra.mxu0 %v6337
        %6838 = vmatmul.f32.gmra.mxu0 %v6576
        %v6839 = vpop.f32.mrf.mxu0
        %v6840 = vadd.f32 %v6817, %v6839
        %6841 = vmatmul.f32.gmra.mxu0 %v6592
        %v6842 = vpop.f32.mrf.mxu0
        %v6843 = vadd.f32 %v6820, %v6842
        %6844 = vdwg.mxu0
        %6845 = vmatpush.msra.mxu0 %v6399
        %6846 = vmatpush.msra.mxu0 %v6397
        %6847 = vmatpush.msra.mxu0 %v6395
        %6848 = vmatpush.msra.mxu0 %v6393
        %6849 = vmatpush.msra.mxu0 %v6391
        %6850 = vmatpush.msra.mxu0 %v6389
        %6851 = vmatpush.msra.mxu0 %v6387
        %6852 = vmatpush.msra.mxu0 %v6385
        %6853 = vmatpush.msra.mxu0 %v6383
        %6854 = vmatpush.msra.mxu0 %v6381
        %6855 = vmatpush.msra.mxu0 %v6379
        %6856 = vmatpush.msra.mxu0 %v6377
        %6857 = vmatpush.msra.mxu0 %v6375
        %6858 = vmatpush.msra.mxu0 %v6373
        %6859 = vmatpush.msra.mxu0 %v6371
        %6860 = vmatpush.msra.mxu0 %v6369
        %6861 = vmatmul.f32.gmra.mxu0 %v6577
        %v6862 = vpop.f32.mrf.mxu0
        %v6863 = vadd.f32 %v6840, %v6862
        %6864 = vmatmul.f32.gmra.mxu0 %v6593
        %v6865 = vpop.f32.mrf.mxu0
        %v6866 = vadd.f32 %v6843, %v6865
        %6867 = vdwg.mxu0
        %6868 = vmatpush.msra.mxu0 %v6431
        %6869 = vmatpush.msra.mxu0 %v6429
        %6870 = vmatpush.msra.mxu0 %v6427
        %6871 = vmatpush.msra.mxu0 %v6425
        %6872 = vmatpush.msra.mxu0 %v6423
        %6873 = vmatpush.msra.mxu0 %v6421
        %6874 = vmatpush.msra.mxu0 %v6419
        %6875 = vmatpush.msra.mxu0 %v6417
        %6876 = vmatpush.msra.mxu0 %v6415
        %6877 = vmatpush.msra.mxu0 %v6413
        %6878 = vmatpush.msra.mxu0 %v6411
        %6879 = vmatpush.msra.mxu0 %v6409
        %6880 = vmatpush.msra.mxu0 %v6407
        %6881 = vmatpush.msra.mxu0 %v6405
        %6882 = vmatpush.msra.mxu0 %v6403
        %6883 = vmatpush.msra.mxu0 %v6401
        %6884 = vmatmul.f32.gmra.mxu0 %v6578
        %v6885 = vpop.f32.mrf.mxu0
        %v6886 = vadd.f32 %v6863, %v6885
        %6887 = vmatmul.f32.gmra.mxu0 %v6594
        %v6888 = vpop.f32.mrf.mxu0
        %v6889 = vadd.f32 %v6866, %v6888
        %6890 = vdwg.mxu0
        %6891 = vmatpush.msra.mxu0 %v6463
        %6892 = vmatpush.msra.mxu0 %v6461
        %6893 = vmatpush.msra.mxu0 %v6459
        %6894 = vmatpush.msra.mxu0 %v6457
        %6895 = vmatpush.msra.mxu0 %v6455
        %6896 = vmatpush.msra.mxu0 %v6453
        %6897 = vmatpush.msra.mxu0 %v6451
        %6898 = vmatpush.msra.mxu0 %v6449
        %6899 = vmatpush.msra.mxu0 %v6447
        %6900 = vmatpush.msra.mxu0 %v6445
        %6901 = vmatpush.msra.mxu0 %v6443
        %6902 = vmatpush.msra.mxu0 %v6441
        %6903 = vmatpush.msra.mxu0 %v6439
        %6904 = vmatpush.msra.mxu0 %v6437
        %6905 = vmatpush.msra.mxu0 %v6435
        %6906 = vmatpush.msra.mxu0 %v6433
        %6907 = vmatmul.f32.gmra.mxu0 %v6579
        %v6908 = vpop.f32.mrf.mxu0
        %v6909 = vadd.f32 %v6886, %v6908
        %6910 = vmatmul.f32.gmra.mxu0 %v6595
        %v6911 = vpop.f32.mrf.mxu0
        %v6912 = vadd.f32 %v6889, %v6911
        %6913 = vdwg.mxu0
        %6914 = vmatpush.msra.mxu0 %v6495
        %6915 = vmatpush.msra.mxu0 %v6493
        %6916 = vmatpush.msra.mxu0 %v6491
        %6917 = vmatpush.msra.mxu0 %v6489
        %6918 = vmatpush.msra.mxu0 %v6487
        %6919 = vmatpush.msra.mxu0 %v6485
        %6920 = vmatpush.msra.mxu0 %v6483
        %6921 = vmatpush.msra.mxu0 %v6481
        %6922 = vmatpush.msra.mxu0 %v6479
        %6923 = vmatpush.msra.mxu0 %v6477
        %6924 = vmatpush.msra.mxu0 %v6475
        %6925 = vmatpush.msra.mxu0 %v6473
        %6926 = vmatpush.msra.mxu0 %v6471
        %6927 = vmatpush.msra.mxu0 %v6469
        %6928 = vmatpush.msra.mxu0 %v6467
        %6929 = vmatpush.msra.mxu0 %v6465
        %6930 = vmatmul.f32.gmra.mxu0 %v6580
        %v6931 = vpop.f32.mrf.mxu0
        %v6932 = vadd.f32 %v6909, %v6931
        %6933 = vmatmul.f32.gmra.mxu0 %v6596
        %v6934 = vpop.f32.mrf.mxu0
        %v6935 = vadd.f32 %v6912, %v6934
        %6936 = vdwg.mxu0
        %6937 = vmatpush.msra.mxu0 %v6527
        %6938 = vmatpush.msra.mxu0 %v6525
        %6939 = vmatpush.msra.mxu0 %v6523
        %6940 = vmatpush.msra.mxu0 %v6521
        %6941 = vmatpush.msra.mxu0 %v6519
        %6942 = vmatpush.msra.mxu0 %v6517
        %6943 = vmatpush.msra.mxu0 %v6515
        %6944 = vmatpush.msra.mxu0 %v6513
        %6945 = vmatpush.msra.mxu0 %v6511
        %6946 = vmatpush.msra.mxu0 %v6509
        %6947 = vmatpush.msra.mxu0 %v6507
        %6948 = vmatpush.msra.mxu0 %v6505
        %6949 = vmatpush.msra.mxu0 %v6503
        %6950 = vmatpush.msra.mxu0 %v6501
        %6951 = vmatpush.msra.mxu0 %v6499
        %6952 = vmatpush.msra.mxu0 %v6497
        %6953 = vmatmul.f32.gmra.mxu0 %v6581
        %v6954 = vpop.f32.mrf.mxu0
        %v6955 = vadd.f32 %v6932, %v6954
        %6956 = vmatmul.f32.gmra.mxu0 %v6597
        %v6957 = vpop.f32.mrf.mxu0
        %v6958 = vadd.f32 %v6935, %v6957
        %6959 = vdwg.mxu0
        %6960 = vmatpush.msra.mxu0 %v6559
        %6961 = vmatpush.msra.mxu0 %v6557
        %6962 = vmatpush.msra.mxu0 %v6555
        %6963 = vmatpush.msra.mxu0 %v6553
        %6964 = vmatpush.msra.mxu0 %v6551
        %6965 = vmatpush.msra.mxu0 %v6549
        %6966 = vmatpush.msra.mxu0 %v6547
        %6967 = vmatpush.msra.mxu0 %v6545
        %6968 = vmatpush.msra.mxu0 %v6543
        %6969 = vmatpush.msra.mxu0 %v6541
        %6970 = vmatpush.msra.mxu0 %v6539
        %6971 = vmatpush.msra.mxu0 %v6537
        %6972 = vmatpush.msra.mxu0 %v6535
        %6973 = vmatpush.msra.mxu0 %v6533
        %6974 = vmatpush.msra.mxu0 %v6531
        %6975 = vmatpush.msra.mxu0 %v6529
        %6976 = vmatmul.f32.gmra.mxu0 %v6582
        %v6977 = vpop.f32.mrf.mxu0
        %v6978 = vadd.f32 %v6955, %v6977
        %6979 = vmatmul.f32.gmra.mxu0 %v6598
        %v6980 = vpop.f32.mrf.mxu0
        %v6981 = vadd.f32 %v6958, %v6980
        %6982 = vdwg.mxu0
        %v6983 = vadd.f32 %v6107, %v6794
        %v6984 = vadd.f32 %v6108, %v6978
        %v6985 = vadd.f32 %v6109, %v6797
        %v6986 = vadd.f32 %v6110, %v6981
        %v6987 = vld [vmem:[%s5330] sm:$0x3c]
        %v6988 = vld [vmem:[%s5330 + $0x8] sm:$0x3c]
        %v6989 = vld [vmem:[%s5330 + $0x10] sm:$0x3c]
        %v6990 = vld [vmem:[%s5330 + $0x18] sm:$0x3c]
        %v6991 = vld [vmem:[%s5330 + $0x20] sm:$0x3c]
        %v6992 = vld [vmem:[%s5330 + $0x28] sm:$0x3c]
        %v6993 = vld [vmem:[%s5330 + $0x30] sm:$0x3c]
        %v6994 = vld [vmem:[%s5330 + $0x38] sm:$0x3c]
        %v6995 = vld [vmem:[%s5330 + $0x40] sm:$0x3c]
        %v6996 = vld [vmem:[%s5330 + $0x48] sm:$0x3c]
        %v6997 = vld [vmem:[%s5330 + $0x50] sm:$0x3c]
        %v6998 = vld [vmem:[%s5330 + $0x58] sm:$0x3c]
        %v6999 = vld [vmem:[%s5330 + $0x60] sm:$0x3c]
        %v7000 = vld [vmem:[%s5330 + $0x68] sm:$0x3c]
        %v7001 = vld [vmem:[%s5330 + $0x70] sm:$0x3c]
        %v7002 = vld [vmem:[%s5330 + $0x78] sm:$0x3c]
        %v7003 = vld [vmem:[%s5330 + $0x80] sm:$0x3c]
        %v7004 = vld [vmem:[%s5330 + $0x88] sm:$0x3c]
        %v7005 = vld [vmem:[%s5330 + $0x90] sm:$0x3c]
        %v7006 = vld [vmem:[%s5330 + $0x98] sm:$0x3c]
        %v7007 = vld [vmem:[%s5330 + $0xa0] sm:$0x3c]
        %v7008 = vld [vmem:[%s5330 + $0xa8] sm:$0x3c]
        %v7009 = vld [vmem:[%s5330 + $0xb0] sm:$0x3c]
        %v7010 = vld [vmem:[%s5330 + $0xb8] sm:$0x3c]
        %v7011 = vld [vmem:[%s5330 + $0xc0] sm:$0x3c]
        %v7012 = vld [vmem:[%s5330 + $0xc8] sm:$0x3c]
        %v7013 = vld [vmem:[%s5330 + $0xd0] sm:$0x3c]
        %v7014 = vld [vmem:[%s5330 + $0xd8] sm:$0x3c]
        %v7015 = vld [vmem:[%s5330 + $0xe0] sm:$0x3c]
        %v7016 = vld [vmem:[%s5330 + $0xe8] sm:$0x3c]
        %v7017 = vld [vmem:[%s5330 + $0xf0] sm:$0x3c]
        %v7018 = vld [vmem:[%s5330 + $0xf8] sm:$0x3c]
        %v7051 = vrot.slane %v6988, 4
        %v7052 = vrot.slane %v6990, 4
        %v7053 = vrot.slane %v6992, 4
        %v7054 = vrot.slane %v6994, 4
        %v7055 = vrot.slane %v6996, 4
        %v7056 = vrot.slane %v6998, 4
        %v7057 = vrot.slane %v7000, 4
        %v7058 = vrot.slane %v7002, 4
        %v7059 = vrot.slane %v7004, 4
        %v7060 = vrot.slane %v7006, 4
        %v7061 = vrot.slane %v7008, 4
        %v7062 = vrot.slane %v7010, 4
        %v7063 = vrot.slane %v7012, 4
        %v7064 = vrot.slane %v7014, 4
        %v7065 = vrot.slane %v7016, 4
        %v7066 = vrot.slane %v7018, 4
        %v7067 = vsel %vm347, %v6987, %v7051
        %v7068 = vsel %vm347, %v6989, %v7052
        %v7069 = vsel %vm347, %v6991, %v7053
        %v7070 = vsel %vm347, %v6993, %v7054
        %v7071 = vsel %vm347, %v7051, %v6987
        %v7072 = vrot.slane %v7071, 4
        %v7073 = vsel %vm347, %v7052, %v6989
        %v7074 = vrot.slane %v7073, 4
        %v7075 = vsel %vm347, %v7053, %v6991
        %v7076 = vrot.slane %v7075, 4
        %v7077 = vsel %vm347, %v7054, %v6993
        %v7078 = vrot.slane %v7077, 4
        %v7079 = vsel %vm347, %v6995, %v7055
        %v7080 = vsel %vm347, %v6997, %v7056
        %v7081 = vsel %vm347, %v6999, %v7057
        %v7082 = vsel %vm347, %v7001, %v7058
        %v7083 = vsel %vm347, %v7055, %v6995
        %v7084 = vrot.slane %v7083, 4
        %v7085 = vsel %vm347, %v7056, %v6997
        %v7086 = vrot.slane %v7085, 4
        %v7087 = vsel %vm347, %v7057, %v6999
        %v7088 = vrot.slane %v7087, 4
        %v7089 = vsel %vm347, %v7058, %v7001
        %v7090 = vrot.slane %v7089, 4
        %v7091 = vsel %vm347, %v7003, %v7059
        %v7092 = vsel %vm347, %v7005, %v7060
        %v7093 = vsel %vm347, %v7007, %v7061
        %v7094 = vsel %vm347, %v7009, %v7062
        %v7095 = vsel %vm347, %v7059, %v7003
        %v7096 = vrot.slane %v7095, 4
        %v7097 = vsel %vm347, %v7060, %v7005
        %v7098 = vrot.slane %v7097, 4
        %v7099 = vsel %vm347, %v7061, %v7007
        %v7100 = vrot.slane %v7099, 4
        %v7101 = vsel %vm347, %v7062, %v7009
        %v7102 = vrot.slane %v7101, 4
        %v7103 = vsel %vm347, %v7011, %v7063
        %v7104 = vsel %vm347, %v7013, %v7064
        %v7105 = vsel %vm347, %v7015, %v7065
        %v7106 = vsel %vm347, %v7017, %v7066
        %v7107 = vsel %vm347, %v7063, %v7011
        %v7108 = vrot.slane %v7107, 4
        %v7109 = vsel %vm347, %v7064, %v7013
        %v7110 = vrot.slane %v7109, 4
        %v7111 = vsel %vm347, %v7065, %v7015
        %v7112 = vrot.slane %v7111, 4
        %v7113 = vsel %vm347, %v7066, %v7017
        %v7114 = vrot.slane %v7113, 4
        %v7115 = vrot.slane %v7067, 6
        %v7116 = vrot.slane %v7115, 4
        %v7117 = vrot.slane %v7072, 6
        %v7118 = vsel %vm2048, %v7116, %v7117
        %v7119 = vrot.slane %v7068, 6
        %v7120 = vrot.slane %v7119, 4
        %v7121 = vrot.slane %v7074, 6
        %v7122 = vsel %vm2048, %v7120, %v7121
        %v7123 = vrot.slane %v7069, 6
        %v7124 = vrot.slane %v7123, 4
        %v7125 = vrot.slane %v7076, 6
        %v7126 = vsel %vm2048, %v7124, %v7125
        %v7127 = vrot.slane %v7070, 6
        %v7128 = vrot.slane %v7127, 4
        %v7129 = vrot.slane %v7078, 6
        %v7130 = vsel %vm2048, %v7128, %v7129
        %v7131 = vrot.slane %v7079, 6
        %v7132 = vrot.slane %v7131, 4
        %v7133 = vrot.slane %v7084, 6
        %v7134 = vsel %vm2048, %v7132, %v7133
        %v7135 = vrot.slane %v7080, 6
        %v7136 = vrot.slane %v7135, 4
        %v7137 = vrot.slane %v7086, 6
        %v7138 = vsel %vm2048, %v7136, %v7137
        %v7139 = vrot.slane %v7081, 6
        %v7140 = vrot.slane %v7139, 4
        %v7141 = vrot.slane %v7088, 6
        %v7142 = vsel %vm2048, %v7140, %v7141
        %v7143 = vrot.slane %v7082, 6
        %v7144 = vrot.slane %v7143, 4
        %v7145 = vrot.slane %v7090, 6
        %v7146 = vsel %vm2048, %v7144, %v7145
        %v7147 = vrot.slane %v7091, 6
        %v7148 = vrot.slane %v7147, 4
        %v7149 = vrot.slane %v7096, 6
        %v7150 = vsel %vm2048, %v7148, %v7149
        %v7151 = vrot.slane %v7092, 6
        %v7152 = vrot.slane %v7151, 4
        %v7153 = vrot.slane %v7098, 6
        %v7154 = vsel %vm2048, %v7152, %v7153
        %v7155 = vrot.slane %v7093, 6
        %v7156 = vrot.slane %v7155, 4
        %v7157 = vrot.slane %v7100, 6
        %v7158 = vsel %vm2048, %v7156, %v7157
        %v7159 = vrot.slane %v7094, 6
        %v7160 = vrot.slane %v7159, 4
        %v7161 = vrot.slane %v7102, 6
        %v7162 = vsel %vm2048, %v7160, %v7161
        %v7163 = vrot.slane %v7103, 6
        %v7164 = vrot.slane %v7163, 4
        %v7165 = vrot.slane %v7108, 6
        %v7166 = vsel %vm2048, %v7164, %v7165
        %v7167 = vrot.slane %v7104, 6
        %v7168 = vrot.slane %v7167, 4
        %v7169 = vrot.slane %v7110, 6
        %v7170 = vsel %vm2048, %v7168, %v7169
        %v7171 = vrot.slane %v7105, 6
        %v7172 = vrot.slane %v7171, 4
        %v7173 = vrot.slane %v7112, 6
        %v7174 = vsel %vm2048, %v7172, %v7173
        %v7175 = vrot.slane %v7106, 6
        %v7176 = vrot.slane %v7175, 4
        %v7177 = vrot.slane %v7114, 6
        %v7178 = vsel %vm2048, %v7176, %v7177
        %s7179 = scalar_lea.vmem %s215, 16384 [#allocation2]
        %v7180 = vld [vmem:[%s7179] sm:$0xff]
        %v7181 = vld [vmem:[%s7179 + $0x8] sm:$0xff]
        %v7182 = vld [vmem:[%s7179 + $0x10] sm:$0xff]
        %v7183 = vld [vmem:[%s7179 + $0x18] sm:$0xff]
        %v7184 = vld [vmem:[%s7179 + $0x20] sm:$0xff]
        %v7185 = vld [vmem:[%s7179 + $0x28] sm:$0xff]
        %v7186 = vld [vmem:[%s7179 + $0x30] sm:$0xff]
        %v7187 = vld [vmem:[%s7179 + $0x38] sm:$0xff]
        %v7188 = vld [vmem:[%s7179 + $0x40] sm:$0xff]
        %v7189 = vld [vmem:[%s7179 + $0x48] sm:$0xff]
        %v7190 = vld [vmem:[%s7179 + $0x50] sm:$0xff]
        %v7191 = vld [vmem:[%s7179 + $0x58] sm:$0xff]
        %v7192 = vld [vmem:[%s7179 + $0x60] sm:$0xff]
        %v7193 = vld [vmem:[%s7179 + $0x68] sm:$0xff]
        %v7194 = vld [vmem:[%s7179 + $0x70] sm:$0xff]
        %v7195 = vld [vmem:[%s7179 + $0x78] sm:$0xff]
        %v7196 = vld [vmem:[%s7179 + $0x80] sm:$0xff]
        %v7197 = vld [vmem:[%s7179 + $0x88] sm:$0xff]
        %v7198 = vld [vmem:[%s7179 + $0x90] sm:$0xff]
        %v7199 = vld [vmem:[%s7179 + $0x98] sm:$0xff]
        %v7200 = vld [vmem:[%s7179 + $0xa0] sm:$0xff]
        %v7201 = vld [vmem:[%s7179 + $0xa8] sm:$0xff]
        %v7202 = vld [vmem:[%s7179 + $0xb0] sm:$0xff]
        %v7203 = vld [vmem:[%s7179 + $0xb8] sm:$0xff]
        %v7204 = vld [vmem:[%s7179 + $0xc0] sm:$0xff]
        %v7205 = vld [vmem:[%s7179 + $0xc8] sm:$0xff]
        %v7206 = vld [vmem:[%s7179 + $0xd0] sm:$0xff]
        %v7207 = vld [vmem:[%s7179 + $0xd8] sm:$0xff]
        %v7208 = vld [vmem:[%s7179 + $0xe0] sm:$0xff]
        %v7209 = vld [vmem:[%s7179 + $0xe8] sm:$0xff]
        %v7210 = vld [vmem:[%s7179 + $0xf0] sm:$0xff]
        %v7211 = vld [vmem:[%s7179 + $0xf8] sm:$0xff]
        %v7212 = vld [vmem:[%s7179 + $0x100] sm:$0xff]
        %v7213 = vld [vmem:[%s7179 + $0x108] sm:$0xff]
        %v7214 = vld [vmem:[%s7179 + $0x110] sm:$0xff]
        %v7215 = vld [vmem:[%s7179 + $0x118] sm:$0xff]
        %v7216 = vld [vmem:[%s7179 + $0x120] sm:$0xff]
        %v7217 = vld [vmem:[%s7179 + $0x128] sm:$0xff]
        %v7218 = vld [vmem:[%s7179 + $0x130] sm:$0xff]
        %v7219 = vld [vmem:[%s7179 + $0x138] sm:$0xff]
        %v7220 = vld [vmem:[%s7179 + $0x140] sm:$0xff]
        %v7221 = vld [vmem:[%s7179 + $0x148] sm:$0xff]
        %v7222 = vld [vmem:[%s7179 + $0x150] sm:$0xff]
        %v7223 = vld [vmem:[%s7179 + $0x158] sm:$0xff]
        %v7224 = vld [vmem:[%s7179 + $0x160] sm:$0xff]
        %v7225 = vld [vmem:[%s7179 + $0x168] sm:$0xff]
        %v7226 = vld [vmem:[%s7179 + $0x170] sm:$0xff]
        %v7227 = vld [vmem:[%s7179 + $0x178] sm:$0xff]
        %v7228 = vld [vmem:[%s7179 + $0x180] sm:$0xff]
        %v7229 = vld [vmem:[%s7179 + $0x188] sm:$0xff]
        %v7230 = vld [vmem:[%s7179 + $0x190] sm:$0xff]
        %v7231 = vld [vmem:[%s7179 + $0x198] sm:$0xff]
        %v7232 = vld [vmem:[%s7179 + $0x1a0] sm:$0xff]
        %v7233 = vld [vmem:[%s7179 + $0x1a8] sm:$0xff]
        %v7234 = vld [vmem:[%s7179 + $0x1b0] sm:$0xff]
        %v7235 = vld [vmem:[%s7179 + $0x1b8] sm:$0xff]
        %v7236 = vld [vmem:[%s7179 + $0x1c0] sm:$0xff]
        %v7237 = vld [vmem:[%s7179 + $0x1c8] sm:$0xff]
        %v7238 = vld [vmem:[%s7179 + $0x1d0] sm:$0xff]
        %v7239 = vld [vmem:[%s7179 + $0x1d8] sm:$0xff]
        %v7240 = vld [vmem:[%s7179 + $0x1e0] sm:$0xff]
        %v7241 = vld [vmem:[%s7179 + $0x1e8] sm:$0xff]
        %v7242 = vld [vmem:[%s7179 + $0x1f0] sm:$0xff]
        %v7243 = vld [vmem:[%s7179 + $0x1f8] sm:$0xff]
        %v7244 = vld [vmem:[%s7179 + $0x200] sm:$0xff]
        %v7245 = vld [vmem:[%s7179 + $0x208] sm:$0xff]
        %v7246 = vld [vmem:[%s7179 + $0x210] sm:$0xff]
        %v7247 = vld [vmem:[%s7179 + $0x218] sm:$0xff]
        %v7248 = vld [vmem:[%s7179 + $0x220] sm:$0xff]
        %v7249 = vld [vmem:[%s7179 + $0x228] sm:$0xff]
        %v7250 = vld [vmem:[%s7179 + $0x230] sm:$0xff]
        %v7251 = vld [vmem:[%s7179 + $0x238] sm:$0xff]
        %v7252 = vld [vmem:[%s7179 + $0x240] sm:$0xff]
        %v7253 = vld [vmem:[%s7179 + $0x248] sm:$0xff]
        %v7254 = vld [vmem:[%s7179 + $0x250] sm:$0xff]
        %v7255 = vld [vmem:[%s7179 + $0x258] sm:$0xff]
        %v7256 = vld [vmem:[%s7179 + $0x260] sm:$0xff]
        %v7257 = vld [vmem:[%s7179 + $0x268] sm:$0xff]
        %v7258 = vld [vmem:[%s7179 + $0x270] sm:$0xff]
        %v7259 = vld [vmem:[%s7179 + $0x278] sm:$0xff]
        %v7260 = vld [vmem:[%s7179 + $0x280] sm:$0xff]
        %v7261 = vld [vmem:[%s7179 + $0x288] sm:$0xff]
        %v7262 = vld [vmem:[%s7179 + $0x290] sm:$0xff]
        %v7263 = vld [vmem:[%s7179 + $0x298] sm:$0xff]
        %v7264 = vld [vmem:[%s7179 + $0x2a0] sm:$0xff]
        %v7265 = vld [vmem:[%s7179 + $0x2a8] sm:$0xff]
        %v7266 = vld [vmem:[%s7179 + $0x2b0] sm:$0xff]
        %v7267 = vld [vmem:[%s7179 + $0x2b8] sm:$0xff]
        %v7268 = vld [vmem:[%s7179 + $0x2c0] sm:$0xff]
        %v7269 = vld [vmem:[%s7179 + $0x2c8] sm:$0xff]
        %v7270 = vld [vmem:[%s7179 + $0x2d0] sm:$0xff]
        %v7271 = vld [vmem:[%s7179 + $0x2d8] sm:$0xff]
        %v7272 = vld [vmem:[%s7179 + $0x2e0] sm:$0xff]
        %v7273 = vld [vmem:[%s7179 + $0x2e8] sm:$0xff]
        %v7274 = vld [vmem:[%s7179 + $0x2f0] sm:$0xff]
        %v7275 = vld [vmem:[%s7179 + $0x2f8] sm:$0xff]
        %v7276 = vld [vmem:[%s7179 + $0x300] sm:$0xff]
        %v7277 = vld [vmem:[%s7179 + $0x308] sm:$0xff]
        %v7278 = vld [vmem:[%s7179 + $0x310] sm:$0xff]
        %v7279 = vld [vmem:[%s7179 + $0x318] sm:$0xff]
        %v7280 = vld [vmem:[%s7179 + $0x320] sm:$0xff]
        %v7281 = vld [vmem:[%s7179 + $0x328] sm:$0xff]
        %v7282 = vld [vmem:[%s7179 + $0x330] sm:$0xff]
        %v7283 = vld [vmem:[%s7179 + $0x338] sm:$0xff]
        %v7284 = vld [vmem:[%s7179 + $0x340] sm:$0xff]
        %v7285 = vld [vmem:[%s7179 + $0x348] sm:$0xff]
        %v7286 = vld [vmem:[%s7179 + $0x350] sm:$0xff]
        %v7287 = vld [vmem:[%s7179 + $0x358] sm:$0xff]
        %v7288 = vld [vmem:[%s7179 + $0x360] sm:$0xff]
        %v7289 = vld [vmem:[%s7179 + $0x368] sm:$0xff]
        %v7290 = vld [vmem:[%s7179 + $0x370] sm:$0xff]
        %v7291 = vld [vmem:[%s7179 + $0x378] sm:$0xff]
        %v7292 = vld [vmem:[%s7179 + $0x380] sm:$0xff]
        %v7293 = vld [vmem:[%s7179 + $0x388] sm:$0xff]
        %v7294 = vld [vmem:[%s7179 + $0x390] sm:$0xff]
        %v7295 = vld [vmem:[%s7179 + $0x398] sm:$0xff]
        %v7296 = vld [vmem:[%s7179 + $0x3a0] sm:$0xff]
        %v7297 = vld [vmem:[%s7179 + $0x3a8] sm:$0xff]
        %v7298 = vld [vmem:[%s7179 + $0x3b0] sm:$0xff]
        %v7299 = vld [vmem:[%s7179 + $0x3b8] sm:$0xff]
        %v7300 = vld [vmem:[%s7179 + $0x3c0] sm:$0xff]
        %v7301 = vld [vmem:[%s7179 + $0x3c8] sm:$0xff]
        %v7302 = vld [vmem:[%s7179 + $0x3d0] sm:$0xff]
        %v7303 = vld [vmem:[%s7179 + $0x3d8] sm:$0xff]
        %v7304 = vld [vmem:[%s7179 + $0x3e0] sm:$0xff]
        %v7305 = vld [vmem:[%s7179 + $0x3e8] sm:$0xff]
        %v7306 = vld [vmem:[%s7179 + $0x3f0] sm:$0xff]
        %v7307 = vld [vmem:[%s7179 + $0x3f8] sm:$0xff]
        %v7308 = vld [vmem:[%s7179 + $0x400] sm:$0xff]
        %v7309 = vld [vmem:[%s7179 + $0x408] sm:$0xff]
        %v7310 = vld [vmem:[%s7179 + $0x410] sm:$0xff]
        %v7311 = vld [vmem:[%s7179 + $0x418] sm:$0xff]
        %v7312 = vld [vmem:[%s7179 + $0x420] sm:$0xff]
        %v7313 = vld [vmem:[%s7179 + $0x428] sm:$0xff]
        %v7314 = vld [vmem:[%s7179 + $0x430] sm:$0xff]
        %v7315 = vld [vmem:[%s7179 + $0x438] sm:$0xff]
        %v7316 = vld [vmem:[%s7179 + $0x440] sm:$0xff]
        %v7317 = vld [vmem:[%s7179 + $0x448] sm:$0xff]
        %v7318 = vld [vmem:[%s7179 + $0x450] sm:$0xff]
        %v7319 = vld [vmem:[%s7179 + $0x458] sm:$0xff]
        %v7320 = vld [vmem:[%s7179 + $0x460] sm:$0xff]
        %v7321 = vld [vmem:[%s7179 + $0x468] sm:$0xff]
        %v7322 = vld [vmem:[%s7179 + $0x470] sm:$0xff]
        %v7323 = vld [vmem:[%s7179 + $0x478] sm:$0xff]
        %v7324 = vld [vmem:[%s7179 + $0x480] sm:$0xff]
        %v7325 = vld [vmem:[%s7179 + $0x488] sm:$0xff]
        %v7326 = vld [vmem:[%s7179 + $0x490] sm:$0xff]
        %v7327 = vld [vmem:[%s7179 + $0x498] sm:$0xff]
        %v7328 = vld [vmem:[%s7179 + $0x4a0] sm:$0xff]
        %v7329 = vld [vmem:[%s7179 + $0x4a8] sm:$0xff]
        %v7330 = vld [vmem:[%s7179 + $0x4b0] sm:$0xff]
        %v7331 = vld [vmem:[%s7179 + $0x4b8] sm:$0xff]
        %v7332 = vld [vmem:[%s7179 + $0x4c0] sm:$0xff]
        %v7333 = vld [vmem:[%s7179 + $0x4c8] sm:$0xff]
        %v7334 = vld [vmem:[%s7179 + $0x4d0] sm:$0xff]
        %v7335 = vld [vmem:[%s7179 + $0x4d8] sm:$0xff]
        %v7336 = vld [vmem:[%s7179 + $0x4e0] sm:$0xff]
        %v7337 = vld [vmem:[%s7179 + $0x4e8] sm:$0xff]
        %v7338 = vld [vmem:[%s7179 + $0x4f0] sm:$0xff]
        %v7339 = vld [vmem:[%s7179 + $0x4f8] sm:$0xff]
        %v7340 = vld [vmem:[%s7179 + $0x500] sm:$0xff]
        %v7341 = vld [vmem:[%s7179 + $0x508] sm:$0xff]
        %v7342 = vld [vmem:[%s7179 + $0x510] sm:$0xff]
        %v7343 = vld [vmem:[%s7179 + $0x518] sm:$0xff]
        %v7344 = vld [vmem:[%s7179 + $0x520] sm:$0xff]
        %v7345 = vld [vmem:[%s7179 + $0x528] sm:$0xff]
        %v7346 = vld [vmem:[%s7179 + $0x530] sm:$0xff]
        %v7347 = vld [vmem:[%s7179 + $0x538] sm:$0xff]
        %v7348 = vld [vmem:[%s7179 + $0x540] sm:$0xff]
        %v7349 = vld [vmem:[%s7179 + $0x548] sm:$0xff]
        %v7350 = vld [vmem:[%s7179 + $0x550] sm:$0xff]
        %v7351 = vld [vmem:[%s7179 + $0x558] sm:$0xff]
        %v7352 = vld [vmem:[%s7179 + $0x560] sm:$0xff]
        %v7353 = vld [vmem:[%s7179 + $0x568] sm:$0xff]
        %v7354 = vld [vmem:[%s7179 + $0x570] sm:$0xff]
        %v7355 = vld [vmem:[%s7179 + $0x578] sm:$0xff]
        %v7356 = vld [vmem:[%s7179 + $0x580] sm:$0xff]
        %v7357 = vld [vmem:[%s7179 + $0x588] sm:$0xff]
        %v7358 = vld [vmem:[%s7179 + $0x590] sm:$0xff]
        %v7359 = vld [vmem:[%s7179 + $0x598] sm:$0xff]
        %v7360 = vld [vmem:[%s7179 + $0x5a0] sm:$0xff]
        %v7361 = vld [vmem:[%s7179 + $0x5a8] sm:$0xff]
        %v7362 = vld [vmem:[%s7179 + $0x5b0] sm:$0xff]
        %v7363 = vld [vmem:[%s7179 + $0x5b8] sm:$0xff]
        %v7364 = vld [vmem:[%s7179 + $0x5c0] sm:$0xff]
        %v7365 = vld [vmem:[%s7179 + $0x5c8] sm:$0xff]
        %v7366 = vld [vmem:[%s7179 + $0x5d0] sm:$0xff]
        %v7367 = vld [vmem:[%s7179 + $0x5d8] sm:$0xff]
        %v7368 = vld [vmem:[%s7179 + $0x5e0] sm:$0xff]
        %v7369 = vld [vmem:[%s7179 + $0x5e8] sm:$0xff]
        %v7370 = vld [vmem:[%s7179 + $0x5f0] sm:$0xff]
        %v7371 = vld [vmem:[%s7179 + $0x5f8] sm:$0xff]
        %v7372 = vld [vmem:[%s7179 + $0x600] sm:$0xff]
        %v7373 = vld [vmem:[%s7179 + $0x608] sm:$0xff]
        %v7374 = vld [vmem:[%s7179 + $0x610] sm:$0xff]
        %v7375 = vld [vmem:[%s7179 + $0x618] sm:$0xff]
        %v7376 = vld [vmem:[%s7179 + $0x620] sm:$0xff]
        %v7377 = vld [vmem:[%s7179 + $0x628] sm:$0xff]
        %v7378 = vld [vmem:[%s7179 + $0x630] sm:$0xff]
        %v7379 = vld [vmem:[%s7179 + $0x638] sm:$0xff]
        %v7380 = vld [vmem:[%s7179 + $0x640] sm:$0xff]
        %v7381 = vld [vmem:[%s7179 + $0x648] sm:$0xff]
        %v7382 = vld [vmem:[%s7179 + $0x650] sm:$0xff]
        %v7383 = vld [vmem:[%s7179 + $0x658] sm:$0xff]
        %v7384 = vld [vmem:[%s7179 + $0x660] sm:$0xff]
        %v7385 = vld [vmem:[%s7179 + $0x668] sm:$0xff]
        %v7386 = vld [vmem:[%s7179 + $0x670] sm:$0xff]
        %v7387 = vld [vmem:[%s7179 + $0x678] sm:$0xff]
        %v7388 = vld [vmem:[%s7179 + $0x680] sm:$0xff]
        %v7389 = vld [vmem:[%s7179 + $0x688] sm:$0xff]
        %v7390 = vld [vmem:[%s7179 + $0x690] sm:$0xff]
        %v7391 = vld [vmem:[%s7179 + $0x698] sm:$0xff]
        %v7392 = vld [vmem:[%s7179 + $0x6a0] sm:$0xff]
        %v7393 = vld [vmem:[%s7179 + $0x6a8] sm:$0xff]
        %v7394 = vld [vmem:[%s7179 + $0x6b0] sm:$0xff]
        %v7395 = vld [vmem:[%s7179 + $0x6b8] sm:$0xff]
        %v7396 = vld [vmem:[%s7179 + $0x6c0] sm:$0xff]
        %v7397 = vld [vmem:[%s7179 + $0x6c8] sm:$0xff]
        %v7398 = vld [vmem:[%s7179 + $0x6d0] sm:$0xff]
        %v7399 = vld [vmem:[%s7179 + $0x6d8] sm:$0xff]
        %v7400 = vld [vmem:[%s7179 + $0x6e0] sm:$0xff]
        %v7401 = vld [vmem:[%s7179 + $0x6e8] sm:$0xff]
        %v7402 = vld [vmem:[%s7179 + $0x6f0] sm:$0xff]
        %v7403 = vld [vmem:[%s7179 + $0x6f8] sm:$0xff]
        %v7404 = vld [vmem:[%s7179 + $0x700] sm:$0xff]
        %v7405 = vld [vmem:[%s7179 + $0x708] sm:$0xff]
        %v7406 = vld [vmem:[%s7179 + $0x710] sm:$0xff]
        %v7407 = vld [vmem:[%s7179 + $0x718] sm:$0xff]
        %v7408 = vld [vmem:[%s7179 + $0x720] sm:$0xff]
        %v7409 = vld [vmem:[%s7179 + $0x728] sm:$0xff]
        %v7410 = vld [vmem:[%s7179 + $0x730] sm:$0xff]
        %v7411 = vld [vmem:[%s7179 + $0x738] sm:$0xff]
        %v7412 = vld [vmem:[%s7179 + $0x740] sm:$0xff]
        %v7413 = vld [vmem:[%s7179 + $0x748] sm:$0xff]
        %v7414 = vld [vmem:[%s7179 + $0x750] sm:$0xff]
        %v7415 = vld [vmem:[%s7179 + $0x758] sm:$0xff]
        %v7416 = vld [vmem:[%s7179 + $0x760] sm:$0xff]
        %v7417 = vld [vmem:[%s7179 + $0x768] sm:$0xff]
        %v7418 = vld [vmem:[%s7179 + $0x770] sm:$0xff]
        %v7419 = vld [vmem:[%s7179 + $0x778] sm:$0xff]
        %v7420 = vld [vmem:[%s7179 + $0x780] sm:$0xff]
        %v7421 = vld [vmem:[%s7179 + $0x788] sm:$0xff]
        %v7422 = vld [vmem:[%s7179 + $0x790] sm:$0xff]
        %v7423 = vld [vmem:[%s7179 + $0x798] sm:$0xff]
        %v7424 = vld [vmem:[%s7179 + $0x7a0] sm:$0xff]
        %v7425 = vld [vmem:[%s7179 + $0x7a8] sm:$0xff]
        %v7426 = vld [vmem:[%s7179 + $0x7b0] sm:$0xff]
        %v7427 = vld [vmem:[%s7179 + $0x7b8] sm:$0xff]
        %v7428 = vld [vmem:[%s7179 + $0x7c0] sm:$0xff]
        %v7429 = vld [vmem:[%s7179 + $0x7c8] sm:$0xff]
        %v7430 = vld [vmem:[%s7179 + $0x7d0] sm:$0xff]
        %v7431 = vld [vmem:[%s7179 + $0x7d8] sm:$0xff]
        %v7432 = vld [vmem:[%s7179 + $0x7e0] sm:$0xff]
        %v7433 = vld [vmem:[%s7179 + $0x7e8] sm:$0xff]
        %v7434 = vld [vmem:[%s7179 + $0x7f0] sm:$0xff]
        %v7435 = vld [vmem:[%s7179 + $0x7f8] sm:$0xff]
        %7436 = vst [vmem:[#allocation1] ss:$2 sm:$0xff] %v7118
        %s7437 = scalar_lea.vmem [#allocation1], 1
        %7438 = vst [vmem:[%s7437] ss:$2 sm:$0xff] %v7134
        %s7439 = scalar_lea.vmem [#allocation1], 16
        %7440 = vst [vmem:[%s7439] ss:$2 sm:$0xff] %v7122
        %s7441 = scalar_lea.vmem [#allocation1], 17
        %7442 = vst [vmem:[%s7441] ss:$2 sm:$0xff] %v7138
        %s7443 = scalar_lea.vmem [#allocation1], 32
        %7444 = vst [vmem:[%s7443] ss:$2 sm:$0xff] %v7126
        %s7445 = scalar_lea.vmem [#allocation1], 33
        %7446 = vst [vmem:[%s7445] ss:$2 sm:$0xff] %v7142
        %s7447 = scalar_lea.vmem [#allocation1], 48
        %7448 = vst [vmem:[%s7447] ss:$2 sm:$0xff] %v7130
        %s7449 = scalar_lea.vmem [#allocation1], 49
        %7450 = vst [vmem:[%s7449] ss:$2 sm:$0xff] %v7146
        %v7451 = vld.sshfl [vmem:[#allocation1] sm:$0xff pattern:$0x75316420]
        %v7452 = vld.sshfl [vmem:[#allocation1 + $0x8] sm:$0xff pattern:$0x75316420]
        %v7453 = vld.sshfl [vmem:[#allocation1 + $0x10] sm:$0xff pattern:$0x75316420]
        %v7454 = vld.sshfl [vmem:[#allocation1 + $0x18] sm:$0xff pattern:$0x75316420]
        %v7455 = vld.sshfl [vmem:[#allocation1 + $0x20] sm:$0xff pattern:$0x75316420]
        %v7456 = vld.sshfl [vmem:[#allocation1 + $0x28] sm:$0xff pattern:$0x75316420]
        %v7457 = vld.sshfl [vmem:[#allocation1 + $0x30] sm:$0xff pattern:$0x75316420]
        %v7458 = vld.sshfl [vmem:[#allocation1 + $0x38] sm:$0xff pattern:$0x75316420]
        %7459 = vst [vmem:[#allocation1] ss:$2 sm:$0xff] %v7150
        %7460 = vst [vmem:[%s7437] ss:$2 sm:$0xff] %v7166
        %7461 = vst [vmem:[%s7439] ss:$2 sm:$0xff] %v7154
        %7462 = vst [vmem:[%s7441] ss:$2 sm:$0xff] %v7170
        %7463 = vst [vmem:[%s7443] ss:$2 sm:$0xff] %v7158
        %7464 = vst [vmem:[%s7445] ss:$2 sm:$0xff] %v7174
        %7465 = vst [vmem:[%s7447] ss:$2 sm:$0xff] %v7162
        %7466 = vst [vmem:[%s7449] ss:$2 sm:$0xff] %v7178
        %v7467 = vld.sshfl [vmem:[#allocation1] sm:$0xff pattern:$0x75316420]
        %v7468 = vld.sshfl [vmem:[#allocation1 + $0x8] sm:$0xff pattern:$0x75316420]
        %v7469 = vld.sshfl [vmem:[#allocation1 + $0x10] sm:$0xff pattern:$0x75316420]
        %v7470 = vld.sshfl [vmem:[#allocation1 + $0x18] sm:$0xff pattern:$0x75316420]
        %v7471 = vld.sshfl [vmem:[#allocation1 + $0x20] sm:$0xff pattern:$0x75316420]
        %v7472 = vld.sshfl [vmem:[#allocation1 + $0x28] sm:$0xff pattern:$0x75316420]
        %v7473 = vld.sshfl [vmem:[#allocation1 + $0x30] sm:$0xff pattern:$0x75316420]
        %v7474 = vld.sshfl [vmem:[#allocation1 + $0x38] sm:$0xff pattern:$0x75316420]
        %7491 = vmatpush.msra.mxu0 %v7210
        %7492 = vmatpush.msra.mxu0 %v7208
        %7493 = vmatpush.msra.mxu0 %v7206
        %7494 = vmatpush.msra.mxu0 %v7204
        %7495 = vmatpush.msra.mxu0 %v7202
        %7496 = vmatpush.msra.mxu0 %v7200
        %7497 = vmatpush.msra.mxu0 %v7198
        %7498 = vmatpush.msra.mxu0 %v7196
        %7499 = vmatpush.msra.mxu0 %v7194
        %7500 = vmatpush.msra.mxu0 %v7192
        %7501 = vmatpush.msra.mxu0 %v7190
        %7502 = vmatpush.msra.mxu0 %v7188
        %7503 = vmatpush.msra.mxu0 %v7186
        %7504 = vmatpush.msra.mxu0 %v7184
        %7505 = vmatpush.msra.mxu0 %v7182
        %7506 = vmatpush.msra.mxu0 %v7180
        %7507 = vmatmul.f32.gmra.mxu0 %v7451
        %v7508 = vpop.f32.mrf.mxu0
        %v7509 = vadd.f32 0.0, %v7508
        %7510 = vmatmul.f32.gmra.mxu0 %v7467
        %v7511 = vpop.f32.mrf.mxu0
        %v7512 = vadd.f32 0.0, %v7511
        %7513 = vdwg.mxu0
        %7514 = vmatpush.msra.mxu0 %v7242
        %7515 = vmatpush.msra.mxu0 %v7240
        %7516 = vmatpush.msra.mxu0 %v7238
        %7517 = vmatpush.msra.mxu0 %v7236
        %7518 = vmatpush.msra.mxu0 %v7234
        %7519 = vmatpush.msra.mxu0 %v7232
        %7520 = vmatpush.msra.mxu0 %v7230
        %7521 = vmatpush.msra.mxu0 %v7228
        %7522 = vmatpush.msra.mxu0 %v7226
        %7523 = vmatpush.msra.mxu0 %v7224
        %7524 = vmatpush.msra.mxu0 %v7222
        %7525 = vmatpush.msra.mxu0 %v7220
        %7526 = vmatpush.msra.mxu0 %v7218
        %7527 = vmatpush.msra.mxu0 %v7216
        %7528 = vmatpush.msra.mxu0 %v7214
        %7529 = vmatpush.msra.mxu0 %v7212
        %7530 = vmatmul.f32.gmra.mxu0 %v7452
        %v7531 = vpop.f32.mrf.mxu0
        %v7532 = vadd.f32 %v7509, %v7531
        %7533 = vmatmul.f32.gmra.mxu0 %v7468
        %v7534 = vpop.f32.mrf.mxu0
        %v7535 = vadd.f32 %v7512, %v7534
        %7536 = vdwg.mxu0
        %7537 = vmatpush.msra.mxu0 %v7274
        %7538 = vmatpush.msra.mxu0 %v7272
        %7539 = vmatpush.msra.mxu0 %v7270
        %7540 = vmatpush.msra.mxu0 %v7268
        %7541 = vmatpush.msra.mxu0 %v7266
        %7542 = vmatpush.msra.mxu0 %v7264
        %7543 = vmatpush.msra.mxu0 %v7262
        %7544 = vmatpush.msra.mxu0 %v7260
        %7545 = vmatpush.msra.mxu0 %v7258
        %7546 = vmatpush.msra.mxu0 %v7256
        %7547 = vmatpush.msra.mxu0 %v7254
        %7548 = vmatpush.msra.mxu0 %v7252
        %7549 = vmatpush.msra.mxu0 %v7250
        %7550 = vmatpush.msra.mxu0 %v7248
        %7551 = vmatpush.msra.mxu0 %v7246
        %7552 = vmatpush.msra.mxu0 %v7244
        %7553 = vmatmul.f32.gmra.mxu0 %v7453
        %v7554 = vpop.f32.mrf.mxu0
        %v7555 = vadd.f32 %v7532, %v7554
        %7556 = vmatmul.f32.gmra.mxu0 %v7469
        %v7557 = vpop.f32.mrf.mxu0
        %v7558 = vadd.f32 %v7535, %v7557
        %7559 = vdwg.mxu0
        %7560 = vmatpush.msra.mxu0 %v7306
        %7561 = vmatpush.msra.mxu0 %v7304
        %7562 = vmatpush.msra.mxu0 %v7302
        %7563 = vmatpush.msra.mxu0 %v7300
        %7564 = vmatpush.msra.mxu0 %v7298
        %7565 = vmatpush.msra.mxu0 %v7296
        %7566 = vmatpush.msra.mxu0 %v7294
        %7567 = vmatpush.msra.mxu0 %v7292
        %7568 = vmatpush.msra.mxu0 %v7290
        %7569 = vmatpush.msra.mxu0 %v7288
        %7570 = vmatpush.msra.mxu0 %v7286
        %7571 = vmatpush.msra.mxu0 %v7284
        %7572 = vmatpush.msra.mxu0 %v7282
        %7573 = vmatpush.msra.mxu0 %v7280
        %7574 = vmatpush.msra.mxu0 %v7278
        %7575 = vmatpush.msra.mxu0 %v7276
        %7576 = vmatmul.f32.gmra.mxu0 %v7454
        %v7577 = vpop.f32.mrf.mxu0
        %v7578 = vadd.f32 %v7555, %v7577
        %7579 = vmatmul.f32.gmra.mxu0 %v7470
        %v7580 = vpop.f32.mrf.mxu0
        %v7581 = vadd.f32 %v7558, %v7580
        %7582 = vdwg.mxu0
        %7583 = vmatpush.msra.mxu0 %v7338
        %7584 = vmatpush.msra.mxu0 %v7336
        %7585 = vmatpush.msra.mxu0 %v7334
        %7586 = vmatpush.msra.mxu0 %v7332
        %7587 = vmatpush.msra.mxu0 %v7330
        %7588 = vmatpush.msra.mxu0 %v7328
        %7589 = vmatpush.msra.mxu0 %v7326
        %7590 = vmatpush.msra.mxu0 %v7324
        %7591 = vmatpush.msra.mxu0 %v7322
        %7592 = vmatpush.msra.mxu0 %v7320
        %7593 = vmatpush.msra.mxu0 %v7318
        %7594 = vmatpush.msra.mxu0 %v7316
        %7595 = vmatpush.msra.mxu0 %v7314
        %7596 = vmatpush.msra.mxu0 %v7312
        %7597 = vmatpush.msra.mxu0 %v7310
        %7598 = vmatpush.msra.mxu0 %v7308
        %7599 = vmatmul.f32.gmra.mxu0 %v7455
        %v7600 = vpop.f32.mrf.mxu0
        %v7601 = vadd.f32 %v7578, %v7600
        %7602 = vmatmul.f32.gmra.mxu0 %v7471
        %v7603 = vpop.f32.mrf.mxu0
        %v7604 = vadd.f32 %v7581, %v7603
        %7605 = vdwg.mxu0
        %7606 = vmatpush.msra.mxu0 %v7370
        %7607 = vmatpush.msra.mxu0 %v7368
        %7608 = vmatpush.msra.mxu0 %v7366
        %7609 = vmatpush.msra.mxu0 %v7364
        %7610 = vmatpush.msra.mxu0 %v7362
        %7611 = vmatpush.msra.mxu0 %v7360
        %7612 = vmatpush.msra.mxu0 %v7358
        %7613 = vmatpush.msra.mxu0 %v7356
        %7614 = vmatpush.msra.mxu0 %v7354
        %7615 = vmatpush.msra.mxu0 %v7352
        %7616 = vmatpush.msra.mxu0 %v7350
        %7617 = vmatpush.msra.mxu0 %v7348
        %7618 = vmatpush.msra.mxu0 %v7346
        %7619 = vmatpush.msra.mxu0 %v7344
        %7620 = vmatpush.msra.mxu0 %v7342
        %7621 = vmatpush.msra.mxu0 %v7340
        %7622 = vmatmul.f32.gmra.mxu0 %v7456
        %v7623 = vpop.f32.mrf.mxu0
        %v7624 = vadd.f32 %v7601, %v7623
        %7625 = vmatmul.f32.gmra.mxu0 %v7472
        %v7626 = vpop.f32.mrf.mxu0
        %v7627 = vadd.f32 %v7604, %v7626
        %7628 = vdwg.mxu0
        %7629 = vmatpush.msra.mxu0 %v7402
        %7630 = vmatpush.msra.mxu0 %v7400
        %7631 = vmatpush.msra.mxu0 %v7398
        %7632 = vmatpush.msra.mxu0 %v7396
        %7633 = vmatpush.msra.mxu0 %v7394
        %7634 = vmatpush.msra.mxu0 %v7392
        %7635 = vmatpush.msra.mxu0 %v7390
        %7636 = vmatpush.msra.mxu0 %v7388
        %7637 = vmatpush.msra.mxu0 %v7386
        %7638 = vmatpush.msra.mxu0 %v7384
        %7639 = vmatpush.msra.mxu0 %v7382
        %7640 = vmatpush.msra.mxu0 %v7380
        %7641 = vmatpush.msra.mxu0 %v7378
        %7642 = vmatpush.msra.mxu0 %v7376
        %7643 = vmatpush.msra.mxu0 %v7374
        %7644 = vmatpush.msra.mxu0 %v7372
        %7645 = vmatmul.f32.gmra.mxu0 %v7457
        %v7646 = vpop.f32.mrf.mxu0
        %v7647 = vadd.f32 %v7624, %v7646
        %7648 = vmatmul.f32.gmra.mxu0 %v7473
        %v7649 = vpop.f32.mrf.mxu0
        %v7650 = vadd.f32 %v7627, %v7649
        %7651 = vdwg.mxu0
        %7652 = vmatpush.msra.mxu0 %v7434
        %7653 = vmatpush.msra.mxu0 %v7432
        %7654 = vmatpush.msra.mxu0 %v7430
        %7655 = vmatpush.msra.mxu0 %v7428
        %7656 = vmatpush.msra.mxu0 %v7426
        %7657 = vmatpush.msra.mxu0 %v7424
        %7658 = vmatpush.msra.mxu0 %v7422
        %7659 = vmatpush.msra.mxu0 %v7420
        %7660 = vmatpush.msra.mxu0 %v7418
        %7661 = vmatpush.msra.mxu0 %v7416
        %7662 = vmatpush.msra.mxu0 %v7414
        %7663 = vmatpush.msra.mxu0 %v7412
        %7664 = vmatpush.msra.mxu0 %v7410
        %7665 = vmatpush.msra.mxu0 %v7408
        %7666 = vmatpush.msra.mxu0 %v7406
        %7667 = vmatpush.msra.mxu0 %v7404
        %7668 = vmatmul.f32.gmra.mxu0 %v7458
        %v7669 = vpop.f32.mrf.mxu0
        %v7670 = vadd.f32 %v7647, %v7669
        %7671 = vmatmul.f32.gmra.mxu0 %v7474
        %v7672 = vpop.f32.mrf.mxu0
        %v7673 = vadd.f32 %v7650, %v7672
        %7674 = vdwg.mxu0
        %7675 = vmatpush.msra.mxu0 %v7211
        %7676 = vmatpush.msra.mxu0 %v7209
        %7677 = vmatpush.msra.mxu0 %v7207
        %7678 = vmatpush.msra.mxu0 %v7205
        %7679 = vmatpush.msra.mxu0 %v7203
        %7680 = vmatpush.msra.mxu0 %v7201
        %7681 = vmatpush.msra.mxu0 %v7199
        %7682 = vmatpush.msra.mxu0 %v7197
        %7683 = vmatpush.msra.mxu0 %v7195
        %7684 = vmatpush.msra.mxu0 %v7193
        %7685 = vmatpush.msra.mxu0 %v7191
        %7686 = vmatpush.msra.mxu0 %v7189
        %7687 = vmatpush.msra.mxu0 %v7187
        %7688 = vmatpush.msra.mxu0 %v7185
        %7689 = vmatpush.msra.mxu0 %v7183
        %7690 = vmatpush.msra.mxu0 %v7181
        %7691 = vmatmul.f32.gmra.mxu0 %v7451
        %v7692 = vpop.f32.mrf.mxu0
        %v7693 = vadd.f32 0.0, %v7692
        %7694 = vmatmul.f32.gmra.mxu0 %v7467
        %v7695 = vpop.f32.mrf.mxu0
        %v7696 = vadd.f32 0.0, %v7695
        %7697 = vdwg.mxu0
        %7698 = vmatpush.msra.mxu0 %v7243
        %7699 = vmatpush.msra.mxu0 %v7241
        %7700 = vmatpush.msra.mxu0 %v7239
        %7701 = vmatpush.msra.mxu0 %v7237
        %7702 = vmatpush.msra.mxu0 %v7235
        %7703 = vmatpush.msra.mxu0 %v7233
        %7704 = vmatpush.msra.mxu0 %v7231
        %7705 = vmatpush.msra.mxu0 %v7229
        %7706 = vmatpush.msra.mxu0 %v7227
        %7707 = vmatpush.msra.mxu0 %v7225
        %7708 = vmatpush.msra.mxu0 %v7223
        %7709 = vmatpush.msra.mxu0 %v7221
        %7710 = vmatpush.msra.mxu0 %v7219
        %7711 = vmatpush.msra.mxu0 %v7217
        %7712 = vmatpush.msra.mxu0 %v7215
        %7713 = vmatpush.msra.mxu0 %v7213
        %7714 = vmatmul.f32.gmra.mxu0 %v7452
        %v7715 = vpop.f32.mrf.mxu0
        %v7716 = vadd.f32 %v7693, %v7715
        %7717 = vmatmul.f32.gmra.mxu0 %v7468
        %v7718 = vpop.f32.mrf.mxu0
        %v7719 = vadd.f32 %v7696, %v7718
        %7720 = vdwg.mxu0
        %7721 = vmatpush.msra.mxu0 %v7275
        %7722 = vmatpush.msra.mxu0 %v7273
        %7723 = vmatpush.msra.mxu0 %v7271
        %7724 = vmatpush.msra.mxu0 %v7269
        %7725 = vmatpush.msra.mxu0 %v7267
        %7726 = vmatpush.msra.mxu0 %v7265
        %7727 = vmatpush.msra.mxu0 %v7263
        %7728 = vmatpush.msra.mxu0 %v7261
        %7729 = vmatpush.msra.mxu0 %v7259
        %7730 = vmatpush.msra.mxu0 %v7257
        %7731 = vmatpush.msra.mxu0 %v7255
        %7732 = vmatpush.msra.mxu0 %v7253
        %7733 = vmatpush.msra.mxu0 %v7251
        %7734 = vmatpush.msra.mxu0 %v7249
        %7735 = vmatpush.msra.mxu0 %v7247
        %7736 = vmatpush.msra.mxu0 %v7245
        %7737 = vmatmul.f32.gmra.mxu0 %v7453
        %v7738 = vpop.f32.mrf.mxu0
        %v7739 = vadd.f32 %v7716, %v7738
        %7740 = vmatmul.f32.gmra.mxu0 %v7469
        %v7741 = vpop.f32.mrf.mxu0
        %v7742 = vadd.f32 %v7719, %v7741
        %7743 = vdwg.mxu0
        %7744 = vmatpush.msra.mxu0 %v7307
        %7745 = vmatpush.msra.mxu0 %v7305
        %7746 = vmatpush.msra.mxu0 %v7303
        %7747 = vmatpush.msra.mxu0 %v7301
        %7748 = vmatpush.msra.mxu0 %v7299
        %7749 = vmatpush.msra.mxu0 %v7297
        %7750 = vmatpush.msra.mxu0 %v7295
        %7751 = vmatpush.msra.mxu0 %v7293
        %7752 = vmatpush.msra.mxu0 %v7291
        %7753 = vmatpush.msra.mxu0 %v7289
        %7754 = vmatpush.msra.mxu0 %v7287
        %7755 = vmatpush.msra.mxu0 %v7285
        %7756 = vmatpush.msra.mxu0 %v7283
        %7757 = vmatpush.msra.mxu0 %v7281
        %7758 = vmatpush.msra.mxu0 %v7279
        %7759 = vmatpush.msra.mxu0 %v7277
        %7760 = vmatmul.f32.gmra.mxu0 %v7454
        %v7761 = vpop.f32.mrf.mxu0
        %v7762 = vadd.f32 %v7739, %v7761
        %7763 = vmatmul.f32.gmra.mxu0 %v7470
        %v7764 = vpop.f32.mrf.mxu0
        %v7765 = vadd.f32 %v7742, %v7764
        %7766 = vdwg.mxu0
        %7767 = vmatpush.msra.mxu0 %v7339
        %7768 = vmatpush.msra.mxu0 %v7337
        %7769 = vmatpush.msra.mxu0 %v7335
        %7770 = vmatpush.msra.mxu0 %v7333
        %7771 = vmatpush.msra.mxu0 %v7331
        %7772 = vmatpush.msra.mxu0 %v7329
        %7773 = vmatpush.msra.mxu0 %v7327
        %7774 = vmatpush.msra.mxu0 %v7325
        %7775 = vmatpush.msra.mxu0 %v7323
        %7776 = vmatpush.msra.mxu0 %v7321
        %7777 = vmatpush.msra.mxu0 %v7319
        %7778 = vmatpush.msra.mxu0 %v7317
        %7779 = vmatpush.msra.mxu0 %v7315
        %7780 = vmatpush.msra.mxu0 %v7313
        %7781 = vmatpush.msra.mxu0 %v7311
        %7782 = vmatpush.msra.mxu0 %v7309
        %7783 = vmatmul.f32.gmra.mxu0 %v7455
        %v7784 = vpop.f32.mrf.mxu0
        %v7785 = vadd.f32 %v7762, %v7784
        %7786 = vmatmul.f32.gmra.mxu0 %v7471
        %v7787 = vpop.f32.mrf.mxu0
        %v7788 = vadd.f32 %v7765, %v7787
        %7789 = vdwg.mxu0
        %7790 = vmatpush.msra.mxu0 %v7371
        %7791 = vmatpush.msra.mxu0 %v7369
        %7792 = vmatpush.msra.mxu0 %v7367
        %7793 = vmatpush.msra.mxu0 %v7365
        %7794 = vmatpush.msra.mxu0 %v7363
        %7795 = vmatpush.msra.mxu0 %v7361
        %7796 = vmatpush.msra.mxu0 %v7359
        %7797 = vmatpush.msra.mxu0 %v7357
        %7798 = vmatpush.msra.mxu0 %v7355
        %7799 = vmatpush.msra.mxu0 %v7353
        %7800 = vmatpush.msra.mxu0 %v7351
        %7801 = vmatpush.msra.mxu0 %v7349
        %7802 = vmatpush.msra.mxu0 %v7347
        %7803 = vmatpush.msra.mxu0 %v7345
        %7804 = vmatpush.msra.mxu0 %v7343
        %7805 = vmatpush.msra.mxu0 %v7341
        %7806 = vmatmul.f32.gmra.mxu0 %v7456
        %v7807 = vpop.f32.mrf.mxu0
        %v7808 = vadd.f32 %v7785, %v7807
        %7809 = vmatmul.f32.gmra.mxu0 %v7472
        %v7810 = vpop.f32.mrf.mxu0
        %v7811 = vadd.f32 %v7788, %v7810
        %7812 = vdwg.mxu0
        %7813 = vmatpush.msra.mxu0 %v7403
        %7814 = vmatpush.msra.mxu0 %v7401
        %7815 = vmatpush.msra.mxu0 %v7399
        %7816 = vmatpush.msra.mxu0 %v7397
        %7817 = vmatpush.msra.mxu0 %v7395
        %7818 = vmatpush.msra.mxu0 %v7393
        %7819 = vmatpush.msra.mxu0 %v7391
        %7820 = vmatpush.msra.mxu0 %v7389
        %7821 = vmatpush.msra.mxu0 %v7387
        %7822 = vmatpush.msra.mxu0 %v7385
        %7823 = vmatpush.msra.mxu0 %v7383
        %7824 = vmatpush.msra.mxu0 %v7381
        %7825 = vmatpush.msra.mxu0 %v7379
        %7826 = vmatpush.msra.mxu0 %v7377
        %7827 = vmatpush.msra.mxu0 %v7375
        %7828 = vmatpush.msra.mxu0 %v7373
        %7829 = vmatmul.f32.gmra.mxu0 %v7457
        %v7830 = vpop.f32.mrf.mxu0
        %v7831 = vadd.f32 %v7808, %v7830
        %7832 = vmatmul.f32.gmra.mxu0 %v7473
        %v7833 = vpop.f32.mrf.mxu0
        %v7834 = vadd.f32 %v7811, %v7833
        %7835 = vdwg.mxu0
        %7836 = vmatpush.msra.mxu0 %v7435
        %7837 = vmatpush.msra.mxu0 %v7433
        %7838 = vmatpush.msra.mxu0 %v7431
        %7839 = vmatpush.msra.mxu0 %v7429
        %7840 = vmatpush.msra.mxu0 %v7427
        %7841 = vmatpush.msra.mxu0 %v7425
        %7842 = vmatpush.msra.mxu0 %v7423
        %7843 = vmatpush.msra.mxu0 %v7421
        %7844 = vmatpush.msra.mxu0 %v7419
        %7845 = vmatpush.msra.mxu0 %v7417
        %7846 = vmatpush.msra.mxu0 %v7415
        %7847 = vmatpush.msra.mxu0 %v7413
        %7848 = vmatpush.msra.mxu0 %v7411
        %7849 = vmatpush.msra.mxu0 %v7409
        %7850 = vmatpush.msra.mxu0 %v7407
        %7851 = vmatpush.msra.mxu0 %v7405
        %7852 = vmatmul.f32.gmra.mxu0 %v7458
        %v7853 = vpop.f32.mrf.mxu0
        %v7854 = vadd.f32 %v7831, %v7853
        %7855 = vmatmul.f32.gmra.mxu0 %v7474
        %v7856 = vpop.f32.mrf.mxu0
        %v7857 = vadd.f32 %v7834, %v7856
        %7858 = vdwg.mxu0
        %v7859 = vadd.f32 %v6983, %v7670
        %v7860 = vadd.f32 %v6984, %v7854
        %v7861 = vadd.f32 %v6985, %v7673
        %v7862 = vadd.f32 %v6986, %v7857
        %v7863 = vld [vmem:[%s225] sm:$0x3]
        %v7865 = vperm.slane %v7863, 0
        %v7866 = vperm.slane %v7863, 1
        %v7869 = vadd.f32 %v7859, %v7865
        %v7870 = vadd.f32 %v7860, %v7866
        %v7871 = vadd.f32 %v7861, %v7865
        %v7872 = vadd.f32 %v7862, %v7866
        %v7873 = vmax.f32 %v7869, 0.0
        %v7874 = vmax.f32 %v7870, 0.0
        %v7875 = vmax.f32 %v7871, 0.0
        %v7876 = vmax.f32 %v7872, 0.0
        %v7881 = vrot.slane %v7874, 4
        %v7882 = vrot.slane %v7876, 4
        %v7883 = vsel %vm347, %v7873, %v7881
        %v7884 = vsel %vm347, %v7881, %v7873
        %v7885 = vrot.slane %v7884, 4
        %v7886 = vsel %vm347, %v7875, %v7882
        %v7887 = vsel %vm347, %v7882, %v7875
        %v7888 = vrot.slane %v7887, 4
        %7893 = vst [vmem:[%s258] sm:$0xff] %v7883
        %7894 = vst [vmem:[%s258 + $0x8] sm:$0xff] %v7885
        %7895 = vst [vmem:[%s258 + $0x10] sm:$0xff] %v7886
        %7896 = vst [vmem:[%s258 + $0x18] sm:$0xff] %v7888
        %s7897 = sand.u32 %s123, 1
        %s7898 = scalar_lea.sflag [#allocation4], %s7897
        %s7899 = sand.u32 %s123, 1
        %s7900 = smul.addr %s7899, 32
        %s7901 = scalar_lea.vmem [#allocation7], %s7900
        // Predicated region
        $region41: #{tpu_custom_call.1} parent=31 // pred_check
          %p7902 = pneg %p133
        $region42: #{tpu_custom_call.1} parent=31 // pred_check_branch
          %7904 = sbr.rel (%p7902) target = $region44
        $region43: #{tpu_custom_call.1} parent=31 // pred_region
          %s7905 = smul.u32 2, %s27
          %7907 = vsyncadd %s7898, 0
          %s7908 = smul.addr %s28, 32
          %s7909 = sadd.s32 %s7905, %s7908
          %s7910 = smul.addr %s7909, 4
          %s7911 = scalar_lea.hbm %s3, %s7910
          %s7912 = sshll.u32 %s7901, 4
          %s7913 = int_to_ptr.vmem [resolvable:$true] %s7912
          %s7914 = sshll.u32 %s7911, 4
          %s7915 = int_to_ptr.hbm [resolvable:$true] %s7914
          %7920 = dma.vmem_to_hbm [thread:$0]  %s7913, 512, %s7915, %s7898, 128, 512, 8
        $region44: #{tpu_custom_call.1} parent=31 // pred_fallthru
          _
      $region32: #{tpu_custom_call.1} parent=5 // pred_fallthru
        _
      %p7921 = scmp.le.s32.totalorder 2, %s18
      // Predicated region
      $region45: #{tpu_custom_call.1} parent=5 // pred_check
        %p7922 = pneg %p7921
      $region46: #{tpu_custom_call.1} parent=5 // pred_check_branch
        %7924 = sbr.rel (%p7922) target = $region48
      $region47: #{tpu_custom_call.1} parent=5 // pred_region
        %s7925 = ssub.s32 %s18, 2
        // Predicated region
        $region49: #{tpu_custom_call.1} parent=47 // pred_check
          %p7926 = pneg %p139
        $region50: #{tpu_custom_call.1} parent=47 // pred_check_branch
          %7928 = sbr.rel (%p7926) target = $region52
        $region51: #{tpu_custom_call.1} parent=47 // pred_region
          %s7929 = sand.u32 %s124, 1
          %s7930 = scalar_lea.sflag [#allocation4], %s7929
          %s7931 = sand.u32 %s124, 1
          %s7932 = smul.addr %s7931, 32
          %s7933 = scalar_lea.vmem [#allocation7], %s7932
          %7935 = dma.done %s7930, 512
        $region52: #{tpu_custom_call.1} parent=47 // pred_fallthru
          _
      $region48: #{tpu_custom_call.1} parent=5 // pred_fallthru
        _
    $region6: #{tpu_custom_call.1} parent=1 // loop_footer
      %s22 = sadd.s32 1, %s18
    $region7: #{tpu_custom_call.1} parent=1 // loop_footer_branch
      %17 = sbr.rel target = $region3
    $region8: #{tpu_custom_call.1} parent=1 // loop_exit
      _
    %7936 = vsyncpa [#allocation3], 1
    %s7937 = scalar_lea.sflag [#allocation3], 1
    %7938 = vsyncpa %s7937, 1
    %7939 = vsyncpa [#allocation6], 1
    %s7940 = scalar_lea.sflag [#allocation6], 1
    %7941 = vsyncpa %s7940, 1
    %7942 = vsyncpa [#allocation4], 1
    %s7943 = scalar_lea.sflag [#allocation4], 1
    %7944 = vsyncpa %s7943, 1

</llo_original>
